<compile_context>
chip_gen: v6e
topology: v6e:2x2x1
jax: 0.10.0
libtpu: 0.0.40
codegen_flags: <defaults>
</compile_context>

<pallas_src>
import functools

import numpy as np
import jax
import jax.numpy as jnp
from jax import lax
from jax.experimental import pallas as pl
from jax.experimental.pallas import tpu as pltpu

# Model hyper-parameters (from the PyTorch module).
D = 4        # input_size / d_model
H = 4        # num_heads
DH = D // H  # head_dim == 1
F = 64       # hidden_size / dim_feedforward
L = 2        # num_encoder_layers == num_decoder_layers
OUT = 4      # output_size
EPS = 1e-5   # LayerNorm eps (PyTorch default)
SLAB_W = 64  # lane width of the packed parameter slab

assert DH == 1, "attention below exploits head_dim == 1 (scores are outer products)"


# --------------------------- packed parameter layout --------------------------
def make_layout(B):
    """Row offsets of every parameter block in the single (R, SLAB_W) slab.

    Attention projection weights are stored in "sb layout": block-diagonal over
    the batch (so one FMA-linear on a (S, B*D) activation produces all batches)
    with output columns grouped [q | k | v].  Weight blocks start on 8-row
    boundaries; 1-row bias/LayerNorm vectors are packed densely afterwards.
    """
    assert 3 * B * D <= SLAB_W and F <= SLAB_W
    G = B * D
    lay = {}
    r = 0

    def add(name, nrows, align=False):
        nonlocal r
        if align:
            r = -(-r // 8) * 8
        lay[name] = r
        r += nrows

    for i in range(3 * L):                       # enc0, enc1, dec_sa0, dec_sa1, dec_ca0, dec_ca1
        add(f"qkv_sb_w_{i}", G, align=True)      # (G, 3G)
    for i in range(3 * L):
        add(f"out_sb_w_{i}", G, align=True)      # (G, G)
    add("fc_wT", D, align=True)                  # (D, OUT)
    for i in range(2 * L):                       # enc0, enc1, dec0, dec1
        add(f"ff1_wT_{i}", D, align=True)        # (D, F)
    for i in range(2 * L):
        add(f"ff2_w_{i}", D, align=True)         # (D, F)
    for l in range(L):
        for nm in ("qkv_b", "out_b", "ff1_b", "ff2_b",
                   "ln1_w", "ln1_b", "ln2_w", "ln2_b"):
            add(f"enc{l}_{nm}", 1)
    add("enc_fn_w", 1)
    add("enc_fn_b", 1)
    for l in range(L):
        for nm in ("sa_qkv_b", "sa_out_b", "ca_qkv_b", "ca_out_b", "ff1_b", "ff2_b",
                   "ln1_w", "ln1_b", "ln2_w", "ln2_b", "ln3_w", "ln3_b"):
            add(f"dec{l}_{nm}", 1)
    add("dec_fn_w", 1)
    add("dec_fn_b", 1)
    add("fc_b", 1)
    return lay, -(-r // 8) * 8


# ----------------------------------- kernel -----------------------------------
def _transformer_kernel(x_ref, p_ref, out_ref, *, S, B):
    """x_ref: (S*B, D) activations, rows ordered s*B+b (native seq-major order).
    p_ref: (R, SLAB_W) packed parameters.  out_ref: (S*B, D+OUT) lane-packed
    [ transformer(src, src) | fc(src) ]."""
    lay, _ = make_layout(B)
    G = B * D
    N = S * B

    def wrow(name, nrows, ncols):
        r0 = lay[name]
        return p_ref[r0:r0 + nrows, 0:ncols]

    def fma(x, wT, b):
        # Tiny-K linear on the VPU: x (R, K) @ wT (K, M) + b (1, M).
        acc = x[:, 0:1] * wT[0:1, :] + b
        for d in range(1, wT.shape[0]):
            acc = acc + x[:, d:d + 1] * wT[d:d + 1, :]
        return acc

    def mxu_T(x, wT):    # x (R, K) @ wT (K, M)
        return lax.dot_general(x, wT, (((1,), (0,)), ((), ())),
                               preferred_element_type=jnp.float32)

    def mxu_wt(x, w):    # x (R, K) @ w (M, K)^T
        return lax.dot_general(x, w, (((1,), (1,)), ((), ())),
                               preferred_element_type=jnp.float32)

    def layernorm(x, w, b):
        mu = jnp.mean(x, axis=-1, keepdims=True)
        xc = x - mu
        var = jnp.mean(xc * xc, axis=-1, keepdims=True)
        return xc * lax.rsqrt(var + EPS) * w + b

    def to_sb(x2_):
        # (S*B, D) -> (S, B*D), col = b*D + d  (last-dim-preserving reshape + slices)
        x3 = x2_.reshape(S, B, D)
        return jnp.concatenate([x3[:, b, :] for b in range(B)], axis=1)

    def from_sb(x_sb):
        # (S, B*D) -> (S*B, D)
        parts = [x_sb[:, b * D:(b + 1) * D][:, None, :] for b in range(B)]
        return jnp.concatenate(parts, axis=1).reshape(N, D)

    def mha(xq_sb, xkv_sb, idx, b_qkv_name, b_out_name, fused):
        """PyTorch nn.MultiheadAttention (packed in_proj, no mask, eval mode).

        Inputs in sb layout (S, B*D).  With head_dim == 1 the heads map to
        lanes; scores live in one (S, S*B*H) tile with the softmax axis on
        sublanes.  Output stays in sb layout."""
        w_qkv = wrow(f"qkv_sb_w_{idx}", G, 3 * G)
        b_qkv = wrow(b_qkv_name, 1, 3 * G)
        w_out = wrow(f"out_sb_w_{idx}", G, G)
        b_out = wrow(b_out_name, 1, G)
        if fused:                                    # self-attention: one FMA linear
            qkv = fma(xq_sb, w_qkv, b_qkv)           # (S, 3G)
            q_r, k_r, v_r = qkv[:, 0:G], qkv[:, G:2 * G], qkv[:, 2 * G:3 * G]
        else:                                        # cross-attention: Q + fused KV
            q_r = fma(xq_sb, w_qkv[:, 0:G], b_qkv[:, 0:G])
            kv = fma(xkv_sb, w_qkv[:, G:3 * G], b_qkv[:, G:3 * G])   # (S, 2G)
            k_r, v_r = kv[:, 0:G], kv[:, G:2 * G]

        # head_dim == 1 -> softmax scale 1/sqrt(head_dim) == 1 (omitted).
        k_t = jnp.concatenate([k_r] * S, axis=1)                         # (S, S*G)
        v_t = jnp.concatenate([v_r] * S, axis=1)                         # (S, S*G)
        q_flat = jnp.concatenate([q_r[s:s + 1, :] for s in range(S)], axis=1)  # (1, S*G)

        sc = jnp.broadcast_to(q_flat, (S, S * G)) * k_t                  # scores[t, (s,b,h)]
        sc = sc - jnp.max(sc, axis=0, keepdims=True)
        e = jnp.exp(sc)
        prob = e * pl.reciprocal(jnp.sum(e, axis=0, keepdims=True), approx=True)
        o_flat = jnp.sum(prob * v_t, axis=0, keepdims=True)              # (1, S*G)
        o_sb = jnp.concatenate([o_flat[:, s * G:(s + 1) * G] for s in range(S)],
                               axis=0)                                   # (S, G)
        return fma(o_sb, w_out, b_out)                                   # (S, G)

    def ffn(x, idx, b1_name, b2_name):
        w1 = wrow(f"ff1_wT_{idx}", D, F)       # (D, F) == W1.T
        b1 = wrow(b1_name, 1, F)
        w2 = wrow(f"ff2_w_{idx}", D, F)        # (D, F) == W2
        b2 = wrow(b2_name, 1, D)
        h = jnp.maximum(mxu_T(x, w1) + b1, 0.0)
        return mxu_wt(h, w2) + b2

    x2 = x_ref[...]                            # (N, D)

    # ------------------ encoder: L post-norm layers + final LayerNorm --------
    h2 = x2
    for l in range(L):
        h_sb = to_sb(h2)
        sa = from_sb(mha(h_sb, h_sb, l, f"enc{l}_qkv_b", f"enc{l}_out_b", True))
        h2 = layernorm(h2 + sa, wrow(f"enc{l}_ln1_w", 1, D), wrow(f"enc{l}_ln1_b", 1, D))
        ff = ffn(h2, l, f"enc{l}_ff1_b", f"enc{l}_ff2_b")
        h2 = layernorm(h2 + ff, wrow(f"enc{l}_ln2_w", 1, D), wrow(f"enc{l}_ln2_b", 1, D))
    mem2 = layernorm(h2, wrow("enc_fn_w", 1, D), wrow("enc_fn_b", 1, D))
    mem_sb = to_sb(mem2)                       # hoisted: reused by both decoder layers

    # ------------------ decoder (tgt == src in the original forward) ---------
    y2 = x2
    for l in range(L):
        y_sb = to_sb(y2)
        sa = from_sb(mha(y_sb, y_sb, 2 + l, f"dec{l}_sa_qkv_b", f"dec{l}_sa_out_b", True))
        y2 = layernorm(y2 + sa, wrow(f"dec{l}_ln1_w", 1, D), wrow(f"dec{l}_ln1_b", 1, D))
        y_sb = to_sb(y2)
        ca = from_sb(mha(y_sb, mem_sb, 4 + l, f"dec{l}_ca_qkv_b", f"dec{l}_ca_out_b", False))
        y2 = layernorm(y2 + ca, wrow(f"dec{l}_ln2_w", 1, D), wrow(f"dec{l}_ln2_b", 1, D))
        ff = ffn(y2, 2 + l, f"dec{l}_ff1_b", f"dec{l}_ff2_b")
        y2 = layernorm(y2 + ff, wrow(f"dec{l}_ln3_w", 1, D), wrow(f"dec{l}_ln3_b", 1, D))
    y2 = layernorm(y2, wrow("dec_fn_w", 1, D), wrow("dec_fn_b", 1, D))

    # TODO(synk): original forward does `fc_layer(src, tgt)` — nn.Linear takes a
    # single input, so that call is a TypeError in PyTorch.  Closest runnable
    # semantics: fc_layer(src) with a fresh Linear(4, 4); tgt is unused.
    fc2 = fma(x2, wrow("fc_wT", D, OUT), wrow("fc_b", 1, OUT))           # (N, OUT)

    out_ref[...] = jnp.concatenate([y2, fc2], axis=1)                    # (N, D+OUT)


# ----------------------------------- wrapper ----------------------------------
@jax.jit
def transformer_model_forward(src, tgt, params_slab):
    """Returns (module_output, transformer_output); module_output = fc(src).

    src / tgt: (S, B, D) float32 (PyTorch batch_first=False).  No transposes:
    the wrapper only does free contiguous reshapes / slices around the kernel.
    """
    del tgt  # unused — see TODO(synk) in the kernel
    S, B, _ = src.shape
    x2 = src.astype(jnp.float32).reshape(S * B, D)        # free reshape (contiguous)

    kernel = functools.partial(_transformer_kernel, S=S, B=B)
    out = pl.pallas_call(
        kernel,
        out_shape=jax.ShapeDtypeStruct((S * B, D + OUT), jnp.float32),
        in_specs=[pl.BlockSpec(memory_space=pltpu.MemorySpace.VMEM),
                  pl.BlockSpec(memory_space=pltpu.MemorySpace.VMEM)],
        out_specs=pl.BlockSpec(memory_space=pltpu.MemorySpace.VMEM),
    )(x2, params_slab)

    tr_out = out[:, 0:D].reshape(S, B, D)
    fc_out = out[:, D:D + OUT].reshape(S, B, OUT)
    return fc_out, tr_out


# ------------------------- parameter init & packing ---------------------------
def init_params(key):
    keys = iter(jax.random.split(key, 40))

    def xavier(shape):
        fan_in, fan_out = shape[-1], shape[-2]
        lim = (6.0 / (fan_in + fan_out)) ** 0.5      # nn.Transformer xavier_uniform_
        return jax.random.uniform(next(keys), shape, jnp.float32, -lim, lim)

    def bias(shape, fan_in):
        lim = 1.0 / (fan_in ** 0.5)                  # nn.Linear default bias init
        return jax.random.uniform(next(keys), shape, jnp.float32, -lim, lim)

    p = {
        # attention modules 0..5: enc0, enc1, dec_sa0, dec_sa1, dec_ca0, dec_ca1
        "attn_qkv_w": [xavier((3 * D, D)) for _ in range(3 * L)],
        "attn_qkv_b": [jnp.zeros((3 * D,), jnp.float32) for _ in range(3 * L)],
        "attn_out_w": [xavier((D, D)) for _ in range(3 * L)],
        "attn_out_b": [jnp.zeros((D,), jnp.float32) for _ in range(3 * L)],
        # feed-forward 0..3: enc0, enc1, dec0, dec1
        "ff1_w": [xavier((F, D)) for _ in range(2 * L)],
        "ff1_b": [bias((F,), D) for _ in range(2 * L)],
        "ff2_w": [xavier((D, F)) for _ in range(2 * L)],
        "ff2_b": [bias((D,), F) for _ in range(2 * L)],
        # the ad-hoc fc_layer = nn.Linear(4, 4) created inside forward()
        "fc_w": xavier((OUT, D)),
        "fc_b": bias((OUT,), D),
    }
    return p


def _expand_qkv_w(w_in, B):
    """(3D, D) in_proj weight -> (B*D, 3*B*D) batch-block-diagonal, cols [q|k|v]."""
    G = B * D
    w = np.asarray(w_in, np.float32)
    out = np.zeros((G, 3 * G), np.float32)
    for ob in range(3):
        for b in range(B):
            out[b * D:(b + 1) * D, ob * G + b * D: ob * G + (b + 1) * D] = \
                w[ob * D:(ob + 1) * D, :].T
    return out


def _expand_out_w(w_out, B):
    """(D, D) out_proj weight -> (B*D, B*D) batch-block-diagonal (transposed blocks)."""
    G = B * D
    w = np.asarray(w_out, np.float32)
    out = np.zeros((G, G), np.float32)
    for b in range(B):
        out[b * D:(b + 1) * D, b * D:(b + 1) * D] = w.T
    return out


def _expand_qkv_b(b_in, B):
    b_in = np.asarray(b_in, np.float32)
    return np.concatenate([np.tile(b_in[ob * D:(ob + 1) * D], B) for ob in range(3)])


def pack_params(p, B):
    """Pack all parameters into a single (R, 64) f32 slab (one DMA in the kernel)."""
    lay, nrows = make_layout(B)
    ones_d = np.ones((D,), np.float32)
    zeros_d = np.zeros((D,), np.float32)

    entries = []
    for i in range(3 * L):
        entries.append((f"qkv_sb_w_{i}", _expand_qkv_w(p["attn_qkv_w"][i], B)))
        entries.append((f"out_sb_w_{i}", _expand_out_w(p["attn_out_w"][i], B)))
    entries.append(("fc_wT", np.asarray(p["fc_w"], np.float32).T))
    for i in range(2 * L):
        entries.append((f"ff1_wT_{i}", np.asarray(p["ff1_w"][i], np.float32).T))
        entries.append((f"ff2_w_{i}", np.asarray(p["ff2_w"][i], np.float32)))

    for l in range(L):
        entries += [
            (f"enc{l}_qkv_b", _expand_qkv_b(p["attn_qkv_b"][l], B)),
            (f"enc{l}_out_b", np.tile(np.asarray(p["attn_out_b"][l], np.float32), B)),
            (f"enc{l}_ff1_b", np.asarray(p["ff1_b"][l], np.float32)),
            (f"enc{l}_ff2_b", np.asarray(p["ff2_b"][l], np.float32)),
            (f"enc{l}_ln1_w", ones_d), (f"enc{l}_ln1_b", zeros_d),
            (f"enc{l}_ln2_w", ones_d), (f"enc{l}_ln2_b", zeros_d),
        ]
    entries += [("enc_fn_w", ones_d), ("enc_fn_b", zeros_d)]
    for l in range(L):
        sa, ca, ff = 2 + l, 4 + l, 2 + l
        entries += [
            (f"dec{l}_sa_qkv_b", _expand_qkv_b(p["attn_qkv_b"][sa], B)),
            (f"dec{l}_sa_out_b", np.tile(np.asarray(p["attn_out_b"][sa], np.float32), B)),
            (f"dec{l}_ca_qkv_b", _expand_qkv_b(p["attn_qkv_b"][ca], B)),
            (f"dec{l}_ca_out_b", np.tile(np.asarray(p["attn_out_b"][ca], np.float32), B)),
            (f"dec{l}_ff1_b", np.asarray(p["ff1_b"][ff], np.float32)),
            (f"dec{l}_ff2_b", np.asarray(p["ff2_b"][ff], np.float32)),
            (f"dec{l}_ln1_w", ones_d), (f"dec{l}_ln1_b", zeros_d),
            (f"dec{l}_ln2_w", ones_d), (f"dec{l}_ln2_b", zeros_d),
            (f"dec{l}_ln3_w", ones_d), (f"dec{l}_ln3_b", zeros_d),
        ]
    entries += [("dec_fn_w", ones_d), ("dec_fn_b", zeros_d),
                ("fc_b", np.asarray(p["fc_b"], np.float32))]

    slab = np.zeros((nrows, SLAB_W), np.float32)
    for name, mat in entries:
        mat = np.asarray(mat, np.float32)
        if mat.ndim == 1:
            mat = mat[None, :]
        r0 = lay[name]
        slab[r0:r0 + mat.shape[0], 0:mat.shape[1]] = mat
    return jnp.asarray(slab)


if __name__ == "__main__":
    key = jax.random.PRNGKey(0)
    kp, ks, kt = jax.random.split(key, 3)

    S, B = 8, 2                                   # small seq / batch
    params_slab = pack_params(init_params(kp), B)

    src = jax.random.normal(ks, (S, B, D), jnp.float32)
    tgt = jax.random.normal(kt, (S, B, D), jnp.float32)

    out, tr_out = transformer_model_forward(src, tgt, params_slab)
    jax.block_until_ready((out, tr_out))

    assert out.shape == (S, B, OUT), out.shape
    assert tr_out.shape == (S, B, D), tr_out.shape
    assert bool(jnp.all(jnp.isfinite(out))) and bool(jnp.all(jnp.isfinite(tr_out)))
    print("KERNEL_OK")
</pallas_src>

<mosaic_0001>
module attributes {stable_mosaic.version = 11 : i64} {
  func.func @_transformer_kernel(%arg0: memref<16x4xf32, #tpu.memory_space<vmem>>, %arg1: memref<216x64xf32, #tpu.memory_space<vmem>>, %arg2: memref<16x8xf32, #tpu.memory_space<vmem>>) attributes {dimension_semantics = [], scalar_prefetch = 0 : i64, scratch_operands = 0 : i64, tpu.core_type = #tpu.core_type<tc>} {
    %c0 = arith.constant 0 : index
    %c0_0 = arith.constant 0 : index
    %0 = vector.load %arg0[%c0, %c0_0] : memref<16x4xf32, #tpu.memory_space<vmem>>, vector<16x4xf32>
    %1 = vector.shape_cast %0 : vector<16x4xf32> to vector<8x2x4xf32>
    %2 = vector.extract_strided_slice %1 {offsets = [0, 0, 0], sizes = [8, 1, 4], strides = [1, 1, 1]} : vector<8x2x4xf32> to vector<8x1x4xf32>
    %3 = vector.shape_cast %2 : vector<8x1x4xf32> to vector<8x4xf32>
    %4 = vector.extract_strided_slice %1 {offsets = [0, 1, 0], sizes = [8, 1, 4], strides = [1, 1, 1]} : vector<8x2x4xf32> to vector<8x1x4xf32>
    %5 = vector.shape_cast %4 : vector<8x1x4xf32> to vector<8x4xf32>
    %6 = tpu.concatenate %3, %5 in 1 : vector<8x4xf32>, vector<8x4xf32> -> vector<8x8xf32>
    %c0_1 = arith.constant 0 : index
    %c0_2 = arith.constant 0 : index
    %7 = vector.load %arg1[%c0_1, %c0_2] : memref<216x64xf32, #tpu.memory_space<vmem>>, vector<8x24xf32>
    %c164 = arith.constant 164 : index
    %c0_3 = arith.constant 0 : index
    %8 = vector.load %arg1[%c164, %c0_3] : memref<216x64xf32, #tpu.memory_space<vmem>>, vector<1x24xf32>
    %c48 = arith.constant 48 : index
    %c0_4 = arith.constant 0 : index
    %9 = vector.load %arg1[%c48, %c0_4] : memref<216x64xf32, #tpu.memory_space<vmem>>, vector<8x8xf32>
    %c165 = arith.constant 165 : index
    %c0_5 = arith.constant 0 : index
    %10 = vector.load %arg1[%c165, %c0_5] : memref<216x64xf32, #tpu.memory_space<vmem>>, vector<1x8xf32>
    %11 = vector.extract_strided_slice %6 {offsets = [0, 0], sizes = [8, 1], strides = [1, 1]} : vector<8x8xf32> to vector<8x1xf32>
    %12 = vector.extract_strided_slice %7 {offsets = [0, 0], sizes = [1, 24], strides = [1, 1]} : vector<8x24xf32> to vector<1x24xf32>
    %13 = vector.broadcast %11 : vector<8x1xf32> to vector<8x24xf32>
    %14 = vector.broadcast %12 : vector<1x24xf32> to vector<8x24xf32>
    %15 = arith.mulf %13, %14 : vector<8x24xf32>
    %16 = vector.broadcast %8 : vector<1x24xf32> to vector<8x24xf32>
    %17 = arith.addf %15, %16 : vector<8x24xf32>
    %18 = vector.extract_strided_slice %6 {offsets = [0, 1], sizes = [8, 1], strides = [1, 1]} : vector<8x8xf32> to vector<8x1xf32>
    %19 = vector.extract_strided_slice %7 {offsets = [1, 0], sizes = [1, 24], strides = [1, 1]} : vector<8x24xf32> to vector<1x24xf32>
    %20 = vector.broadcast %18 : vector<8x1xf32> to vector<8x24xf32>
    %21 = vector.broadcast %19 : vector<1x24xf32> to vector<8x24xf32>
    %22 = arith.mulf %20, %21 : vector<8x24xf32>
    %23 = arith.addf %17, %22 : vector<8x24xf32>
    %24 = vector.extract_strided_slice %6 {offsets = [0, 2], sizes = [8, 1], strides = [1, 1]} : vector<8x8xf32> to vector<8x1xf32>
    %25 = vector.extract_strided_slice %7 {offsets = [2, 0], sizes = [1, 24], strides = [1, 1]} : vector<8x24xf32> to vector<1x24xf32>
    %26 = vector.broadcast %24 : vector<8x1xf32> to vector<8x24xf32>
    %27 = vector.broadcast %25 : vector<1x24xf32> to vector<8x24xf32>
    %28 = arith.mulf %26, %27 : vector<8x24xf32>
    %29 = arith.addf %23, %28 : vector<8x24xf32>
    %30 = vector.extract_strided_slice %6 {offsets = [0, 3], sizes = [8, 1], strides = [1, 1]} : vector<8x8xf32> to vector<8x1xf32>
    %31 = vector.extract_strided_slice %7 {offsets = [3, 0], sizes = [1, 24], strides = [1, 1]} : vector<8x24xf32> to vector<1x24xf32>
    %32 = vector.broadcast %30 : vector<8x1xf32> to vector<8x24xf32>
    %33 = vector.broadcast %31 : vector<1x24xf32> to vector<8x24xf32>
    %34 = arith.mulf %32, %33 : vector<8x24xf32>
    %35 = arith.addf %29, %34 : vector<8x24xf32>
    %36 = vector.extract_strided_slice %6 {offsets = [0, 4], sizes = [8, 1], strides = [1, 1]} : vector<8x8xf32> to vector<8x1xf32>
    %37 = vector.extract_strided_slice %7 {offsets = [4, 0], sizes = [1, 24], strides = [1, 1]} : vector<8x24xf32> to vector<1x24xf32>
    %38 = vector.broadcast %36 : vector<8x1xf32> to vector<8x24xf32>
    %39 = vector.broadcast %37 : vector<1x24xf32> to vector<8x24xf32>
    %40 = arith.mulf %38, %39 : vector<8x24xf32>
    %41 = arith.addf %35, %40 : vector<8x24xf32>
    %42 = vector.extract_strided_slice %6 {offsets = [0, 5], sizes = [8, 1], strides = [1, 1]} : vector<8x8xf32> to vector<8x1xf32>
    %43 = vector.extract_strided_slice %7 {offsets = [5, 0], sizes = [1, 24], strides = [1, 1]} : vector<8x24xf32> to vector<1x24xf32>
    %44 = vector.broadcast %42 : vector<8x1xf32> to vector<8x24xf32>
    %45 = vector.broadcast %43 : vector<1x24xf32> to vector<8x24xf32>
    %46 = arith.mulf %44, %45 : vector<8x24xf32>
    %47 = arith.addf %41, %46 : vector<8x24xf32>
    %48 = vector.extract_strided_slice %6 {offsets = [0, 6], sizes = [8, 1], strides = [1, 1]} : vector<8x8xf32> to vector<8x1xf32>
    %49 = vector.extract_strided_slice %7 {offsets = [6, 0], sizes = [1, 24], strides = [1, 1]} : vector<8x24xf32> to vector<1x24xf32>
    %50 = vector.broadcast %48 : vector<8x1xf32> to vector<8x24xf32>
    %51 = vector.broadcast %49 : vector<1x24xf32> to vector<8x24xf32>
    %52 = arith.mulf %50, %51 : vector<8x24xf32>
    %53 = arith.addf %47, %52 : vector<8x24xf32>
    %54 = vector.extract_strided_slice %6 {offsets = [0, 7], sizes = [8, 1], strides = [1, 1]} : vector<8x8xf32> to vector<8x1xf32>
    %55 = vector.extract_strided_slice %7 {offsets = [7, 0], sizes = [1, 24], strides = [1, 1]} : vector<8x24xf32> to vector<1x24xf32>
    %56 = vector.broadcast %54 : vector<8x1xf32> to vector<8x24xf32>
    %57 = vector.broadcast %55 : vector<1x24xf32> to vector<8x24xf32>
    %58 = arith.mulf %56, %57 : vector<8x24xf32>
    %59 = arith.addf %53, %58 : vector<8x24xf32>
    %60 = vector.extract_strided_slice %59 {offsets = [0, 0], sizes = [8, 8], strides = [1, 1]} : vector<8x24xf32> to vector<8x8xf32>
    %61 = vector.extract_strided_slice %59 {offsets = [0, 8], sizes = [8, 8], strides = [1, 1]} : vector<8x24xf32> to vector<8x8xf32>
    %62 = vector.extract_strided_slice %59 {offsets = [0, 16], sizes = [8, 8], strides = [1, 1]} : vector<8x24xf32> to vector<8x8xf32>
    %63 = tpu.concatenate %61, %61, %61, %61, %61, %61, %61, %61 in 1 : vector<8x8xf32>, vector<8x8xf32>, vector<8x8xf32>, vector<8x8xf32>, vector<8x8xf32>, vector<8x8xf32>, vector<8x8xf32>, vector<8x8xf32> -> vector<8x64xf32>
    %64 = tpu.concatenate %62, %62, %62, %62, %62, %62, %62, %62 in 1 : vector<8x8xf32>, vector<8x8xf32>, vector<8x8xf32>, vector<8x8xf32>, vector<8x8xf32>, vector<8x8xf32>, vector<8x8xf32>, vector<8x8xf32> -> vector<8x64xf32>
    %65 = vector.extract_strided_slice %60 {offsets = [0, 0], sizes = [1, 8], strides = [1, 1]} : vector<8x8xf32> to vector<1x8xf32>
    %66 = vector.extract_strided_slice %60 {offsets = [1, 0], sizes = [1, 8], strides = [1, 1]} : vector<8x8xf32> to vector<1x8xf32>
    %67 = vector.extract_strided_slice %60 {offsets = [2, 0], sizes = [1, 8], strides = [1, 1]} : vector<8x8xf32> to vector<1x8xf32>
    %68 = vector.extract_strided_slice %60 {offsets = [3, 0], sizes = [1, 8], strides = [1, 1]} : vector<8x8xf32> to vector<1x8xf32>
    %69 = vector.extract_strided_slice %60 {offsets = [4, 0], sizes = [1, 8], strides = [1, 1]} : vector<8x8xf32> to vector<1x8xf32>
    %70 = vector.extract_strided_slice %60 {offsets = [5, 0], sizes = [1, 8], strides = [1, 1]} : vector<8x8xf32> to vector<1x8xf32>
    %71 = vector.extract_strided_slice %60 {offsets = [6, 0], sizes = [1, 8], strides = [1, 1]} : vector<8x8xf32> to vector<1x8xf32>
    %72 = vector.extract_strided_slice %60 {offsets = [7, 0], sizes = [1, 8], strides = [1, 1]} : vector<8x8xf32> to vector<1x8xf32>
    %73 = tpu.concatenate %65, %66, %67, %68, %69, %70, %71, %72 in 1 : vector<1x8xf32>, vector<1x8xf32>, vector<1x8xf32>, vector<1x8xf32>, vector<1x8xf32>, vector<1x8xf32>, vector<1x8xf32>, vector<1x8xf32> -> vector<1x64xf32>
    %74 = vector.shape_cast %73 : vector<1x64xf32> to vector<1x64xf32>
    %75 = vector.broadcast %74 : vector<1x64xf32> to vector<8x64xf32>
    %76 = arith.mulf %75, %63 : vector<8x64xf32>
    %cst = arith.constant dense<0xFF800000> : vector<64xf32>
    %77 = vector.multi_reduction <maximumf>, %76, %cst [0] : vector<8x64xf32> to vector<64xf32>
    %78 = vector.shape_cast %77 : vector<64xf32> to vector<1x64xf32>
    %79 = vector.broadcast %78 : vector<1x64xf32> to vector<8x64xf32>
    %80 = arith.subf %76, %79 : vector<8x64xf32>
    %81 = math.exp %80 : vector<8x64xf32>
    %cst_6 = arith.constant dense<0.000000e+00> : vector<64xf32>
    %82 = vector.multi_reduction <add>, %81, %cst_6 [0] : vector<8x64xf32> to vector<64xf32>
    %83 = vector.shape_cast %82 : vector<64xf32> to vector<1x64xf32>
    %84 = tpu.reciprocal %83 {approx = true} : vector<1x64xf32> -> vector<1x64xf32>
    %85 = vector.broadcast %84 : vector<1x64xf32> to vector<8x64xf32>
    %86 = arith.mulf %81, %85 : vector<8x64xf32>
    %87 = arith.mulf %86, %64 : vector<8x64xf32>
    %cst_7 = arith.constant dense<0.000000e+00> : vector<64xf32>
    %88 = vector.multi_reduction <add>, %87, %cst_7 [0] : vector<8x64xf32> to vector<64xf32>
    %89 = vector.shape_cast %88 : vector<64xf32> to vector<1x64xf32>
    %90 = vector.extract_strided_slice %89 {offsets = [0, 0], sizes = [1, 8], strides = [1, 1]} : vector<1x64xf32> to vector<1x8xf32>
    %91 = vector.extract_strided_slice %89 {offsets = [0, 8], sizes = [1, 8], strides = [1, 1]} : vector<1x64xf32> to vector<1x8xf32>
    %92 = vector.extract_strided_slice %89 {offsets = [0, 16], sizes = [1, 8], strides = [1, 1]} : vector<1x64xf32> to vector<1x8xf32>
    %93 = vector.extract_strided_slice %89 {offsets = [0, 24], sizes = [1, 8], strides = [1, 1]} : vector<1x64xf32> to vector<1x8xf32>
    %94 = vector.extract_strided_slice %89 {offsets = [0, 32], sizes = [1, 8], strides = [1, 1]} : vector<1x64xf32> to vector<1x8xf32>
    %95 = vector.extract_strided_slice %89 {offsets = [0, 40], sizes = [1, 8], strides = [1, 1]} : vector<1x64xf32> to vector<1x8xf32>
    %96 = vector.extract_strided_slice %89 {offsets = [0, 48], sizes = [1, 8], strides = [1, 1]} : vector<1x64xf32> to vector<1x8xf32>
    %97 = vector.extract_strided_slice %89 {offsets = [0, 56], sizes = [1, 8], strides = [1, 1]} : vector<1x64xf32> to vector<1x8xf32>
    %98 = tpu.concatenate %90, %91, %92, %93, %94, %95, %96, %97 in 0 : vector<1x8xf32>, vector<1x8xf32>, vector<1x8xf32>, vector<1x8xf32>, vector<1x8xf32>, vector<1x8xf32>, vector<1x8xf32>, vector<1x8xf32> -> vector<8x8xf32>
    %99 = vector.extract_strided_slice %98 {offsets = [0, 0], sizes = [8, 1], strides = [1, 1]} : vector<8x8xf32> to vector<8x1xf32>
    %100 = vector.extract_strided_slice %9 {offsets = [0, 0], sizes = [1, 8], strides = [1, 1]} : vector<8x8xf32> to vector<1x8xf32>
    %101 = vector.broadcast %99 : vector<8x1xf32> to vector<8x8xf32>
    %102 = vector.broadcast %100 : vector<1x8xf32> to vector<8x8xf32>
    %103 = arith.mulf %101, %102 : vector<8x8xf32>
    %104 = vector.broadcast %10 : vector<1x8xf32> to vector<8x8xf32>
    %105 = arith.addf %103, %104 : vector<8x8xf32>
    %106 = vector.extract_strided_slice %98 {offsets = [0, 1], sizes = [8, 1], strides = [1, 1]} : vector<8x8xf32> to vector<8x1xf32>
    %107 = vector.extract_strided_slice %9 {offsets = [1, 0], sizes = [1, 8], strides = [1, 1]} : vector<8x8xf32> to vector<1x8xf32>
    %108 = vector.broadcast %106 : vector<8x1xf32> to vector<8x8xf32>
    %109 = vector.broadcast %107 : vector<1x8xf32> to vector<8x8xf32>
    %110 = arith.mulf %108, %109 : vector<8x8xf32>
    %111 = arith.addf %105, %110 : vector<8x8xf32>
    %112 = vector.extract_strided_slice %98 {offsets = [0, 2], sizes = [8, 1], strides = [1, 1]} : vector<8x8xf32> to vector<8x1xf32>
    %113 = vector.extract_strided_slice %9 {offsets = [2, 0], sizes = [1, 8], strides = [1, 1]} : vector<8x8xf32> to vector<1x8xf32>
    %114 = vector.broadcast %112 : vector<8x1xf32> to vector<8x8xf32>
    %115 = vector.broadcast %113 : vector<1x8xf32> to vector<8x8xf32>
    %116 = arith.mulf %114, %115 : vector<8x8xf32>
    %117 = arith.addf %111, %116 : vector<8x8xf32>
    %118 = vector.extract_strided_slice %98 {offsets = [0, 3], sizes = [8, 1], strides = [1, 1]} : vector<8x8xf32> to vector<8x1xf32>
    %119 = vector.extract_strided_slice %9 {offsets = [3, 0], sizes = [1, 8], strides = [1, 1]} : vector<8x8xf32> to vector<1x8xf32>
    %120 = vector.broadcast %118 : vector<8x1xf32> to vector<8x8xf32>
    %121 = vector.broadcast %119 : vector<1x8xf32> to vector<8x8xf32>
    %122 = arith.mulf %120, %121 : vector<8x8xf32>
    %123 = arith.addf %117, %122 : vector<8x8xf32>
    %124 = vector.extract_strided_slice %98 {offsets = [0, 4], sizes = [8, 1], strides = [1, 1]} : vector<8x8xf32> to vector<8x1xf32>
    %125 = vector.extract_strided_slice %9 {offsets = [4, 0], sizes = [1, 8], strides = [1, 1]} : vector<8x8xf32> to vector<1x8xf32>
    %126 = vector.broadcast %124 : vector<8x1xf32> to vector<8x8xf32>
    %127 = vector.broadcast %125 : vector<1x8xf32> to vector<8x8xf32>
    %128 = arith.mulf %126, %127 : vector<8x8xf32>
    %129 = arith.addf %123, %128 : vector<8x8xf32>
    %130 = vector.extract_strided_slice %98 {offsets = [0, 5], sizes = [8, 1], strides = [1, 1]} : vector<8x8xf32> to vector<8x1xf32>
    %131 = vector.extract_strided_slice %9 {offsets = [5, 0], sizes = [1, 8], strides = [1, 1]} : vector<8x8xf32> to vector<1x8xf32>
    %132 = vector.broadcast %130 : vector<8x1xf32> to vector<8x8xf32>
    %133 = vector.broadcast %131 : vector<1x8xf32> to vector<8x8xf32>
    %134 = arith.mulf %132, %133 : vector<8x8xf32>
    %135 = arith.addf %129, %134 : vector<8x8xf32>
    %136 = vector.extract_strided_slice %98 {offsets = [0, 6], sizes = [8, 1], strides = [1, 1]} : vector<8x8xf32> to vector<8x1xf32>
    %137 = vector.extract_strided_slice %9 {offsets = [6, 0], sizes = [1, 8], strides = [1, 1]} : vector<8x8xf32> to vector<1x8xf32>
    %138 = vector.broadcast %136 : vector<8x1xf32> to vector<8x8xf32>
    %139 = vector.broadcast %137 : vector<1x8xf32> to vector<8x8xf32>
    %140 = arith.mulf %138, %139 : vector<8x8xf32>
    %141 = arith.addf %135, %140 : vector<8x8xf32>
    %142 = vector.extract_strided_slice %98 {offsets = [0, 7], sizes = [8, 1], strides = [1, 1]} : vector<8x8xf32> to vector<8x1xf32>
    %143 = vector.extract_strided_slice %9 {offsets = [7, 0], sizes = [1, 8], strides = [1, 1]} : vector<8x8xf32> to vector<1x8xf32>
    %144 = vector.broadcast %142 : vector<8x1xf32> to vector<8x8xf32>
    %145 = vector.broadcast %143 : vector<1x8xf32> to vector<8x8xf32>
    %146 = arith.mulf %144, %145 : vector<8x8xf32>
    %147 = arith.addf %141, %146 : vector<8x8xf32>
    %148 = vector.extract_strided_slice %147 {offsets = [0, 0], sizes = [8, 4], strides = [1, 1]} : vector<8x8xf32> to vector<8x4xf32>
    %149 = vector.shape_cast %148 : vector<8x4xf32> to vector<8x1x4xf32>
    %150 = vector.extract_strided_slice %147 {offsets = [0, 4], sizes = [8, 4], strides = [1, 1]} : vector<8x8xf32> to vector<8x4xf32>
    %151 = vector.shape_cast %150 : vector<8x4xf32> to vector<8x1x4xf32>
    %152 = tpu.concatenate %149, %151 in 1 : vector<8x1x4xf32>, vector<8x1x4xf32> -> vector<8x2x4xf32>
    %153 = vector.shape_cast %152 : vector<8x2x4xf32> to vector<16x4xf32>
    %154 = arith.addf %0, %153 : vector<16x4xf32>
    %c168 = arith.constant 168 : index
    %c0_8 = arith.constant 0 : index
    %155 = vector.load %arg1[%c168, %c0_8] : memref<216x64xf32, #tpu.memory_space<vmem>>, vector<1x4xf32>
    %c169 = arith.constant 169 : index
    %c0_9 = arith.constant 0 : index
    %156 = vector.load %arg1[%c169, %c0_9] : memref<216x64xf32, #tpu.memory_space<vmem>>, vector<1x4xf32>
    %cst_10 = arith.constant dense<0.000000e+00> : vector<16xf32>
    %157 = vector.multi_reduction <add>, %154, %cst_10 [1] : vector<16x4xf32> to vector<16xf32>
    %158 = vector.shape_cast %157 : vector<16xf32> to vector<16x1xf32>
    %cst_11 = arith.constant 4.000000e+00 : f32
    %159 = vector.broadcast %cst_11 : f32 to vector<16x1xf32>
    %160 = arith.divf %158, %159 : vector<16x1xf32>
    %161 = vector.broadcast %160 : vector<16x1xf32> to vector<16x4xf32>
    %162 = arith.subf %154, %161 : vector<16x4xf32>
    %163 = arith.mulf %162, %162 : vector<16x4xf32>
    %cst_12 = arith.constant dense<0.000000e+00> : vector<16xf32>
    %164 = vector.multi_reduction <add>, %163, %cst_12 [1] : vector<16x4xf32> to vector<16xf32>
    %165 = vector.shape_cast %164 : vector<16xf32> to vector<16x1xf32>
    %cst_13 = arith.constant 4.000000e+00 : f32
    %166 = vector.broadcast %cst_13 : f32 to vector<16x1xf32>
    %167 = arith.divf %165, %166 : vector<16x1xf32>
    %cst_14 = arith.constant 9.99999974E-6 : f32
    %168 = vector.broadcast %cst_14 : f32 to vector<16x1xf32>
    %169 = arith.addf %167, %168 : vector<16x1xf32>
    %170 = math.rsqrt %169 : vector<16x1xf32>
    %171 = vector.broadcast %170 : vector<16x1xf32> to vector<16x4xf32>
    %172 = arith.mulf %162, %171 : vector<16x4xf32>
    %173 = vector.broadcast %155 : vector<1x4xf32> to vector<16x4xf32>
    %174 = arith.mulf %172, %173 : vector<16x4xf32>
    %175 = vector.broadcast %156 : vector<1x4xf32> to vector<16x4xf32>
    %176 = arith.addf %174, %175 : vector<16x4xf32>
    %c104 = arith.constant 104 : index
    %c0_15 = arith.constant 0 : index
    %177 = vector.load %arg1[%c104, %c0_15] : memref<216x64xf32, #tpu.memory_space<vmem>>, vector<4x64xf32>
    %c166 = arith.constant 166 : index
    %c0_16 = arith.constant 0 : index
    %178 = vector.load %arg1[%c166, %c0_16] : memref<216x64xf32, #tpu.memory_space<vmem>>, vector<1x64xf32>
    %c136 = arith.constant 136 : index
    %c0_17 = arith.constant 0 : index
    %179 = vector.load %arg1[%c136, %c0_17] : memref<216x64xf32, #tpu.memory_space<vmem>>, vector<4x64xf32>
    %c167 = arith.constant 167 : index
    %c0_18 = arith.constant 0 : index
    %180 = vector.load %arg1[%c167, %c0_18] : memref<216x64xf32, #tpu.memory_space<vmem>>, vector<1x4xf32>
    %cst_19 = arith.constant dense<0.000000e+00> : vector<16x64xf32>
    %181 = tpu.matmul %176, %177, %cst_19 {dimension_numbers = #tpu.dot_dimension_numbers<[1], [0], [0], [1], [0, 0, 1, 1], [], []>} : vector<16x4xf32>, vector<4x64xf32>, vector<16x64xf32> -> vector<16x64xf32>
    %182 = vector.broadcast %178 : vector<1x64xf32> to vector<16x64xf32>
    %183 = arith.addf %181, %182 : vector<16x64xf32>
    %cst_20 = arith.constant 0.000000e+00 : f32
    %184 = vector.broadcast %cst_20 : f32 to vector<16x64xf32>
    %185 = arith.maximumf %183, %184 : vector<16x64xf32>
    %cst_21 = arith.constant dense<0.000000e+00> : vector<16x4xf32>
    %186 = tpu.matmul %185, %179, %cst_21 {dimension_numbers = #tpu.dot_dimension_numbers<[1], [1], [0], [0], [0, 0, 1, 0], [], []>} : vector<16x64xf32>, vector<4x64xf32>, vector<16x4xf32> -> vector<16x4xf32>
    %187 = vector.broadcast %180 : vector<1x4xf32> to vector<16x4xf32>
    %188 = arith.addf %186, %187 : vector<16x4xf32>
    %189 = arith.addf %176, %188 : vector<16x4xf32>
    %c170 = arith.constant 170 : index
    %c0_22 = arith.constant 0 : index
    %190 = vector.load %arg1[%c170, %c0_22] : memref<216x64xf32, #tpu.memory_space<vmem>>, vector<1x4xf32>
    %c171 = arith.constant 171 : index
    %c0_23 = arith.constant 0 : index
    %191 = vector.load %arg1[%c171, %c0_23] : memref<216x64xf32, #tpu.memory_space<vmem>>, vector<1x4xf32>
    %cst_24 = arith.constant dense<0.000000e+00> : vector<16xf32>
    %192 = vector.multi_reduction <add>, %189, %cst_24 [1] : vector<16x4xf32> to vector<16xf32>
    %193 = vector.shape_cast %192 : vector<16xf32> to vector<16x1xf32>
    %cst_25 = arith.constant 4.000000e+00 : f32
    %194 = vector.broadcast %cst_25 : f32 to vector<16x1xf32>
    %195 = arith.divf %193, %194 : vector<16x1xf32>
    %196 = vector.broadcast %195 : vector<16x1xf32> to vector<16x4xf32>
    %197 = arith.subf %189, %196 : vector<16x4xf32>
    %198 = arith.mulf %197, %197 : vector<16x4xf32>
    %cst_26 = arith.constant dense<0.000000e+00> : vector<16xf32>
    %199 = vector.multi_reduction <add>, %198, %cst_26 [1] : vector<16x4xf32> to vector<16xf32>
    %200 = vector.shape_cast %199 : vector<16xf32> to vector<16x1xf32>
    %cst_27 = arith.constant 4.000000e+00 : f32
    %201 = vector.broadcast %cst_27 : f32 to vector<16x1xf32>
    %202 = arith.divf %200, %201 : vector<16x1xf32>
    %cst_28 = arith.constant 9.99999974E-6 : f32
    %203 = vector.broadcast %cst_28 : f32 to vector<16x1xf32>
    %204 = arith.addf %202, %203 : vector<16x1xf32>
    %205 = math.rsqrt %204 : vector<16x1xf32>
    %206 = vector.broadcast %205 : vector<16x1xf32> to vector<16x4xf32>
    %207 = arith.mulf %197, %206 : vector<16x4xf32>
    %208 = vector.broadcast %190 : vector<1x4xf32> to vector<16x4xf32>
    %209 = arith.mulf %207, %208 : vector<16x4xf32>
    %210 = vector.broadcast %191 : vector<1x4xf32> to vector<16x4xf32>
    %211 = arith.addf %209, %210 : vector<16x4xf32>
    %212 = vector.shape_cast %211 : vector<16x4xf32> to vector<8x2x4xf32>
    %213 = vector.extract_strided_slice %212 {offsets = [0, 0, 0], sizes = [8, 1, 4], strides = [1, 1, 1]} : vector<8x2x4xf32> to vector<8x1x4xf32>
    %214 = vector.shape_cast %213 : vector<8x1x4xf32> to vector<8x4xf32>
    %215 = vector.extract_strided_slice %212 {offsets = [0, 1, 0], sizes = [8, 1, 4], strides = [1, 1, 1]} : vector<8x2x4xf32> to vector<8x1x4xf32>
    %216 = vector.shape_cast %215 : vector<8x1x4xf32> to vector<8x4xf32>
    %217 = tpu.concatenate %214, %216 in 1 : vector<8x4xf32>, vector<8x4xf32> -> vector<8x8xf32>
    %c8 = arith.constant 8 : index
    %c0_29 = arith.constant 0 : index
    %218 = vector.load %arg1[%c8, %c0_29] : memref<216x64xf32, #tpu.memory_space<vmem>>, vector<8x24xf32>
    %c172 = arith.constant 172 : index
    %c0_30 = arith.constant 0 : index
    %219 = vector.load %arg1[%c172, %c0_30] : memref<216x64xf32, #tpu.memory_space<vmem>>, vector<1x24xf32>
    %c56 = arith.constant 56 : index
    %c0_31 = arith.constant 0 : index
    %220 = vector.load %arg1[%c56, %c0_31] : memref<216x64xf32, #tpu.memory_space<vmem>>, vector<8x8xf32>
    %c173 = arith.constant 173 : index
    %c0_32 = arith.constant 0 : index
    %221 = vector.load %arg1[%c173, %c0_32] : memref<216x64xf32, #tpu.memory_space<vmem>>, vector<1x8xf32>
    %222 = vector.extract_strided_slice %217 {offsets = [0, 0], sizes = [8, 1], strides = [1, 1]} : vector<8x8xf32> to vector<8x1xf32>
    %223 = vector.extract_strided_slice %218 {offsets = [0, 0], sizes = [1, 24], strides = [1, 1]} : vector<8x24xf32> to vector<1x24xf32>
    %224 = vector.broadcast %222 : vector<8x1xf32> to vector<8x24xf32>
    %225 = vector.broadcast %223 : vector<1x24xf32> to vector<8x24xf32>
    %226 = arith.mulf %224, %225 : vector<8x24xf32>
    %227 = vector.broadcast %219 : vector<1x24xf32> to vector<8x24xf32>
    %228 = arith.addf %226, %227 : vector<8x24xf32>
    %229 = vector.extract_strided_slice %217 {offsets = [0, 1], sizes = [8, 1], strides = [1, 1]} : vector<8x8xf32> to vector<8x1xf32>
    %230 = vector.extract_strided_slice %218 {offsets = [1, 0], sizes = [1, 24], strides = [1, 1]} : vector<8x24xf32> to vector<1x24xf32>
    %231 = vector.broadcast %229 : vector<8x1xf32> to vector<8x24xf32>
    %232 = vector.broadcast %230 : vector<1x24xf32> to vector<8x24xf32>
    %233 = arith.mulf %231, %232 : vector<8x24xf32>
    %234 = arith.addf %228, %233 : vector<8x24xf32>
    %235 = vector.extract_strided_slice %217 {offsets = [0, 2], sizes = [8, 1], strides = [1, 1]} : vector<8x8xf32> to vector<8x1xf32>
    %236 = vector.extract_strided_slice %218 {offsets = [2, 0], sizes = [1, 24], strides = [1, 1]} : vector<8x24xf32> to vector<1x24xf32>
    %237 = vector.broadcast %235 : vector<8x1xf32> to vector<8x24xf32>
    %238 = vector.broadcast %236 : vector<1x24xf32> to vector<8x24xf32>
    %239 = arith.mulf %237, %238 : vector<8x24xf32>
    %240 = arith.addf %234, %239 : vector<8x24xf32>
    %241 = vector.extract_strided_slice %217 {offsets = [0, 3], sizes = [8, 1], strides = [1, 1]} : vector<8x8xf32> to vector<8x1xf32>
    %242 = vector.extract_strided_slice %218 {offsets = [3, 0], sizes = [1, 24], strides = [1, 1]} : vector<8x24xf32> to vector<1x24xf32>
    %243 = vector.broadcast %241 : vector<8x1xf32> to vector<8x24xf32>
    %244 = vector.broadcast %242 : vector<1x24xf32> to vector<8x24xf32>
    %245 = arith.mulf %243, %244 : vector<8x24xf32>
    %246 = arith.addf %240, %245 : vector<8x24xf32>
    %247 = vector.extract_strided_slice %217 {offsets = [0, 4], sizes = [8, 1], strides = [1, 1]} : vector<8x8xf32> to vector<8x1xf32>
    %248 = vector.extract_strided_slice %218 {offsets = [4, 0], sizes = [1, 24], strides = [1, 1]} : vector<8x24xf32> to vector<1x24xf32>
    %249 = vector.broadcast %247 : vector<8x1xf32> to vector<8x24xf32>
    %250 = vector.broadcast %248 : vector<1x24xf32> to vector<8x24xf32>
    %251 = arith.mulf %249, %250 : vector<8x24xf32>
    %252 = arith.addf %246, %251 : vector<8x24xf32>
    %253 = vector.extract_strided_slice %217 {offsets = [0, 5], sizes = [8, 1], strides = [1, 1]} : vector<8x8xf32> to vector<8x1xf32>
    %254 = vector.extract_strided_slice %218 {offsets = [5, 0], sizes = [1, 24], strides = [1, 1]} : vector<8x24xf32> to vector<1x24xf32>
    %255 = vector.broadcast %253 : vector<8x1xf32> to vector<8x24xf32>
    %256 = vector.broadcast %254 : vector<1x24xf32> to vector<8x24xf32>
    %257 = arith.mulf %255, %256 : vector<8x24xf32>
    %258 = arith.addf %252, %257 : vector<8x24xf32>
    %259 = vector.extract_strided_slice %217 {offsets = [0, 6], sizes = [8, 1], strides = [1, 1]} : vector<8x8xf32> to vector<8x1xf32>
    %260 = vector.extract_strided_slice %218 {offsets = [6, 0], sizes = [1, 24], strides = [1, 1]} : vector<8x24xf32> to vector<1x24xf32>
    %261 = vector.broadcast %259 : vector<8x1xf32> to vector<8x24xf32>
    %262 = vector.broadcast %260 : vector<1x24xf32> to vector<8x24xf32>
    %263 = arith.mulf %261, %262 : vector<8x24xf32>
    %264 = arith.addf %258, %263 : vector<8x24xf32>
    %265 = vector.extract_strided_slice %217 {offsets = [0, 7], sizes = [8, 1], strides = [1, 1]} : vector<8x8xf32> to vector<8x1xf32>
    %266 = vector.extract_strided_slice %218 {offsets = [7, 0], sizes = [1, 24], strides = [1, 1]} : vector<8x24xf32> to vector<1x24xf32>
    %267 = vector.broadcast %265 : vector<8x1xf32> to vector<8x24xf32>
    %268 = vector.broadcast %266 : vector<1x24xf32> to vector<8x24xf32>
    %269 = arith.mulf %267, %268 : vector<8x24xf32>
    %270 = arith.addf %264, %269 : vector<8x24xf32>
    %271 = vector.extract_strided_slice %270 {offsets = [0, 0], sizes = [8, 8], strides = [1, 1]} : vector<8x24xf32> to vector<8x8xf32>
    %272 = vector.extract_strided_slice %270 {offsets = [0, 8], sizes = [8, 8], strides = [1, 1]} : vector<8x24xf32> to vector<8x8xf32>
    %273 = vector.extract_strided_slice %270 {offsets = [0, 16], sizes = [8, 8], strides = [1, 1]} : vector<8x24xf32> to vector<8x8xf32>
    %274 = tpu.concatenate %272, %272, %272, %272, %272, %272, %272, %272 in 1 : vector<8x8xf32>, vector<8x8xf32>, vector<8x8xf32>, vector<8x8xf32>, vector<8x8xf32>, vector<8x8xf32>, vector<8x8xf32>, vector<8x8xf32> -> vector<8x64xf32>
    %275 = tpu.concatenate %273, %273, %273, %273, %273, %273, %273, %273 in 1 : vector<8x8xf32>, vector<8x8xf32>, vector<8x8xf32>, vector<8x8xf32>, vector<8x8xf32>, vector<8x8xf32>, vector<8x8xf32>, vector<8x8xf32> -> vector<8x64xf32>
    %276 = vector.extract_strided_slice %271 {offsets = [0, 0], sizes = [1, 8], strides = [1, 1]} : vector<8x8xf32> to vector<1x8xf32>
    %277 = vector.extract_strided_slice %271 {offsets = [1, 0], sizes = [1, 8], strides = [1, 1]} : vector<8x8xf32> to vector<1x8xf32>
    %278 = vector.extract_strided_slice %271 {offsets = [2, 0], sizes = [1, 8], strides = [1, 1]} : vector<8x8xf32> to vector<1x8xf32>
    %279 = vector.extract_strided_slice %271 {offsets = [3, 0], sizes = [1, 8], strides = [1, 1]} : vector<8x8xf32> to vector<1x8xf32>
    %280 = vector.extract_strided_slice %271 {offsets = [4, 0], sizes = [1, 8], strides = [1, 1]} : vector<8x8xf32> to vector<1x8xf32>
    %281 = vector.extract_strided_slice %271 {offsets = [5, 0], sizes = [1, 8], strides = [1, 1]} : vector<8x8xf32> to vector<1x8xf32>
    %282 = vector.extract_strided_slice %271 {offsets = [6, 0], sizes = [1, 8], strides = [1, 1]} : vector<8x8xf32> to vector<1x8xf32>
    %283 = vector.extract_strided_slice %271 {offsets = [7, 0], sizes = [1, 8], strides = [1, 1]} : vector<8x8xf32> to vector<1x8xf32>
    %284 = tpu.concatenate %276, %277, %278, %279, %280, %281, %282, %283 in 1 : vector<1x8xf32>, vector<1x8xf32>, vector<1x8xf32>, vector<1x8xf32>, vector<1x8xf32>, vector<1x8xf32>, vector<1x8xf32>, vector<1x8xf32> -> vector<1x64xf32>
    %285 = vector.shape_cast %284 : vector<1x64xf32> to vector<1x64xf32>
    %286 = vector.broadcast %285 : vector<1x64xf32> to vector<8x64xf32>
    %287 = arith.mulf %286, %274 : vector<8x64xf32>
    %cst_33 = arith.constant dense<0xFF800000> : vector<64xf32>
    %288 = vector.multi_reduction <maximumf>, %287, %cst_33 [0] : vector<8x64xf32> to vector<64xf32>
    %289 = vector.shape_cast %288 : vector<64xf32> to vector<1x64xf32>
    %290 = vector.broadcast %289 : vector<1x64xf32> to vector<8x64xf32>
    %291 = arith.subf %287, %290 : vector<8x64xf32>
    %292 = math.exp %291 : vector<8x64xf32>
    %cst_34 = arith.constant dense<0.000000e+00> : vector<64xf32>
    %293 = vector.multi_reduction <add>, %292, %cst_34 [0] : vector<8x64xf32> to vector<64xf32>
    %294 = vector.shape_cast %293 : vector<64xf32> to vector<1x64xf32>
    %295 = tpu.reciprocal %294 {approx = true} : vector<1x64xf32> -> vector<1x64xf32>
    %296 = vector.broadcast %295 : vector<1x64xf32> to vector<8x64xf32>
    %297 = arith.mulf %292, %296 : vector<8x64xf32>
    %298 = arith.mulf %297, %275 : vector<8x64xf32>
    %cst_35 = arith.constant dense<0.000000e+00> : vector<64xf32>
    %299 = vector.multi_reduction <add>, %298, %cst_35 [0] : vector<8x64xf32> to vector<64xf32>
    %300 = vector.shape_cast %299 : vector<64xf32> to vector<1x64xf32>
    %301 = vector.extract_strided_slice %300 {offsets = [0, 0], sizes = [1, 8], strides = [1, 1]} : vector<1x64xf32> to vector<1x8xf32>
    %302 = vector.extract_strided_slice %300 {offsets = [0, 8], sizes = [1, 8], strides = [1, 1]} : vector<1x64xf32> to vector<1x8xf32>
    %303 = vector.extract_strided_slice %300 {offsets = [0, 16], sizes = [1, 8], strides = [1, 1]} : vector<1x64xf32> to vector<1x8xf32>
    %304 = vector.extract_strided_slice %300 {offsets = [0, 24], sizes = [1, 8], strides = [1, 1]} : vector<1x64xf32> to vector<1x8xf32>
    %305 = vector.extract_strided_slice %300 {offsets = [0, 32], sizes = [1, 8], strides = [1, 1]} : vector<1x64xf32> to vector<1x8xf32>
    %306 = vector.extract_strided_slice %300 {offsets = [0, 40], sizes = [1, 8], strides = [1, 1]} : vector<1x64xf32> to vector<1x8xf32>
    %307 = vector.extract_strided_slice %300 {offsets = [0, 48], sizes = [1, 8], strides = [1, 1]} : vector<1x64xf32> to vector<1x8xf32>
    %308 = vector.extract_strided_slice %300 {offsets = [0, 56], sizes = [1, 8], strides = [1, 1]} : vector<1x64xf32> to vector<1x8xf32>
    %309 = tpu.concatenate %301, %302, %303, %304, %305, %306, %307, %308 in 0 : vector<1x8xf32>, vector<1x8xf32>, vector<1x8xf32>, vector<1x8xf32>, vector<1x8xf32>, vector<1x8xf32>, vector<1x8xf32>, vector<1x8xf32> -> vector<8x8xf32>
    %310 = vector.extract_strided_slice %309 {offsets = [0, 0], sizes = [8, 1], strides = [1, 1]} : vector<8x8xf32> to vector<8x1xf32>
    %311 = vector.extract_strided_slice %220 {offsets = [0, 0], sizes = [1, 8], strides = [1, 1]} : vector<8x8xf32> to vector<1x8xf32>
    %312 = vector.broadcast %310 : vector<8x1xf32> to vector<8x8xf32>
    %313 = vector.broadcast %311 : vector<1x8xf32> to vector<8x8xf32>
    %314 = arith.mulf %312, %313 : vector<8x8xf32>
    %315 = vector.broadcast %221 : vector<1x8xf32> to vector<8x8xf32>
    %316 = arith.addf %314, %315 : vector<8x8xf32>
    %317 = vector.extract_strided_slice %309 {offsets = [0, 1], sizes = [8, 1], strides = [1, 1]} : vector<8x8xf32> to vector<8x1xf32>
    %318 = vector.extract_strided_slice %220 {offsets = [1, 0], sizes = [1, 8], strides = [1, 1]} : vector<8x8xf32> to vector<1x8xf32>
    %319 = vector.broadcast %317 : vector<8x1xf32> to vector<8x8xf32>
    %320 = vector.broadcast %318 : vector<1x8xf32> to vector<8x8xf32>
    %321 = arith.mulf %319, %320 : vector<8x8xf32>
    %322 = arith.addf %316, %321 : vector<8x8xf32>
    %323 = vector.extract_strided_slice %309 {offsets = [0, 2], sizes = [8, 1], strides = [1, 1]} : vector<8x8xf32> to vector<8x1xf32>
    %324 = vector.extract_strided_slice %220 {offsets = [2, 0], sizes = [1, 8], strides = [1, 1]} : vector<8x8xf32> to vector<1x8xf32>
    %325 = vector.broadcast %323 : vector<8x1xf32> to vector<8x8xf32>
    %326 = vector.broadcast %324 : vector<1x8xf32> to vector<8x8xf32>
    %327 = arith.mulf %325, %326 : vector<8x8xf32>
    %328 = arith.addf %322, %327 : vector<8x8xf32>
    %329 = vector.extract_strided_slice %309 {offsets = [0, 3], sizes = [8, 1], strides = [1, 1]} : vector<8x8xf32> to vector<8x1xf32>
    %330 = vector.extract_strided_slice %220 {offsets = [3, 0], sizes = [1, 8], strides = [1, 1]} : vector<8x8xf32> to vector<1x8xf32>
    %331 = vector.broadcast %329 : vector<8x1xf32> to vector<8x8xf32>
    %332 = vector.broadcast %330 : vector<1x8xf32> to vector<8x8xf32>
    %333 = arith.mulf %331, %332 : vector<8x8xf32>
    %334 = arith.addf %328, %333 : vector<8x8xf32>
    %335 = vector.extract_strided_slice %309 {offsets = [0, 4], sizes = [8, 1], strides = [1, 1]} : vector<8x8xf32> to vector<8x1xf32>
    %336 = vector.extract_strided_slice %220 {offsets = [4, 0], sizes = [1, 8], strides = [1, 1]} : vector<8x8xf32> to vector<1x8xf32>
    %337 = vector.broadcast %335 : vector<8x1xf32> to vector<8x8xf32>
    %338 = vector.broadcast %336 : vector<1x8xf32> to vector<8x8xf32>
    %339 = arith.mulf %337, %338 : vector<8x8xf32>
    %340 = arith.addf %334, %339 : vector<8x8xf32>
    %341 = vector.extract_strided_slice %309 {offsets = [0, 5], sizes = [8, 1], strides = [1, 1]} : vector<8x8xf32> to vector<8x1xf32>
    %342 = vector.extract_strided_slice %220 {offsets = [5, 0], sizes = [1, 8], strides = [1, 1]} : vector<8x8xf32> to vector<1x8xf32>
    %343 = vector.broadcast %341 : vector<8x1xf32> to vector<8x8xf32>
    %344 = vector.broadcast %342 : vector<1x8xf32> to vector<8x8xf32>
    %345 = arith.mulf %343, %344 : vector<8x8xf32>
    %346 = arith.addf %340, %345 : vector<8x8xf32>
    %347 = vector.extract_strided_slice %309 {offsets = [0, 6], sizes = [8, 1], strides = [1, 1]} : vector<8x8xf32> to vector<8x1xf32>
    %348 = vector.extract_strided_slice %220 {offsets = [6, 0], sizes = [1, 8], strides = [1, 1]} : vector<8x8xf32> to vector<1x8xf32>
    %349 = vector.broadcast %347 : vector<8x1xf32> to vector<8x8xf32>
    %350 = vector.broadcast %348 : vector<1x8xf32> to vector<8x8xf32>
    %351 = arith.mulf %349, %350 : vector<8x8xf32>
    %352 = arith.addf %346, %351 : vector<8x8xf32>
    %353 = vector.extract_strided_slice %309 {offsets = [0, 7], sizes = [8, 1], strides = [1, 1]} : vector<8x8xf32> to vector<8x1xf32>
    %354 = vector.extract_strided_slice %220 {offsets = [7, 0], sizes = [1, 8], strides = [1, 1]} : vector<8x8xf32> to vector<1x8xf32>
    %355 = vector.broadcast %353 : vector<8x1xf32> to vector<8x8xf32>
    %356 = vector.broadcast %354 : vector<1x8xf32> to vector<8x8xf32>
    %357 = arith.mulf %355, %356 : vector<8x8xf32>
    %358 = arith.addf %352, %357 : vector<8x8xf32>
    %359 = vector.extract_strided_slice %358 {offsets = [0, 0], sizes = [8, 4], strides = [1, 1]} : vector<8x8xf32> to vector<8x4xf32>
    %360 = vector.shape_cast %359 : vector<8x4xf32> to vector<8x1x4xf32>
    %361 = vector.extract_strided_slice %358 {offsets = [0, 4], sizes = [8, 4], strides = [1, 1]} : vector<8x8xf32> to vector<8x4xf32>
    %362 = vector.shape_cast %361 : vector<8x4xf32> to vector<8x1x4xf32>
    %363 = tpu.concatenate %360, %362 in 1 : vector<8x1x4xf32>, vector<8x1x4xf32> -> vector<8x2x4xf32>
    %364 = vector.shape_cast %363 : vector<8x2x4xf32> to vector<16x4xf32>
    %365 = arith.addf %211, %364 : vector<16x4xf32>
    %c176 = arith.constant 176 : index
    %c0_36 = arith.constant 0 : index
    %366 = vector.load %arg1[%c176, %c0_36] : memref<216x64xf32, #tpu.memory_space<vmem>>, vector<1x4xf32>
    %c177 = arith.constant 177 : index
    %c0_37 = arith.constant 0 : index
    %367 = vector.load %arg1[%c177, %c0_37] : memref<216x64xf32, #tpu.memory_space<vmem>>, vector<1x4xf32>
    %cst_38 = arith.constant dense<0.000000e+00> : vector<16xf32>
    %368 = vector.multi_reduction <add>, %365, %cst_38 [1] : vector<16x4xf32> to vector<16xf32>
    %369 = vector.shape_cast %368 : vector<16xf32> to vector<16x1xf32>
    %cst_39 = arith.constant 4.000000e+00 : f32
    %370 = vector.broadcast %cst_39 : f32 to vector<16x1xf32>
    %371 = arith.divf %369, %370 : vector<16x1xf32>
    %372 = vector.broadcast %371 : vector<16x1xf32> to vector<16x4xf32>
    %373 = arith.subf %365, %372 : vector<16x4xf32>
    %374 = arith.mulf %373, %373 : vector<16x4xf32>
    %cst_40 = arith.constant dense<0.000000e+00> : vector<16xf32>
    %375 = vector.multi_reduction <add>, %374, %cst_40 [1] : vector<16x4xf32> to vector<16xf32>
    %376 = vector.shape_cast %375 : vector<16xf32> to vector<16x1xf32>
    %cst_41 = arith.constant 4.000000e+00 : f32
    %377 = vector.broadcast %cst_41 : f32 to vector<16x1xf32>
    %378 = arith.divf %376, %377 : vector<16x1xf32>
    %cst_42 = arith.constant 9.99999974E-6 : f32
    %379 = vector.broadcast %cst_42 : f32 to vector<16x1xf32>
    %380 = arith.addf %378, %379 : vector<16x1xf32>
    %381 = math.rsqrt %380 : vector<16x1xf32>
    %382 = vector.broadcast %381 : vector<16x1xf32> to vector<16x4xf32>
    %383 = arith.mulf %373, %382 : vector<16x4xf32>
    %384 = vector.broadcast %366 : vector<1x4xf32> to vector<16x4xf32>
    %385 = arith.mulf %383, %384 : vector<16x4xf32>
    %386 = vector.broadcast %367 : vector<1x4xf32> to vector<16x4xf32>
    %387 = arith.addf %385, %386 : vector<16x4xf32>
    %c112 = arith.constant 112 : index
    %c0_43 = arith.constant 0 : index
    %388 = vector.load %arg1[%c112, %c0_43] : memref<216x64xf32, #tpu.memory_space<vmem>>, vector<4x64xf32>
    %c174 = arith.constant 174 : index
    %c0_44 = arith.constant 0 : index
    %389 = vector.load %arg1[%c174, %c0_44] : memref<216x64xf32, #tpu.memory_space<vmem>>, vector<1x64xf32>
    %c144 = arith.constant 144 : index
    %c0_45 = arith.constant 0 : index
    %390 = vector.load %arg1[%c144, %c0_45] : memref<216x64xf32, #tpu.memory_space<vmem>>, vector<4x64xf32>
    %c175 = arith.constant 175 : index
    %c0_46 = arith.constant 0 : index
    %391 = vector.load %arg1[%c175, %c0_46] : memref<216x64xf32, #tpu.memory_space<vmem>>, vector<1x4xf32>
    %cst_47 = arith.constant dense<0.000000e+00> : vector<16x64xf32>
    %392 = tpu.matmul %387, %388, %cst_47 {dimension_numbers = #tpu.dot_dimension_numbers<[1], [0], [0], [1], [0, 0, 1, 1], [], []>} : vector<16x4xf32>, vector<4x64xf32>, vector<16x64xf32> -> vector<16x64xf32>
    %393 = vector.broadcast %389 : vector<1x64xf32> to vector<16x64xf32>
    %394 = arith.addf %392, %393 : vector<16x64xf32>
    %cst_48 = arith.constant 0.000000e+00 : f32
    %395 = vector.broadcast %cst_48 : f32 to vector<16x64xf32>
    %396 = arith.maximumf %394, %395 : vector<16x64xf32>
    %cst_49 = arith.constant dense<0.000000e+00> : vector<16x4xf32>
    %397 = tpu.matmul %396, %390, %cst_49 {dimension_numbers = #tpu.dot_dimension_numbers<[1], [1], [0], [0], [0, 0, 1, 0], [], []>} : vector<16x64xf32>, vector<4x64xf32>, vector<16x4xf32> -> vector<16x4xf32>
    %398 = vector.broadcast %391 : vector<1x4xf32> to vector<16x4xf32>
    %399 = arith.addf %397, %398 : vector<16x4xf32>
    %400 = arith.addf %387, %399 : vector<16x4xf32>
    %c178 = arith.constant 178 : index
    %c0_50 = arith.constant 0 : index
    %401 = vector.load %arg1[%c178, %c0_50] : memref<216x64xf32, #tpu.memory_space<vmem>>, vector<1x4xf32>
    %c179 = arith.constant 179 : index
    %c0_51 = arith.constant 0 : index
    %402 = vector.load %arg1[%c179, %c0_51] : memref<216x64xf32, #tpu.memory_space<vmem>>, vector<1x4xf32>
    %cst_52 = arith.constant dense<0.000000e+00> : vector<16xf32>
    %403 = vector.multi_reduction <add>, %400, %cst_52 [1] : vector<16x4xf32> to vector<16xf32>
    %404 = vector.shape_cast %403 : vector<16xf32> to vector<16x1xf32>
    %cst_53 = arith.constant 4.000000e+00 : f32
    %405 = vector.broadcast %cst_53 : f32 to vector<16x1xf32>
    %406 = arith.divf %404, %405 : vector<16x1xf32>
    %407 = vector.broadcast %406 : vector<16x1xf32> to vector<16x4xf32>
    %408 = arith.subf %400, %407 : vector<16x4xf32>
    %409 = arith.mulf %408, %408 : vector<16x4xf32>
    %cst_54 = arith.constant dense<0.000000e+00> : vector<16xf32>
    %410 = vector.multi_reduction <add>, %409, %cst_54 [1] : vector<16x4xf32> to vector<16xf32>
    %411 = vector.shape_cast %410 : vector<16xf32> to vector<16x1xf32>
    %cst_55 = arith.constant 4.000000e+00 : f32
    %412 = vector.broadcast %cst_55 : f32 to vector<16x1xf32>
    %413 = arith.divf %411, %412 : vector<16x1xf32>
    %cst_56 = arith.constant 9.99999974E-6 : f32
    %414 = vector.broadcast %cst_56 : f32 to vector<16x1xf32>
    %415 = arith.addf %413, %414 : vector<16x1xf32>
    %416 = math.rsqrt %415 : vector<16x1xf32>
    %417 = vector.broadcast %416 : vector<16x1xf32> to vector<16x4xf32>
    %418 = arith.mulf %408, %417 : vector<16x4xf32>
    %419 = vector.broadcast %401 : vector<1x4xf32> to vector<16x4xf32>
    %420 = arith.mulf %418, %419 : vector<16x4xf32>
    %421 = vector.broadcast %402 : vector<1x4xf32> to vector<16x4xf32>
    %422 = arith.addf %420, %421 : vector<16x4xf32>
    %c180 = arith.constant 180 : index
    %c0_57 = arith.constant 0 : index
    %423 = vector.load %arg1[%c180, %c0_57] : memref<216x64xf32, #tpu.memory_space<vmem>>, vector<1x4xf32>
    %c181 = arith.constant 181 : index
    %c0_58 = arith.constant 0 : index
    %424 = vector.load %arg1[%c181, %c0_58] : memref<216x64xf32, #tpu.memory_space<vmem>>, vector<1x4xf32>
    %cst_59 = arith.constant dense<0.000000e+00> : vector<16xf32>
    %425 = vector.multi_reduction <add>, %422, %cst_59 [1] : vector<16x4xf32> to vector<16xf32>
    %426 = vector.shape_cast %425 : vector<16xf32> to vector<16x1xf32>
    %cst_60 = arith.constant 4.000000e+00 : f32
    %427 = vector.broadcast %cst_60 : f32 to vector<16x1xf32>
    %428 = arith.divf %426, %427 : vector<16x1xf32>
    %429 = vector.broadcast %428 : vector<16x1xf32> to vector<16x4xf32>
    %430 = arith.subf %422, %429 : vector<16x4xf32>
    %431 = arith.mulf %430, %430 : vector<16x4xf32>
    %cst_61 = arith.constant dense<0.000000e+00> : vector<16xf32>
    %432 = vector.multi_reduction <add>, %431, %cst_61 [1] : vector<16x4xf32> to vector<16xf32>
    %433 = vector.shape_cast %432 : vector<16xf32> to vector<16x1xf32>
    %cst_62 = arith.constant 4.000000e+00 : f32
    %434 = vector.broadcast %cst_62 : f32 to vector<16x1xf32>
    %435 = arith.divf %433, %434 : vector<16x1xf32>
    %cst_63 = arith.constant 9.99999974E-6 : f32
    %436 = vector.broadcast %cst_63 : f32 to vector<16x1xf32>
    %437 = arith.addf %435, %436 : vector<16x1xf32>
    %438 = math.rsqrt %437 : vector<16x1xf32>
    %439 = vector.broadcast %438 : vector<16x1xf32> to vector<16x4xf32>
    %440 = arith.mulf %430, %439 : vector<16x4xf32>
    %441 = vector.broadcast %423 : vector<1x4xf32> to vector<16x4xf32>
    %442 = arith.mulf %440, %441 : vector<16x4xf32>
    %443 = vector.broadcast %424 : vector<1x4xf32> to vector<16x4xf32>
    %444 = arith.addf %442, %443 : vector<16x4xf32>
    %445 = vector.shape_cast %444 : vector<16x4xf32> to vector<8x2x4xf32>
    %446 = vector.extract_strided_slice %445 {offsets = [0, 0, 0], sizes = [8, 1, 4], strides = [1, 1, 1]} : vector<8x2x4xf32> to vector<8x1x4xf32>
    %447 = vector.shape_cast %446 : vector<8x1x4xf32> to vector<8x4xf32>
    %448 = vector.extract_strided_slice %445 {offsets = [0, 1, 0], sizes = [8, 1, 4], strides = [1, 1, 1]} : vector<8x2x4xf32> to vector<8x1x4xf32>
    %449 = vector.shape_cast %448 : vector<8x1x4xf32> to vector<8x4xf32>
    %450 = tpu.concatenate %447, %449 in 1 : vector<8x4xf32>, vector<8x4xf32> -> vector<8x8xf32>
    %451 = vector.shape_cast %0 : vector<16x4xf32> to vector<8x2x4xf32>
    %452 = vector.extract_strided_slice %451 {offsets = [0, 0, 0], sizes = [8, 1, 4], strides = [1, 1, 1]} : vector<8x2x4xf32> to vector<8x1x4xf32>
    %453 = vector.shape_cast %452 : vector<8x1x4xf32> to vector<8x4xf32>
    %454 = vector.extract_strided_slice %451 {offsets = [0, 1, 0], sizes = [8, 1, 4], strides = [1, 1, 1]} : vector<8x2x4xf32> to vector<8x1x4xf32>
    %455 = vector.shape_cast %454 : vector<8x1x4xf32> to vector<8x4xf32>
    %456 = tpu.concatenate %453, %455 in 1 : vector<8x4xf32>, vector<8x4xf32> -> vector<8x8xf32>
    %c16 = arith.constant 16 : index
    %c0_64 = arith.constant 0 : index
    %457 = vector.load %arg1[%c16, %c0_64] : memref<216x64xf32, #tpu.memory_space<vmem>>, vector<8x24xf32>
    %c182 = arith.constant 182 : index
    %c0_65 = arith.constant 0 : index
    %458 = vector.load %arg1[%c182, %c0_65] : memref<216x64xf32, #tpu.memory_space<vmem>>, vector<1x24xf32>
    %c64 = arith.constant 64 : index
    %c0_66 = arith.constant 0 : index
    %459 = vector.load %arg1[%c64, %c0_66] : memref<216x64xf32, #tpu.memory_space<vmem>>, vector<8x8xf32>
    %c183 = arith.constant 183 : index
    %c0_67 = arith.constant 0 : index
    %460 = vector.load %arg1[%c183, %c0_67] : memref<216x64xf32, #tpu.memory_space<vmem>>, vector<1x8xf32>
    %461 = vector.extract_strided_slice %456 {offsets = [0, 0], sizes = [8, 1], strides = [1, 1]} : vector<8x8xf32> to vector<8x1xf32>
    %462 = vector.extract_strided_slice %457 {offsets = [0, 0], sizes = [1, 24], strides = [1, 1]} : vector<8x24xf32> to vector<1x24xf32>
    %463 = vector.broadcast %461 : vector<8x1xf32> to vector<8x24xf32>
    %464 = vector.broadcast %462 : vector<1x24xf32> to vector<8x24xf32>
    %465 = arith.mulf %463, %464 : vector<8x24xf32>
    %466 = vector.broadcast %458 : vector<1x24xf32> to vector<8x24xf32>
    %467 = arith.addf %465, %466 : vector<8x24xf32>
    %468 = vector.extract_strided_slice %456 {offsets = [0, 1], sizes = [8, 1], strides = [1, 1]} : vector<8x8xf32> to vector<8x1xf32>
    %469 = vector.extract_strided_slice %457 {offsets = [1, 0], sizes = [1, 24], strides = [1, 1]} : vector<8x24xf32> to vector<1x24xf32>
    %470 = vector.broadcast %468 : vector<8x1xf32> to vector<8x24xf32>
    %471 = vector.broadcast %469 : vector<1x24xf32> to vector<8x24xf32>
    %472 = arith.mulf %470, %471 : vector<8x24xf32>
    %473 = arith.addf %467, %472 : vector<8x24xf32>
    %474 = vector.extract_strided_slice %456 {offsets = [0, 2], sizes = [8, 1], strides = [1, 1]} : vector<8x8xf32> to vector<8x1xf32>
    %475 = vector.extract_strided_slice %457 {offsets = [2, 0], sizes = [1, 24], strides = [1, 1]} : vector<8x24xf32> to vector<1x24xf32>
    %476 = vector.broadcast %474 : vector<8x1xf32> to vector<8x24xf32>
    %477 = vector.broadcast %475 : vector<1x24xf32> to vector<8x24xf32>
    %478 = arith.mulf %476, %477 : vector<8x24xf32>
    %479 = arith.addf %473, %478 : vector<8x24xf32>
    %480 = vector.extract_strided_slice %456 {offsets = [0, 3], sizes = [8, 1], strides = [1, 1]} : vector<8x8xf32> to vector<8x1xf32>
    %481 = vector.extract_strided_slice %457 {offsets = [3, 0], sizes = [1, 24], strides = [1, 1]} : vector<8x24xf32> to vector<1x24xf32>
    %482 = vector.broadcast %480 : vector<8x1xf32> to vector<8x24xf32>
    %483 = vector.broadcast %481 : vector<1x24xf32> to vector<8x24xf32>
    %484 = arith.mulf %482, %483 : vector<8x24xf32>
    %485 = arith.addf %479, %484 : vector<8x24xf32>
    %486 = vector.extract_strided_slice %456 {offsets = [0, 4], sizes = [8, 1], strides = [1, 1]} : vector<8x8xf32> to vector<8x1xf32>
    %487 = vector.extract_strided_slice %457 {offsets = [4, 0], sizes = [1, 24], strides = [1, 1]} : vector<8x24xf32> to vector<1x24xf32>
    %488 = vector.broadcast %486 : vector<8x1xf32> to vector<8x24xf32>
    %489 = vector.broadcast %487 : vector<1x24xf32> to vector<8x24xf32>
    %490 = arith.mulf %488, %489 : vector<8x24xf32>
    %491 = arith.addf %485, %490 : vector<8x24xf32>
    %492 = vector.extract_strided_slice %456 {offsets = [0, 5], sizes = [8, 1], strides = [1, 1]} : vector<8x8xf32> to vector<8x1xf32>
    %493 = vector.extract_strided_slice %457 {offsets = [5, 0], sizes = [1, 24], strides = [1, 1]} : vector<8x24xf32> to vector<1x24xf32>
    %494 = vector.broadcast %492 : vector<8x1xf32> to vector<8x24xf32>
    %495 = vector.broadcast %493 : vector<1x24xf32> to vector<8x24xf32>
    %496 = arith.mulf %494, %495 : vector<8x24xf32>
    %497 = arith.addf %491, %496 : vector<8x24xf32>
    %498 = vector.extract_strided_slice %456 {offsets = [0, 6], sizes = [8, 1], strides = [1, 1]} : vector<8x8xf32> to vector<8x1xf32>
    %499 = vector.extract_strided_slice %457 {offsets = [6, 0], sizes = [1, 24], strides = [1, 1]} : vector<8x24xf32> to vector<1x24xf32>
    %500 = vector.broadcast %498 : vector<8x1xf32> to vector<8x24xf32>
    %501 = vector.broadcast %499 : vector<1x24xf32> to vector<8x24xf32>
    %502 = arith.mulf %500, %501 : vector<8x24xf32>
    %503 = arith.addf %497, %502 : vector<8x24xf32>
    %504 = vector.extract_strided_slice %456 {offsets = [0, 7], sizes = [8, 1], strides = [1, 1]} : vector<8x8xf32> to vector<8x1xf32>
    %505 = vector.extract_strided_slice %457 {offsets = [7, 0], sizes = [1, 24], strides = [1, 1]} : vector<8x24xf32> to vector<1x24xf32>
    %506 = vector.broadcast %504 : vector<8x1xf32> to vector<8x24xf32>
    %507 = vector.broadcast %505 : vector<1x24xf32> to vector<8x24xf32>
    %508 = arith.mulf %506, %507 : vector<8x24xf32>
    %509 = arith.addf %503, %508 : vector<8x24xf32>
    %510 = vector.extract_strided_slice %509 {offsets = [0, 0], sizes = [8, 8], strides = [1, 1]} : vector<8x24xf32> to vector<8x8xf32>
    %511 = vector.extract_strided_slice %509 {offsets = [0, 8], sizes = [8, 8], strides = [1, 1]} : vector<8x24xf32> to vector<8x8xf32>
    %512 = vector.extract_strided_slice %509 {offsets = [0, 16], sizes = [8, 8], strides = [1, 1]} : vector<8x24xf32> to vector<8x8xf32>
    %513 = tpu.concatenate %511, %511, %511, %511, %511, %511, %511, %511 in 1 : vector<8x8xf32>, vector<8x8xf32>, vector<8x8xf32>, vector<8x8xf32>, vector<8x8xf32>, vector<8x8xf32>, vector<8x8xf32>, vector<8x8xf32> -> vector<8x64xf32>
    %514 = tpu.concatenate %512, %512, %512, %512, %512, %512, %512, %512 in 1 : vector<8x8xf32>, vector<8x8xf32>, vector<8x8xf32>, vector<8x8xf32>, vector<8x8xf32>, vector<8x8xf32>, vector<8x8xf32>, vector<8x8xf32> -> vector<8x64xf32>
    %515 = vector.extract_strided_slice %510 {offsets = [0, 0], sizes = [1, 8], strides = [1, 1]} : vector<8x8xf32> to vector<1x8xf32>
    %516 = vector.extract_strided_slice %510 {offsets = [1, 0], sizes = [1, 8], strides = [1, 1]} : vector<8x8xf32> to vector<1x8xf32>
    %517 = vector.extract_strided_slice %510 {offsets = [2, 0], sizes = [1, 8], strides = [1, 1]} : vector<8x8xf32> to vector<1x8xf32>
    %518 = vector.extract_strided_slice %510 {offsets = [3, 0], sizes = [1, 8], strides = [1, 1]} : vector<8x8xf32> to vector<1x8xf32>
    %519 = vector.extract_strided_slice %510 {offsets = [4, 0], sizes = [1, 8], strides = [1, 1]} : vector<8x8xf32> to vector<1x8xf32>
    %520 = vector.extract_strided_slice %510 {offsets = [5, 0], sizes = [1, 8], strides = [1, 1]} : vector<8x8xf32> to vector<1x8xf32>
    %521 = vector.extract_strided_slice %510 {offsets = [6, 0], sizes = [1, 8], strides = [1, 1]} : vector<8x8xf32> to vector<1x8xf32>
    %522 = vector.extract_strided_slice %510 {offsets = [7, 0], sizes = [1, 8], strides = [1, 1]} : vector<8x8xf32> to vector<1x8xf32>
    %523 = tpu.concatenate %515, %516, %517, %518, %519, %520, %521, %522 in 1 : vector<1x8xf32>, vector<1x8xf32>, vector<1x8xf32>, vector<1x8xf32>, vector<1x8xf32>, vector<1x8xf32>, vector<1x8xf32>, vector<1x8xf32> -> vector<1x64xf32>
    %524 = vector.shape_cast %523 : vector<1x64xf32> to vector<1x64xf32>
    %525 = vector.broadcast %524 : vector<1x64xf32> to vector<8x64xf32>
    %526 = arith.mulf %525, %513 : vector<8x64xf32>
    %cst_68 = arith.constant dense<0xFF800000> : vector<64xf32>
    %527 = vector.multi_reduction <maximumf>, %526, %cst_68 [0] : vector<8x64xf32> to vector<64xf32>
    %528 = vector.shape_cast %527 : vector<64xf32> to vector<1x64xf32>
    %529 = vector.broadcast %528 : vector<1x64xf32> to vector<8x64xf32>
    %530 = arith.subf %526, %529 : vector<8x64xf32>
    %531 = math.exp %530 : vector<8x64xf32>
    %cst_69 = arith.constant dense<0.000000e+00> : vector<64xf32>
    %532 = vector.multi_reduction <add>, %531, %cst_69 [0] : vector<8x64xf32> to vector<64xf32>
    %533 = vector.shape_cast %532 : vector<64xf32> to vector<1x64xf32>
    %534 = tpu.reciprocal %533 {approx = true} : vector<1x64xf32> -> vector<1x64xf32>
    %535 = vector.broadcast %534 : vector<1x64xf32> to vector<8x64xf32>
    %536 = arith.mulf %531, %535 : vector<8x64xf32>
    %537 = arith.mulf %536, %514 : vector<8x64xf32>
    %cst_70 = arith.constant dense<0.000000e+00> : vector<64xf32>
    %538 = vector.multi_reduction <add>, %537, %cst_70 [0] : vector<8x64xf32> to vector<64xf32>
    %539 = vector.shape_cast %538 : vector<64xf32> to vector<1x64xf32>
    %540 = vector.extract_strided_slice %539 {offsets = [0, 0], sizes = [1, 8], strides = [1, 1]} : vector<1x64xf32> to vector<1x8xf32>
    %541 = vector.extract_strided_slice %539 {offsets = [0, 8], sizes = [1, 8], strides = [1, 1]} : vector<1x64xf32> to vector<1x8xf32>
    %542 = vector.extract_strided_slice %539 {offsets = [0, 16], sizes = [1, 8], strides = [1, 1]} : vector<1x64xf32> to vector<1x8xf32>
    %543 = vector.extract_strided_slice %539 {offsets = [0, 24], sizes = [1, 8], strides = [1, 1]} : vector<1x64xf32> to vector<1x8xf32>
    %544 = vector.extract_strided_slice %539 {offsets = [0, 32], sizes = [1, 8], strides = [1, 1]} : vector<1x64xf32> to vector<1x8xf32>
    %545 = vector.extract_strided_slice %539 {offsets = [0, 40], sizes = [1, 8], strides = [1, 1]} : vector<1x64xf32> to vector<1x8xf32>
    %546 = vector.extract_strided_slice %539 {offsets = [0, 48], sizes = [1, 8], strides = [1, 1]} : vector<1x64xf32> to vector<1x8xf32>
    %547 = vector.extract_strided_slice %539 {offsets = [0, 56], sizes = [1, 8], strides = [1, 1]} : vector<1x64xf32> to vector<1x8xf32>
    %548 = tpu.concatenate %540, %541, %542, %543, %544, %545, %546, %547 in 0 : vector<1x8xf32>, vector<1x8xf32>, vector<1x8xf32>, vector<1x8xf32>, vector<1x8xf32>, vector<1x8xf32>, vector<1x8xf32>, vector<1x8xf32> -> vector<8x8xf32>
    %549 = vector.extract_strided_slice %548 {offsets = [0, 0], sizes = [8, 1], strides = [1, 1]} : vector<8x8xf32> to vector<8x1xf32>
    %550 = vector.extract_strided_slice %459 {offsets = [0, 0], sizes = [1, 8], strides = [1, 1]} : vector<8x8xf32> to vector<1x8xf32>
    %551 = vector.broadcast %549 : vector<8x1xf32> to vector<8x8xf32>
    %552 = vector.broadcast %550 : vector<1x8xf32> to vector<8x8xf32>
    %553 = arith.mulf %551, %552 : vector<8x8xf32>
    %554 = vector.broadcast %460 : vector<1x8xf32> to vector<8x8xf32>
    %555 = arith.addf %553, %554 : vector<8x8xf32>
    %556 = vector.extract_strided_slice %548 {offsets = [0, 1], sizes = [8, 1], strides = [1, 1]} : vector<8x8xf32> to vector<8x1xf32>
    %557 = vector.extract_strided_slice %459 {offsets = [1, 0], sizes = [1, 8], strides = [1, 1]} : vector<8x8xf32> to vector<1x8xf32>
    %558 = vector.broadcast %556 : vector<8x1xf32> to vector<8x8xf32>
    %559 = vector.broadcast %557 : vector<1x8xf32> to vector<8x8xf32>
    %560 = arith.mulf %558, %559 : vector<8x8xf32>
    %561 = arith.addf %555, %560 : vector<8x8xf32>
    %562 = vector.extract_strided_slice %548 {offsets = [0, 2], sizes = [8, 1], strides = [1, 1]} : vector<8x8xf32> to vector<8x1xf32>
    %563 = vector.extract_strided_slice %459 {offsets = [2, 0], sizes = [1, 8], strides = [1, 1]} : vector<8x8xf32> to vector<1x8xf32>
    %564 = vector.broadcast %562 : vector<8x1xf32> to vector<8x8xf32>
    %565 = vector.broadcast %563 : vector<1x8xf32> to vector<8x8xf32>
    %566 = arith.mulf %564, %565 : vector<8x8xf32>
    %567 = arith.addf %561, %566 : vector<8x8xf32>
    %568 = vector.extract_strided_slice %548 {offsets = [0, 3], sizes = [8, 1], strides = [1, 1]} : vector<8x8xf32> to vector<8x1xf32>
    %569 = vector.extract_strided_slice %459 {offsets = [3, 0], sizes = [1, 8], strides = [1, 1]} : vector<8x8xf32> to vector<1x8xf32>
    %570 = vector.broadcast %568 : vector<8x1xf32> to vector<8x8xf32>
    %571 = vector.broadcast %569 : vector<1x8xf32> to vector<8x8xf32>
    %572 = arith.mulf %570, %571 : vector<8x8xf32>
    %573 = arith.addf %567, %572 : vector<8x8xf32>
    %574 = vector.extract_strided_slice %548 {offsets = [0, 4], sizes = [8, 1], strides = [1, 1]} : vector<8x8xf32> to vector<8x1xf32>
    %575 = vector.extract_strided_slice %459 {offsets = [4, 0], sizes = [1, 8], strides = [1, 1]} : vector<8x8xf32> to vector<1x8xf32>
    %576 = vector.broadcast %574 : vector<8x1xf32> to vector<8x8xf32>
    %577 = vector.broadcast %575 : vector<1x8xf32> to vector<8x8xf32>
    %578 = arith.mulf %576, %577 : vector<8x8xf32>
    %579 = arith.addf %573, %578 : vector<8x8xf32>
    %580 = vector.extract_strided_slice %548 {offsets = [0, 5], sizes = [8, 1], strides = [1, 1]} : vector<8x8xf32> to vector<8x1xf32>
    %581 = vector.extract_strided_slice %459 {offsets = [5, 0], sizes = [1, 8], strides = [1, 1]} : vector<8x8xf32> to vector<1x8xf32>
    %582 = vector.broadcast %580 : vector<8x1xf32> to vector<8x8xf32>
    %583 = vector.broadcast %581 : vector<1x8xf32> to vector<8x8xf32>
    %584 = arith.mulf %582, %583 : vector<8x8xf32>
    %585 = arith.addf %579, %584 : vector<8x8xf32>
    %586 = vector.extract_strided_slice %548 {offsets = [0, 6], sizes = [8, 1], strides = [1, 1]} : vector<8x8xf32> to vector<8x1xf32>
    %587 = vector.extract_strided_slice %459 {offsets = [6, 0], sizes = [1, 8], strides = [1, 1]} : vector<8x8xf32> to vector<1x8xf32>
    %588 = vector.broadcast %586 : vector<8x1xf32> to vector<8x8xf32>
    %589 = vector.broadcast %587 : vector<1x8xf32> to vector<8x8xf32>
    %590 = arith.mulf %588, %589 : vector<8x8xf32>
    %591 = arith.addf %585, %590 : vector<8x8xf32>
    %592 = vector.extract_strided_slice %548 {offsets = [0, 7], sizes = [8, 1], strides = [1, 1]} : vector<8x8xf32> to vector<8x1xf32>
    %593 = vector.extract_strided_slice %459 {offsets = [7, 0], sizes = [1, 8], strides = [1, 1]} : vector<8x8xf32> to vector<1x8xf32>
    %594 = vector.broadcast %592 : vector<8x1xf32> to vector<8x8xf32>
    %595 = vector.broadcast %593 : vector<1x8xf32> to vector<8x8xf32>
    %596 = arith.mulf %594, %595 : vector<8x8xf32>
    %597 = arith.addf %591, %596 : vector<8x8xf32>
    %598 = vector.extract_strided_slice %597 {offsets = [0, 0], sizes = [8, 4], strides = [1, 1]} : vector<8x8xf32> to vector<8x4xf32>
    %599 = vector.shape_cast %598 : vector<8x4xf32> to vector<8x1x4xf32>
    %600 = vector.extract_strided_slice %597 {offsets = [0, 4], sizes = [8, 4], strides = [1, 1]} : vector<8x8xf32> to vector<8x4xf32>
    %601 = vector.shape_cast %600 : vector<8x4xf32> to vector<8x1x4xf32>
    %602 = tpu.concatenate %599, %601 in 1 : vector<8x1x4xf32>, vector<8x1x4xf32> -> vector<8x2x4xf32>
    %603 = vector.shape_cast %602 : vector<8x2x4xf32> to vector<16x4xf32>
    %604 = arith.addf %0, %603 : vector<16x4xf32>
    %c188 = arith.constant 188 : index
    %c0_71 = arith.constant 0 : index
    %605 = vector.load %arg1[%c188, %c0_71] : memref<216x64xf32, #tpu.memory_space<vmem>>, vector<1x4xf32>
    %c189 = arith.constant 189 : index
    %c0_72 = arith.constant 0 : index
    %606 = vector.load %arg1[%c189, %c0_72] : memref<216x64xf32, #tpu.memory_space<vmem>>, vector<1x4xf32>
    %cst_73 = arith.constant dense<0.000000e+00> : vector<16xf32>
    %607 = vector.multi_reduction <add>, %604, %cst_73 [1] : vector<16x4xf32> to vector<16xf32>
    %608 = vector.shape_cast %607 : vector<16xf32> to vector<16x1xf32>
    %cst_74 = arith.constant 4.000000e+00 : f32
    %609 = vector.broadcast %cst_74 : f32 to vector<16x1xf32>
    %610 = arith.divf %608, %609 : vector<16x1xf32>
    %611 = vector.broadcast %610 : vector<16x1xf32> to vector<16x4xf32>
    %612 = arith.subf %604, %611 : vector<16x4xf32>
    %613 = arith.mulf %612, %612 : vector<16x4xf32>
    %cst_75 = arith.constant dense<0.000000e+00> : vector<16xf32>
    %614 = vector.multi_reduction <add>, %613, %cst_75 [1] : vector<16x4xf32> to vector<16xf32>
    %615 = vector.shape_cast %614 : vector<16xf32> to vector<16x1xf32>
    %cst_76 = arith.constant 4.000000e+00 : f32
    %616 = vector.broadcast %cst_76 : f32 to vector<16x1xf32>
    %617 = arith.divf %615, %616 : vector<16x1xf32>
    %cst_77 = arith.constant 9.99999974E-6 : f32
    %618 = vector.broadcast %cst_77 : f32 to vector<16x1xf32>
    %619 = arith.addf %617, %618 : vector<16x1xf32>
    %620 = math.rsqrt %619 : vector<16x1xf32>
    %621 = vector.broadcast %620 : vector<16x1xf32> to vector<16x4xf32>
    %622 = arith.mulf %612, %621 : vector<16x4xf32>
    %623 = vector.broadcast %605 : vector<1x4xf32> to vector<16x4xf32>
    %624 = arith.mulf %622, %623 : vector<16x4xf32>
    %625 = vector.broadcast %606 : vector<1x4xf32> to vector<16x4xf32>
    %626 = arith.addf %624, %625 : vector<16x4xf32>
    %627 = vector.shape_cast %626 : vector<16x4xf32> to vector<8x2x4xf32>
    %628 = vector.extract_strided_slice %627 {offsets = [0, 0, 0], sizes = [8, 1, 4], strides = [1, 1, 1]} : vector<8x2x4xf32> to vector<8x1x4xf32>
    %629 = vector.shape_cast %628 : vector<8x1x4xf32> to vector<8x4xf32>
    %630 = vector.extract_strided_slice %627 {offsets = [0, 1, 0], sizes = [8, 1, 4], strides = [1, 1, 1]} : vector<8x2x4xf32> to vector<8x1x4xf32>
    %631 = vector.shape_cast %630 : vector<8x1x4xf32> to vector<8x4xf32>
    %632 = tpu.concatenate %629, %631 in 1 : vector<8x4xf32>, vector<8x4xf32> -> vector<8x8xf32>
    %c32 = arith.constant 32 : index
    %c0_78 = arith.constant 0 : index
    %633 = vector.load %arg1[%c32, %c0_78] : memref<216x64xf32, #tpu.memory_space<vmem>>, vector<8x24xf32>
    %c184 = arith.constant 184 : index
    %c0_79 = arith.constant 0 : index
    %634 = vector.load %arg1[%c184, %c0_79] : memref<216x64xf32, #tpu.memory_space<vmem>>, vector<1x24xf32>
    %c80 = arith.constant 80 : index
    %c0_80 = arith.constant 0 : index
    %635 = vector.load %arg1[%c80, %c0_80] : memref<216x64xf32, #tpu.memory_space<vmem>>, vector<8x8xf32>
    %c185 = arith.constant 185 : index
    %c0_81 = arith.constant 0 : index
    %636 = vector.load %arg1[%c185, %c0_81] : memref<216x64xf32, #tpu.memory_space<vmem>>, vector<1x8xf32>
    %637 = vector.extract_strided_slice %633 {offsets = [0, 0], sizes = [8, 8], strides = [1, 1]} : vector<8x24xf32> to vector<8x8xf32>
    %638 = vector.extract_strided_slice %634 {offsets = [0, 0], sizes = [1, 8], strides = [1, 1]} : vector<1x24xf32> to vector<1x8xf32>
    %639 = vector.extract_strided_slice %632 {offsets = [0, 0], sizes = [8, 1], strides = [1, 1]} : vector<8x8xf32> to vector<8x1xf32>
    %640 = vector.extract_strided_slice %637 {offsets = [0, 0], sizes = [1, 8], strides = [1, 1]} : vector<8x8xf32> to vector<1x8xf32>
    %641 = vector.broadcast %639 : vector<8x1xf32> to vector<8x8xf32>
    %642 = vector.broadcast %640 : vector<1x8xf32> to vector<8x8xf32>
    %643 = arith.mulf %641, %642 : vector<8x8xf32>
    %644 = vector.broadcast %638 : vector<1x8xf32> to vector<8x8xf32>
    %645 = arith.addf %643, %644 : vector<8x8xf32>
    %646 = vector.extract_strided_slice %632 {offsets = [0, 1], sizes = [8, 1], strides = [1, 1]} : vector<8x8xf32> to vector<8x1xf32>
    %647 = vector.extract_strided_slice %637 {offsets = [1, 0], sizes = [1, 8], strides = [1, 1]} : vector<8x8xf32> to vector<1x8xf32>
    %648 = vector.broadcast %646 : vector<8x1xf32> to vector<8x8xf32>
    %649 = vector.broadcast %647 : vector<1x8xf32> to vector<8x8xf32>
    %650 = arith.mulf %648, %649 : vector<8x8xf32>
    %651 = arith.addf %645, %650 : vector<8x8xf32>
    %652 = vector.extract_strided_slice %632 {offsets = [0, 2], sizes = [8, 1], strides = [1, 1]} : vector<8x8xf32> to vector<8x1xf32>
    %653 = vector.extract_strided_slice %637 {offsets = [2, 0], sizes = [1, 8], strides = [1, 1]} : vector<8x8xf32> to vector<1x8xf32>
    %654 = vector.broadcast %652 : vector<8x1xf32> to vector<8x8xf32>
    %655 = vector.broadcast %653 : vector<1x8xf32> to vector<8x8xf32>
    %656 = arith.mulf %654, %655 : vector<8x8xf32>
    %657 = arith.addf %651, %656 : vector<8x8xf32>
    %658 = vector.extract_strided_slice %632 {offsets = [0, 3], sizes = [8, 1], strides = [1, 1]} : vector<8x8xf32> to vector<8x1xf32>
    %659 = vector.extract_strided_slice %637 {offsets = [3, 0], sizes = [1, 8], strides = [1, 1]} : vector<8x8xf32> to vector<1x8xf32>
    %660 = vector.broadcast %658 : vector<8x1xf32> to vector<8x8xf32>
    %661 = vector.broadcast %659 : vector<1x8xf32> to vector<8x8xf32>
    %662 = arith.mulf %660, %661 : vector<8x8xf32>
    %663 = arith.addf %657, %662 : vector<8x8xf32>
    %664 = vector.extract_strided_slice %632 {offsets = [0, 4], sizes = [8, 1], strides = [1, 1]} : vector<8x8xf32> to vector<8x1xf32>
    %665 = vector.extract_strided_slice %637 {offsets = [4, 0], sizes = [1, 8], strides = [1, 1]} : vector<8x8xf32> to vector<1x8xf32>
    %666 = vector.broadcast %664 : vector<8x1xf32> to vector<8x8xf32>
    %667 = vector.broadcast %665 : vector<1x8xf32> to vector<8x8xf32>
    %668 = arith.mulf %666, %667 : vector<8x8xf32>
    %669 = arith.addf %663, %668 : vector<8x8xf32>
    %670 = vector.extract_strided_slice %632 {offsets = [0, 5], sizes = [8, 1], strides = [1, 1]} : vector<8x8xf32> to vector<8x1xf32>
    %671 = vector.extract_strided_slice %637 {offsets = [5, 0], sizes = [1, 8], strides = [1, 1]} : vector<8x8xf32> to vector<1x8xf32>
    %672 = vector.broadcast %670 : vector<8x1xf32> to vector<8x8xf32>
    %673 = vector.broadcast %671 : vector<1x8xf32> to vector<8x8xf32>
    %674 = arith.mulf %672, %673 : vector<8x8xf32>
    %675 = arith.addf %669, %674 : vector<8x8xf32>
    %676 = vector.extract_strided_slice %632 {offsets = [0, 6], sizes = [8, 1], strides = [1, 1]} : vector<8x8xf32> to vector<8x1xf32>
    %677 = vector.extract_strided_slice %637 {offsets = [6, 0], sizes = [1, 8], strides = [1, 1]} : vector<8x8xf32> to vector<1x8xf32>
    %678 = vector.broadcast %676 : vector<8x1xf32> to vector<8x8xf32>
    %679 = vector.broadcast %677 : vector<1x8xf32> to vector<8x8xf32>
    %680 = arith.mulf %678, %679 : vector<8x8xf32>
    %681 = arith.addf %675, %680 : vector<8x8xf32>
    %682 = vector.extract_strided_slice %632 {offsets = [0, 7], sizes = [8, 1], strides = [1, 1]} : vector<8x8xf32> to vector<8x1xf32>
    %683 = vector.extract_strided_slice %637 {offsets = [7, 0], sizes = [1, 8], strides = [1, 1]} : vector<8x8xf32> to vector<1x8xf32>
    %684 = vector.broadcast %682 : vector<8x1xf32> to vector<8x8xf32>
    %685 = vector.broadcast %683 : vector<1x8xf32> to vector<8x8xf32>
    %686 = arith.mulf %684, %685 : vector<8x8xf32>
    %687 = arith.addf %681, %686 : vector<8x8xf32>
    %688 = vector.extract_strided_slice %633 {offsets = [0, 8], sizes = [8, 16], strides = [1, 1]} : vector<8x24xf32> to vector<8x16xf32>
    %689 = vector.extract_strided_slice %634 {offsets = [0, 8], sizes = [1, 16], strides = [1, 1]} : vector<1x24xf32> to vector<1x16xf32>
    %690 = vector.extract_strided_slice %450 {offsets = [0, 0], sizes = [8, 1], strides = [1, 1]} : vector<8x8xf32> to vector<8x1xf32>
    %691 = vector.extract_strided_slice %688 {offsets = [0, 0], sizes = [1, 16], strides = [1, 1]} : vector<8x16xf32> to vector<1x16xf32>
    %692 = vector.broadcast %690 : vector<8x1xf32> to vector<8x16xf32>
    %693 = vector.broadcast %691 : vector<1x16xf32> to vector<8x16xf32>
    %694 = arith.mulf %692, %693 : vector<8x16xf32>
    %695 = vector.broadcast %689 : vector<1x16xf32> to vector<8x16xf32>
    %696 = arith.addf %694, %695 : vector<8x16xf32>
    %697 = vector.extract_strided_slice %450 {offsets = [0, 1], sizes = [8, 1], strides = [1, 1]} : vector<8x8xf32> to vector<8x1xf32>
    %698 = vector.extract_strided_slice %688 {offsets = [1, 0], sizes = [1, 16], strides = [1, 1]} : vector<8x16xf32> to vector<1x16xf32>
    %699 = vector.broadcast %697 : vector<8x1xf32> to vector<8x16xf32>
    %700 = vector.broadcast %698 : vector<1x16xf32> to vector<8x16xf32>
    %701 = arith.mulf %699, %700 : vector<8x16xf32>
    %702 = arith.addf %696, %701 : vector<8x16xf32>
    %703 = vector.extract_strided_slice %450 {offsets = [0, 2], sizes = [8, 1], strides = [1, 1]} : vector<8x8xf32> to vector<8x1xf32>
    %704 = vector.extract_strided_slice %688 {offsets = [2, 0], sizes = [1, 16], strides = [1, 1]} : vector<8x16xf32> to vector<1x16xf32>
    %705 = vector.broadcast %703 : vector<8x1xf32> to vector<8x16xf32>
    %706 = vector.broadcast %704 : vector<1x16xf32> to vector<8x16xf32>
    %707 = arith.mulf %705, %706 : vector<8x16xf32>
    %708 = arith.addf %702, %707 : vector<8x16xf32>
    %709 = vector.extract_strided_slice %450 {offsets = [0, 3], sizes = [8, 1], strides = [1, 1]} : vector<8x8xf32> to vector<8x1xf32>
    %710 = vector.extract_strided_slice %688 {offsets = [3, 0], sizes = [1, 16], strides = [1, 1]} : vector<8x16xf32> to vector<1x16xf32>
    %711 = vector.broadcast %709 : vector<8x1xf32> to vector<8x16xf32>
    %712 = vector.broadcast %710 : vector<1x16xf32> to vector<8x16xf32>
    %713 = arith.mulf %711, %712 : vector<8x16xf32>
    %714 = arith.addf %708, %713 : vector<8x16xf32>
    %715 = vector.extract_strided_slice %450 {offsets = [0, 4], sizes = [8, 1], strides = [1, 1]} : vector<8x8xf32> to vector<8x1xf32>
    %716 = vector.extract_strided_slice %688 {offsets = [4, 0], sizes = [1, 16], strides = [1, 1]} : vector<8x16xf32> to vector<1x16xf32>
    %717 = vector.broadcast %715 : vector<8x1xf32> to vector<8x16xf32>
    %718 = vector.broadcast %716 : vector<1x16xf32> to vector<8x16xf32>
    %719 = arith.mulf %717, %718 : vector<8x16xf32>
    %720 = arith.addf %714, %719 : vector<8x16xf32>
    %721 = vector.extract_strided_slice %450 {offsets = [0, 5], sizes = [8, 1], strides = [1, 1]} : vector<8x8xf32> to vector<8x1xf32>
    %722 = vector.extract_strided_slice %688 {offsets = [5, 0], sizes = [1, 16], strides = [1, 1]} : vector<8x16xf32> to vector<1x16xf32>
    %723 = vector.broadcast %721 : vector<8x1xf32> to vector<8x16xf32>
    %724 = vector.broadcast %722 : vector<1x16xf32> to vector<8x16xf32>
    %725 = arith.mulf %723, %724 : vector<8x16xf32>
    %726 = arith.addf %720, %725 : vector<8x16xf32>
    %727 = vector.extract_strided_slice %450 {offsets = [0, 6], sizes = [8, 1], strides = [1, 1]} : vector<8x8xf32> to vector<8x1xf32>
    %728 = vector.extract_strided_slice %688 {offsets = [6, 0], sizes = [1, 16], strides = [1, 1]} : vector<8x16xf32> to vector<1x16xf32>
    %729 = vector.broadcast %727 : vector<8x1xf32> to vector<8x16xf32>
    %730 = vector.broadcast %728 : vector<1x16xf32> to vector<8x16xf32>
    %731 = arith.mulf %729, %730 : vector<8x16xf32>
    %732 = arith.addf %726, %731 : vector<8x16xf32>
    %733 = vector.extract_strided_slice %450 {offsets = [0, 7], sizes = [8, 1], strides = [1, 1]} : vector<8x8xf32> to vector<8x1xf32>
    %734 = vector.extract_strided_slice %688 {offsets = [7, 0], sizes = [1, 16], strides = [1, 1]} : vector<8x16xf32> to vector<1x16xf32>
    %735 = vector.broadcast %733 : vector<8x1xf32> to vector<8x16xf32>
    %736 = vector.broadcast %734 : vector<1x16xf32> to vector<8x16xf32>
    %737 = arith.mulf %735, %736 : vector<8x16xf32>
    %738 = arith.addf %732, %737 : vector<8x16xf32>
    %739 = vector.extract_strided_slice %738 {offsets = [0, 0], sizes = [8, 8], strides = [1, 1]} : vector<8x16xf32> to vector<8x8xf32>
    %740 = vector.extract_strided_slice %738 {offsets = [0, 8], sizes = [8, 8], strides = [1, 1]} : vector<8x16xf32> to vector<8x8xf32>
    %741 = tpu.concatenate %739, %739, %739, %739, %739, %739, %739, %739 in 1 : vector<8x8xf32>, vector<8x8xf32>, vector<8x8xf32>, vector<8x8xf32>, vector<8x8xf32>, vector<8x8xf32>, vector<8x8xf32>, vector<8x8xf32> -> vector<8x64xf32>
    %742 = tpu.concatenate %740, %740, %740, %740, %740, %740, %740, %740 in 1 : vector<8x8xf32>, vector<8x8xf32>, vector<8x8xf32>, vector<8x8xf32>, vector<8x8xf32>, vector<8x8xf32>, vector<8x8xf32>, vector<8x8xf32> -> vector<8x64xf32>
    %743 = vector.extract_strided_slice %687 {offsets = [0, 0], sizes = [1, 8], strides = [1, 1]} : vector<8x8xf32> to vector<1x8xf32>
    %744 = vector.extract_strided_slice %687 {offsets = [1, 0], sizes = [1, 8], strides = [1, 1]} : vector<8x8xf32> to vector<1x8xf32>
    %745 = vector.extract_strided_slice %687 {offsets = [2, 0], sizes = [1, 8], strides = [1, 1]} : vector<8x8xf32> to vector<1x8xf32>
    %746 = vector.extract_strided_slice %687 {offsets = [3, 0], sizes = [1, 8], strides = [1, 1]} : vector<8x8xf32> to vector<1x8xf32>
    %747 = vector.extract_strided_slice %687 {offsets = [4, 0], sizes = [1, 8], strides = [1, 1]} : vector<8x8xf32> to vector<1x8xf32>
    %748 = vector.extract_strided_slice %687 {offsets = [5, 0], sizes = [1, 8], strides = [1, 1]} : vector<8x8xf32> to vector<1x8xf32>
    %749 = vector.extract_strided_slice %687 {offsets = [6, 0], sizes = [1, 8], strides = [1, 1]} : vector<8x8xf32> to vector<1x8xf32>
    %750 = vector.extract_strided_slice %687 {offsets = [7, 0], sizes = [1, 8], strides = [1, 1]} : vector<8x8xf32> to vector<1x8xf32>
    %751 = tpu.concatenate %743, %744, %745, %746, %747, %748, %749, %750 in 1 : vector<1x8xf32>, vector<1x8xf32>, vector<1x8xf32>, vector<1x8xf32>, vector<1x8xf32>, vector<1x8xf32>, vector<1x8xf32>, vector<1x8xf32> -> vector<1x64xf32>
    %752 = vector.shape_cast %751 : vector<1x64xf32> to vector<1x64xf32>
    %753 = vector.broadcast %752 : vector<1x64xf32> to vector<8x64xf32>
    %754 = arith.mulf %753, %741 : vector<8x64xf32>
    %cst_82 = arith.constant dense<0xFF800000> : vector<64xf32>
    %755 = vector.multi_reduction <maximumf>, %754, %cst_82 [0] : vector<8x64xf32> to vector<64xf32>
    %756 = vector.shape_cast %755 : vector<64xf32> to vector<1x64xf32>
    %757 = vector.broadcast %756 : vector<1x64xf32> to vector<8x64xf32>
    %758 = arith.subf %754, %757 : vector<8x64xf32>
    %759 = math.exp %758 : vector<8x64xf32>
    %cst_83 = arith.constant dense<0.000000e+00> : vector<64xf32>
    %760 = vector.multi_reduction <add>, %759, %cst_83 [0] : vector<8x64xf32> to vector<64xf32>
    %761 = vector.shape_cast %760 : vector<64xf32> to vector<1x64xf32>
    %762 = tpu.reciprocal %761 {approx = true} : vector<1x64xf32> -> vector<1x64xf32>
    %763 = vector.broadcast %762 : vector<1x64xf32> to vector<8x64xf32>
    %764 = arith.mulf %759, %763 : vector<8x64xf32>
    %765 = arith.mulf %764, %742 : vector<8x64xf32>
    %cst_84 = arith.constant dense<0.000000e+00> : vector<64xf32>
    %766 = vector.multi_reduction <add>, %765, %cst_84 [0] : vector<8x64xf32> to vector<64xf32>
    %767 = vector.shape_cast %766 : vector<64xf32> to vector<1x64xf32>
    %768 = vector.extract_strided_slice %767 {offsets = [0, 0], sizes = [1, 8], strides = [1, 1]} : vector<1x64xf32> to vector<1x8xf32>
    %769 = vector.extract_strided_slice %767 {offsets = [0, 8], sizes = [1, 8], strides = [1, 1]} : vector<1x64xf32> to vector<1x8xf32>
    %770 = vector.extract_strided_slice %767 {offsets = [0, 16], sizes = [1, 8], strides = [1, 1]} : vector<1x64xf32> to vector<1x8xf32>
    %771 = vector.extract_strided_slice %767 {offsets = [0, 24], sizes = [1, 8], strides = [1, 1]} : vector<1x64xf32> to vector<1x8xf32>
    %772 = vector.extract_strided_slice %767 {offsets = [0, 32], sizes = [1, 8], strides = [1, 1]} : vector<1x64xf32> to vector<1x8xf32>
    %773 = vector.extract_strided_slice %767 {offsets = [0, 40], sizes = [1, 8], strides = [1, 1]} : vector<1x64xf32> to vector<1x8xf32>
    %774 = vector.extract_strided_slice %767 {offsets = [0, 48], sizes = [1, 8], strides = [1, 1]} : vector<1x64xf32> to vector<1x8xf32>
    %775 = vector.extract_strided_slice %767 {offsets = [0, 56], sizes = [1, 8], strides = [1, 1]} : vector<1x64xf32> to vector<1x8xf32>
    %776 = tpu.concatenate %768, %769, %770, %771, %772, %773, %774, %775 in 0 : vector<1x8xf32>, vector<1x8xf32>, vector<1x8xf32>, vector<1x8xf32>, vector<1x8xf32>, vector<1x8xf32>, vector<1x8xf32>, vector<1x8xf32> -> vector<8x8xf32>
    %777 = vector.extract_strided_slice %776 {offsets = [0, 0], sizes = [8, 1], strides = [1, 1]} : vector<8x8xf32> to vector<8x1xf32>
    %778 = vector.extract_strided_slice %635 {offsets = [0, 0], sizes = [1, 8], strides = [1, 1]} : vector<8x8xf32> to vector<1x8xf32>
    %779 = vector.broadcast %777 : vector<8x1xf32> to vector<8x8xf32>
    %780 = vector.broadcast %778 : vector<1x8xf32> to vector<8x8xf32>
    %781 = arith.mulf %779, %780 : vector<8x8xf32>
    %782 = vector.broadcast %636 : vector<1x8xf32> to vector<8x8xf32>
    %783 = arith.addf %781, %782 : vector<8x8xf32>
    %784 = vector.extract_strided_slice %776 {offsets = [0, 1], sizes = [8, 1], strides = [1, 1]} : vector<8x8xf32> to vector<8x1xf32>
    %785 = vector.extract_strided_slice %635 {offsets = [1, 0], sizes = [1, 8], strides = [1, 1]} : vector<8x8xf32> to vector<1x8xf32>
    %786 = vector.broadcast %784 : vector<8x1xf32> to vector<8x8xf32>
    %787 = vector.broadcast %785 : vector<1x8xf32> to vector<8x8xf32>
    %788 = arith.mulf %786, %787 : vector<8x8xf32>
    %789 = arith.addf %783, %788 : vector<8x8xf32>
    %790 = vector.extract_strided_slice %776 {offsets = [0, 2], sizes = [8, 1], strides = [1, 1]} : vector<8x8xf32> to vector<8x1xf32>
    %791 = vector.extract_strided_slice %635 {offsets = [2, 0], sizes = [1, 8], strides = [1, 1]} : vector<8x8xf32> to vector<1x8xf32>
    %792 = vector.broadcast %790 : vector<8x1xf32> to vector<8x8xf32>
    %793 = vector.broadcast %791 : vector<1x8xf32> to vector<8x8xf32>
    %794 = arith.mulf %792, %793 : vector<8x8xf32>
    %795 = arith.addf %789, %794 : vector<8x8xf32>
    %796 = vector.extract_strided_slice %776 {offsets = [0, 3], sizes = [8, 1], strides = [1, 1]} : vector<8x8xf32> to vector<8x1xf32>
    %797 = vector.extract_strided_slice %635 {offsets = [3, 0], sizes = [1, 8], strides = [1, 1]} : vector<8x8xf32> to vector<1x8xf32>
    %798 = vector.broadcast %796 : vector<8x1xf32> to vector<8x8xf32>
    %799 = vector.broadcast %797 : vector<1x8xf32> to vector<8x8xf32>
    %800 = arith.mulf %798, %799 : vector<8x8xf32>
    %801 = arith.addf %795, %800 : vector<8x8xf32>
    %802 = vector.extract_strided_slice %776 {offsets = [0, 4], sizes = [8, 1], strides = [1, 1]} : vector<8x8xf32> to vector<8x1xf32>
    %803 = vector.extract_strided_slice %635 {offsets = [4, 0], sizes = [1, 8], strides = [1, 1]} : vector<8x8xf32> to vector<1x8xf32>
    %804 = vector.broadcast %802 : vector<8x1xf32> to vector<8x8xf32>
    %805 = vector.broadcast %803 : vector<1x8xf32> to vector<8x8xf32>
    %806 = arith.mulf %804, %805 : vector<8x8xf32>
    %807 = arith.addf %801, %806 : vector<8x8xf32>
    %808 = vector.extract_strided_slice %776 {offsets = [0, 5], sizes = [8, 1], strides = [1, 1]} : vector<8x8xf32> to vector<8x1xf32>
    %809 = vector.extract_strided_slice %635 {offsets = [5, 0], sizes = [1, 8], strides = [1, 1]} : vector<8x8xf32> to vector<1x8xf32>
    %810 = vector.broadcast %808 : vector<8x1xf32> to vector<8x8xf32>
    %811 = vector.broadcast %809 : vector<1x8xf32> to vector<8x8xf32>
    %812 = arith.mulf %810, %811 : vector<8x8xf32>
    %813 = arith.addf %807, %812 : vector<8x8xf32>
    %814 = vector.extract_strided_slice %776 {offsets = [0, 6], sizes = [8, 1], strides = [1, 1]} : vector<8x8xf32> to vector<8x1xf32>
    %815 = vector.extract_strided_slice %635 {offsets = [6, 0], sizes = [1, 8], strides = [1, 1]} : vector<8x8xf32> to vector<1x8xf32>
    %816 = vector.broadcast %814 : vector<8x1xf32> to vector<8x8xf32>
    %817 = vector.broadcast %815 : vector<1x8xf32> to vector<8x8xf32>
    %818 = arith.mulf %816, %817 : vector<8x8xf32>
    %819 = arith.addf %813, %818 : vector<8x8xf32>
    %820 = vector.extract_strided_slice %776 {offsets = [0, 7], sizes = [8, 1], strides = [1, 1]} : vector<8x8xf32> to vector<8x1xf32>
    %821 = vector.extract_strided_slice %635 {offsets = [7, 0], sizes = [1, 8], strides = [1, 1]} : vector<8x8xf32> to vector<1x8xf32>
    %822 = vector.broadcast %820 : vector<8x1xf32> to vector<8x8xf32>
    %823 = vector.broadcast %821 : vector<1x8xf32> to vector<8x8xf32>
    %824 = arith.mulf %822, %823 : vector<8x8xf32>
    %825 = arith.addf %819, %824 : vector<8x8xf32>
    %826 = vector.extract_strided_slice %825 {offsets = [0, 0], sizes = [8, 4], strides = [1, 1]} : vector<8x8xf32> to vector<8x4xf32>
    %827 = vector.shape_cast %826 : vector<8x4xf32> to vector<8x1x4xf32>
    %828 = vector.extract_strided_slice %825 {offsets = [0, 4], sizes = [8, 4], strides = [1, 1]} : vector<8x8xf32> to vector<8x4xf32>
    %829 = vector.shape_cast %828 : vector<8x4xf32> to vector<8x1x4xf32>
    %830 = tpu.concatenate %827, %829 in 1 : vector<8x1x4xf32>, vector<8x1x4xf32> -> vector<8x2x4xf32>
    %831 = vector.shape_cast %830 : vector<8x2x4xf32> to vector<16x4xf32>
    %832 = arith.addf %626, %831 : vector<16x4xf32>
    %c190 = arith.constant 190 : index
    %c0_85 = arith.constant 0 : index
    %833 = vector.load %arg1[%c190, %c0_85] : memref<216x64xf32, #tpu.memory_space<vmem>>, vector<1x4xf32>
    %c191 = arith.constant 191 : index
    %c0_86 = arith.constant 0 : index
    %834 = vector.load %arg1[%c191, %c0_86] : memref<216x64xf32, #tpu.memory_space<vmem>>, vector<1x4xf32>
    %cst_87 = arith.constant dense<0.000000e+00> : vector<16xf32>
    %835 = vector.multi_reduction <add>, %832, %cst_87 [1] : vector<16x4xf32> to vector<16xf32>
    %836 = vector.shape_cast %835 : vector<16xf32> to vector<16x1xf32>
    %cst_88 = arith.constant 4.000000e+00 : f32
    %837 = vector.broadcast %cst_88 : f32 to vector<16x1xf32>
    %838 = arith.divf %836, %837 : vector<16x1xf32>
    %839 = vector.broadcast %838 : vector<16x1xf32> to vector<16x4xf32>
    %840 = arith.subf %832, %839 : vector<16x4xf32>
    %841 = arith.mulf %840, %840 : vector<16x4xf32>
    %cst_89 = arith.constant dense<0.000000e+00> : vector<16xf32>
    %842 = vector.multi_reduction <add>, %841, %cst_89 [1] : vector<16x4xf32> to vector<16xf32>
    %843 = vector.shape_cast %842 : vector<16xf32> to vector<16x1xf32>
    %cst_90 = arith.constant 4.000000e+00 : f32
    %844 = vector.broadcast %cst_90 : f32 to vector<16x1xf32>
    %845 = arith.divf %843, %844 : vector<16x1xf32>
    %cst_91 = arith.constant 9.99999974E-6 : f32
    %846 = vector.broadcast %cst_91 : f32 to vector<16x1xf32>
    %847 = arith.addf %845, %846 : vector<16x1xf32>
    %848 = math.rsqrt %847 : vector<16x1xf32>
    %849 = vector.broadcast %848 : vector<16x1xf32> to vector<16x4xf32>
    %850 = arith.mulf %840, %849 : vector<16x4xf32>
    %851 = vector.broadcast %833 : vector<1x4xf32> to vector<16x4xf32>
    %852 = arith.mulf %850, %851 : vector<16x4xf32>
    %853 = vector.broadcast %834 : vector<1x4xf32> to vector<16x4xf32>
    %854 = arith.addf %852, %853 : vector<16x4xf32>
    %c120 = arith.constant 120 : index
    %c0_92 = arith.constant 0 : index
    %855 = vector.load %arg1[%c120, %c0_92] : memref<216x64xf32, #tpu.memory_space<vmem>>, vector<4x64xf32>
    %c186 = arith.constant 186 : index
    %c0_93 = arith.constant 0 : index
    %856 = vector.load %arg1[%c186, %c0_93] : memref<216x64xf32, #tpu.memory_space<vmem>>, vector<1x64xf32>
    %c152 = arith.constant 152 : index
    %c0_94 = arith.constant 0 : index
    %857 = vector.load %arg1[%c152, %c0_94] : memref<216x64xf32, #tpu.memory_space<vmem>>, vector<4x64xf32>
    %c187 = arith.constant 187 : index
    %c0_95 = arith.constant 0 : index
    %858 = vector.load %arg1[%c187, %c0_95] : memref<216x64xf32, #tpu.memory_space<vmem>>, vector<1x4xf32>
    %cst_96 = arith.constant dense<0.000000e+00> : vector<16x64xf32>
    %859 = tpu.matmul %854, %855, %cst_96 {dimension_numbers = #tpu.dot_dimension_numbers<[1], [0], [0], [1], [0, 0, 1, 1], [], []>} : vector<16x4xf32>, vector<4x64xf32>, vector<16x64xf32> -> vector<16x64xf32>
    %860 = vector.broadcast %856 : vector<1x64xf32> to vector<16x64xf32>
    %861 = arith.addf %859, %860 : vector<16x64xf32>
    %cst_97 = arith.constant 0.000000e+00 : f32
    %862 = vector.broadcast %cst_97 : f32 to vector<16x64xf32>
    %863 = arith.maximumf %861, %862 : vector<16x64xf32>
    %cst_98 = arith.constant dense<0.000000e+00> : vector<16x4xf32>
    %864 = tpu.matmul %863, %857, %cst_98 {dimension_numbers = #tpu.dot_dimension_numbers<[1], [1], [0], [0], [0, 0, 1, 0], [], []>} : vector<16x64xf32>, vector<4x64xf32>, vector<16x4xf32> -> vector<16x4xf32>
    %865 = vector.broadcast %858 : vector<1x4xf32> to vector<16x4xf32>
    %866 = arith.addf %864, %865 : vector<16x4xf32>
    %867 = arith.addf %854, %866 : vector<16x4xf32>
    %c192 = arith.constant 192 : index
    %c0_99 = arith.constant 0 : index
    %868 = vector.load %arg1[%c192, %c0_99] : memref<216x64xf32, #tpu.memory_space<vmem>>, vector<1x4xf32>
    %c193 = arith.constant 193 : index
    %c0_100 = arith.constant 0 : index
    %869 = vector.load %arg1[%c193, %c0_100] : memref<216x64xf32, #tpu.memory_space<vmem>>, vector<1x4xf32>
    %cst_101 = arith.constant dense<0.000000e+00> : vector<16xf32>
    %870 = vector.multi_reduction <add>, %867, %cst_101 [1] : vector<16x4xf32> to vector<16xf32>
    %871 = vector.shape_cast %870 : vector<16xf32> to vector<16x1xf32>
    %cst_102 = arith.constant 4.000000e+00 : f32
    %872 = vector.broadcast %cst_102 : f32 to vector<16x1xf32>
    %873 = arith.divf %871, %872 : vector<16x1xf32>
    %874 = vector.broadcast %873 : vector<16x1xf32> to vector<16x4xf32>
    %875 = arith.subf %867, %874 : vector<16x4xf32>
    %876 = arith.mulf %875, %875 : vector<16x4xf32>
    %cst_103 = arith.constant dense<0.000000e+00> : vector<16xf32>
    %877 = vector.multi_reduction <add>, %876, %cst_103 [1] : vector<16x4xf32> to vector<16xf32>
    %878 = vector.shape_cast %877 : vector<16xf32> to vector<16x1xf32>
    %cst_104 = arith.constant 4.000000e+00 : f32
    %879 = vector.broadcast %cst_104 : f32 to vector<16x1xf32>
    %880 = arith.divf %878, %879 : vector<16x1xf32>
    %cst_105 = arith.constant 9.99999974E-6 : f32
    %881 = vector.broadcast %cst_105 : f32 to vector<16x1xf32>
    %882 = arith.addf %880, %881 : vector<16x1xf32>
    %883 = math.rsqrt %882 : vector<16x1xf32>
    %884 = vector.broadcast %883 : vector<16x1xf32> to vector<16x4xf32>
    %885 = arith.mulf %875, %884 : vector<16x4xf32>
    %886 = vector.broadcast %868 : vector<1x4xf32> to vector<16x4xf32>
    %887 = arith.mulf %885, %886 : vector<16x4xf32>
    %888 = vector.broadcast %869 : vector<1x4xf32> to vector<16x4xf32>
    %889 = arith.addf %887, %888 : vector<16x4xf32>
    %890 = vector.shape_cast %889 : vector<16x4xf32> to vector<8x2x4xf32>
    %891 = vector.extract_strided_slice %890 {offsets = [0, 0, 0], sizes = [8, 1, 4], strides = [1, 1, 1]} : vector<8x2x4xf32> to vector<8x1x4xf32>
    %892 = vector.shape_cast %891 : vector<8x1x4xf32> to vector<8x4xf32>
    %893 = vector.extract_strided_slice %890 {offsets = [0, 1, 0], sizes = [8, 1, 4], strides = [1, 1, 1]} : vector<8x2x4xf32> to vector<8x1x4xf32>
    %894 = vector.shape_cast %893 : vector<8x1x4xf32> to vector<8x4xf32>
    %895 = tpu.concatenate %892, %894 in 1 : vector<8x4xf32>, vector<8x4xf32> -> vector<8x8xf32>
    %c24 = arith.constant 24 : index
    %c0_106 = arith.constant 0 : index
    %896 = vector.load %arg1[%c24, %c0_106] : memref<216x64xf32, #tpu.memory_space<vmem>>, vector<8x24xf32>
    %c194 = arith.constant 194 : index
    %c0_107 = arith.constant 0 : index
    %897 = vector.load %arg1[%c194, %c0_107] : memref<216x64xf32, #tpu.memory_space<vmem>>, vector<1x24xf32>
    %c72 = arith.constant 72 : index
    %c0_108 = arith.constant 0 : index
    %898 = vector.load %arg1[%c72, %c0_108] : memref<216x64xf32, #tpu.memory_space<vmem>>, vector<8x8xf32>
    %c195 = arith.constant 195 : index
    %c0_109 = arith.constant 0 : index
    %899 = vector.load %arg1[%c195, %c0_109] : memref<216x64xf32, #tpu.memory_space<vmem>>, vector<1x8xf32>
    %900 = vector.extract_strided_slice %895 {offsets = [0, 0], sizes = [8, 1], strides = [1, 1]} : vector<8x8xf32> to vector<8x1xf32>
    %901 = vector.extract_strided_slice %896 {offsets = [0, 0], sizes = [1, 24], strides = [1, 1]} : vector<8x24xf32> to vector<1x24xf32>
    %902 = vector.broadcast %900 : vector<8x1xf32> to vector<8x24xf32>
    %903 = vector.broadcast %901 : vector<1x24xf32> to vector<8x24xf32>
    %904 = arith.mulf %902, %903 : vector<8x24xf32>
    %905 = vector.broadcast %897 : vector<1x24xf32> to vector<8x24xf32>
    %906 = arith.addf %904, %905 : vector<8x24xf32>
    %907 = vector.extract_strided_slice %895 {offsets = [0, 1], sizes = [8, 1], strides = [1, 1]} : vector<8x8xf32> to vector<8x1xf32>
    %908 = vector.extract_strided_slice %896 {offsets = [1, 0], sizes = [1, 24], strides = [1, 1]} : vector<8x24xf32> to vector<1x24xf32>
    %909 = vector.broadcast %907 : vector<8x1xf32> to vector<8x24xf32>
    %910 = vector.broadcast %908 : vector<1x24xf32> to vector<8x24xf32>
    %911 = arith.mulf %909, %910 : vector<8x24xf32>
    %912 = arith.addf %906, %911 : vector<8x24xf32>
    %913 = vector.extract_strided_slice %895 {offsets = [0, 2], sizes = [8, 1], strides = [1, 1]} : vector<8x8xf32> to vector<8x1xf32>
    %914 = vector.extract_strided_slice %896 {offsets = [2, 0], sizes = [1, 24], strides = [1, 1]} : vector<8x24xf32> to vector<1x24xf32>
    %915 = vector.broadcast %913 : vector<8x1xf32> to vector<8x24xf32>
    %916 = vector.broadcast %914 : vector<1x24xf32> to vector<8x24xf32>
    %917 = arith.mulf %915, %916 : vector<8x24xf32>
    %918 = arith.addf %912, %917 : vector<8x24xf32>
    %919 = vector.extract_strided_slice %895 {offsets = [0, 3], sizes = [8, 1], strides = [1, 1]} : vector<8x8xf32> to vector<8x1xf32>
    %920 = vector.extract_strided_slice %896 {offsets = [3, 0], sizes = [1, 24], strides = [1, 1]} : vector<8x24xf32> to vector<1x24xf32>
    %921 = vector.broadcast %919 : vector<8x1xf32> to vector<8x24xf32>
    %922 = vector.broadcast %920 : vector<1x24xf32> to vector<8x24xf32>
    %923 = arith.mulf %921, %922 : vector<8x24xf32>
    %924 = arith.addf %918, %923 : vector<8x24xf32>
    %925 = vector.extract_strided_slice %895 {offsets = [0, 4], sizes = [8, 1], strides = [1, 1]} : vector<8x8xf32> to vector<8x1xf32>
    %926 = vector.extract_strided_slice %896 {offsets = [4, 0], sizes = [1, 24], strides = [1, 1]} : vector<8x24xf32> to vector<1x24xf32>
    %927 = vector.broadcast %925 : vector<8x1xf32> to vector<8x24xf32>
    %928 = vector.broadcast %926 : vector<1x24xf32> to vector<8x24xf32>
    %929 = arith.mulf %927, %928 : vector<8x24xf32>
    %930 = arith.addf %924, %929 : vector<8x24xf32>
    %931 = vector.extract_strided_slice %895 {offsets = [0, 5], sizes = [8, 1], strides = [1, 1]} : vector<8x8xf32> to vector<8x1xf32>
    %932 = vector.extract_strided_slice %896 {offsets = [5, 0], sizes = [1, 24], strides = [1, 1]} : vector<8x24xf32> to vector<1x24xf32>
    %933 = vector.broadcast %931 : vector<8x1xf32> to vector<8x24xf32>
    %934 = vector.broadcast %932 : vector<1x24xf32> to vector<8x24xf32>
    %935 = arith.mulf %933, %934 : vector<8x24xf32>
    %936 = arith.addf %930, %935 : vector<8x24xf32>
    %937 = vector.extract_strided_slice %895 {offsets = [0, 6], sizes = [8, 1], strides = [1, 1]} : vector<8x8xf32> to vector<8x1xf32>
    %938 = vector.extract_strided_slice %896 {offsets = [6, 0], sizes = [1, 24], strides = [1, 1]} : vector<8x24xf32> to vector<1x24xf32>
    %939 = vector.broadcast %937 : vector<8x1xf32> to vector<8x24xf32>
    %940 = vector.broadcast %938 : vector<1x24xf32> to vector<8x24xf32>
    %941 = arith.mulf %939, %940 : vector<8x24xf32>
    %942 = arith.addf %936, %941 : vector<8x24xf32>
    %943 = vector.extract_strided_slice %895 {offsets = [0, 7], sizes = [8, 1], strides = [1, 1]} : vector<8x8xf32> to vector<8x1xf32>
    %944 = vector.extract_strided_slice %896 {offsets = [7, 0], sizes = [1, 24], strides = [1, 1]} : vector<8x24xf32> to vector<1x24xf32>
    %945 = vector.broadcast %943 : vector<8x1xf32> to vector<8x24xf32>
    %946 = vector.broadcast %944 : vector<1x24xf32> to vector<8x24xf32>
    %947 = arith.mulf %945, %946 : vector<8x24xf32>
    %948 = arith.addf %942, %947 : vector<8x24xf32>
    %949 = vector.extract_strided_slice %948 {offsets = [0, 0], sizes = [8, 8], strides = [1, 1]} : vector<8x24xf32> to vector<8x8xf32>
    %950 = vector.extract_strided_slice %948 {offsets = [0, 8], sizes = [8, 8], strides = [1, 1]} : vector<8x24xf32> to vector<8x8xf32>
    %951 = vector.extract_strided_slice %948 {offsets = [0, 16], sizes = [8, 8], strides = [1, 1]} : vector<8x24xf32> to vector<8x8xf32>
    %952 = tpu.concatenate %950, %950, %950, %950, %950, %950, %950, %950 in 1 : vector<8x8xf32>, vector<8x8xf32>, vector<8x8xf32>, vector<8x8xf32>, vector<8x8xf32>, vector<8x8xf32>, vector<8x8xf32>, vector<8x8xf32> -> vector<8x64xf32>
    %953 = tpu.concatenate %951, %951, %951, %951, %951, %951, %951, %951 in 1 : vector<8x8xf32>, vector<8x8xf32>, vector<8x8xf32>, vector<8x8xf32>, vector<8x8xf32>, vector<8x8xf32>, vector<8x8xf32>, vector<8x8xf32> -> vector<8x64xf32>
    %954 = vector.extract_strided_slice %949 {offsets = [0, 0], sizes = [1, 8], strides = [1, 1]} : vector<8x8xf32> to vector<1x8xf32>
    %955 = vector.extract_strided_slice %949 {offsets = [1, 0], sizes = [1, 8], strides = [1, 1]} : vector<8x8xf32> to vector<1x8xf32>
    %956 = vector.extract_strided_slice %949 {offsets = [2, 0], sizes = [1, 8], strides = [1, 1]} : vector<8x8xf32> to vector<1x8xf32>
    %957 = vector.extract_strided_slice %949 {offsets = [3, 0], sizes = [1, 8], strides = [1, 1]} : vector<8x8xf32> to vector<1x8xf32>
    %958 = vector.extract_strided_slice %949 {offsets = [4, 0], sizes = [1, 8], strides = [1, 1]} : vector<8x8xf32> to vector<1x8xf32>
    %959 = vector.extract_strided_slice %949 {offsets = [5, 0], sizes = [1, 8], strides = [1, 1]} : vector<8x8xf32> to vector<1x8xf32>
    %960 = vector.extract_strided_slice %949 {offsets = [6, 0], sizes = [1, 8], strides = [1, 1]} : vector<8x8xf32> to vector<1x8xf32>
    %961 = vector.extract_strided_slice %949 {offsets = [7, 0], sizes = [1, 8], strides = [1, 1]} : vector<8x8xf32> to vector<1x8xf32>
    %962 = tpu.concatenate %954, %955, %956, %957, %958, %959, %960, %961 in 1 : vector<1x8xf32>, vector<1x8xf32>, vector<1x8xf32>, vector<1x8xf32>, vector<1x8xf32>, vector<1x8xf32>, vector<1x8xf32>, vector<1x8xf32> -> vector<1x64xf32>
    %963 = vector.shape_cast %962 : vector<1x64xf32> to vector<1x64xf32>
    %964 = vector.broadcast %963 : vector<1x64xf32> to vector<8x64xf32>
    %965 = arith.mulf %964, %952 : vector<8x64xf32>
    %cst_110 = arith.constant dense<0xFF800000> : vector<64xf32>
    %966 = vector.multi_reduction <maximumf>, %965, %cst_110 [0] : vector<8x64xf32> to vector<64xf32>
    %967 = vector.shape_cast %966 : vector<64xf32> to vector<1x64xf32>
    %968 = vector.broadcast %967 : vector<1x64xf32> to vector<8x64xf32>
    %969 = arith.subf %965, %968 : vector<8x64xf32>
    %970 = math.exp %969 : vector<8x64xf32>
    %cst_111 = arith.constant dense<0.000000e+00> : vector<64xf32>
    %971 = vector.multi_reduction <add>, %970, %cst_111 [0] : vector<8x64xf32> to vector<64xf32>
    %972 = vector.shape_cast %971 : vector<64xf32> to vector<1x64xf32>
    %973 = tpu.reciprocal %972 {approx = true} : vector<1x64xf32> -> vector<1x64xf32>
    %974 = vector.broadcast %973 : vector<1x64xf32> to vector<8x64xf32>
    %975 = arith.mulf %970, %974 : vector<8x64xf32>
    %976 = arith.mulf %975, %953 : vector<8x64xf32>
    %cst_112 = arith.constant dense<0.000000e+00> : vector<64xf32>
    %977 = vector.multi_reduction <add>, %976, %cst_112 [0] : vector<8x64xf32> to vector<64xf32>
    %978 = vector.shape_cast %977 : vector<64xf32> to vector<1x64xf32>
    %979 = vector.extract_strided_slice %978 {offsets = [0, 0], sizes = [1, 8], strides = [1, 1]} : vector<1x64xf32> to vector<1x8xf32>
    %980 = vector.extract_strided_slice %978 {offsets = [0, 8], sizes = [1, 8], strides = [1, 1]} : vector<1x64xf32> to vector<1x8xf32>
    %981 = vector.extract_strided_slice %978 {offsets = [0, 16], sizes = [1, 8], strides = [1, 1]} : vector<1x64xf32> to vector<1x8xf32>
    %982 = vector.extract_strided_slice %978 {offsets = [0, 24], sizes = [1, 8], strides = [1, 1]} : vector<1x64xf32> to vector<1x8xf32>
    %983 = vector.extract_strided_slice %978 {offsets = [0, 32], sizes = [1, 8], strides = [1, 1]} : vector<1x64xf32> to vector<1x8xf32>
    %984 = vector.extract_strided_slice %978 {offsets = [0, 40], sizes = [1, 8], strides = [1, 1]} : vector<1x64xf32> to vector<1x8xf32>
    %985 = vector.extract_strided_slice %978 {offsets = [0, 48], sizes = [1, 8], strides = [1, 1]} : vector<1x64xf32> to vector<1x8xf32>
    %986 = vector.extract_strided_slice %978 {offsets = [0, 56], sizes = [1, 8], strides = [1, 1]} : vector<1x64xf32> to vector<1x8xf32>
    %987 = tpu.concatenate %979, %980, %981, %982, %983, %984, %985, %986 in 0 : vector<1x8xf32>, vector<1x8xf32>, vector<1x8xf32>, vector<1x8xf32>, vector<1x8xf32>, vector<1x8xf32>, vector<1x8xf32>, vector<1x8xf32> -> vector<8x8xf32>
    %988 = vector.extract_strided_slice %987 {offsets = [0, 0], sizes = [8, 1], strides = [1, 1]} : vector<8x8xf32> to vector<8x1xf32>
    %989 = vector.extract_strided_slice %898 {offsets = [0, 0], sizes = [1, 8], strides = [1, 1]} : vector<8x8xf32> to vector<1x8xf32>
    %990 = vector.broadcast %988 : vector<8x1xf32> to vector<8x8xf32>
    %991 = vector.broadcast %989 : vector<1x8xf32> to vector<8x8xf32>
    %992 = arith.mulf %990, %991 : vector<8x8xf32>
    %993 = vector.broadcast %899 : vector<1x8xf32> to vector<8x8xf32>
    %994 = arith.addf %992, %993 : vector<8x8xf32>
    %995 = vector.extract_strided_slice %987 {offsets = [0, 1], sizes = [8, 1], strides = [1, 1]} : vector<8x8xf32> to vector<8x1xf32>
    %996 = vector.extract_strided_slice %898 {offsets = [1, 0], sizes = [1, 8], strides = [1, 1]} : vector<8x8xf32> to vector<1x8xf32>
    %997 = vector.broadcast %995 : vector<8x1xf32> to vector<8x8xf32>
    %998 = vector.broadcast %996 : vector<1x8xf32> to vector<8x8xf32>
    %999 = arith.mulf %997, %998 : vector<8x8xf32>
    %1000 = arith.addf %994, %999 : vector<8x8xf32>
    %1001 = vector.extract_strided_slice %987 {offsets = [0, 2], sizes = [8, 1], strides = [1, 1]} : vector<8x8xf32> to vector<8x1xf32>
    %1002 = vector.extract_strided_slice %898 {offsets = [2, 0], sizes = [1, 8], strides = [1, 1]} : vector<8x8xf32> to vector<1x8xf32>
    %1003 = vector.broadcast %1001 : vector<8x1xf32> to vector<8x8xf32>
    %1004 = vector.broadcast %1002 : vector<1x8xf32> to vector<8x8xf32>
    %1005 = arith.mulf %1003, %1004 : vector<8x8xf32>
    %1006 = arith.addf %1000, %1005 : vector<8x8xf32>
    %1007 = vector.extract_strided_slice %987 {offsets = [0, 3], sizes = [8, 1], strides = [1, 1]} : vector<8x8xf32> to vector<8x1xf32>
    %1008 = vector.extract_strided_slice %898 {offsets = [3, 0], sizes = [1, 8], strides = [1, 1]} : vector<8x8xf32> to vector<1x8xf32>
    %1009 = vector.broadcast %1007 : vector<8x1xf32> to vector<8x8xf32>
    %1010 = vector.broadcast %1008 : vector<1x8xf32> to vector<8x8xf32>
    %1011 = arith.mulf %1009, %1010 : vector<8x8xf32>
    %1012 = arith.addf %1006, %1011 : vector<8x8xf32>
    %1013 = vector.extract_strided_slice %987 {offsets = [0, 4], sizes = [8, 1], strides = [1, 1]} : vector<8x8xf32> to vector<8x1xf32>
    %1014 = vector.extract_strided_slice %898 {offsets = [4, 0], sizes = [1, 8], strides = [1, 1]} : vector<8x8xf32> to vector<1x8xf32>
    %1015 = vector.broadcast %1013 : vector<8x1xf32> to vector<8x8xf32>
    %1016 = vector.broadcast %1014 : vector<1x8xf32> to vector<8x8xf32>
    %1017 = arith.mulf %1015, %1016 : vector<8x8xf32>
    %1018 = arith.addf %1012, %1017 : vector<8x8xf32>
    %1019 = vector.extract_strided_slice %987 {offsets = [0, 5], sizes = [8, 1], strides = [1, 1]} : vector<8x8xf32> to vector<8x1xf32>
    %1020 = vector.extract_strided_slice %898 {offsets = [5, 0], sizes = [1, 8], strides = [1, 1]} : vector<8x8xf32> to vector<1x8xf32>
    %1021 = vector.broadcast %1019 : vector<8x1xf32> to vector<8x8xf32>
    %1022 = vector.broadcast %1020 : vector<1x8xf32> to vector<8x8xf32>
    %1023 = arith.mulf %1021, %1022 : vector<8x8xf32>
    %1024 = arith.addf %1018, %1023 : vector<8x8xf32>
    %1025 = vector.extract_strided_slice %987 {offsets = [0, 6], sizes = [8, 1], strides = [1, 1]} : vector<8x8xf32> to vector<8x1xf32>
    %1026 = vector.extract_strided_slice %898 {offsets = [6, 0], sizes = [1, 8], strides = [1, 1]} : vector<8x8xf32> to vector<1x8xf32>
    %1027 = vector.broadcast %1025 : vector<8x1xf32> to vector<8x8xf32>
    %1028 = vector.broadcast %1026 : vector<1x8xf32> to vector<8x8xf32>
    %1029 = arith.mulf %1027, %1028 : vector<8x8xf32>
    %1030 = arith.addf %1024, %1029 : vector<8x8xf32>
    %1031 = vector.extract_strided_slice %987 {offsets = [0, 7], sizes = [8, 1], strides = [1, 1]} : vector<8x8xf32> to vector<8x1xf32>
    %1032 = vector.extract_strided_slice %898 {offsets = [7, 0], sizes = [1, 8], strides = [1, 1]} : vector<8x8xf32> to vector<1x8xf32>
    %1033 = vector.broadcast %1031 : vector<8x1xf32> to vector<8x8xf32>
    %1034 = vector.broadcast %1032 : vector<1x8xf32> to vector<8x8xf32>
    %1035 = arith.mulf %1033, %1034 : vector<8x8xf32>
    %1036 = arith.addf %1030, %1035 : vector<8x8xf32>
    %1037 = vector.extract_strided_slice %1036 {offsets = [0, 0], sizes = [8, 4], strides = [1, 1]} : vector<8x8xf32> to vector<8x4xf32>
    %1038 = vector.shape_cast %1037 : vector<8x4xf32> to vector<8x1x4xf32>
    %1039 = vector.extract_strided_slice %1036 {offsets = [0, 4], sizes = [8, 4], strides = [1, 1]} : vector<8x8xf32> to vector<8x4xf32>
    %1040 = vector.shape_cast %1039 : vector<8x4xf32> to vector<8x1x4xf32>
    %1041 = tpu.concatenate %1038, %1040 in 1 : vector<8x1x4xf32>, vector<8x1x4xf32> -> vector<8x2x4xf32>
    %1042 = vector.shape_cast %1041 : vector<8x2x4xf32> to vector<16x4xf32>
    %1043 = arith.addf %889, %1042 : vector<16x4xf32>
    %c200 = arith.constant 200 : index
    %c0_113 = arith.constant 0 : index
    %1044 = vector.load %arg1[%c200, %c0_113] : memref<216x64xf32, #tpu.memory_space<vmem>>, vector<1x4xf32>
    %c201 = arith.constant 201 : index
    %c0_114 = arith.constant 0 : index
    %1045 = vector.load %arg1[%c201, %c0_114] : memref<216x64xf32, #tpu.memory_space<vmem>>, vector<1x4xf32>
    %cst_115 = arith.constant dense<0.000000e+00> : vector<16xf32>
    %1046 = vector.multi_reduction <add>, %1043, %cst_115 [1] : vector<16x4xf32> to vector<16xf32>
    %1047 = vector.shape_cast %1046 : vector<16xf32> to vector<16x1xf32>
    %cst_116 = arith.constant 4.000000e+00 : f32
    %1048 = vector.broadcast %cst_116 : f32 to vector<16x1xf32>
    %1049 = arith.divf %1047, %1048 : vector<16x1xf32>
    %1050 = vector.broadcast %1049 : vector<16x1xf32> to vector<16x4xf32>
    %1051 = arith.subf %1043, %1050 : vector<16x4xf32>
    %1052 = arith.mulf %1051, %1051 : vector<16x4xf32>
    %cst_117 = arith.constant dense<0.000000e+00> : vector<16xf32>
    %1053 = vector.multi_reduction <add>, %1052, %cst_117 [1] : vector<16x4xf32> to vector<16xf32>
    %1054 = vector.shape_cast %1053 : vector<16xf32> to vector<16x1xf32>
    %cst_118 = arith.constant 4.000000e+00 : f32
    %1055 = vector.broadcast %cst_118 : f32 to vector<16x1xf32>
    %1056 = arith.divf %1054, %1055 : vector<16x1xf32>
    %cst_119 = arith.constant 9.99999974E-6 : f32
    %1057 = vector.broadcast %cst_119 : f32 to vector<16x1xf32>
    %1058 = arith.addf %1056, %1057 : vector<16x1xf32>
    %1059 = math.rsqrt %1058 : vector<16x1xf32>
    %1060 = vector.broadcast %1059 : vector<16x1xf32> to vector<16x4xf32>
    %1061 = arith.mulf %1051, %1060 : vector<16x4xf32>
    %1062 = vector.broadcast %1044 : vector<1x4xf32> to vector<16x4xf32>
    %1063 = arith.mulf %1061, %1062 : vector<16x4xf32>
    %1064 = vector.broadcast %1045 : vector<1x4xf32> to vector<16x4xf32>
    %1065 = arith.addf %1063, %1064 : vector<16x4xf32>
    %1066 = vector.shape_cast %1065 : vector<16x4xf32> to vector<8x2x4xf32>
    %1067 = vector.extract_strided_slice %1066 {offsets = [0, 0, 0], sizes = [8, 1, 4], strides = [1, 1, 1]} : vector<8x2x4xf32> to vector<8x1x4xf32>
    %1068 = vector.shape_cast %1067 : vector<8x1x4xf32> to vector<8x4xf32>
    %1069 = vector.extract_strided_slice %1066 {offsets = [0, 1, 0], sizes = [8, 1, 4], strides = [1, 1, 1]} : vector<8x2x4xf32> to vector<8x1x4xf32>
    %1070 = vector.shape_cast %1069 : vector<8x1x4xf32> to vector<8x4xf32>
    %1071 = tpu.concatenate %1068, %1070 in 1 : vector<8x4xf32>, vector<8x4xf32> -> vector<8x8xf32>
    %c40 = arith.constant 40 : index
    %c0_120 = arith.constant 0 : index
    %1072 = vector.load %arg1[%c40, %c0_120] : memref<216x64xf32, #tpu.memory_space<vmem>>, vector<8x24xf32>
    %c196 = arith.constant 196 : index
    %c0_121 = arith.constant 0 : index
    %1073 = vector.load %arg1[%c196, %c0_121] : memref<216x64xf32, #tpu.memory_space<vmem>>, vector<1x24xf32>
    %c88 = arith.constant 88 : index
    %c0_122 = arith.constant 0 : index
    %1074 = vector.load %arg1[%c88, %c0_122] : memref<216x64xf32, #tpu.memory_space<vmem>>, vector<8x8xf32>
    %c197 = arith.constant 197 : index
    %c0_123 = arith.constant 0 : index
    %1075 = vector.load %arg1[%c197, %c0_123] : memref<216x64xf32, #tpu.memory_space<vmem>>, vector<1x8xf32>
    %1076 = vector.extract_strided_slice %1072 {offsets = [0, 0], sizes = [8, 8], strides = [1, 1]} : vector<8x24xf32> to vector<8x8xf32>
    %1077 = vector.extract_strided_slice %1073 {offsets = [0, 0], sizes = [1, 8], strides = [1, 1]} : vector<1x24xf32> to vector<1x8xf32>
    %1078 = vector.extract_strided_slice %1071 {offsets = [0, 0], sizes = [8, 1], strides = [1, 1]} : vector<8x8xf32> to vector<8x1xf32>
    %1079 = vector.extract_strided_slice %1076 {offsets = [0, 0], sizes = [1, 8], strides = [1, 1]} : vector<8x8xf32> to vector<1x8xf32>
    %1080 = vector.broadcast %1078 : vector<8x1xf32> to vector<8x8xf32>
    %1081 = vector.broadcast %1079 : vector<1x8xf32> to vector<8x8xf32>
    %1082 = arith.mulf %1080, %1081 : vector<8x8xf32>
    %1083 = vector.broadcast %1077 : vector<1x8xf32> to vector<8x8xf32>
    %1084 = arith.addf %1082, %1083 : vector<8x8xf32>
    %1085 = vector.extract_strided_slice %1071 {offsets = [0, 1], sizes = [8, 1], strides = [1, 1]} : vector<8x8xf32> to vector<8x1xf32>
    %1086 = vector.extract_strided_slice %1076 {offsets = [1, 0], sizes = [1, 8], strides = [1, 1]} : vector<8x8xf32> to vector<1x8xf32>
    %1087 = vector.broadcast %1085 : vector<8x1xf32> to vector<8x8xf32>
    %1088 = vector.broadcast %1086 : vector<1x8xf32> to vector<8x8xf32>
    %1089 = arith.mulf %1087, %1088 : vector<8x8xf32>
    %1090 = arith.addf %1084, %1089 : vector<8x8xf32>
    %1091 = vector.extract_strided_slice %1071 {offsets = [0, 2], sizes = [8, 1], strides = [1, 1]} : vector<8x8xf32> to vector<8x1xf32>
    %1092 = vector.extract_strided_slice %1076 {offsets = [2, 0], sizes = [1, 8], strides = [1, 1]} : vector<8x8xf32> to vector<1x8xf32>
    %1093 = vector.broadcast %1091 : vector<8x1xf32> to vector<8x8xf32>
    %1094 = vector.broadcast %1092 : vector<1x8xf32> to vector<8x8xf32>
    %1095 = arith.mulf %1093, %1094 : vector<8x8xf32>
    %1096 = arith.addf %1090, %1095 : vector<8x8xf32>
    %1097 = vector.extract_strided_slice %1071 {offsets = [0, 3], sizes = [8, 1], strides = [1, 1]} : vector<8x8xf32> to vector<8x1xf32>
    %1098 = vector.extract_strided_slice %1076 {offsets = [3, 0], sizes = [1, 8], strides = [1, 1]} : vector<8x8xf32> to vector<1x8xf32>
    %1099 = vector.broadcast %1097 : vector<8x1xf32> to vector<8x8xf32>
    %1100 = vector.broadcast %1098 : vector<1x8xf32> to vector<8x8xf32>
    %1101 = arith.mulf %1099, %1100 : vector<8x8xf32>
    %1102 = arith.addf %1096, %1101 : vector<8x8xf32>
    %1103 = vector.extract_strided_slice %1071 {offsets = [0, 4], sizes = [8, 1], strides = [1, 1]} : vector<8x8xf32> to vector<8x1xf32>
    %1104 = vector.extract_strided_slice %1076 {offsets = [4, 0], sizes = [1, 8], strides = [1, 1]} : vector<8x8xf32> to vector<1x8xf32>
    %1105 = vector.broadcast %1103 : vector<8x1xf32> to vector<8x8xf32>
    %1106 = vector.broadcast %1104 : vector<1x8xf32> to vector<8x8xf32>
    %1107 = arith.mulf %1105, %1106 : vector<8x8xf32>
    %1108 = arith.addf %1102, %1107 : vector<8x8xf32>
    %1109 = vector.extract_strided_slice %1071 {offsets = [0, 5], sizes = [8, 1], strides = [1, 1]} : vector<8x8xf32> to vector<8x1xf32>
    %1110 = vector.extract_strided_slice %1076 {offsets = [5, 0], sizes = [1, 8], strides = [1, 1]} : vector<8x8xf32> to vector<1x8xf32>
    %1111 = vector.broadcast %1109 : vector<8x1xf32> to vector<8x8xf32>
    %1112 = vector.broadcast %1110 : vector<1x8xf32> to vector<8x8xf32>
    %1113 = arith.mulf %1111, %1112 : vector<8x8xf32>
    %1114 = arith.addf %1108, %1113 : vector<8x8xf32>
    %1115 = vector.extract_strided_slice %1071 {offsets = [0, 6], sizes = [8, 1], strides = [1, 1]} : vector<8x8xf32> to vector<8x1xf32>
    %1116 = vector.extract_strided_slice %1076 {offsets = [6, 0], sizes = [1, 8], strides = [1, 1]} : vector<8x8xf32> to vector<1x8xf32>
    %1117 = vector.broadcast %1115 : vector<8x1xf32> to vector<8x8xf32>
    %1118 = vector.broadcast %1116 : vector<1x8xf32> to vector<8x8xf32>
    %1119 = arith.mulf %1117, %1118 : vector<8x8xf32>
    %1120 = arith.addf %1114, %1119 : vector<8x8xf32>
    %1121 = vector.extract_strided_slice %1071 {offsets = [0, 7], sizes = [8, 1], strides = [1, 1]} : vector<8x8xf32> to vector<8x1xf32>
    %1122 = vector.extract_strided_slice %1076 {offsets = [7, 0], sizes = [1, 8], strides = [1, 1]} : vector<8x8xf32> to vector<1x8xf32>
    %1123 = vector.broadcast %1121 : vector<8x1xf32> to vector<8x8xf32>
    %1124 = vector.broadcast %1122 : vector<1x8xf32> to vector<8x8xf32>
    %1125 = arith.mulf %1123, %1124 : vector<8x8xf32>
    %1126 = arith.addf %1120, %1125 : vector<8x8xf32>
    %1127 = vector.extract_strided_slice %1072 {offsets = [0, 8], sizes = [8, 16], strides = [1, 1]} : vector<8x24xf32> to vector<8x16xf32>
    %1128 = vector.extract_strided_slice %1073 {offsets = [0, 8], sizes = [1, 16], strides = [1, 1]} : vector<1x24xf32> to vector<1x16xf32>
    %1129 = vector.extract_strided_slice %450 {offsets = [0, 0], sizes = [8, 1], strides = [1, 1]} : vector<8x8xf32> to vector<8x1xf32>
    %1130 = vector.extract_strided_slice %1127 {offsets = [0, 0], sizes = [1, 16], strides = [1, 1]} : vector<8x16xf32> to vector<1x16xf32>
    %1131 = vector.broadcast %1129 : vector<8x1xf32> to vector<8x16xf32>
    %1132 = vector.broadcast %1130 : vector<1x16xf32> to vector<8x16xf32>
    %1133 = arith.mulf %1131, %1132 : vector<8x16xf32>
    %1134 = vector.broadcast %1128 : vector<1x16xf32> to vector<8x16xf32>
    %1135 = arith.addf %1133, %1134 : vector<8x16xf32>
    %1136 = vector.extract_strided_slice %450 {offsets = [0, 1], sizes = [8, 1], strides = [1, 1]} : vector<8x8xf32> to vector<8x1xf32>
    %1137 = vector.extract_strided_slice %1127 {offsets = [1, 0], sizes = [1, 16], strides = [1, 1]} : vector<8x16xf32> to vector<1x16xf32>
    %1138 = vector.broadcast %1136 : vector<8x1xf32> to vector<8x16xf32>
    %1139 = vector.broadcast %1137 : vector<1x16xf32> to vector<8x16xf32>
    %1140 = arith.mulf %1138, %1139 : vector<8x16xf32>
    %1141 = arith.addf %1135, %1140 : vector<8x16xf32>
    %1142 = vector.extract_strided_slice %450 {offsets = [0, 2], sizes = [8, 1], strides = [1, 1]} : vector<8x8xf32> to vector<8x1xf32>
    %1143 = vector.extract_strided_slice %1127 {offsets = [2, 0], sizes = [1, 16], strides = [1, 1]} : vector<8x16xf32> to vector<1x16xf32>
    %1144 = vector.broadcast %1142 : vector<8x1xf32> to vector<8x16xf32>
    %1145 = vector.broadcast %1143 : vector<1x16xf32> to vector<8x16xf32>
    %1146 = arith.mulf %1144, %1145 : vector<8x16xf32>
    %1147 = arith.addf %1141, %1146 : vector<8x16xf32>
    %1148 = vector.extract_strided_slice %450 {offsets = [0, 3], sizes = [8, 1], strides = [1, 1]} : vector<8x8xf32> to vector<8x1xf32>
    %1149 = vector.extract_strided_slice %1127 {offsets = [3, 0], sizes = [1, 16], strides = [1, 1]} : vector<8x16xf32> to vector<1x16xf32>
    %1150 = vector.broadcast %1148 : vector<8x1xf32> to vector<8x16xf32>
    %1151 = vector.broadcast %1149 : vector<1x16xf32> to vector<8x16xf32>
    %1152 = arith.mulf %1150, %1151 : vector<8x16xf32>
    %1153 = arith.addf %1147, %1152 : vector<8x16xf32>
    %1154 = vector.extract_strided_slice %450 {offsets = [0, 4], sizes = [8, 1], strides = [1, 1]} : vector<8x8xf32> to vector<8x1xf32>
    %1155 = vector.extract_strided_slice %1127 {offsets = [4, 0], sizes = [1, 16], strides = [1, 1]} : vector<8x16xf32> to vector<1x16xf32>
    %1156 = vector.broadcast %1154 : vector<8x1xf32> to vector<8x16xf32>
    %1157 = vector.broadcast %1155 : vector<1x16xf32> to vector<8x16xf32>
    %1158 = arith.mulf %1156, %1157 : vector<8x16xf32>
    %1159 = arith.addf %1153, %1158 : vector<8x16xf32>
    %1160 = vector.extract_strided_slice %450 {offsets = [0, 5], sizes = [8, 1], strides = [1, 1]} : vector<8x8xf32> to vector<8x1xf32>
    %1161 = vector.extract_strided_slice %1127 {offsets = [5, 0], sizes = [1, 16], strides = [1, 1]} : vector<8x16xf32> to vector<1x16xf32>
    %1162 = vector.broadcast %1160 : vector<8x1xf32> to vector<8x16xf32>
    %1163 = vector.broadcast %1161 : vector<1x16xf32> to vector<8x16xf32>
    %1164 = arith.mulf %1162, %1163 : vector<8x16xf32>
    %1165 = arith.addf %1159, %1164 : vector<8x16xf32>
    %1166 = vector.extract_strided_slice %450 {offsets = [0, 6], sizes = [8, 1], strides = [1, 1]} : vector<8x8xf32> to vector<8x1xf32>
    %1167 = vector.extract_strided_slice %1127 {offsets = [6, 0], sizes = [1, 16], strides = [1, 1]} : vector<8x16xf32> to vector<1x16xf32>
    %1168 = vector.broadcast %1166 : vector<8x1xf32> to vector<8x16xf32>
    %1169 = vector.broadcast %1167 : vector<1x16xf32> to vector<8x16xf32>
    %1170 = arith.mulf %1168, %1169 : vector<8x16xf32>
    %1171 = arith.addf %1165, %1170 : vector<8x16xf32>
    %1172 = vector.extract_strided_slice %450 {offsets = [0, 7], sizes = [8, 1], strides = [1, 1]} : vector<8x8xf32> to vector<8x1xf32>
    %1173 = vector.extract_strided_slice %1127 {offsets = [7, 0], sizes = [1, 16], strides = [1, 1]} : vector<8x16xf32> to vector<1x16xf32>
    %1174 = vector.broadcast %1172 : vector<8x1xf32> to vector<8x16xf32>
    %1175 = vector.broadcast %1173 : vector<1x16xf32> to vector<8x16xf32>
    %1176 = arith.mulf %1174, %1175 : vector<8x16xf32>
    %1177 = arith.addf %1171, %1176 : vector<8x16xf32>
    %1178 = vector.extract_strided_slice %1177 {offsets = [0, 0], sizes = [8, 8], strides = [1, 1]} : vector<8x16xf32> to vector<8x8xf32>
    %1179 = vector.extract_strided_slice %1177 {offsets = [0, 8], sizes = [8, 8], strides = [1, 1]} : vector<8x16xf32> to vector<8x8xf32>
    %1180 = tpu.concatenate %1178, %1178, %1178, %1178, %1178, %1178, %1178, %1178 in 1 : vector<8x8xf32>, vector<8x8xf32>, vector<8x8xf32>, vector<8x8xf32>, vector<8x8xf32>, vector<8x8xf32>, vector<8x8xf32>, vector<8x8xf32> -> vector<8x64xf32>
    %1181 = tpu.concatenate %1179, %1179, %1179, %1179, %1179, %1179, %1179, %1179 in 1 : vector<8x8xf32>, vector<8x8xf32>, vector<8x8xf32>, vector<8x8xf32>, vector<8x8xf32>, vector<8x8xf32>, vector<8x8xf32>, vector<8x8xf32> -> vector<8x64xf32>
    %1182 = vector.extract_strided_slice %1126 {offsets = [0, 0], sizes = [1, 8], strides = [1, 1]} : vector<8x8xf32> to vector<1x8xf32>
    %1183 = vector.extract_strided_slice %1126 {offsets = [1, 0], sizes = [1, 8], strides = [1, 1]} : vector<8x8xf32> to vector<1x8xf32>
    %1184 = vector.extract_strided_slice %1126 {offsets = [2, 0], sizes = [1, 8], strides = [1, 1]} : vector<8x8xf32> to vector<1x8xf32>
    %1185 = vector.extract_strided_slice %1126 {offsets = [3, 0], sizes = [1, 8], strides = [1, 1]} : vector<8x8xf32> to vector<1x8xf32>
    %1186 = vector.extract_strided_slice %1126 {offsets = [4, 0], sizes = [1, 8], strides = [1, 1]} : vector<8x8xf32> to vector<1x8xf32>
    %1187 = vector.extract_strided_slice %1126 {offsets = [5, 0], sizes = [1, 8], strides = [1, 1]} : vector<8x8xf32> to vector<1x8xf32>
    %1188 = vector.extract_strided_slice %1126 {offsets = [6, 0], sizes = [1, 8], strides = [1, 1]} : vector<8x8xf32> to vector<1x8xf32>
    %1189 = vector.extract_strided_slice %1126 {offsets = [7, 0], sizes = [1, 8], strides = [1, 1]} : vector<8x8xf32> to vector<1x8xf32>
    %1190 = tpu.concatenate %1182, %1183, %1184, %1185, %1186, %1187, %1188, %1189 in 1 : vector<1x8xf32>, vector<1x8xf32>, vector<1x8xf32>, vector<1x8xf32>, vector<1x8xf32>, vector<1x8xf32>, vector<1x8xf32>, vector<1x8xf32> -> vector<1x64xf32>
    %1191 = vector.shape_cast %1190 : vector<1x64xf32> to vector<1x64xf32>
    %1192 = vector.broadcast %1191 : vector<1x64xf32> to vector<8x64xf32>
    %1193 = arith.mulf %1192, %1180 : vector<8x64xf32>
    %cst_124 = arith.constant dense<0xFF800000> : vector<64xf32>
    %1194 = vector.multi_reduction <maximumf>, %1193, %cst_124 [0] : vector<8x64xf32> to vector<64xf32>
    %1195 = vector.shape_cast %1194 : vector<64xf32> to vector<1x64xf32>
    %1196 = vector.broadcast %1195 : vector<1x64xf32> to vector<8x64xf32>
    %1197 = arith.subf %1193, %1196 : vector<8x64xf32>
    %1198 = math.exp %1197 : vector<8x64xf32>
    %cst_125 = arith.constant dense<0.000000e+00> : vector<64xf32>
    %1199 = vector.multi_reduction <add>, %1198, %cst_125 [0] : vector<8x64xf32> to vector<64xf32>
    %1200 = vector.shape_cast %1199 : vector<64xf32> to vector<1x64xf32>
    %1201 = tpu.reciprocal %1200 {approx = true} : vector<1x64xf32> -> vector<1x64xf32>
    %1202 = vector.broadcast %1201 : vector<1x64xf32> to vector<8x64xf32>
    %1203 = arith.mulf %1198, %1202 : vector<8x64xf32>
    %1204 = arith.mulf %1203, %1181 : vector<8x64xf32>
    %cst_126 = arith.constant dense<0.000000e+00> : vector<64xf32>
    %1205 = vector.multi_reduction <add>, %1204, %cst_126 [0] : vector<8x64xf32> to vector<64xf32>
    %1206 = vector.shape_cast %1205 : vector<64xf32> to vector<1x64xf32>
    %1207 = vector.extract_strided_slice %1206 {offsets = [0, 0], sizes = [1, 8], strides = [1, 1]} : vector<1x64xf32> to vector<1x8xf32>
    %1208 = vector.extract_strided_slice %1206 {offsets = [0, 8], sizes = [1, 8], strides = [1, 1]} : vector<1x64xf32> to vector<1x8xf32>
    %1209 = vector.extract_strided_slice %1206 {offsets = [0, 16], sizes = [1, 8], strides = [1, 1]} : vector<1x64xf32> to vector<1x8xf32>
    %1210 = vector.extract_strided_slice %1206 {offsets = [0, 24], sizes = [1, 8], strides = [1, 1]} : vector<1x64xf32> to vector<1x8xf32>
    %1211 = vector.extract_strided_slice %1206 {offsets = [0, 32], sizes = [1, 8], strides = [1, 1]} : vector<1x64xf32> to vector<1x8xf32>
    %1212 = vector.extract_strided_slice %1206 {offsets = [0, 40], sizes = [1, 8], strides = [1, 1]} : vector<1x64xf32> to vector<1x8xf32>
    %1213 = vector.extract_strided_slice %1206 {offsets = [0, 48], sizes = [1, 8], strides = [1, 1]} : vector<1x64xf32> to vector<1x8xf32>
    %1214 = vector.extract_strided_slice %1206 {offsets = [0, 56], sizes = [1, 8], strides = [1, 1]} : vector<1x64xf32> to vector<1x8xf32>
    %1215 = tpu.concatenate %1207, %1208, %1209, %1210, %1211, %1212, %1213, %1214 in 0 : vector<1x8xf32>, vector<1x8xf32>, vector<1x8xf32>, vector<1x8xf32>, vector<1x8xf32>, vector<1x8xf32>, vector<1x8xf32>, vector<1x8xf32> -> vector<8x8xf32>
    %1216 = vector.extract_strided_slice %1215 {offsets = [0, 0], sizes = [8, 1], strides = [1, 1]} : vector<8x8xf32> to vector<8x1xf32>
    %1217 = vector.extract_strided_slice %1074 {offsets = [0, 0], sizes = [1, 8], strides = [1, 1]} : vector<8x8xf32> to vector<1x8xf32>
    %1218 = vector.broadcast %1216 : vector<8x1xf32> to vector<8x8xf32>
    %1219 = vector.broadcast %1217 : vector<1x8xf32> to vector<8x8xf32>
    %1220 = arith.mulf %1218, %1219 : vector<8x8xf32>
    %1221 = vector.broadcast %1075 : vector<1x8xf32> to vector<8x8xf32>
    %1222 = arith.addf %1220, %1221 : vector<8x8xf32>
    %1223 = vector.extract_strided_slice %1215 {offsets = [0, 1], sizes = [8, 1], strides = [1, 1]} : vector<8x8xf32> to vector<8x1xf32>
    %1224 = vector.extract_strided_slice %1074 {offsets = [1, 0], sizes = [1, 8], strides = [1, 1]} : vector<8x8xf32> to vector<1x8xf32>
    %1225 = vector.broadcast %1223 : vector<8x1xf32> to vector<8x8xf32>
    %1226 = vector.broadcast %1224 : vector<1x8xf32> to vector<8x8xf32>
    %1227 = arith.mulf %1225, %1226 : vector<8x8xf32>
    %1228 = arith.addf %1222, %1227 : vector<8x8xf32>
    %1229 = vector.extract_strided_slice %1215 {offsets = [0, 2], sizes = [8, 1], strides = [1, 1]} : vector<8x8xf32> to vector<8x1xf32>
    %1230 = vector.extract_strided_slice %1074 {offsets = [2, 0], sizes = [1, 8], strides = [1, 1]} : vector<8x8xf32> to vector<1x8xf32>
    %1231 = vector.broadcast %1229 : vector<8x1xf32> to vector<8x8xf32>
    %1232 = vector.broadcast %1230 : vector<1x8xf32> to vector<8x8xf32>
    %1233 = arith.mulf %1231, %1232 : vector<8x8xf32>
    %1234 = arith.addf %1228, %1233 : vector<8x8xf32>
    %1235 = vector.extract_strided_slice %1215 {offsets = [0, 3], sizes = [8, 1], strides = [1, 1]} : vector<8x8xf32> to vector<8x1xf32>
    %1236 = vector.extract_strided_slice %1074 {offsets = [3, 0], sizes = [1, 8], strides = [1, 1]} : vector<8x8xf32> to vector<1x8xf32>
    %1237 = vector.broadcast %1235 : vector<8x1xf32> to vector<8x8xf32>
    %1238 = vector.broadcast %1236 : vector<1x8xf32> to vector<8x8xf32>
    %1239 = arith.mulf %1237, %1238 : vector<8x8xf32>
    %1240 = arith.addf %1234, %1239 : vector<8x8xf32>
    %1241 = vector.extract_strided_slice %1215 {offsets = [0, 4], sizes = [8, 1], strides = [1, 1]} : vector<8x8xf32> to vector<8x1xf32>
    %1242 = vector.extract_strided_slice %1074 {offsets = [4, 0], sizes = [1, 8], strides = [1, 1]} : vector<8x8xf32> to vector<1x8xf32>
    %1243 = vector.broadcast %1241 : vector<8x1xf32> to vector<8x8xf32>
    %1244 = vector.broadcast %1242 : vector<1x8xf32> to vector<8x8xf32>
    %1245 = arith.mulf %1243, %1244 : vector<8x8xf32>
    %1246 = arith.addf %1240, %1245 : vector<8x8xf32>
    %1247 = vector.extract_strided_slice %1215 {offsets = [0, 5], sizes = [8, 1], strides = [1, 1]} : vector<8x8xf32> to vector<8x1xf32>
    %1248 = vector.extract_strided_slice %1074 {offsets = [5, 0], sizes = [1, 8], strides = [1, 1]} : vector<8x8xf32> to vector<1x8xf32>
    %1249 = vector.broadcast %1247 : vector<8x1xf32> to vector<8x8xf32>
    %1250 = vector.broadcast %1248 : vector<1x8xf32> to vector<8x8xf32>
    %1251 = arith.mulf %1249, %1250 : vector<8x8xf32>
    %1252 = arith.addf %1246, %1251 : vector<8x8xf32>
    %1253 = vector.extract_strided_slice %1215 {offsets = [0, 6], sizes = [8, 1], strides = [1, 1]} : vector<8x8xf32> to vector<8x1xf32>
    %1254 = vector.extract_strided_slice %1074 {offsets = [6, 0], sizes = [1, 8], strides = [1, 1]} : vector<8x8xf32> to vector<1x8xf32>
    %1255 = vector.broadcast %1253 : vector<8x1xf32> to vector<8x8xf32>
    %1256 = vector.broadcast %1254 : vector<1x8xf32> to vector<8x8xf32>
    %1257 = arith.mulf %1255, %1256 : vector<8x8xf32>
    %1258 = arith.addf %1252, %1257 : vector<8x8xf32>
    %1259 = vector.extract_strided_slice %1215 {offsets = [0, 7], sizes = [8, 1], strides = [1, 1]} : vector<8x8xf32> to vector<8x1xf32>
    %1260 = vector.extract_strided_slice %1074 {offsets = [7, 0], sizes = [1, 8], strides = [1, 1]} : vector<8x8xf32> to vector<1x8xf32>
    %1261 = vector.broadcast %1259 : vector<8x1xf32> to vector<8x8xf32>
    %1262 = vector.broadcast %1260 : vector<1x8xf32> to vector<8x8xf32>
    %1263 = arith.mulf %1261, %1262 : vector<8x8xf32>
    %1264 = arith.addf %1258, %1263 : vector<8x8xf32>
    %1265 = vector.extract_strided_slice %1264 {offsets = [0, 0], sizes = [8, 4], strides = [1, 1]} : vector<8x8xf32> to vector<8x4xf32>
    %1266 = vector.shape_cast %1265 : vector<8x4xf32> to vector<8x1x4xf32>
    %1267 = vector.extract_strided_slice %1264 {offsets = [0, 4], sizes = [8, 4], strides = [1, 1]} : vector<8x8xf32> to vector<8x4xf32>
    %1268 = vector.shape_cast %1267 : vector<8x4xf32> to vector<8x1x4xf32>
    %1269 = tpu.concatenate %1266, %1268 in 1 : vector<8x1x4xf32>, vector<8x1x4xf32> -> vector<8x2x4xf32>
    %1270 = vector.shape_cast %1269 : vector<8x2x4xf32> to vector<16x4xf32>
    %1271 = arith.addf %1065, %1270 : vector<16x4xf32>
    %c202 = arith.constant 202 : index
    %c0_127 = arith.constant 0 : index
    %1272 = vector.load %arg1[%c202, %c0_127] : memref<216x64xf32, #tpu.memory_space<vmem>>, vector<1x4xf32>
    %c203 = arith.constant 203 : index
    %c0_128 = arith.constant 0 : index
    %1273 = vector.load %arg1[%c203, %c0_128] : memref<216x64xf32, #tpu.memory_space<vmem>>, vector<1x4xf32>
    %cst_129 = arith.constant dense<0.000000e+00> : vector<16xf32>
    %1274 = vector.multi_reduction <add>, %1271, %cst_129 [1] : vector<16x4xf32> to vector<16xf32>
    %1275 = vector.shape_cast %1274 : vector<16xf32> to vector<16x1xf32>
    %cst_130 = arith.constant 4.000000e+00 : f32
    %1276 = vector.broadcast %cst_130 : f32 to vector<16x1xf32>
    %1277 = arith.divf %1275, %1276 : vector<16x1xf32>
    %1278 = vector.broadcast %1277 : vector<16x1xf32> to vector<16x4xf32>
    %1279 = arith.subf %1271, %1278 : vector<16x4xf32>
    %1280 = arith.mulf %1279, %1279 : vector<16x4xf32>
    %cst_131 = arith.constant dense<0.000000e+00> : vector<16xf32>
    %1281 = vector.multi_reduction <add>, %1280, %cst_131 [1] : vector<16x4xf32> to vector<16xf32>
    %1282 = vector.shape_cast %1281 : vector<16xf32> to vector<16x1xf32>
    %cst_132 = arith.constant 4.000000e+00 : f32
    %1283 = vector.broadcast %cst_132 : f32 to vector<16x1xf32>
    %1284 = arith.divf %1282, %1283 : vector<16x1xf32>
    %cst_133 = arith.constant 9.99999974E-6 : f32
    %1285 = vector.broadcast %cst_133 : f32 to vector<16x1xf32>
    %1286 = arith.addf %1284, %1285 : vector<16x1xf32>
    %1287 = math.rsqrt %1286 : vector<16x1xf32>
    %1288 = vector.broadcast %1287 : vector<16x1xf32> to vector<16x4xf32>
    %1289 = arith.mulf %1279, %1288 : vector<16x4xf32>
    %1290 = vector.broadcast %1272 : vector<1x4xf32> to vector<16x4xf32>
    %1291 = arith.mulf %1289, %1290 : vector<16x4xf32>
    %1292 = vector.broadcast %1273 : vector<1x4xf32> to vector<16x4xf32>
    %1293 = arith.addf %1291, %1292 : vector<16x4xf32>
    %c128 = arith.constant 128 : index
    %c0_134 = arith.constant 0 : index
    %1294 = vector.load %arg1[%c128, %c0_134] : memref<216x64xf32, #tpu.memory_space<vmem>>, vector<4x64xf32>
    %c198 = arith.constant 198 : index
    %c0_135 = arith.constant 0 : index
    %1295 = vector.load %arg1[%c198, %c0_135] : memref<216x64xf32, #tpu.memory_space<vmem>>, vector<1x64xf32>
    %c160 = arith.constant 160 : index
    %c0_136 = arith.constant 0 : index
    %1296 = vector.load %arg1[%c160, %c0_136] : memref<216x64xf32, #tpu.memory_space<vmem>>, vector<4x64xf32>
    %c199 = arith.constant 199 : index
    %c0_137 = arith.constant 0 : index
    %1297 = vector.load %arg1[%c199, %c0_137] : memref<216x64xf32, #tpu.memory_space<vmem>>, vector<1x4xf32>
    %cst_138 = arith.constant dense<0.000000e+00> : vector<16x64xf32>
    %1298 = tpu.matmul %1293, %1294, %cst_138 {dimension_numbers = #tpu.dot_dimension_numbers<[1], [0], [0], [1], [0, 0, 1, 1], [], []>} : vector<16x4xf32>, vector<4x64xf32>, vector<16x64xf32> -> vector<16x64xf32>
    %1299 = vector.broadcast %1295 : vector<1x64xf32> to vector<16x64xf32>
    %1300 = arith.addf %1298, %1299 : vector<16x64xf32>
    %cst_139 = arith.constant 0.000000e+00 : f32
    %1301 = vector.broadcast %cst_139 : f32 to vector<16x64xf32>
    %1302 = arith.maximumf %1300, %1301 : vector<16x64xf32>
    %cst_140 = arith.constant dense<0.000000e+00> : vector<16x4xf32>
    %1303 = tpu.matmul %1302, %1296, %cst_140 {dimension_numbers = #tpu.dot_dimension_numbers<[1], [1], [0], [0], [0, 0, 1, 0], [], []>} : vector<16x64xf32>, vector<4x64xf32>, vector<16x4xf32> -> vector<16x4xf32>
    %1304 = vector.broadcast %1297 : vector<1x4xf32> to vector<16x4xf32>
    %1305 = arith.addf %1303, %1304 : vector<16x4xf32>
    %1306 = arith.addf %1293, %1305 : vector<16x4xf32>
    %c204 = arith.constant 204 : index
    %c0_141 = arith.constant 0 : index
    %1307 = vector.load %arg1[%c204, %c0_141] : memref<216x64xf32, #tpu.memory_space<vmem>>, vector<1x4xf32>
    %c205 = arith.constant 205 : index
    %c0_142 = arith.constant 0 : index
    %1308 = vector.load %arg1[%c205, %c0_142] : memref<216x64xf32, #tpu.memory_space<vmem>>, vector<1x4xf32>
    %cst_143 = arith.constant dense<0.000000e+00> : vector<16xf32>
    %1309 = vector.multi_reduction <add>, %1306, %cst_143 [1] : vector<16x4xf32> to vector<16xf32>
    %1310 = vector.shape_cast %1309 : vector<16xf32> to vector<16x1xf32>
    %cst_144 = arith.constant 4.000000e+00 : f32
    %1311 = vector.broadcast %cst_144 : f32 to vector<16x1xf32>
    %1312 = arith.divf %1310, %1311 : vector<16x1xf32>
    %1313 = vector.broadcast %1312 : vector<16x1xf32> to vector<16x4xf32>
    %1314 = arith.subf %1306, %1313 : vector<16x4xf32>
    %1315 = arith.mulf %1314, %1314 : vector<16x4xf32>
    %cst_145 = arith.constant dense<0.000000e+00> : vector<16xf32>
    %1316 = vector.multi_reduction <add>, %1315, %cst_145 [1] : vector<16x4xf32> to vector<16xf32>
    %1317 = vector.shape_cast %1316 : vector<16xf32> to vector<16x1xf32>
    %cst_146 = arith.constant 4.000000e+00 : f32
    %1318 = vector.broadcast %cst_146 : f32 to vector<16x1xf32>
    %1319 = arith.divf %1317, %1318 : vector<16x1xf32>
    %cst_147 = arith.constant 9.99999974E-6 : f32
    %1320 = vector.broadcast %cst_147 : f32 to vector<16x1xf32>
    %1321 = arith.addf %1319, %1320 : vector<16x1xf32>
    %1322 = math.rsqrt %1321 : vector<16x1xf32>
    %1323 = vector.broadcast %1322 : vector<16x1xf32> to vector<16x4xf32>
    %1324 = arith.mulf %1314, %1323 : vector<16x4xf32>
    %1325 = vector.broadcast %1307 : vector<1x4xf32> to vector<16x4xf32>
    %1326 = arith.mulf %1324, %1325 : vector<16x4xf32>
    %1327 = vector.broadcast %1308 : vector<1x4xf32> to vector<16x4xf32>
    %1328 = arith.addf %1326, %1327 : vector<16x4xf32>
    %c206 = arith.constant 206 : index
    %c0_148 = arith.constant 0 : index
    %1329 = vector.load %arg1[%c206, %c0_148] : memref<216x64xf32, #tpu.memory_space<vmem>>, vector<1x4xf32>
    %c207 = arith.constant 207 : index
    %c0_149 = arith.constant 0 : index
    %1330 = vector.load %arg1[%c207, %c0_149] : memref<216x64xf32, #tpu.memory_space<vmem>>, vector<1x4xf32>
    %cst_150 = arith.constant dense<0.000000e+00> : vector<16xf32>
    %1331 = vector.multi_reduction <add>, %1328, %cst_150 [1] : vector<16x4xf32> to vector<16xf32>
    %1332 = vector.shape_cast %1331 : vector<16xf32> to vector<16x1xf32>
    %cst_151 = arith.constant 4.000000e+00 : f32
    %1333 = vector.broadcast %cst_151 : f32 to vector<16x1xf32>
    %1334 = arith.divf %1332, %1333 : vector<16x1xf32>
    %1335 = vector.broadcast %1334 : vector<16x1xf32> to vector<16x4xf32>
    %1336 = arith.subf %1328, %1335 : vector<16x4xf32>
    %1337 = arith.mulf %1336, %1336 : vector<16x4xf32>
    %cst_152 = arith.constant dense<0.000000e+00> : vector<16xf32>
    %1338 = vector.multi_reduction <add>, %1337, %cst_152 [1] : vector<16x4xf32> to vector<16xf32>
    %1339 = vector.shape_cast %1338 : vector<16xf32> to vector<16x1xf32>
    %cst_153 = arith.constant 4.000000e+00 : f32
    %1340 = vector.broadcast %cst_153 : f32 to vector<16x1xf32>
    %1341 = arith.divf %1339, %1340 : vector<16x1xf32>
    %cst_154 = arith.constant 9.99999974E-6 : f32
    %1342 = vector.broadcast %cst_154 : f32 to vector<16x1xf32>
    %1343 = arith.addf %1341, %1342 : vector<16x1xf32>
    %1344 = math.rsqrt %1343 : vector<16x1xf32>
    %1345 = vector.broadcast %1344 : vector<16x1xf32> to vector<16x4xf32>
    %1346 = arith.mulf %1336, %1345 : vector<16x4xf32>
    %1347 = vector.broadcast %1329 : vector<1x4xf32> to vector<16x4xf32>
    %1348 = arith.mulf %1346, %1347 : vector<16x4xf32>
    %1349 = vector.broadcast %1330 : vector<1x4xf32> to vector<16x4xf32>
    %1350 = arith.addf %1348, %1349 : vector<16x4xf32>
    %c96 = arith.constant 96 : index
    %c0_155 = arith.constant 0 : index
    %1351 = vector.load %arg1[%c96, %c0_155] : memref<216x64xf32, #tpu.memory_space<vmem>>, vector<4x4xf32>
    %c208 = arith.constant 208 : index
    %c0_156 = arith.constant 0 : index
    %1352 = vector.load %arg1[%c208, %c0_156] : memref<216x64xf32, #tpu.memory_space<vmem>>, vector<1x4xf32>
    %1353 = vector.extract_strided_slice %0 {offsets = [0, 0], sizes = [16, 1], strides = [1, 1]} : vector<16x4xf32> to vector<16x1xf32>
    %1354 = vector.extract_strided_slice %1351 {offsets = [0, 0], sizes = [1, 4], strides = [1, 1]} : vector<4x4xf32> to vector<1x4xf32>
    %1355 = vector.broadcast %1353 : vector<16x1xf32> to vector<16x4xf32>
    %1356 = vector.broadcast %1354 : vector<1x4xf32> to vector<16x4xf32>
    %1357 = arith.mulf %1355, %1356 : vector<16x4xf32>
    %1358 = vector.broadcast %1352 : vector<1x4xf32> to vector<16x4xf32>
    %1359 = arith.addf %1357, %1358 : vector<16x4xf32>
    %1360 = vector.extract_strided_slice %0 {offsets = [0, 1], sizes = [16, 1], strides = [1, 1]} : vector<16x4xf32> to vector<16x1xf32>
    %1361 = vector.extract_strided_slice %1351 {offsets = [1, 0], sizes = [1, 4], strides = [1, 1]} : vector<4x4xf32> to vector<1x4xf32>
    %1362 = vector.broadcast %1360 : vector<16x1xf32> to vector<16x4xf32>
    %1363 = vector.broadcast %1361 : vector<1x4xf32> to vector<16x4xf32>
    %1364 = arith.mulf %1362, %1363 : vector<16x4xf32>
    %1365 = arith.addf %1359, %1364 : vector<16x4xf32>
    %1366 = vector.extract_strided_slice %0 {offsets = [0, 2], sizes = [16, 1], strides = [1, 1]} : vector<16x4xf32> to vector<16x1xf32>
    %1367 = vector.extract_strided_slice %1351 {offsets = [2, 0], sizes = [1, 4], strides = [1, 1]} : vector<4x4xf32> to vector<1x4xf32>
    %1368 = vector.broadcast %1366 : vector<16x1xf32> to vector<16x4xf32>
    %1369 = vector.broadcast %1367 : vector<1x4xf32> to vector<16x4xf32>
    %1370 = arith.mulf %1368, %1369 : vector<16x4xf32>
    %1371 = arith.addf %1365, %1370 : vector<16x4xf32>
    %1372 = vector.extract_strided_slice %0 {offsets = [0, 3], sizes = [16, 1], strides = [1, 1]} : vector<16x4xf32> to vector<16x1xf32>
    %1373 = vector.extract_strided_slice %1351 {offsets = [3, 0], sizes = [1, 4], strides = [1, 1]} : vector<4x4xf32> to vector<1x4xf32>
    %1374 = vector.broadcast %1372 : vector<16x1xf32> to vector<16x4xf32>
    %1375 = vector.broadcast %1373 : vector<1x4xf32> to vector<16x4xf32>
    %1376 = arith.mulf %1374, %1375 : vector<16x4xf32>
    %1377 = arith.addf %1371, %1376 : vector<16x4xf32>
    %1378 = tpu.concatenate %1350, %1377 in 1 : vector<16x4xf32>, vector<16x4xf32> -> vector<16x8xf32>
    %c0_157 = arith.constant 0 : index
    %c0_158 = arith.constant 0 : index
    %1379 = vector.load %arg2[%c0_157, %c0_158] : memref<16x8xf32, #tpu.memory_space<vmem>>, vector<16x8xf32>
    tpu.vector_store %arg2[%c0_157, %c0_158], %1378 {strides = array<i32>} : memref<16x8xf32, #tpu.memory_space<vmem>>, vector<16x8xf32>,
    return
  }
}

</mosaic_0001>

<llo_original>
// kernel: transformer_model_forward.1
$region0: #{transformer_model_forward.1}
  #allocation0 [shape = 'u32[]', space=smem, size = 0x4, offset = 0x4, fixed_abs, tag = 'smem constant byte address 0x4 - core index']
  #allocation1 [shape = 'u32[144,128]{1,0:T(1,128)}', space=vmem, size = 0x12000, scoped, tag = 'internal scratch']
  %s0 = inlined_call_operand.vmem [shape: f32[16,4], index: 0, kind: input, shape index: {}]
  %s1 = inlined_call_operand.vmem [shape: f32[216,64], index: 1, kind: input, shape index: {}]
  %s2 = inlined_call_operand.vmem [shape: f32[16,8], index: 2, kind: output, shape index: {}]
  %s3 = sld [smem:[#allocation0]]
  $region18: #{transformer_model_forward.1} parent=0
    _
  %s5 = ssub.s32 1, %s3
  %s6 = scalar_select 0, %s5, %s3
  // Predicated region
  $region2: #{transformer_model_forward.1} parent=0 // pred_check
    _
  $region3: #{transformer_model_forward.1} parent=0 // pred_check_branch
    %8 = sbr.rel (0) target = $region5
  $region4: #{transformer_model_forward.1} parent=0 // pred_region
    _
  $region5: #{transformer_model_forward.1} parent=0 // pred_fallthru
    _
  // Predicated region
  $region6: #{transformer_model_forward.1} parent=0 // pred_check
    _
  $region7: #{transformer_model_forward.1} parent=0 // pred_check_branch
    %10 = sbr.rel (0) target = $region9
  $region8: #{transformer_model_forward.1} parent=0 // pred_region
    _
  $region9: #{transformer_model_forward.1} parent=0 // pred_fallthru
    _
  %v11 = vld [vmem:[%s0] sm:$0xff]
  %v12 = vld [vmem:[%s0 + $0x8] sm:$0xff]
  %v15 = vcombine.high %v11, %v11
  %v17 = vunpack.c.l.s4 1983009808
  %v18 = vunpack.c.0.s8 %v17
  %v19 = vlaneseq
  %v20 = vshrl.u32 %v19, 7
  %v21 = vsub.s32 %v18, %v20
  %v22 = vrot.slane %v11, %v21
  %v24 = vunpack.c.l.s4 1983009808
  %v25 = vunpack.c.0.s8 %v24
  %v26 = vlaneseq
  %v27 = vshrl.u32 %v26, 7
  %v28 = vsub.s32 %v25, %v27
  %v29 = vrot.slane %v15, %v28
  %v30 = vcombine.high %v22, %v22
  %v31 = vcombine.high %v29, %v29
  %v32 = vcombine.high %v12, %v12
  %v34 = vunpack.c.l.s4 1983009808
  %v35 = vunpack.c.0.s8 %v34
  %v36 = vlaneseq
  %v37 = vshrl.u32 %v36, 7
  %v38 = vsub.s32 %v35, %v37
  %v39 = vrot.slane %v12, %v38
  %v41 = vunpack.c.l.s4 1983009808
  %v42 = vunpack.c.0.s8 %v41
  %v43 = vlaneseq
  %v44 = vshrl.u32 %v43, 7
  %v45 = vsub.s32 %v42, %v44
  %v46 = vrot.slane %v32, %v45
  %v47 = vcombine.high %v39, %v39
  %v48 = vcombine.high %v46, %v46
  %v49 = vlaneseq
  %v50 = vshrl.u32 %v49, 7
  %v51 = vsub.s32 0, %v50
  %v52 = vrot.slane %v22, %v51
  %v53 = vlaneseq
  %v54 = vshrl.u32 %v53, 7
  %v55 = vsub.s32 0, %v54
  %v56 = vrot.slane %v30, %v55
  %v57 = vlaneseq
  %v58 = vshrl.u32 %v57, 7
  %v59 = vsub.s32 0, %v58
  %v60 = vrot.slane %v29, %v59
  %v61 = vlaneseq
  %v62 = vshrl.u32 %v61, 7
  %v63 = vsub.s32 0, %v62
  %v64 = vrot.slane %v31, %v63
  %v65 = vlaneseq
  %v66 = vshrl.u32 %v65, 7
  %v67 = vsub.s32 0, %v66
  %v68 = vrot.slane %v39, %v67
  %v69 = vlaneseq
  %v70 = vshrl.u32 %v69, 7
  %v71 = vsub.s32 0, %v70
  %v72 = vrot.slane %v47, %v71
  %v73 = vlaneseq
  %v74 = vshrl.u32 %v73, 7
  %v75 = vsub.s32 0, %v74
  %v76 = vrot.slane %v46, %v75
  %v77 = vlaneseq
  %v78 = vshrl.u32 %v77, 7
  %v79 = vsub.s32 0, %v78
  %v80 = vrot.slane %v48, %v79
  %vm81 = vcmask 1041409
  %v82 = vsel %vm81, %v56, %v52
  %vm83 = vcmask 1042434
  %v84 = vsel %vm83, %v60, %v82
  %vm85 = vcmask 1043459
  %v86 = vsel %vm85, %v64, %v84
  %vm87 = vcmask 1044484
  %v88 = vsel %vm87, %v68, %v86
  %vm89 = vcmask 1045509
  %v90 = vsel %vm89, %v72, %v88
  %vm91 = vcmask 1046534
  %v92 = vsel %vm91, %v76, %v90
  %vm93 = vcmask 1047559
  %v94 = vsel %vm93, %v80, %v92
  %v96 = vlaneseq
  %v97 = vshrl.u32 %v96, 7
  %v98 = vsub.s32 1, %v97
  %v99 = vrot.slane %v22, %v98
  %v100 = vlaneseq
  %v101 = vshrl.u32 %v100, 7
  %v102 = vsub.s32 1, %v101
  %v103 = vrot.slane %v30, %v102
  %v104 = vlaneseq
  %v105 = vshrl.u32 %v104, 7
  %v106 = vsub.s32 1, %v105
  %v107 = vrot.slane %v29, %v106
  %v108 = vlaneseq
  %v109 = vshrl.u32 %v108, 7
  %v110 = vsub.s32 1, %v109
  %v111 = vrot.slane %v31, %v110
  %v112 = vlaneseq
  %v113 = vshrl.u32 %v112, 7
  %v114 = vsub.s32 1, %v113
  %v115 = vrot.slane %v39, %v114
  %v116 = vlaneseq
  %v117 = vshrl.u32 %v116, 7
  %v118 = vsub.s32 1, %v117
  %v119 = vrot.slane %v47, %v118
  %v120 = vlaneseq
  %v121 = vshrl.u32 %v120, 7
  %v122 = vsub.s32 1, %v121
  %v123 = vrot.slane %v46, %v122
  %v124 = vlaneseq
  %v125 = vshrl.u32 %v124, 7
  %v126 = vsub.s32 1, %v125
  %v127 = vrot.slane %v48, %v126
  %v128 = vsel %vm81, %v103, %v99
  %v129 = vsel %vm83, %v107, %v128
  %v130 = vsel %vm85, %v111, %v129
  %v131 = vsel %vm87, %v115, %v130
  %v132 = vsel %vm89, %v119, %v131
  %v133 = vsel %vm91, %v123, %v132
  %v134 = vsel %vm93, %v127, %v133
  %135 = vrot.lane.b32.xlu0 %v134, 4
  %v136 = vpop.permute.xlu0 %135
  %vm138 = vcmask 31744
  %v139 = vsel %vm138, %v94, %v136
  %v140 = vld [vmem:[%s1] sm:$0xff]
  %v141 = vld [vmem:[%s1 + $0xa4] sm:$0x1]
  %v142 = vld [vmem:[%s1 + $0x30] sm:$0xff]
  %v143 = vld [vmem:[%s1 + $0xa5] sm:$0x1]
  %145 = vset.pattern.permute.xlu0 0
  %146 = vperm.xlu0 %145, %v139
  %v147 = vpop.permute.xlu0 %146
  %v149 = vlaneseq
  %v150 = vshrl.u32 %v149, 7
  %v151 = vsub.s32 0, %v150
  %v152 = vrot.slane %v140, %v151
  %v153 = vmul.f32 %v147, %v152
  %v154 = vlaneseq
  %v155 = vshrl.u32 %v154, 7
  %v156 = vsub.s32 0, %v155
  %v157 = vrot.slane %v141, %v156
  %v158 = vadd.f32 %v153, %v157
  %159 = vset.pattern.permute.xlu0 1
  %160 = vperm.xlu0 %159, %v139
  %v161 = vpop.permute.xlu0 %160
  %v163 = vlaneseq
  %v164 = vshrl.u32 %v163, 7
  %v165 = vsub.s32 1, %v164
  %v166 = vrot.slane %v140, %v165
  %v167 = vmul.f32 %v161, %v166
  %v168 = vadd.f32 %v158, %v167
  %169 = vset.pattern.permute.xlu0 2
  %170 = vperm.xlu0 %169, %v139
  %v171 = vpop.permute.xlu0 %170
  %v173 = vlaneseq
  %v174 = vshrl.u32 %v173, 7
  %v175 = vsub.s32 2, %v174
  %v176 = vrot.slane %v140, %v175
  %v177 = vmul.f32 %v171, %v176
  %v178 = vadd.f32 %v168, %v177
  %179 = vset.pattern.permute.xlu0 3
  %180 = vperm.xlu0 %179, %v139
  %v181 = vpop.permute.xlu0 %180
  %v183 = vlaneseq
  %v184 = vshrl.u32 %v183, 7
  %v185 = vsub.s32 3, %v184
  %v186 = vrot.slane %v140, %v185
  %v187 = vmul.f32 %v181, %v186
  %v188 = vadd.f32 %v178, %v187
  %189 = vset.pattern.permute.xlu0 4
  %190 = vperm.xlu0 %189, %v139
  %v191 = vpop.permute.xlu0 %190
  %v193 = vlaneseq
  %v194 = vshrl.u32 %v193, 7
  %v195 = vsub.s32 4, %v194
  %v196 = vrot.slane %v140, %v195
  %v197 = vmul.f32 %v191, %v196
  %v198 = vadd.f32 %v188, %v197
  %199 = vset.pattern.permute.xlu0 5
  %200 = vperm.xlu0 %199, %v139
  %v201 = vpop.permute.xlu0 %200
  %v203 = vlaneseq
  %v204 = vshrl.u32 %v203, 7
  %v205 = vsub.s32 5, %v204
  %v206 = vrot.slane %v140, %v205
  %v207 = vmul.f32 %v201, %v206
  %v208 = vadd.f32 %v198, %v207
  %209 = vset.pattern.permute.xlu0 6
  %210 = vperm.xlu0 %209, %v139
  %v211 = vpop.permute.xlu0 %210
  %v213 = vlaneseq
  %v214 = vshrl.u32 %v213, 7
  %v215 = vsub.s32 6, %v214
  %v216 = vrot.slane %v140, %v215
  %v217 = vmul.f32 %v211, %v216
  %v218 = vadd.f32 %v208, %v217
  %219 = vset.pattern.permute.xlu0 7
  %220 = vperm.xlu0 %219, %v139
  %v221 = vpop.permute.xlu0 %220
  %v223 = vlaneseq
  %v224 = vshrl.u32 %v223, 7
  %v225 = vsub.s32 7, %v224
  %v226 = vrot.slane %v140, %v225
  %v227 = vmul.f32 %v221, %v226
  %v228 = vadd.f32 %v218, %v227
  %230 = vrot.lane.b32.xlu0 %v228, 120
  %v231 = vpop.permute.xlu0 %230
  %233 = vrot.lane.b32.xlu0 %v228, 8
  %v234 = vpop.permute.xlu0 %233
  %236 = vrot.lane.b32.xlu0 %v228, 16
  %v237 = vpop.permute.xlu0 %236
  %239 = vrot.lane.b32.xlu0 %v228, 24
  %v240 = vpop.permute.xlu0 %239
  %242 = vrot.lane.b32.xlu0 %v228, 32
  %v243 = vpop.permute.xlu0 %242
  %245 = vrot.lane.b32.xlu0 %v228, 40
  %v246 = vpop.permute.xlu0 %245
  %248 = vrot.lane.b32.xlu0 %v228, 48
  %v249 = vpop.permute.xlu0 %248
  %vm251 = vcmask 64512
  %v252 = vsel %vm251, %v231, %v228
  %vm253 = vcmask 130048
  %v254 = vsel %vm253, %v252, %v234
  %vm255 = vcmask 195584
  %v256 = vsel %vm255, %v254, %v237
  %vm257 = vcmask 261120
  %v258 = vsel %vm257, %v256, %v240
  %vm259 = vcmask 326656
  %v260 = vsel %vm259, %v258, %v243
  %vm261 = vcmask 392192
  %v262 = vsel %vm261, %v260, %v246
  %vm263 = vcmask 457728
  %v264 = vsel %vm263, %v262, %v249
  %265 = vrot.lane.b32.xlu0 %v228, 112
  %v266 = vpop.permute.xlu0 %265
  %v268 = vsel %vm251, %v266, %v231
  %v269 = vsel %vm253, %v268, %v228
  %v270 = vsel %vm255, %v269, %v234
  %v271 = vsel %vm257, %v270, %v237
  %v272 = vsel %vm259, %v271, %v240
  %v273 = vsel %vm261, %v272, %v243
  %v274 = vsel %vm263, %v273, %v246
  %v275 = vrot.slane %v228, 1
  %276 = vrot.lane.b32.xlu0 %v275, 8
  %v277 = vpop.permute.xlu0 %276
  %v279 = vrot.slane %v228, 2
  %280 = vrot.lane.b32.xlu0 %v279, 16
  %v281 = vpop.permute.xlu0 %280
  %v283 = vrot.slane %v228, 3
  %284 = vrot.lane.b32.xlu0 %v283, 24
  %v285 = vpop.permute.xlu0 %284
  %v287 = vrot.slane %v228, 4
  %288 = vrot.lane.b32.xlu0 %v287, 32
  %v289 = vpop.permute.xlu0 %288
  %v291 = vrot.slane %v228, 5
  %292 = vrot.lane.b32.xlu0 %v291, 40
  %v293 = vpop.permute.xlu0 %292
  %v295 = vrot.slane %v228, 6
  %296 = vrot.lane.b32.xlu0 %v295, 48
  %v297 = vpop.permute.xlu0 %296
  %v299 = vrot.slane %v228, 7
  %300 = vrot.lane.b32.xlu0 %v299, 56
  %v301 = vpop.permute.xlu0 %300
  %v303 = vsel %vm251, %v228, %v277
  %v304 = vsel %vm253, %v303, %v281
  %v305 = vsel %vm255, %v304, %v285
  %v306 = vsel %vm257, %v305, %v289
  %v307 = vsel %vm259, %v306, %v293
  %v308 = vsel %vm261, %v307, %v297
  %v309 = vsel %vm263, %v308, %v301
  %v310 = vlaneseq
  %v311 = vshrl.u32 %v310, 7
  %v312 = vsub.s32 0, %v311
  %v313 = vrot.slane %v309, %v312
  %v314 = vmul.f32 %v313, %v264
  %vm315 = vcmask 523264
  %v316 = vsel %vm315, %v314, -inf
  %v317 = vrot.slane %v316, 4
  %v318 = vmax.f32 %v316, %v317
  %v319 = vrot.slane %v318, 2
  %v320 = vmax.f32 %v318, %v319
  %v321 = vrot.slane %v320, 1
  %v322 = vmax.f32 %v320, %v321
  %v323 = vsub.f32 %v314, %v322
  %v324 = vmul.f32 %v323, 1.442695
  %v325 = vpow.pop %v324
  %v326 = vsel %vm315, %v325, 0.0
  %v327 = vrot.slane %v326, 4
  %v328 = vadd.f32 %v326, %v327
  %v329 = vrot.slane %v328, 2
  %v330 = vadd.f32 %v328, %v329
  %v331 = vrot.slane %v330, 1
  %v332 = vadd.f32 %v330, %v331
  %v333 = vrcp.pop %v332
  %v334 = vmul.f32 %v325, %v333
  %v335 = vmul.f32 %v334, %v274
  %v336 = vsel %vm315, %v335, 0.0
  %v337 = vrot.slane %v336, 4
  %v338 = vadd.f32 %v336, %v337
  %v339 = vrot.slane %v338, 2
  %v340 = vadd.f32 %v338, %v339
  %v341 = vrot.slane %v340, 1
  %v342 = vadd.f32 %v340, %v341
  %344 = vrot.lane.b32.xlu0 %v342, 120
  %v345 = vpop.permute.xlu0 %344
  %347 = vrot.lane.b32.xlu0 %v342, 112
  %v348 = vpop.permute.xlu0 %347
  %350 = vrot.lane.b32.xlu0 %v342, 104
  %v351 = vpop.permute.xlu0 %350
  %353 = vrot.lane.b32.xlu0 %v342, 96
  %v354 = vpop.permute.xlu0 %353
  %356 = vrot.lane.b32.xlu0 %v342, 88
  %v357 = vpop.permute.xlu0 %356
  %359 = vrot.lane.b32.xlu0 %v342, 80
  %v360 = vpop.permute.xlu0 %359
  %362 = vrot.lane.b32.xlu0 %v342, 72
  %v363 = vpop.permute.xlu0 %362
  %vm365 = vcmask 1040384
  %v366 = vsel %vm365, %v342, %v345
  %vm367 = vcmask 1041408
  %v368 = vsel %vm367, %v366, %v348
  %vm369 = vcmask 1042432
  %v370 = vsel %vm369, %v368, %v351
  %vm371 = vcmask 1043456
  %v372 = vsel %vm371, %v370, %v354
  %vm373 = vcmask 1044480
  %v374 = vsel %vm373, %v372, %v357
  %vm375 = vcmask 1045504
  %v376 = vsel %vm375, %v374, %v360
  %vm377 = vcmask 1046528
  %v378 = vsel %vm377, %v376, %v363
  %380 = vset.pattern.permute.xlu0 0
  %381 = vperm.xlu0 %380, %v378
  %v382 = vpop.permute.xlu0 %381
  %v384 = vlaneseq
  %v385 = vshrl.u32 %v384, 7
  %v386 = vsub.s32 0, %v385
  %v387 = vrot.slane %v142, %v386
  %v388 = vmul.f32 %v382, %v387
  %v389 = vlaneseq
  %v390 = vshrl.u32 %v389, 7
  %v391 = vsub.s32 0, %v390
  %v392 = vrot.slane %v143, %v391
  %v393 = vadd.f32 %v388, %v392
  %394 = vset.pattern.permute.xlu0 1
  %395 = vperm.xlu0 %394, %v378
  %v396 = vpop.permute.xlu0 %395
  %v398 = vlaneseq
  %v399 = vshrl.u32 %v398, 7
  %v400 = vsub.s32 1, %v399
  %v401 = vrot.slane %v142, %v400
  %v402 = vmul.f32 %v396, %v401
  %v403 = vadd.f32 %v393, %v402
  %404 = vset.pattern.permute.xlu0 2
  %405 = vperm.xlu0 %404, %v378
  %v406 = vpop.permute.xlu0 %405
  %v408 = vlaneseq
  %v409 = vshrl.u32 %v408, 7
  %v410 = vsub.s32 2, %v409
  %v411 = vrot.slane %v142, %v410
  %v412 = vmul.f32 %v406, %v411
  %v413 = vadd.f32 %v403, %v412
  %414 = vset.pattern.permute.xlu0 3
  %415 = vperm.xlu0 %414, %v378
  %v416 = vpop.permute.xlu0 %415
  %v418 = vlaneseq
  %v419 = vshrl.u32 %v418, 7
  %v420 = vsub.s32 3, %v419
  %v421 = vrot.slane %v142, %v420
  %v422 = vmul.f32 %v416, %v421
  %v423 = vadd.f32 %v413, %v422
  %424 = vset.pattern.permute.xlu0 4
  %425 = vperm.xlu0 %424, %v378
  %v426 = vpop.permute.xlu0 %425
  %v428 = vlaneseq
  %v429 = vshrl.u32 %v428, 7
  %v430 = vsub.s32 4, %v429
  %v431 = vrot.slane %v142, %v430
  %v432 = vmul.f32 %v426, %v431
  %v433 = vadd.f32 %v423, %v432
  %434 = vset.pattern.permute.xlu0 5
  %435 = vperm.xlu0 %434, %v378
  %v436 = vpop.permute.xlu0 %435
  %v438 = vlaneseq
  %v439 = vshrl.u32 %v438, 7
  %v440 = vsub.s32 5, %v439
  %v441 = vrot.slane %v142, %v440
  %v442 = vmul.f32 %v436, %v441
  %v443 = vadd.f32 %v433, %v442
  %444 = vset.pattern.permute.xlu0 6
  %445 = vperm.xlu0 %444, %v378
  %v446 = vpop.permute.xlu0 %445
  %v448 = vlaneseq
  %v449 = vshrl.u32 %v448, 7
  %v450 = vsub.s32 6, %v449
  %v451 = vrot.slane %v142, %v450
  %v452 = vmul.f32 %v446, %v451
  %v453 = vadd.f32 %v443, %v452
  %454 = vset.pattern.permute.xlu0 7
  %455 = vperm.xlu0 %454, %v378
  %v456 = vpop.permute.xlu0 %455
  %v458 = vlaneseq
  %v459 = vshrl.u32 %v458, 7
  %v460 = vsub.s32 7, %v459
  %v461 = vrot.slane %v142, %v460
  %v462 = vmul.f32 %v456, %v461
  %v463 = vadd.f32 %v453, %v462
  %v465 = vcombine.high %v463, %v463
  %v467 = vunpack.c.l.s4 1966171168
  %v468 = vunpack.c.0.s8 %v467
  %v469 = vlaneseq
  %v470 = vshrl.u32 %v469, 7
  %v471 = vsub.s32 %v468, %v470
  %v472 = vrot.slane %v463, %v471
  %v474 = vunpack.c.l.s4 1966171168
  %v475 = vunpack.c.0.s8 %v474
  %v476 = vlaneseq
  %v477 = vshrl.u32 %v476, 7
  %v478 = vsub.s32 %v475, %v477
  %v479 = vrot.slane %v465, %v478
  %v480 = vcombine.high %v472, %v472
  %v481 = vcombine.high %v479, %v479
  %v483 = vunpack.c.l.s4 1966171168
  %v484 = vunpack.c.0.s8 %v483
  %v485 = vlaneseq
  %v486 = vshrl.u32 %v485, 7
  %v487 = vsub.s32 %v484, %v486
  %v488 = vrot.slane %v472, %v487
  %v490 = vunpack.c.l.s4 1966171168
  %v491 = vunpack.c.0.s8 %v490
  %v492 = vlaneseq
  %v493 = vshrl.u32 %v492, 7
  %v494 = vsub.s32 %v491, %v493
  %v495 = vrot.slane %v479, %v494
  %v497 = vunpack.c.l.s4 1966171168
  %v498 = vunpack.c.0.s8 %v497
  %v499 = vlaneseq
  %v500 = vshrl.u32 %v499, 7
  %v501 = vsub.s32 %v498, %v500
  %v502 = vrot.slane %v480, %v501
  %v504 = vunpack.c.l.s4 1966171168
  %v505 = vunpack.c.0.s8 %v504
  %v506 = vlaneseq
  %v507 = vshrl.u32 %v506, 7
  %v508 = vsub.s32 %v505, %v507
  %v509 = vrot.slane %v481, %v508
  %v510 = vcombine.high %v488, %v488
  %v511 = vcombine.high %v495, %v495
  %v512 = vcombine.high %v502, %v502
  %v513 = vcombine.high %v509, %v509
  %v522 = vlaneseq
  %v523 = vshrl.u32 %v522, 7
  %v524 = vsub.s32 0, %v523
  %v525 = vrot.slane %v488, %v524
  %v526 = vlaneseq
  %v527 = vshrl.u32 %v526, 7
  %v528 = vsub.s32 0, %v527
  %v529 = vrot.slane %v502, %v528
  %v530 = vlaneseq
  %v531 = vshrl.u32 %v530, 7
  %v532 = vsub.s32 0, %v531
  %v533 = vrot.slane %v510, %v532
  %v534 = vlaneseq
  %v535 = vshrl.u32 %v534, 7
  %v536 = vsub.s32 0, %v535
  %v537 = vrot.slane %v512, %v536
  %v538 = vlaneseq
  %v539 = vshrl.u32 %v538, 7
  %v540 = vsub.s32 0, %v539
  %v541 = vrot.slane %v495, %v540
  %v542 = vlaneseq
  %v543 = vshrl.u32 %v542, 7
  %v544 = vsub.s32 0, %v543
  %v545 = vrot.slane %v509, %v544
  %v546 = vlaneseq
  %v547 = vshrl.u32 %v546, 7
  %v548 = vsub.s32 0, %v547
  %v549 = vrot.slane %v511, %v548
  %v550 = vlaneseq
  %v551 = vshrl.u32 %v550, 7
  %v552 = vsub.s32 0, %v551
  %v553 = vrot.slane %v513, %v552
  %554 = vrot.lane.b32.xlu0 %v525, 124
  %v555 = vpop.permute.xlu0 %554
  %556 = vrot.lane.b32.xlu0 %v529, 124
  %v557 = vpop.permute.xlu0 %556
  %558 = vrot.lane.b32.xlu0 %v533, 124
  %v559 = vpop.permute.xlu0 %558
  %560 = vrot.lane.b32.xlu0 %v537, 124
  %v561 = vpop.permute.xlu0 %560
  %562 = vrot.lane.b32.xlu0 %v541, 124
  %v563 = vpop.permute.xlu0 %562
  %564 = vrot.lane.b32.xlu0 %v545, 124
  %v565 = vpop.permute.xlu0 %564
  %566 = vrot.lane.b32.xlu0 %v549, 124
  %v567 = vpop.permute.xlu0 %566
  %568 = vrot.lane.b32.xlu0 %v553, 124
  %v569 = vpop.permute.xlu0 %568
  %v578 = vsel %vm365, %v488, %v555
  %v579 = vsel %vm365, %v502, %v557
  %v580 = vsel %vm365, %v510, %v559
  %v581 = vsel %vm365, %v512, %v561
  %v582 = vsel %vm365, %v495, %v563
  %v583 = vsel %vm365, %v509, %v565
  %v584 = vsel %vm365, %v511, %v567
  %v585 = vsel %vm365, %v513, %v569
  %v594 = vcombine.low %v578, %v579
  %v595 = vcombine.low %v580, %v581
  %v597 = vunpack.c.l.s4 1983009808
  %v598 = vunpack.c.0.s8 %v597
  %v599 = vlaneseq
  %v600 = vshrl.u32 %v599, 7
  %v601 = vsub.s32 %v598, %v600
  %v602 = vrot.slane %v594, %v601
  %v604 = vunpack.c.l.s4 1983009808
  %v605 = vunpack.c.0.s8 %v604
  %v606 = vlaneseq
  %v607 = vshrl.u32 %v606, 7
  %v608 = vsub.s32 %v605, %v607
  %v609 = vrot.slane %v595, %v608
  %v610 = vcombine.low %v602, %v609
  %v611 = vcombine.low %v582, %v583
  %v612 = vcombine.low %v584, %v585
  %v614 = vunpack.c.l.s4 1983009808
  %v615 = vunpack.c.0.s8 %v614
  %v616 = vlaneseq
  %v617 = vshrl.u32 %v616, 7
  %v618 = vsub.s32 %v615, %v617
  %v619 = vrot.slane %v611, %v618
  %v621 = vunpack.c.l.s4 1983009808
  %v622 = vunpack.c.0.s8 %v621
  %v623 = vlaneseq
  %v624 = vshrl.u32 %v623, 7
  %v625 = vsub.s32 %v622, %v624
  %v626 = vrot.slane %v612, %v625
  %v627 = vcombine.low %v619, %v626
  %v630 = vadd.f32 %v11, %v610
  %v631 = vadd.f32 %v12, %v627
  %v632 = vld [vmem:[%s1 + $0xa8] sm:$0x1]
  %v633 = vld [vmem:[%s1 + $0xa9] sm:$0x1]
  %v634 = vsel %vm138, %v630, 0.0
  %635 = vadd.xlane.f32.xlu0 %v634
  %v636 = vpop.xlane.xlu0 %635
  %v637 = vsel %vm138, %v631, 0.0
  %638 = vadd.xlane.f32.xlu0 %v637
  %v639 = vpop.xlane.xlu0 %638
  %v640 = vrcp.pop 4.0
  %v641 = vmul.f32 %v636, %v640
  %v642 = vmul.f32 %v639, %v640
  %v643 = vsub.f32 %v630, %v641
  %v644 = vsub.f32 %v631, %v642
  %v645 = vmul.f32 %v643, %v643
  %v646 = vmul.f32 %v644, %v644
  %v647 = vsel %vm138, %v645, 0.0
  %648 = vadd.xlane.f32.xlu0 %v647
  %v649 = vpop.xlane.xlu0 %648
  %v650 = vsel %vm138, %v646, 0.0
  %651 = vadd.xlane.f32.xlu0 %v650
  %v652 = vpop.xlane.xlu0 %651
  %v653 = vmul.f32 %v649, %v640
  %v654 = vmul.f32 %v652, %v640
  %v655 = vadd.f32 %v653, 1e-05
  %v656 = vadd.f32 %v654, 1e-05
  %v657 = vrsqrt.pop %v655
  %v658 = vrsqrt.pop %v656
  %v659 = vmul.f32 %v643, %v657
  %v660 = vmul.f32 %v644, %v658
  %v661 = vlaneseq
  %v662 = vshrl.u32 %v661, 7
  %v663 = vsub.s32 0, %v662
  %v664 = vrot.slane %v632, %v663
  %v665 = vmul.f32 %v659, %v664
  %v666 = vmul.f32 %v660, %v664
  %v667 = vlaneseq
  %v668 = vshrl.u32 %v667, 7
  %v669 = vsub.s32 0, %v668
  %v670 = vrot.slane %v633, %v669
  %v671 = vadd.f32 %v665, %v670
  %v672 = vadd.f32 %v666, %v670
  %v673 = vld [vmem:[%s1 + $0x68] sm:$0xf]
  %v674 = vld [vmem:[%s1 + $0xa6] sm:$0x1]
  %v675 = vld [vmem:[%s1 + $0x88] sm:$0xf]
  %v676 = vld [vmem:[%s1 + $0xa7] sm:$0x1]
  %v677 = vlaneseq
  %v678 = vshrl.u32 %v677, 7
  %v679 = vsub.s32 0, %v678
  %v680 = vrot.slane %v674, %v679
  %v682 = vsel %vm138, %v671, 0
  %v685 = vsel %vm138, %v672, 0
  %v688 = vsel %vm371, %v673, 0
  %690 = vmatprep.subr.mxu0 0.0
  %691 = vmatpush1.msra.mxu0 0.0
  %692 = vmatprep.subr.mxu0 0.0
  %693 = vmatpush1.msra.mxu0 0.0
  %694 = vmatprep.subr.mxu0 0.0
  %695 = vmatpush1.msra.mxu0 0.0
  %696 = vmatprep.subr.mxu0 0.0
  %697 = vmatpush1.msra.mxu0 0.0
  %698 = vmatprep.subr.mxu0 0.0
  %699 = vmatpush1.msra.mxu0 0.0
  %700 = vmatprep.subr.mxu0 0.0
  %701 = vmatpush1.msra.mxu0 0.0
  %702 = vmatprep.subr.mxu0 0.0
  %703 = vmatpush1.msra.mxu0 0.0
  %704 = vmatprep.subr.mxu0 0.0
  %705 = vmatpush1.msra.mxu0 0.0
  %706 = vmatprep.subr.mxu0 0.0
  %707 = vmatpush1.msra.mxu0 0.0
  %708 = vmatprep.subr.mxu0 0.0
  %709 = vmatpush1.msra.mxu0 0.0
  %710 = vmatprep.subr.mxu0 0.0
  %711 = vmatpush1.msra.mxu0 0.0
  %712 = vmatprep.subr.mxu0 0.0
  %713 = vmatpush1.msra.mxu0 0.0
  %714 = vmatprep.subr.mxu0 0.0
  %715 = vmatpush1.msra.mxu0 0.0
  %716 = vmatprep.subr.mxu0 0.0
  %717 = vmatpush1.msra.mxu0 0.0
  %718 = vmatprep.subr.mxu0 0.0
  %719 = vmatpush1.msra.mxu0 0.0
  %720 = vmatprep.subr.mxu0 0.0
  %721 = vmatpush1.msra.mxu0 %v688
  %722 = vmatprep.subr.mxu0 0.0
  %723 = vmatpush2.msra.mxu0 0.0
  %724 = vmatprep.subr.mxu0 0.0
  %725 = vmatpush2.msra.mxu0 0.0
  %726 = vmatprep.subr.mxu0 0.0
  %727 = vmatpush2.msra.mxu0 0.0
  %728 = vmatprep.subr.mxu0 0.0
  %729 = vmatpush2.msra.mxu0 0.0
  %730 = vmatprep.subr.mxu0 0.0
  %731 = vmatpush2.msra.mxu0 0.0
  %732 = vmatprep.subr.mxu0 0.0
  %733 = vmatpush2.msra.mxu0 0.0
  %734 = vmatprep.subr.mxu0 0.0
  %735 = vmatpush2.msra.mxu0 0.0
  %736 = vmatprep.subr.mxu0 0.0
  %737 = vmatpush2.msra.mxu0 0.0
  %738 = vmatprep.subr.mxu0 0.0
  %739 = vmatpush2.msra.mxu0 0.0
  %740 = vmatprep.subr.mxu0 0.0
  %741 = vmatpush2.msra.mxu0 0.0
  %742 = vmatprep.subr.mxu0 0.0
  %743 = vmatpush2.msra.mxu0 0.0
  %744 = vmatprep.subr.mxu0 0.0
  %745 = vmatpush2.msra.mxu0 0.0
  %746 = vmatprep.subr.mxu0 0.0
  %747 = vmatpush2.msra.mxu0 0.0
  %748 = vmatprep.subr.mxu0 0.0
  %749 = vmatpush2.msra.mxu0 0.0
  %750 = vmatprep.subr.mxu0 0.0
  %751 = vmatpush2.msra.mxu0 0.0
  %752 = vmatprep.subr.mxu0 0.0
  %753 = vmatpush2.msra.mxu0 0.0
  %754 = vmatprep.mubr.f32.mxu0 0.0
  %755 = vmatmul.mubr.f32.gmra.mxu0 %v682
  %v756 = vpop.f32.mrf.mxu0
  %v757 = vadd.f32 %v680, %v756
  %v758 = vpop.f32.mrf.mxu0
  %759 = vmatprep.mubr.f32.mxu0 0.0
  %760 = vmatmul.mubr.f32.gmra.mxu0 %v685
  %v761 = vpop.f32.mrf.mxu0
  %v762 = vadd.f32 %v680, %v761
  %v763 = vpop.f32.mrf.mxu0
  %764 = vdwg.mxu0
  %v765 = vmax.f32 %v757, 0.0
  %v766 = vmax.f32 %v762, 0.0
  %v767 = vlaneseq
  %v768 = vshrl.u32 %v767, 7
  %v769 = vsub.s32 0, %v768
  %v770 = vrot.slane %v676, %v769
  %v772 = vsel %vm315, %v765, 0
  %v775 = vsel %vm315, %v766, 0
  %v778 = vsel %vm315, %v675, 0
  %780 = vmatprep.subr.mxu0 0.0
  %781 = vmatpush1.xpose.msra.mxu0 0.0
  %782 = vmatprep.subr.mxu0 0.0
  %783 = vmatpush1.xpose.msra.mxu0 0.0
  %784 = vmatprep.subr.mxu0 0.0
  %785 = vmatpush1.xpose.msra.mxu0 0.0
  %786 = vmatprep.subr.mxu0 0.0
  %787 = vmatpush1.xpose.msra.mxu0 0.0
  %788 = vmatprep.subr.mxu0 0.0
  %789 = vmatpush1.xpose.msra.mxu0 0.0
  %790 = vmatprep.subr.mxu0 0.0
  %791 = vmatpush1.xpose.msra.mxu0 0.0
  %792 = vmatprep.subr.mxu0 0.0
  %793 = vmatpush1.xpose.msra.mxu0 0.0
  %794 = vmatprep.subr.mxu0 0.0
  %795 = vmatpush1.xpose.msra.mxu0 0.0
  %796 = vmatprep.subr.mxu0 0.0
  %797 = vmatpush1.xpose.msra.mxu0 0.0
  %798 = vmatprep.subr.mxu0 0.0
  %799 = vmatpush1.xpose.msra.mxu0 0.0
  %800 = vmatprep.subr.mxu0 0.0
  %801 = vmatpush1.xpose.msra.mxu0 0.0
  %802 = vmatprep.subr.mxu0 0.0
  %803 = vmatpush1.xpose.msra.mxu0 0.0
  %804 = vmatprep.subr.mxu0 0.0
  %805 = vmatpush1.xpose.msra.mxu0 0.0
  %806 = vmatprep.subr.mxu0 0.0
  %807 = vmatpush1.xpose.msra.mxu0 0.0
  %808 = vmatprep.subr.mxu0 0.0
  %809 = vmatpush1.xpose.msra.mxu0 0.0
  %810 = vmatprep.subr.mxu0 0.0
  %811 = vmatpush1.xpose.msra.mxu0 %v778
  %812 = vmatprep.subr.mxu0 0.0
  %813 = vmatpush2.xpose.msra.mxu0 0.0
  %814 = vmatprep.subr.mxu0 0.0
  %815 = vmatpush2.xpose.msra.mxu0 0.0
  %816 = vmatprep.subr.mxu0 0.0
  %817 = vmatpush2.xpose.msra.mxu0 0.0
  %818 = vmatprep.subr.mxu0 0.0
  %819 = vmatpush2.xpose.msra.mxu0 0.0
  %820 = vmatprep.subr.mxu0 0.0
  %821 = vmatpush2.xpose.msra.mxu0 0.0
  %822 = vmatprep.subr.mxu0 0.0
  %823 = vmatpush2.xpose.msra.mxu0 0.0
  %824 = vmatprep.subr.mxu0 0.0
  %825 = vmatpush2.xpose.msra.mxu0 0.0
  %826 = vmatprep.subr.mxu0 0.0
  %827 = vmatpush2.xpose.msra.mxu0 0.0
  %828 = vmatprep.subr.mxu0 0.0
  %829 = vmatpush2.xpose.msra.mxu0 0.0
  %830 = vmatprep.subr.mxu0 0.0
  %831 = vmatpush2.xpose.msra.mxu0 0.0
  %832 = vmatprep.subr.mxu0 0.0
  %833 = vmatpush2.xpose.msra.mxu0 0.0
  %834 = vmatprep.subr.mxu0 0.0
  %835 = vmatpush2.xpose.msra.mxu0 0.0
  %836 = vmatprep.subr.mxu0 0.0
  %837 = vmatpush2.xpose.msra.mxu0 0.0
  %838 = vmatprep.subr.mxu0 0.0
  %839 = vmatpush2.xpose.msra.mxu0 0.0
  %840 = vmatprep.subr.mxu0 0.0
  %841 = vmatpush2.xpose.msra.mxu0 0.0
  %842 = vmatprep.subr.mxu0 0.0
  %843 = vmatpush2.xpose.msra.mxu0 0.0
  %844 = vmatprep.mubr.f32.mxu0 0.0
  %845 = vmatmul.mubr.f32.gmra.mxu0 %v772
  %v846 = vpop.f32.mrf.mxu0
  %v847 = vadd.f32 %v770, %v846
  %v848 = vpop.f32.mrf.mxu0
  %849 = vmatprep.mubr.f32.mxu0 0.0
  %850 = vmatmul.mubr.f32.gmra.mxu0 %v775
  %v851 = vpop.f32.mrf.mxu0
  %v852 = vadd.f32 %v770, %v851
  %v853 = vpop.f32.mrf.mxu0
  %854 = vdwg.mxu0
  %v855 = vadd.f32 %v671, %v847
  %v856 = vadd.f32 %v672, %v852
  %v857 = vld [vmem:[%s1 + $0xaa] sm:$0x1]
  %v858 = vld [vmem:[%s1 + $0xab] sm:$0x1]
  %v859 = vsel %vm138, %v855, 0.0
  %860 = vadd.xlane.f32.xlu0 %v859
  %v861 = vpop.xlane.xlu0 %860
  %v862 = vsel %vm138, %v856, 0.0
  %863 = vadd.xlane.f32.xlu0 %v862
  %v864 = vpop.xlane.xlu0 %863
  %v865 = vmul.f32 %v861, %v640
  %v866 = vmul.f32 %v864, %v640
  %v867 = vsub.f32 %v855, %v865
  %v868 = vsub.f32 %v856, %v866
  %v869 = vmul.f32 %v867, %v867
  %v870 = vmul.f32 %v868, %v868
  %v871 = vsel %vm138, %v869, 0.0
  %872 = vadd.xlane.f32.xlu0 %v871
  %v873 = vpop.xlane.xlu0 %872
  %v874 = vsel %vm138, %v870, 0.0
  %875 = vadd.xlane.f32.xlu0 %v874
  %v876 = vpop.xlane.xlu0 %875
  %v877 = vmul.f32 %v873, %v640
  %v878 = vmul.f32 %v876, %v640
  %v879 = vadd.f32 %v877, 1e-05
  %v880 = vadd.f32 %v878, 1e-05
  %v881 = vrsqrt.pop %v879
  %v882 = vrsqrt.pop %v880
  %v883 = vmul.f32 %v867, %v881
  %v884 = vmul.f32 %v868, %v882
  %v885 = vlaneseq
  %v886 = vshrl.u32 %v885, 7
  %v887 = vsub.s32 0, %v886
  %v888 = vrot.slane %v857, %v887
  %v889 = vmul.f32 %v883, %v888
  %v890 = vmul.f32 %v884, %v888
  %v891 = vlaneseq
  %v892 = vshrl.u32 %v891, 7
  %v893 = vsub.s32 0, %v892
  %v894 = vrot.slane %v858, %v893
  %v895 = vadd.f32 %v889, %v894
  %v896 = vadd.f32 %v890, %v894
  %v899 = vcombine.high %v895, %v895
  %v901 = vunpack.c.l.s4 1983009808
  %v902 = vunpack.c.0.s8 %v901
  %v903 = vlaneseq
  %v904 = vshrl.u32 %v903, 7
  %v905 = vsub.s32 %v902, %v904
  %v906 = vrot.slane %v895, %v905
  %v908 = vunpack.c.l.s4 1983009808
  %v909 = vunpack.c.0.s8 %v908
  %v910 = vlaneseq
  %v911 = vshrl.u32 %v910, 7
  %v912 = vsub.s32 %v909, %v911
  %v913 = vrot.slane %v899, %v912
  %v914 = vcombine.high %v906, %v906
  %v915 = vcombine.high %v913, %v913
  %v916 = vcombine.high %v896, %v896
  %v918 = vunpack.c.l.s4 1983009808
  %v919 = vunpack.c.0.s8 %v918
  %v920 = vlaneseq
  %v921 = vshrl.u32 %v920, 7
  %v922 = vsub.s32 %v919, %v921
  %v923 = vrot.slane %v896, %v922
  %v925 = vunpack.c.l.s4 1983009808
  %v926 = vunpack.c.0.s8 %v925
  %v927 = vlaneseq
  %v928 = vshrl.u32 %v927, 7
  %v929 = vsub.s32 %v926, %v928
  %v930 = vrot.slane %v916, %v929
  %v931 = vcombine.high %v923, %v923
  %v932 = vcombine.high %v930, %v930
  %v933 = vlaneseq
  %v934 = vshrl.u32 %v933, 7
  %v935 = vsub.s32 0, %v934
  %v936 = vrot.slane %v906, %v935
  %v937 = vlaneseq
  %v938 = vshrl.u32 %v937, 7
  %v939 = vsub.s32 0, %v938
  %v940 = vrot.slane %v914, %v939
  %v941 = vlaneseq
  %v942 = vshrl.u32 %v941, 7
  %v943 = vsub.s32 0, %v942
  %v944 = vrot.slane %v913, %v943
  %v945 = vlaneseq
  %v946 = vshrl.u32 %v945, 7
  %v947 = vsub.s32 0, %v946
  %v948 = vrot.slane %v915, %v947
  %v949 = vlaneseq
  %v950 = vshrl.u32 %v949, 7
  %v951 = vsub.s32 0, %v950
  %v952 = vrot.slane %v923, %v951
  %v953 = vlaneseq
  %v954 = vshrl.u32 %v953, 7
  %v955 = vsub.s32 0, %v954
  %v956 = vrot.slane %v931, %v955
  %v957 = vlaneseq
  %v958 = vshrl.u32 %v957, 7
  %v959 = vsub.s32 0, %v958
  %v960 = vrot.slane %v930, %v959
  %v961 = vlaneseq
  %v962 = vshrl.u32 %v961, 7
  %v963 = vsub.s32 0, %v962
  %v964 = vrot.slane %v932, %v963
  %v965 = vsel %vm81, %v940, %v936
  %v966 = vsel %vm83, %v944, %v965
  %v967 = vsel %vm85, %v948, %v966
  %v968 = vsel %vm87, %v952, %v967
  %v969 = vsel %vm89, %v956, %v968
  %v970 = vsel %vm91, %v960, %v969
  %v971 = vsel %vm93, %v964, %v970
  %v973 = vlaneseq
  %v974 = vshrl.u32 %v973, 7
  %v975 = vsub.s32 1, %v974
  %v976 = vrot.slane %v906, %v975
  %v977 = vlaneseq
  %v978 = vshrl.u32 %v977, 7
  %v979 = vsub.s32 1, %v978
  %v980 = vrot.slane %v914, %v979
  %v981 = vlaneseq
  %v982 = vshrl.u32 %v981, 7
  %v983 = vsub.s32 1, %v982
  %v984 = vrot.slane %v913, %v983
  %v985 = vlaneseq
  %v986 = vshrl.u32 %v985, 7
  %v987 = vsub.s32 1, %v986
  %v988 = vrot.slane %v915, %v987
  %v989 = vlaneseq
  %v990 = vshrl.u32 %v989, 7
  %v991 = vsub.s32 1, %v990
  %v992 = vrot.slane %v923, %v991
  %v993 = vlaneseq
  %v994 = vshrl.u32 %v993, 7
  %v995 = vsub.s32 1, %v994
  %v996 = vrot.slane %v931, %v995
  %v997 = vlaneseq
  %v998 = vshrl.u32 %v997, 7
  %v999 = vsub.s32 1, %v998
  %v1000 = vrot.slane %v930, %v999
  %v1001 = vlaneseq
  %v1002 = vshrl.u32 %v1001, 7
  %v1003 = vsub.s32 1, %v1002
  %v1004 = vrot.slane %v932, %v1003
  %v1005 = vsel %vm81, %v980, %v976
  %v1006 = vsel %vm83, %v984, %v1005
  %v1007 = vsel %vm85, %v988, %v1006
  %v1008 = vsel %vm87, %v992, %v1007
  %v1009 = vsel %vm89, %v996, %v1008
  %v1010 = vsel %vm91, %v1000, %v1009
  %v1011 = vsel %vm93, %v1004, %v1010
  %1012 = vrot.lane.b32.xlu0 %v1011, 4
  %v1013 = vpop.permute.xlu0 %1012
  %v1015 = vsel %vm138, %v971, %v1013
  %v1016 = vld [vmem:[%s1 + $0x8] sm:$0xff]
  %v1017 = vld [vmem:[%s1 + $0xac] sm:$0x1]
  %v1018 = vld [vmem:[%s1 + $0x38] sm:$0xff]
  %v1019 = vld [vmem:[%s1 + $0xad] sm:$0x1]
  %1021 = vset.pattern.permute.xlu0 0
  %1022 = vperm.xlu0 %1021, %v1015
  %v1023 = vpop.permute.xlu0 %1022
  %v1025 = vlaneseq
  %v1026 = vshrl.u32 %v1025, 7
  %v1027 = vsub.s32 0, %v1026
  %v1028 = vrot.slane %v1016, %v1027
  %v1029 = vmul.f32 %v1023, %v1028
  %v1030 = vlaneseq
  %v1031 = vshrl.u32 %v1030, 7
  %v1032 = vsub.s32 0, %v1031
  %v1033 = vrot.slane %v1017, %v1032
  %v1034 = vadd.f32 %v1029, %v1033
  %1035 = vset.pattern.permute.xlu0 1
  %1036 = vperm.xlu0 %1035, %v1015
  %v1037 = vpop.permute.xlu0 %1036
  %v1039 = vlaneseq
  %v1040 = vshrl.u32 %v1039, 7
  %v1041 = vsub.s32 1, %v1040
  %v1042 = vrot.slane %v1016, %v1041
  %v1043 = vmul.f32 %v1037, %v1042
  %v1044 = vadd.f32 %v1034, %v1043
  %1045 = vset.pattern.permute.xlu0 2
  %1046 = vperm.xlu0 %1045, %v1015
  %v1047 = vpop.permute.xlu0 %1046
  %v1049 = vlaneseq
  %v1050 = vshrl.u32 %v1049, 7
  %v1051 = vsub.s32 2, %v1050
  %v1052 = vrot.slane %v1016, %v1051
  %v1053 = vmul.f32 %v1047, %v1052
  %v1054 = vadd.f32 %v1044, %v1053
  %1055 = vset.pattern.permute.xlu0 3
  %1056 = vperm.xlu0 %1055, %v1015
  %v1057 = vpop.permute.xlu0 %1056
  %v1059 = vlaneseq
  %v1060 = vshrl.u32 %v1059, 7
  %v1061 = vsub.s32 3, %v1060
  %v1062 = vrot.slane %v1016, %v1061
  %v1063 = vmul.f32 %v1057, %v1062
  %v1064 = vadd.f32 %v1054, %v1063
  %1065 = vset.pattern.permute.xlu0 4
  %1066 = vperm.xlu0 %1065, %v1015
  %v1067 = vpop.permute.xlu0 %1066
  %v1069 = vlaneseq
  %v1070 = vshrl.u32 %v1069, 7
  %v1071 = vsub.s32 4, %v1070
  %v1072 = vrot.slane %v1016, %v1071
  %v1073 = vmul.f32 %v1067, %v1072
  %v1074 = vadd.f32 %v1064, %v1073
  %1075 = vset.pattern.permute.xlu0 5
  %1076 = vperm.xlu0 %1075, %v1015
  %v1077 = vpop.permute.xlu0 %1076
  %v1079 = vlaneseq
  %v1080 = vshrl.u32 %v1079, 7
  %v1081 = vsub.s32 5, %v1080
  %v1082 = vrot.slane %v1016, %v1081
  %v1083 = vmul.f32 %v1077, %v1082
  %v1084 = vadd.f32 %v1074, %v1083
  %1085 = vset.pattern.permute.xlu0 6
  %1086 = vperm.xlu0 %1085, %v1015
  %v1087 = vpop.permute.xlu0 %1086
  %v1089 = vlaneseq
  %v1090 = vshrl.u32 %v1089, 7
  %v1091 = vsub.s32 6, %v1090
  %v1092 = vrot.slane %v1016, %v1091
  %v1093 = vmul.f32 %v1087, %v1092
  %v1094 = vadd.f32 %v1084, %v1093
  %1095 = vset.pattern.permute.xlu0 7
  %1096 = vperm.xlu0 %1095, %v1015
  %v1097 = vpop.permute.xlu0 %1096
  %v1099 = vlaneseq
  %v1100 = vshrl.u32 %v1099, 7
  %v1101 = vsub.s32 7, %v1100
  %v1102 = vrot.slane %v1016, %v1101
  %v1103 = vmul.f32 %v1097, %v1102
  %v1104 = vadd.f32 %v1094, %v1103
  %1106 = vrot.lane.b32.xlu0 %v1104, 120
  %v1107 = vpop.permute.xlu0 %1106
  %1109 = vrot.lane.b32.xlu0 %v1104, 8
  %v1110 = vpop.permute.xlu0 %1109
  %1112 = vrot.lane.b32.xlu0 %v1104, 16
  %v1113 = vpop.permute.xlu0 %1112
  %1115 = vrot.lane.b32.xlu0 %v1104, 24
  %v1116 = vpop.permute.xlu0 %1115
  %1118 = vrot.lane.b32.xlu0 %v1104, 32
  %v1119 = vpop.permute.xlu0 %1118
  %1121 = vrot.lane.b32.xlu0 %v1104, 40
  %v1122 = vpop.permute.xlu0 %1121
  %1124 = vrot.lane.b32.xlu0 %v1104, 48
  %v1125 = vpop.permute.xlu0 %1124
  %v1127 = vsel %vm251, %v1107, %v1104
  %v1128 = vsel %vm253, %v1127, %v1110
  %v1129 = vsel %vm255, %v1128, %v1113
  %v1130 = vsel %vm257, %v1129, %v1116
  %v1131 = vsel %vm259, %v1130, %v1119
  %v1132 = vsel %vm261, %v1131, %v1122
  %v1133 = vsel %vm263, %v1132, %v1125
  %1134 = vrot.lane.b32.xlu0 %v1104, 112
  %v1135 = vpop.permute.xlu0 %1134
  %v1137 = vsel %vm251, %v1135, %v1107
  %v1138 = vsel %vm253, %v1137, %v1104
  %v1139 = vsel %vm255, %v1138, %v1110
  %v1140 = vsel %vm257, %v1139, %v1113
  %v1141 = vsel %vm259, %v1140, %v1116
  %v1142 = vsel %vm261, %v1141, %v1119
  %v1143 = vsel %vm263, %v1142, %v1122
  %v1144 = vrot.slane %v1104, 1
  %1145 = vrot.lane.b32.xlu0 %v1144, 8
  %v1146 = vpop.permute.xlu0 %1145
  %v1148 = vrot.slane %v1104, 2
  %1149 = vrot.lane.b32.xlu0 %v1148, 16
  %v1150 = vpop.permute.xlu0 %1149
  %v1152 = vrot.slane %v1104, 3
  %1153 = vrot.lane.b32.xlu0 %v1152, 24
  %v1154 = vpop.permute.xlu0 %1153
  %v1156 = vrot.slane %v1104, 4
  %1157 = vrot.lane.b32.xlu0 %v1156, 32
  %v1158 = vpop.permute.xlu0 %1157
  %v1160 = vrot.slane %v1104, 5
  %1161 = vrot.lane.b32.xlu0 %v1160, 40
  %v1162 = vpop.permute.xlu0 %1161
  %v1164 = vrot.slane %v1104, 6
  %1165 = vrot.lane.b32.xlu0 %v1164, 48
  %v1166 = vpop.permute.xlu0 %1165
  %v1168 = vrot.slane %v1104, 7
  %1169 = vrot.lane.b32.xlu0 %v1168, 56
  %v1170 = vpop.permute.xlu0 %1169
  %v1172 = vsel %vm251, %v1104, %v1146
  %v1173 = vsel %vm253, %v1172, %v1150
  %v1174 = vsel %vm255, %v1173, %v1154
  %v1175 = vsel %vm257, %v1174, %v1158
  %v1176 = vsel %vm259, %v1175, %v1162
  %v1177 = vsel %vm261, %v1176, %v1166
  %v1178 = vsel %vm263, %v1177, %v1170
  %v1179 = vlaneseq
  %v1180 = vshrl.u32 %v1179, 7
  %v1181 = vsub.s32 0, %v1180
  %v1182 = vrot.slane %v1178, %v1181
  %v1183 = vmul.f32 %v1182, %v1133
  %v1184 = vsel %vm315, %v1183, -inf
  %v1185 = vrot.slane %v1184, 4
  %v1186 = vmax.f32 %v1184, %v1185
  %v1187 = vrot.slane %v1186, 2
  %v1188 = vmax.f32 %v1186, %v1187
  %v1189 = vrot.slane %v1188, 1
  %v1190 = vmax.f32 %v1188, %v1189
  %v1191 = vsub.f32 %v1183, %v1190
  %v1192 = vmul.f32 %v1191, 1.442695
  %v1193 = vpow.pop %v1192
  %v1194 = vsel %vm315, %v1193, 0.0
  %v1195 = vrot.slane %v1194, 4
  %v1196 = vadd.f32 %v1194, %v1195
  %v1197 = vrot.slane %v1196, 2
  %v1198 = vadd.f32 %v1196, %v1197
  %v1199 = vrot.slane %v1198, 1
  %v1200 = vadd.f32 %v1198, %v1199
  %v1201 = vrcp.pop %v1200
  %v1202 = vmul.f32 %v1193, %v1201
  %v1203 = vmul.f32 %v1202, %v1143
  %v1204 = vsel %vm315, %v1203, 0.0
  %v1205 = vrot.slane %v1204, 4
  %v1206 = vadd.f32 %v1204, %v1205
  %v1207 = vrot.slane %v1206, 2
  %v1208 = vadd.f32 %v1206, %v1207
  %v1209 = vrot.slane %v1208, 1
  %v1210 = vadd.f32 %v1208, %v1209
  %1212 = vrot.lane.b32.xlu0 %v1210, 120
  %v1213 = vpop.permute.xlu0 %1212
  %1215 = vrot.lane.b32.xlu0 %v1210, 112
  %v1216 = vpop.permute.xlu0 %1215
  %1218 = vrot.lane.b32.xlu0 %v1210, 104
  %v1219 = vpop.permute.xlu0 %1218
  %1221 = vrot.lane.b32.xlu0 %v1210, 96
  %v1222 = vpop.permute.xlu0 %1221
  %1224 = vrot.lane.b32.xlu0 %v1210, 88
  %v1225 = vpop.permute.xlu0 %1224
  %1227 = vrot.lane.b32.xlu0 %v1210, 80
  %v1228 = vpop.permute.xlu0 %1227
  %1230 = vrot.lane.b32.xlu0 %v1210, 72
  %v1231 = vpop.permute.xlu0 %1230
  %v1233 = vsel %vm365, %v1210, %v1213
  %v1234 = vsel %vm367, %v1233, %v1216
  %v1235 = vsel %vm369, %v1234, %v1219
  %v1236 = vsel %vm371, %v1235, %v1222
  %v1237 = vsel %vm373, %v1236, %v1225
  %v1238 = vsel %vm375, %v1237, %v1228
  %v1239 = vsel %vm377, %v1238, %v1231
  %1241 = vset.pattern.permute.xlu0 0
  %1242 = vperm.xlu0 %1241, %v1239
  %v1243 = vpop.permute.xlu0 %1242
  %v1245 = vlaneseq
  %v1246 = vshrl.u32 %v1245, 7
  %v1247 = vsub.s32 0, %v1246
  %v1248 = vrot.slane %v1018, %v1247
  %v1249 = vmul.f32 %v1243, %v1248
  %v1250 = vlaneseq
  %v1251 = vshrl.u32 %v1250, 7
  %v1252 = vsub.s32 0, %v1251
  %v1253 = vrot.slane %v1019, %v1252
  %v1254 = vadd.f32 %v1249, %v1253
  %1255 = vset.pattern.permute.xlu0 1
  %1256 = vperm.xlu0 %1255, %v1239
  %v1257 = vpop.permute.xlu0 %1256
  %v1259 = vlaneseq
  %v1260 = vshrl.u32 %v1259, 7
  %v1261 = vsub.s32 1, %v1260
  %v1262 = vrot.slane %v1018, %v1261
  %v1263 = vmul.f32 %v1257, %v1262
  %v1264 = vadd.f32 %v1254, %v1263
  %1265 = vset.pattern.permute.xlu0 2
  %1266 = vperm.xlu0 %1265, %v1239
  %v1267 = vpop.permute.xlu0 %1266
  %v1269 = vlaneseq
  %v1270 = vshrl.u32 %v1269, 7
  %v1271 = vsub.s32 2, %v1270
  %v1272 = vrot.slane %v1018, %v1271
  %v1273 = vmul.f32 %v1267, %v1272
  %v1274 = vadd.f32 %v1264, %v1273
  %1275 = vset.pattern.permute.xlu0 3
  %1276 = vperm.xlu0 %1275, %v1239
  %v1277 = vpop.permute.xlu0 %1276
  %v1279 = vlaneseq
  %v1280 = vshrl.u32 %v1279, 7
  %v1281 = vsub.s32 3, %v1280
  %v1282 = vrot.slane %v1018, %v1281
  %v1283 = vmul.f32 %v1277, %v1282
  %v1284 = vadd.f32 %v1274, %v1283
  %1285 = vset.pattern.permute.xlu0 4
  %1286 = vperm.xlu0 %1285, %v1239
  %v1287 = vpop.permute.xlu0 %1286
  %v1289 = vlaneseq
  %v1290 = vshrl.u32 %v1289, 7
  %v1291 = vsub.s32 4, %v1290
  %v1292 = vrot.slane %v1018, %v1291
  %v1293 = vmul.f32 %v1287, %v1292
  %v1294 = vadd.f32 %v1284, %v1293
  %1295 = vset.pattern.permute.xlu0 5
  %1296 = vperm.xlu0 %1295, %v1239
  %v1297 = vpop.permute.xlu0 %1296
  %v1299 = vlaneseq
  %v1300 = vshrl.u32 %v1299, 7
  %v1301 = vsub.s32 5, %v1300
  %v1302 = vrot.slane %v1018, %v1301
  %v1303 = vmul.f32 %v1297, %v1302
  %v1304 = vadd.f32 %v1294, %v1303
  %1305 = vset.pattern.permute.xlu0 6
  %1306 = vperm.xlu0 %1305, %v1239
  %v1307 = vpop.permute.xlu0 %1306
  %v1309 = vlaneseq
  %v1310 = vshrl.u32 %v1309, 7
  %v1311 = vsub.s32 6, %v1310
  %v1312 = vrot.slane %v1018, %v1311
  %v1313 = vmul.f32 %v1307, %v1312
  %v1314 = vadd.f32 %v1304, %v1313
  %1315 = vset.pattern.permute.xlu0 7
  %1316 = vperm.xlu0 %1315, %v1239
  %v1317 = vpop.permute.xlu0 %1316
  %v1319 = vlaneseq
  %v1320 = vshrl.u32 %v1319, 7
  %v1321 = vsub.s32 7, %v1320
  %v1322 = vrot.slane %v1018, %v1321
  %v1323 = vmul.f32 %v1317, %v1322
  %v1324 = vadd.f32 %v1314, %v1323
  %v1326 = vcombine.high %v1324, %v1324
  %v1328 = vunpack.c.l.s4 1966171168
  %v1329 = vunpack.c.0.s8 %v1328
  %v1330 = vlaneseq
  %v1331 = vshrl.u32 %v1330, 7
  %v1332 = vsub.s32 %v1329, %v1331
  %v1333 = vrot.slane %v1324, %v1332
  %v1335 = vunpack.c.l.s4 1966171168
  %v1336 = vunpack.c.0.s8 %v1335
  %v1337 = vlaneseq
  %v1338 = vshrl.u32 %v1337, 7
  %v1339 = vsub.s32 %v1336, %v1338
  %v1340 = vrot.slane %v1326, %v1339
  %v1341 = vcombine.high %v1333, %v1333
  %v1342 = vcombine.high %v1340, %v1340
  %v1344 = vunpack.c.l.s4 1966171168
  %v1345 = vunpack.c.0.s8 %v1344
  %v1346 = vlaneseq
  %v1347 = vshrl.u32 %v1346, 7
  %v1348 = vsub.s32 %v1345, %v1347
  %v1349 = vrot.slane %v1333, %v1348
  %v1351 = vunpack.c.l.s4 1966171168
  %v1352 = vunpack.c.0.s8 %v1351
  %v1353 = vlaneseq
  %v1354 = vshrl.u32 %v1353, 7
  %v1355 = vsub.s32 %v1352, %v1354
  %v1356 = vrot.slane %v1340, %v1355
  %v1358 = vunpack.c.l.s4 1966171168
  %v1359 = vunpack.c.0.s8 %v1358
  %v1360 = vlaneseq
  %v1361 = vshrl.u32 %v1360, 7
  %v1362 = vsub.s32 %v1359, %v1361
  %v1363 = vrot.slane %v1341, %v1362
  %v1365 = vunpack.c.l.s4 1966171168
  %v1366 = vunpack.c.0.s8 %v1365
  %v1367 = vlaneseq
  %v1368 = vshrl.u32 %v1367, 7
  %v1369 = vsub.s32 %v1366, %v1368
  %v1370 = vrot.slane %v1342, %v1369
  %v1371 = vcombine.high %v1349, %v1349
  %v1372 = vcombine.high %v1356, %v1356
  %v1373 = vcombine.high %v1363, %v1363
  %v1374 = vcombine.high %v1370, %v1370
  %v1383 = vlaneseq
  %v1384 = vshrl.u32 %v1383, 7
  %v1385 = vsub.s32 0, %v1384
  %v1386 = vrot.slane %v1349, %v1385
  %v1387 = vlaneseq
  %v1388 = vshrl.u32 %v1387, 7
  %v1389 = vsub.s32 0, %v1388
  %v1390 = vrot.slane %v1363, %v1389
  %v1391 = vlaneseq
  %v1392 = vshrl.u32 %v1391, 7
  %v1393 = vsub.s32 0, %v1392
  %v1394 = vrot.slane %v1371, %v1393
  %v1395 = vlaneseq
  %v1396 = vshrl.u32 %v1395, 7
  %v1397 = vsub.s32 0, %v1396
  %v1398 = vrot.slane %v1373, %v1397
  %v1399 = vlaneseq
  %v1400 = vshrl.u32 %v1399, 7
  %v1401 = vsub.s32 0, %v1400
  %v1402 = vrot.slane %v1356, %v1401
  %v1403 = vlaneseq
  %v1404 = vshrl.u32 %v1403, 7
  %v1405 = vsub.s32 0, %v1404
  %v1406 = vrot.slane %v1370, %v1405
  %v1407 = vlaneseq
  %v1408 = vshrl.u32 %v1407, 7
  %v1409 = vsub.s32 0, %v1408
  %v1410 = vrot.slane %v1372, %v1409
  %v1411 = vlaneseq
  %v1412 = vshrl.u32 %v1411, 7
  %v1413 = vsub.s32 0, %v1412
  %v1414 = vrot.slane %v1374, %v1413
  %1415 = vrot.lane.b32.xlu0 %v1386, 124
  %v1416 = vpop.permute.xlu0 %1415
  %1417 = vrot.lane.b32.xlu0 %v1390, 124
  %v1418 = vpop.permute.xlu0 %1417
  %1419 = vrot.lane.b32.xlu0 %v1394, 124
  %v1420 = vpop.permute.xlu0 %1419
  %1421 = vrot.lane.b32.xlu0 %v1398, 124
  %v1422 = vpop.permute.xlu0 %1421
  %1423 = vrot.lane.b32.xlu0 %v1402, 124
  %v1424 = vpop.permute.xlu0 %1423
  %1425 = vrot.lane.b32.xlu0 %v1406, 124
  %v1426 = vpop.permute.xlu0 %1425
  %1427 = vrot.lane.b32.xlu0 %v1410, 124
  %v1428 = vpop.permute.xlu0 %1427
  %1429 = vrot.lane.b32.xlu0 %v1414, 124
  %v1430 = vpop.permute.xlu0 %1429
  %v1439 = vsel %vm365, %v1349, %v1416
  %v1440 = vsel %vm365, %v1363, %v1418
  %v1441 = vsel %vm365, %v1371, %v1420
  %v1442 = vsel %vm365, %v1373, %v1422
  %v1443 = vsel %vm365, %v1356, %v1424
  %v1444 = vsel %vm365, %v1370, %v1426
  %v1445 = vsel %vm365, %v1372, %v1428
  %v1446 = vsel %vm365, %v1374, %v1430
  %v1455 = vcombine.low %v1439, %v1440
  %v1456 = vcombine.low %v1441, %v1442
  %v1458 = vunpack.c.l.s4 1983009808
  %v1459 = vunpack.c.0.s8 %v1458
  %v1460 = vlaneseq
  %v1461 = vshrl.u32 %v1460, 7
  %v1462 = vsub.s32 %v1459, %v1461
  %v1463 = vrot.slane %v1455, %v1462
  %v1465 = vunpack.c.l.s4 1983009808
  %v1466 = vunpack.c.0.s8 %v1465
  %v1467 = vlaneseq
  %v1468 = vshrl.u32 %v1467, 7
  %v1469 = vsub.s32 %v1466, %v1468
  %v1470 = vrot.slane %v1456, %v1469
  %v1471 = vcombine.low %v1463, %v1470
  %v1472 = vcombine.low %v1443, %v1444
  %v1473 = vcombine.low %v1445, %v1446
  %v1475 = vunpack.c.l.s4 1983009808
  %v1476 = vunpack.c.0.s8 %v1475
  %v1477 = vlaneseq
  %v1478 = vshrl.u32 %v1477, 7
  %v1479 = vsub.s32 %v1476, %v1478
  %v1480 = vrot.slane %v1472, %v1479
  %v1482 = vunpack.c.l.s4 1983009808
  %v1483 = vunpack.c.0.s8 %v1482
  %v1484 = vlaneseq
  %v1485 = vshrl.u32 %v1484, 7
  %v1486 = vsub.s32 %v1483, %v1485
  %v1487 = vrot.slane %v1473, %v1486
  %v1488 = vcombine.low %v1480, %v1487
  %v1491 = vadd.f32 %v895, %v1471
  %v1492 = vadd.f32 %v896, %v1488
  %v1493 = vld [vmem:[%s1 + $0xb0] sm:$0x1]
  %v1494 = vld [vmem:[%s1 + $0xb1] sm:$0x1]
  %v1495 = vsel %vm138, %v1491, 0.0
  %1496 = vadd.xlane.f32.xlu0 %v1495
  %v1497 = vpop.xlane.xlu0 %1496
  %v1498 = vsel %vm138, %v1492, 0.0
  %1499 = vadd.xlane.f32.xlu0 %v1498
  %v1500 = vpop.xlane.xlu0 %1499
  %v1501 = vmul.f32 %v1497, %v640
  %v1502 = vmul.f32 %v1500, %v640
  %v1503 = vsub.f32 %v1491, %v1501
  %v1504 = vsub.f32 %v1492, %v1502
  %v1505 = vmul.f32 %v1503, %v1503
  %v1506 = vmul.f32 %v1504, %v1504
  %v1507 = vsel %vm138, %v1505, 0.0
  %1508 = vadd.xlane.f32.xlu0 %v1507
  %v1509 = vpop.xlane.xlu0 %1508
  %v1510 = vsel %vm138, %v1506, 0.0
  %1511 = vadd.xlane.f32.xlu0 %v1510
  %v1512 = vpop.xlane.xlu0 %1511
  %v1513 = vmul.f32 %v1509, %v640
  %v1514 = vmul.f32 %v1512, %v640
  %v1515 = vadd.f32 %v1513, 1e-05
  %v1516 = vadd.f32 %v1514, 1e-05
  %v1517 = vrsqrt.pop %v1515
  %v1518 = vrsqrt.pop %v1516
  %v1519 = vmul.f32 %v1503, %v1517
  %v1520 = vmul.f32 %v1504, %v1518
  %v1521 = vlaneseq
  %v1522 = vshrl.u32 %v1521, 7
  %v1523 = vsub.s32 0, %v1522
  %v1524 = vrot.slane %v1493, %v1523
  %v1525 = vmul.f32 %v1519, %v1524
  %v1526 = vmul.f32 %v1520, %v1524
  %v1527 = vlaneseq
  %v1528 = vshrl.u32 %v1527, 7
  %v1529 = vsub.s32 0, %v1528
  %v1530 = vrot.slane %v1494, %v1529
  %v1531 = vadd.f32 %v1525, %v1530
  %v1532 = vadd.f32 %v1526, %v1530
  %v1533 = vld [vmem:[%s1 + $0x70] sm:$0xf]
  %v1534 = vld [vmem:[%s1 + $0xae] sm:$0x1]
  %v1535 = vld [vmem:[%s1 + $0x90] sm:$0xf]
  %v1536 = vld [vmem:[%s1 + $0xaf] sm:$0x1]
  %v1537 = vlaneseq
  %v1538 = vshrl.u32 %v1537, 7
  %v1539 = vsub.s32 0, %v1538
  %v1540 = vrot.slane %v1534, %v1539
  %v1542 = vsel %vm138, %v1531, 0
  %v1545 = vsel %vm138, %v1532, 0
  %v1548 = vsel %vm371, %v1533, 0
  %1550 = vmatprep.subr.mxu0 0.0
  %1551 = vmatpush1.msra.mxu0 0.0
  %1552 = vmatprep.subr.mxu0 0.0
  %1553 = vmatpush1.msra.mxu0 0.0
  %1554 = vmatprep.subr.mxu0 0.0
  %1555 = vmatpush1.msra.mxu0 0.0
  %1556 = vmatprep.subr.mxu0 0.0
  %1557 = vmatpush1.msra.mxu0 0.0
  %1558 = vmatprep.subr.mxu0 0.0
  %1559 = vmatpush1.msra.mxu0 0.0
  %1560 = vmatprep.subr.mxu0 0.0
  %1561 = vmatpush1.msra.mxu0 0.0
  %1562 = vmatprep.subr.mxu0 0.0
  %1563 = vmatpush1.msra.mxu0 0.0
  %1564 = vmatprep.subr.mxu0 0.0
  %1565 = vmatpush1.msra.mxu0 0.0
  %1566 = vmatprep.subr.mxu0 0.0
  %1567 = vmatpush1.msra.mxu0 0.0
  %1568 = vmatprep.subr.mxu0 0.0
  %1569 = vmatpush1.msra.mxu0 0.0
  %1570 = vmatprep.subr.mxu0 0.0
  %1571 = vmatpush1.msra.mxu0 0.0
  %1572 = vmatprep.subr.mxu0 0.0
  %1573 = vmatpush1.msra.mxu0 0.0
  %1574 = vmatprep.subr.mxu0 0.0
  %1575 = vmatpush1.msra.mxu0 0.0
  %1576 = vmatprep.subr.mxu0 0.0
  %1577 = vmatpush1.msra.mxu0 0.0
  %1578 = vmatprep.subr.mxu0 0.0
  %1579 = vmatpush1.msra.mxu0 0.0
  %1580 = vmatprep.subr.mxu0 0.0
  %1581 = vmatpush1.msra.mxu0 %v1548
  %1582 = vmatprep.subr.mxu0 0.0
  %1583 = vmatpush2.msra.mxu0 0.0
  %1584 = vmatprep.subr.mxu0 0.0
  %1585 = vmatpush2.msra.mxu0 0.0
  %1586 = vmatprep.subr.mxu0 0.0
  %1587 = vmatpush2.msra.mxu0 0.0
  %1588 = vmatprep.subr.mxu0 0.0
  %1589 = vmatpush2.msra.mxu0 0.0
  %1590 = vmatprep.subr.mxu0 0.0
  %1591 = vmatpush2.msra.mxu0 0.0
  %1592 = vmatprep.subr.mxu0 0.0
  %1593 = vmatpush2.msra.mxu0 0.0
  %1594 = vmatprep.subr.mxu0 0.0
  %1595 = vmatpush2.msra.mxu0 0.0
  %1596 = vmatprep.subr.mxu0 0.0
  %1597 = vmatpush2.msra.mxu0 0.0
  %1598 = vmatprep.subr.mxu0 0.0
  %1599 = vmatpush2.msra.mxu0 0.0
  %1600 = vmatprep.subr.mxu0 0.0
  %1601 = vmatpush2.msra.mxu0 0.0
  %1602 = vmatprep.subr.mxu0 0.0
  %1603 = vmatpush2.msra.mxu0 0.0
  %1604 = vmatprep.subr.mxu0 0.0
  %1605 = vmatpush2.msra.mxu0 0.0
  %1606 = vmatprep.subr.mxu0 0.0
  %1607 = vmatpush2.msra.mxu0 0.0
  %1608 = vmatprep.subr.mxu0 0.0
  %1609 = vmatpush2.msra.mxu0 0.0
  %1610 = vmatprep.subr.mxu0 0.0
  %1611 = vmatpush2.msra.mxu0 0.0
  %1612 = vmatprep.subr.mxu0 0.0
  %1613 = vmatpush2.msra.mxu0 0.0
  %1614 = vmatprep.mubr.f32.mxu0 0.0
  %1615 = vmatmul.mubr.f32.gmra.mxu0 %v1542
  %v1616 = vpop.f32.mrf.mxu0
  %v1617 = vadd.f32 %v1540, %v1616
  %v1618 = vpop.f32.mrf.mxu0
  %1619 = vmatprep.mubr.f32.mxu0 0.0
  %1620 = vmatmul.mubr.f32.gmra.mxu0 %v1545
  %v1621 = vpop.f32.mrf.mxu0
  %v1622 = vadd.f32 %v1540, %v1621
  %v1623 = vpop.f32.mrf.mxu0
  %1624 = vdwg.mxu0
  %v1625 = vmax.f32 %v1617, 0.0
  %v1626 = vmax.f32 %v1622, 0.0
  %v1627 = vlaneseq
  %v1628 = vshrl.u32 %v1627, 7
  %v1629 = vsub.s32 0, %v1628
  %v1630 = vrot.slane %v1536, %v1629
  %v1632 = vsel %vm315, %v1625, 0
  %v1635 = vsel %vm315, %v1626, 0
  %v1638 = vsel %vm315, %v1535, 0
  %1640 = vmatprep.subr.mxu0 0.0
  %1641 = vmatpush1.xpose.msra.mxu0 0.0
  %1642 = vmatprep.subr.mxu0 0.0
  %1643 = vmatpush1.xpose.msra.mxu0 0.0
  %1644 = vmatprep.subr.mxu0 0.0
  %1645 = vmatpush1.xpose.msra.mxu0 0.0
  %1646 = vmatprep.subr.mxu0 0.0
  %1647 = vmatpush1.xpose.msra.mxu0 0.0
  %1648 = vmatprep.subr.mxu0 0.0
  %1649 = vmatpush1.xpose.msra.mxu0 0.0
  %1650 = vmatprep.subr.mxu0 0.0
  %1651 = vmatpush1.xpose.msra.mxu0 0.0
  %1652 = vmatprep.subr.mxu0 0.0
  %1653 = vmatpush1.xpose.msra.mxu0 0.0
  %1654 = vmatprep.subr.mxu0 0.0
  %1655 = vmatpush1.xpose.msra.mxu0 0.0
  %1656 = vmatprep.subr.mxu0 0.0
  %1657 = vmatpush1.xpose.msra.mxu0 0.0
  %1658 = vmatprep.subr.mxu0 0.0
  %1659 = vmatpush1.xpose.msra.mxu0 0.0
  %1660 = vmatprep.subr.mxu0 0.0
  %1661 = vmatpush1.xpose.msra.mxu0 0.0
  %1662 = vmatprep.subr.mxu0 0.0
  %1663 = vmatpush1.xpose.msra.mxu0 0.0
  %1664 = vmatprep.subr.mxu0 0.0
  %1665 = vmatpush1.xpose.msra.mxu0 0.0
  %1666 = vmatprep.subr.mxu0 0.0
  %1667 = vmatpush1.xpose.msra.mxu0 0.0
  %1668 = vmatprep.subr.mxu0 0.0
  %1669 = vmatpush1.xpose.msra.mxu0 0.0
  %1670 = vmatprep.subr.mxu0 0.0
  %1671 = vmatpush1.xpose.msra.mxu0 %v1638
  %1672 = vmatprep.subr.mxu0 0.0
  %1673 = vmatpush2.xpose.msra.mxu0 0.0
  %1674 = vmatprep.subr.mxu0 0.0
  %1675 = vmatpush2.xpose.msra.mxu0 0.0
  %1676 = vmatprep.subr.mxu0 0.0
  %1677 = vmatpush2.xpose.msra.mxu0 0.0
  %1678 = vmatprep.subr.mxu0 0.0
  %1679 = vmatpush2.xpose.msra.mxu0 0.0
  %1680 = vmatprep.subr.mxu0 0.0
  %1681 = vmatpush2.xpose.msra.mxu0 0.0
  %1682 = vmatprep.subr.mxu0 0.0
  %1683 = vmatpush2.xpose.msra.mxu0 0.0
  %1684 = vmatprep.subr.mxu0 0.0
  %1685 = vmatpush2.xpose.msra.mxu0 0.0
  %1686 = vmatprep.subr.mxu0 0.0
  %1687 = vmatpush2.xpose.msra.mxu0 0.0
  %1688 = vmatprep.subr.mxu0 0.0
  %1689 = vmatpush2.xpose.msra.mxu0 0.0
  %1690 = vmatprep.subr.mxu0 0.0
  %1691 = vmatpush2.xpose.msra.mxu0 0.0
  %1692 = vmatprep.subr.mxu0 0.0
  %1693 = vmatpush2.xpose.msra.mxu0 0.0
  %1694 = vmatprep.subr.mxu0 0.0
  %1695 = vmatpush2.xpose.msra.mxu0 0.0
  %1696 = vmatprep.subr.mxu0 0.0
  %1697 = vmatpush2.xpose.msra.mxu0 0.0
  %1698 = vmatprep.subr.mxu0 0.0
  %1699 = vmatpush2.xpose.msra.mxu0 0.0
  %1700 = vmatprep.subr.mxu0 0.0
  %1701 = vmatpush2.xpose.msra.mxu0 0.0
  %1702 = vmatprep.subr.mxu0 0.0
  %1703 = vmatpush2.xpose.msra.mxu0 0.0
  %1704 = vmatprep.mubr.f32.mxu0 0.0
  %1705 = vmatmul.mubr.f32.gmra.mxu0 %v1632
  %v1706 = vpop.f32.mrf.mxu0
  %v1707 = vadd.f32 %v1630, %v1706
  %v1708 = vpop.f32.mrf.mxu0
  %1709 = vmatprep.mubr.f32.mxu0 0.0
  %1710 = vmatmul.mubr.f32.gmra.mxu0 %v1635
  %v1711 = vpop.f32.mrf.mxu0
  %v1712 = vadd.f32 %v1630, %v1711
  %v1713 = vpop.f32.mrf.mxu0
  %1714 = vdwg.mxu0
  %v1715 = vadd.f32 %v1531, %v1707
  %v1716 = vadd.f32 %v1532, %v1712
  %v1717 = vld [vmem:[%s1 + $0xb2] sm:$0x1]
  %v1718 = vld [vmem:[%s1 + $0xb3] sm:$0x1]
  %v1719 = vsel %vm138, %v1715, 0.0
  %1720 = vadd.xlane.f32.xlu0 %v1719
  %v1721 = vpop.xlane.xlu0 %1720
  %v1722 = vsel %vm138, %v1716, 0.0
  %1723 = vadd.xlane.f32.xlu0 %v1722
  %v1724 = vpop.xlane.xlu0 %1723
  %v1725 = vmul.f32 %v1721, %v640
  %v1726 = vmul.f32 %v1724, %v640
  %v1727 = vsub.f32 %v1715, %v1725
  %v1728 = vsub.f32 %v1716, %v1726
  %v1729 = vmul.f32 %v1727, %v1727
  %v1730 = vmul.f32 %v1728, %v1728
  %v1731 = vsel %vm138, %v1729, 0.0
  %1732 = vadd.xlane.f32.xlu0 %v1731
  %v1733 = vpop.xlane.xlu0 %1732
  %v1734 = vsel %vm138, %v1730, 0.0
  %1735 = vadd.xlane.f32.xlu0 %v1734
  %v1736 = vpop.xlane.xlu0 %1735
  %v1737 = vmul.f32 %v1733, %v640
  %v1738 = vmul.f32 %v1736, %v640
  %v1739 = vadd.f32 %v1737, 1e-05
  %v1740 = vadd.f32 %v1738, 1e-05
  %v1741 = vrsqrt.pop %v1739
  %v1742 = vrsqrt.pop %v1740
  %v1743 = vmul.f32 %v1727, %v1741
  %v1744 = vmul.f32 %v1728, %v1742
  %v1745 = vlaneseq
  %v1746 = vshrl.u32 %v1745, 7
  %v1747 = vsub.s32 0, %v1746
  %v1748 = vrot.slane %v1717, %v1747
  %v1749 = vmul.f32 %v1743, %v1748
  %v1750 = vmul.f32 %v1744, %v1748
  %v1751 = vlaneseq
  %v1752 = vshrl.u32 %v1751, 7
  %v1753 = vsub.s32 0, %v1752
  %v1754 = vrot.slane %v1718, %v1753
  %v1755 = vadd.f32 %v1749, %v1754
  %v1756 = vadd.f32 %v1750, %v1754
  %v1757 = vld [vmem:[%s1 + $0xb4] sm:$0x1]
  %v1758 = vld [vmem:[%s1 + $0xb5] sm:$0x1]
  %v1759 = vsel %vm138, %v1755, 0.0
  %1760 = vadd.xlane.f32.xlu0 %v1759
  %v1761 = vpop.xlane.xlu0 %1760
  %v1762 = vsel %vm138, %v1756, 0.0
  %1763 = vadd.xlane.f32.xlu0 %v1762
  %v1764 = vpop.xlane.xlu0 %1763
  %v1765 = vmul.f32 %v1761, %v640
  %v1766 = vmul.f32 %v1764, %v640
  %v1767 = vsub.f32 %v1755, %v1765
  %v1768 = vsub.f32 %v1756, %v1766
  %v1769 = vmul.f32 %v1767, %v1767
  %v1770 = vmul.f32 %v1768, %v1768
  %v1771 = vsel %vm138, %v1769, 0.0
  %1772 = vadd.xlane.f32.xlu0 %v1771
  %v1773 = vpop.xlane.xlu0 %1772
  %v1774 = vsel %vm138, %v1770, 0.0
  %1775 = vadd.xlane.f32.xlu0 %v1774
  %v1776 = vpop.xlane.xlu0 %1775
  %v1777 = vmul.f32 %v1773, %v640
  %v1778 = vmul.f32 %v1776, %v640
  %v1779 = vadd.f32 %v1777, 1e-05
  %v1780 = vadd.f32 %v1778, 1e-05
  %v1781 = vrsqrt.pop %v1779
  %v1782 = vrsqrt.pop %v1780
  %v1783 = vmul.f32 %v1767, %v1781
  %v1784 = vmul.f32 %v1768, %v1782
  %v1785 = vlaneseq
  %v1786 = vshrl.u32 %v1785, 7
  %v1787 = vsub.s32 0, %v1786
  %v1788 = vrot.slane %v1757, %v1787
  %v1789 = vmul.f32 %v1783, %v1788
  %v1790 = vmul.f32 %v1784, %v1788
  %v1791 = vlaneseq
  %v1792 = vshrl.u32 %v1791, 7
  %v1793 = vsub.s32 0, %v1792
  %v1794 = vrot.slane %v1758, %v1793
  %v1795 = vadd.f32 %v1789, %v1794
  %v1796 = vadd.f32 %v1790, %v1794
  %v1799 = vcombine.high %v1795, %v1795
  %v1801 = vunpack.c.l.s4 1983009808
  %v1802 = vunpack.c.0.s8 %v1801
  %v1803 = vlaneseq
  %v1804 = vshrl.u32 %v1803, 7
  %v1805 = vsub.s32 %v1802, %v1804
  %v1806 = vrot.slane %v1795, %v1805
  %v1808 = vunpack.c.l.s4 1983009808
  %v1809 = vunpack.c.0.s8 %v1808
  %v1810 = vlaneseq
  %v1811 = vshrl.u32 %v1810, 7
  %v1812 = vsub.s32 %v1809, %v1811
  %v1813 = vrot.slane %v1799, %v1812
  %v1814 = vcombine.high %v1806, %v1806
  %v1815 = vcombine.high %v1813, %v1813
  %v1816 = vcombine.high %v1796, %v1796
  %v1818 = vunpack.c.l.s4 1983009808
  %v1819 = vunpack.c.0.s8 %v1818
  %v1820 = vlaneseq
  %v1821 = vshrl.u32 %v1820, 7
  %v1822 = vsub.s32 %v1819, %v1821
  %v1823 = vrot.slane %v1796, %v1822
  %v1825 = vunpack.c.l.s4 1983009808
  %v1826 = vunpack.c.0.s8 %v1825
  %v1827 = vlaneseq
  %v1828 = vshrl.u32 %v1827, 7
  %v1829 = vsub.s32 %v1826, %v1828
  %v1830 = vrot.slane %v1816, %v1829
  %v1831 = vcombine.high %v1823, %v1823
  %v1832 = vcombine.high %v1830, %v1830
  %v1833 = vlaneseq
  %v1834 = vshrl.u32 %v1833, 7
  %v1835 = vsub.s32 0, %v1834
  %v1836 = vrot.slane %v1806, %v1835
  %v1837 = vlaneseq
  %v1838 = vshrl.u32 %v1837, 7
  %v1839 = vsub.s32 0, %v1838
  %v1840 = vrot.slane %v1814, %v1839
  %v1841 = vlaneseq
  %v1842 = vshrl.u32 %v1841, 7
  %v1843 = vsub.s32 0, %v1842
  %v1844 = vrot.slane %v1813, %v1843
  %v1845 = vlaneseq
  %v1846 = vshrl.u32 %v1845, 7
  %v1847 = vsub.s32 0, %v1846
  %v1848 = vrot.slane %v1815, %v1847
  %v1849 = vlaneseq
  %v1850 = vshrl.u32 %v1849, 7
  %v1851 = vsub.s32 0, %v1850
  %v1852 = vrot.slane %v1823, %v1851
  %v1853 = vlaneseq
  %v1854 = vshrl.u32 %v1853, 7
  %v1855 = vsub.s32 0, %v1854
  %v1856 = vrot.slane %v1831, %v1855
  %v1857 = vlaneseq
  %v1858 = vshrl.u32 %v1857, 7
  %v1859 = vsub.s32 0, %v1858
  %v1860 = vrot.slane %v1830, %v1859
  %v1861 = vlaneseq
  %v1862 = vshrl.u32 %v1861, 7
  %v1863 = vsub.s32 0, %v1862
  %v1864 = vrot.slane %v1832, %v1863
  %v1865 = vsel %vm81, %v1840, %v1836
  %v1866 = vsel %vm83, %v1844, %v1865
  %v1867 = vsel %vm85, %v1848, %v1866
  %v1868 = vsel %vm87, %v1852, %v1867
  %v1869 = vsel %vm89, %v1856, %v1868
  %v1870 = vsel %vm91, %v1860, %v1869
  %v1871 = vsel %vm93, %v1864, %v1870
  %v1873 = vlaneseq
  %v1874 = vshrl.u32 %v1873, 7
  %v1875 = vsub.s32 1, %v1874
  %v1876 = vrot.slane %v1806, %v1875
  %v1877 = vlaneseq
  %v1878 = vshrl.u32 %v1877, 7
  %v1879 = vsub.s32 1, %v1878
  %v1880 = vrot.slane %v1814, %v1879
  %v1881 = vlaneseq
  %v1882 = vshrl.u32 %v1881, 7
  %v1883 = vsub.s32 1, %v1882
  %v1884 = vrot.slane %v1813, %v1883
  %v1885 = vlaneseq
  %v1886 = vshrl.u32 %v1885, 7
  %v1887 = vsub.s32 1, %v1886
  %v1888 = vrot.slane %v1815, %v1887
  %v1889 = vlaneseq
  %v1890 = vshrl.u32 %v1889, 7
  %v1891 = vsub.s32 1, %v1890
  %v1892 = vrot.slane %v1823, %v1891
  %v1893 = vlaneseq
  %v1894 = vshrl.u32 %v1893, 7
  %v1895 = vsub.s32 1, %v1894
  %v1896 = vrot.slane %v1831, %v1895
  %v1897 = vlaneseq
  %v1898 = vshrl.u32 %v1897, 7
  %v1899 = vsub.s32 1, %v1898
  %v1900 = vrot.slane %v1830, %v1899
  %v1901 = vlaneseq
  %v1902 = vshrl.u32 %v1901, 7
  %v1903 = vsub.s32 1, %v1902
  %v1904 = vrot.slane %v1832, %v1903
  %v1905 = vsel %vm81, %v1880, %v1876
  %v1906 = vsel %vm83, %v1884, %v1905
  %v1907 = vsel %vm85, %v1888, %v1906
  %v1908 = vsel %vm87, %v1892, %v1907
  %v1909 = vsel %vm89, %v1896, %v1908
  %v1910 = vsel %vm91, %v1900, %v1909
  %v1911 = vsel %vm93, %v1904, %v1910
  %1912 = vrot.lane.b32.xlu0 %v1911, 4
  %v1913 = vpop.permute.xlu0 %1912
  %v1915 = vsel %vm138, %v1871, %v1913
  %v1916 = vld [vmem:[%s1 + $0x10] sm:$0xff]
  %v1917 = vld [vmem:[%s1 + $0xb6] sm:$0x1]
  %v1918 = vld [vmem:[%s1 + $0x40] sm:$0xff]
  %v1919 = vld [vmem:[%s1 + $0xb7] sm:$0x1]
  %v1920 = vlaneseq
  %v1921 = vshrl.u32 %v1920, 7
  %v1922 = vsub.s32 0, %v1921
  %v1923 = vrot.slane %v1916, %v1922
  %v1924 = vmul.f32 %v147, %v1923
  %v1925 = vlaneseq
  %v1926 = vshrl.u32 %v1925, 7
  %v1927 = vsub.s32 0, %v1926
  %v1928 = vrot.slane %v1917, %v1927
  %v1929 = vadd.f32 %v1924, %v1928
  %v1930 = vlaneseq
  %v1931 = vshrl.u32 %v1930, 7
  %v1932 = vsub.s32 1, %v1931
  %v1933 = vrot.slane %v1916, %v1932
  %v1934 = vmul.f32 %v161, %v1933
  %v1935 = vadd.f32 %v1929, %v1934
  %v1936 = vlaneseq
  %v1937 = vshrl.u32 %v1936, 7
  %v1938 = vsub.s32 2, %v1937
  %v1939 = vrot.slane %v1916, %v1938
  %v1940 = vmul.f32 %v171, %v1939
  %v1941 = vadd.f32 %v1935, %v1940
  %v1942 = vlaneseq
  %v1943 = vshrl.u32 %v1942, 7
  %v1944 = vsub.s32 3, %v1943
  %v1945 = vrot.slane %v1916, %v1944
  %v1946 = vmul.f32 %v181, %v1945
  %v1947 = vadd.f32 %v1941, %v1946
  %v1948 = vlaneseq
  %v1949 = vshrl.u32 %v1948, 7
  %v1950 = vsub.s32 4, %v1949
  %v1951 = vrot.slane %v1916, %v1950
  %v1952 = vmul.f32 %v191, %v1951
  %v1953 = vadd.f32 %v1947, %v1952
  %v1954 = vlaneseq
  %v1955 = vshrl.u32 %v1954, 7
  %v1956 = vsub.s32 5, %v1955
  %v1957 = vrot.slane %v1916, %v1956
  %v1958 = vmul.f32 %v201, %v1957
  %v1959 = vadd.f32 %v1953, %v1958
  %v1960 = vlaneseq
  %v1961 = vshrl.u32 %v1960, 7
  %v1962 = vsub.s32 6, %v1961
  %v1963 = vrot.slane %v1916, %v1962
  %v1964 = vmul.f32 %v211, %v1963
  %v1965 = vadd.f32 %v1959, %v1964
  %v1966 = vlaneseq
  %v1967 = vshrl.u32 %v1966, 7
  %v1968 = vsub.s32 7, %v1967
  %v1969 = vrot.slane %v1916, %v1968
  %v1970 = vmul.f32 %v221, %v1969
  %v1971 = vadd.f32 %v1965, %v1970
  %1973 = vrot.lane.b32.xlu0 %v1971, 120
  %v1974 = vpop.permute.xlu0 %1973
  %1976 = vrot.lane.b32.xlu0 %v1971, 8
  %v1977 = vpop.permute.xlu0 %1976
  %1979 = vrot.lane.b32.xlu0 %v1971, 16
  %v1980 = vpop.permute.xlu0 %1979
  %1982 = vrot.lane.b32.xlu0 %v1971, 24
  %v1983 = vpop.permute.xlu0 %1982
  %1985 = vrot.lane.b32.xlu0 %v1971, 32
  %v1986 = vpop.permute.xlu0 %1985
  %1988 = vrot.lane.b32.xlu0 %v1971, 40
  %v1989 = vpop.permute.xlu0 %1988
  %1991 = vrot.lane.b32.xlu0 %v1971, 48
  %v1992 = vpop.permute.xlu0 %1991
  %v1994 = vsel %vm251, %v1974, %v1971
  %v1995 = vsel %vm253, %v1994, %v1977
  %v1996 = vsel %vm255, %v1995, %v1980
  %v1997 = vsel %vm257, %v1996, %v1983
  %v1998 = vsel %vm259, %v1997, %v1986
  %v1999 = vsel %vm261, %v1998, %v1989
  %v2000 = vsel %vm263, %v1999, %v1992
  %2001 = vrot.lane.b32.xlu0 %v1971, 112
  %v2002 = vpop.permute.xlu0 %2001
  %v2004 = vsel %vm251, %v2002, %v1974
  %v2005 = vsel %vm253, %v2004, %v1971
  %v2006 = vsel %vm255, %v2005, %v1977
  %v2007 = vsel %vm257, %v2006, %v1980
  %v2008 = vsel %vm259, %v2007, %v1983
  %v2009 = vsel %vm261, %v2008, %v1986
  %v2010 = vsel %vm263, %v2009, %v1989
  %v2011 = vrot.slane %v1971, 1
  %2012 = vrot.lane.b32.xlu0 %v2011, 8
  %v2013 = vpop.permute.xlu0 %2012
  %v2015 = vrot.slane %v1971, 2
  %2016 = vrot.lane.b32.xlu0 %v2015, 16
  %v2017 = vpop.permute.xlu0 %2016
  %v2019 = vrot.slane %v1971, 3
  %2020 = vrot.lane.b32.xlu0 %v2019, 24
  %v2021 = vpop.permute.xlu0 %2020
  %v2023 = vrot.slane %v1971, 4
  %2024 = vrot.lane.b32.xlu0 %v2023, 32
  %v2025 = vpop.permute.xlu0 %2024
  %v2027 = vrot.slane %v1971, 5
  %2028 = vrot.lane.b32.xlu0 %v2027, 40
  %v2029 = vpop.permute.xlu0 %2028
  %v2031 = vrot.slane %v1971, 6
  %2032 = vrot.lane.b32.xlu0 %v2031, 48
  %v2033 = vpop.permute.xlu0 %2032
  %v2035 = vrot.slane %v1971, 7
  %2036 = vrot.lane.b32.xlu0 %v2035, 56
  %v2037 = vpop.permute.xlu0 %2036
  %v2039 = vsel %vm251, %v1971, %v2013
  %v2040 = vsel %vm253, %v2039, %v2017
  %v2041 = vsel %vm255, %v2040, %v2021
  %v2042 = vsel %vm257, %v2041, %v2025
  %v2043 = vsel %vm259, %v2042, %v2029
  %v2044 = vsel %vm261, %v2043, %v2033
  %v2045 = vsel %vm263, %v2044, %v2037
  %v2046 = vlaneseq
  %v2047 = vshrl.u32 %v2046, 7
  %v2048 = vsub.s32 0, %v2047
  %v2049 = vrot.slane %v2045, %v2048
  %v2050 = vmul.f32 %v2049, %v2000
  %v2051 = vsel %vm315, %v2050, -inf
  %v2052 = vrot.slane %v2051, 4
  %v2053 = vmax.f32 %v2051, %v2052
  %v2054 = vrot.slane %v2053, 2
  %v2055 = vmax.f32 %v2053, %v2054
  %v2056 = vrot.slane %v2055, 1
  %v2057 = vmax.f32 %v2055, %v2056
  %v2058 = vsub.f32 %v2050, %v2057
  %v2059 = vmul.f32 %v2058, 1.442695
  %v2060 = vpow.pop %v2059
  %v2061 = vsel %vm315, %v2060, 0.0
  %v2062 = vrot.slane %v2061, 4
  %v2063 = vadd.f32 %v2061, %v2062
  %v2064 = vrot.slane %v2063, 2
  %v2065 = vadd.f32 %v2063, %v2064
  %v2066 = vrot.slane %v2065, 1
  %v2067 = vadd.f32 %v2065, %v2066
  %v2068 = vrcp.pop %v2067
  %v2069 = vmul.f32 %v2060, %v2068
  %v2070 = vmul.f32 %v2069, %v2010
  %v2071 = vsel %vm315, %v2070, 0.0
  %v2072 = vrot.slane %v2071, 4
  %v2073 = vadd.f32 %v2071, %v2072
  %v2074 = vrot.slane %v2073, 2
  %v2075 = vadd.f32 %v2073, %v2074
  %v2076 = vrot.slane %v2075, 1
  %v2077 = vadd.f32 %v2075, %v2076
  %2079 = vrot.lane.b32.xlu0 %v2077, 120
  %v2080 = vpop.permute.xlu0 %2079
  %2082 = vrot.lane.b32.xlu0 %v2077, 112
  %v2083 = vpop.permute.xlu0 %2082
  %2085 = vrot.lane.b32.xlu0 %v2077, 104
  %v2086 = vpop.permute.xlu0 %2085
  %2088 = vrot.lane.b32.xlu0 %v2077, 96
  %v2089 = vpop.permute.xlu0 %2088
  %2091 = vrot.lane.b32.xlu0 %v2077, 88
  %v2092 = vpop.permute.xlu0 %2091
  %2094 = vrot.lane.b32.xlu0 %v2077, 80
  %v2095 = vpop.permute.xlu0 %2094
  %2097 = vrot.lane.b32.xlu0 %v2077, 72
  %v2098 = vpop.permute.xlu0 %2097
  %v2100 = vsel %vm365, %v2077, %v2080
  %v2101 = vsel %vm367, %v2100, %v2083
  %v2102 = vsel %vm369, %v2101, %v2086
  %v2103 = vsel %vm371, %v2102, %v2089
  %v2104 = vsel %vm373, %v2103, %v2092
  %v2105 = vsel %vm375, %v2104, %v2095
  %v2106 = vsel %vm377, %v2105, %v2098
  %2108 = vset.pattern.permute.xlu0 0
  %2109 = vperm.xlu0 %2108, %v2106
  %v2110 = vpop.permute.xlu0 %2109
  %v2112 = vlaneseq
  %v2113 = vshrl.u32 %v2112, 7
  %v2114 = vsub.s32 0, %v2113
  %v2115 = vrot.slane %v1918, %v2114
  %v2116 = vmul.f32 %v2110, %v2115
  %v2117 = vlaneseq
  %v2118 = vshrl.u32 %v2117, 7
  %v2119 = vsub.s32 0, %v2118
  %v2120 = vrot.slane %v1919, %v2119
  %v2121 = vadd.f32 %v2116, %v2120
  %2122 = vset.pattern.permute.xlu0 1
  %2123 = vperm.xlu0 %2122, %v2106
  %v2124 = vpop.permute.xlu0 %2123
  %v2126 = vlaneseq
  %v2127 = vshrl.u32 %v2126, 7
  %v2128 = vsub.s32 1, %v2127
  %v2129 = vrot.slane %v1918, %v2128
  %v2130 = vmul.f32 %v2124, %v2129
  %v2131 = vadd.f32 %v2121, %v2130
  %2132 = vset.pattern.permute.xlu0 2
  %2133 = vperm.xlu0 %2132, %v2106
  %v2134 = vpop.permute.xlu0 %2133
  %v2136 = vlaneseq
  %v2137 = vshrl.u32 %v2136, 7
  %v2138 = vsub.s32 2, %v2137
  %v2139 = vrot.slane %v1918, %v2138
  %v2140 = vmul.f32 %v2134, %v2139
  %v2141 = vadd.f32 %v2131, %v2140
  %2142 = vset.pattern.permute.xlu0 3
  %2143 = vperm.xlu0 %2142, %v2106
  %v2144 = vpop.permute.xlu0 %2143
  %v2146 = vlaneseq
  %v2147 = vshrl.u32 %v2146, 7
  %v2148 = vsub.s32 3, %v2147
  %v2149 = vrot.slane %v1918, %v2148
  %v2150 = vmul.f32 %v2144, %v2149
  %v2151 = vadd.f32 %v2141, %v2150
  %2152 = vset.pattern.permute.xlu0 4
  %2153 = vperm.xlu0 %2152, %v2106
  %v2154 = vpop.permute.xlu0 %2153
  %v2156 = vlaneseq
  %v2157 = vshrl.u32 %v2156, 7
  %v2158 = vsub.s32 4, %v2157
  %v2159 = vrot.slane %v1918, %v2158
  %v2160 = vmul.f32 %v2154, %v2159
  %v2161 = vadd.f32 %v2151, %v2160
  %2162 = vset.pattern.permute.xlu0 5
  %2163 = vperm.xlu0 %2162, %v2106
  %v2164 = vpop.permute.xlu0 %2163
  %v2166 = vlaneseq
  %v2167 = vshrl.u32 %v2166, 7
  %v2168 = vsub.s32 5, %v2167
  %v2169 = vrot.slane %v1918, %v2168
  %v2170 = vmul.f32 %v2164, %v2169
  %v2171 = vadd.f32 %v2161, %v2170
  %2172 = vset.pattern.permute.xlu0 6
  %2173 = vperm.xlu0 %2172, %v2106
  %v2174 = vpop.permute.xlu0 %2173
  %v2176 = vlaneseq
  %v2177 = vshrl.u32 %v2176, 7
  %v2178 = vsub.s32 6, %v2177
  %v2179 = vrot.slane %v1918, %v2178
  %v2180 = vmul.f32 %v2174, %v2179
  %v2181 = vadd.f32 %v2171, %v2180
  %2182 = vset.pattern.permute.xlu0 7
  %2183 = vperm.xlu0 %2182, %v2106
  %v2184 = vpop.permute.xlu0 %2183
  %v2186 = vlaneseq
  %v2187 = vshrl.u32 %v2186, 7
  %v2188 = vsub.s32 7, %v2187
  %v2189 = vrot.slane %v1918, %v2188
  %v2190 = vmul.f32 %v2184, %v2189
  %v2191 = vadd.f32 %v2181, %v2190
  %v2193 = vcombine.high %v2191, %v2191
  %v2195 = vunpack.c.l.s4 1966171168
  %v2196 = vunpack.c.0.s8 %v2195
  %v2197 = vlaneseq
  %v2198 = vshrl.u32 %v2197, 7
  %v2199 = vsub.s32 %v2196, %v2198
  %v2200 = vrot.slane %v2191, %v2199
  %v2202 = vunpack.c.l.s4 1966171168
  %v2203 = vunpack.c.0.s8 %v2202
  %v2204 = vlaneseq
  %v2205 = vshrl.u32 %v2204, 7
  %v2206 = vsub.s32 %v2203, %v2205
  %v2207 = vrot.slane %v2193, %v2206
  %v2208 = vcombine.high %v2200, %v2200
  %v2209 = vcombine.high %v2207, %v2207
  %v2211 = vunpack.c.l.s4 1966171168
  %v2212 = vunpack.c.0.s8 %v2211
  %v2213 = vlaneseq
  %v2214 = vshrl.u32 %v2213, 7
  %v2215 = vsub.s32 %v2212, %v2214
  %v2216 = vrot.slane %v2200, %v2215
  %v2218 = vunpack.c.l.s4 1966171168
  %v2219 = vunpack.c.0.s8 %v2218
  %v2220 = vlaneseq
  %v2221 = vshrl.u32 %v2220, 7
  %v2222 = vsub.s32 %v2219, %v2221
  %v2223 = vrot.slane %v2207, %v2222
  %v2225 = vunpack.c.l.s4 1966171168
  %v2226 = vunpack.c.0.s8 %v2225
  %v2227 = vlaneseq
  %v2228 = vshrl.u32 %v2227, 7
  %v2229 = vsub.s32 %v2226, %v2228
  %v2230 = vrot.slane %v2208, %v2229
  %v2232 = vunpack.c.l.s4 1966171168
  %v2233 = vunpack.c.0.s8 %v2232
  %v2234 = vlaneseq
  %v2235 = vshrl.u32 %v2234, 7
  %v2236 = vsub.s32 %v2233, %v2235
  %v2237 = vrot.slane %v2209, %v2236
  %v2238 = vcombine.high %v2216, %v2216
  %v2239 = vcombine.high %v2223, %v2223
  %v2240 = vcombine.high %v2230, %v2230
  %v2241 = vcombine.high %v2237, %v2237
  %v2250 = vlaneseq
  %v2251 = vshrl.u32 %v2250, 7
  %v2252 = vsub.s32 0, %v2251
  %v2253 = vrot.slane %v2216, %v2252
  %v2254 = vlaneseq
  %v2255 = vshrl.u32 %v2254, 7
  %v2256 = vsub.s32 0, %v2255
  %v2257 = vrot.slane %v2230, %v2256
  %v2258 = vlaneseq
  %v2259 = vshrl.u32 %v2258, 7
  %v2260 = vsub.s32 0, %v2259
  %v2261 = vrot.slane %v2238, %v2260
  %v2262 = vlaneseq
  %v2263 = vshrl.u32 %v2262, 7
  %v2264 = vsub.s32 0, %v2263
  %v2265 = vrot.slane %v2240, %v2264
  %v2266 = vlaneseq
  %v2267 = vshrl.u32 %v2266, 7
  %v2268 = vsub.s32 0, %v2267
  %v2269 = vrot.slane %v2223, %v2268
  %v2270 = vlaneseq
  %v2271 = vshrl.u32 %v2270, 7
  %v2272 = vsub.s32 0, %v2271
  %v2273 = vrot.slane %v2237, %v2272
  %v2274 = vlaneseq
  %v2275 = vshrl.u32 %v2274, 7
  %v2276 = vsub.s32 0, %v2275
  %v2277 = vrot.slane %v2239, %v2276
  %v2278 = vlaneseq
  %v2279 = vshrl.u32 %v2278, 7
  %v2280 = vsub.s32 0, %v2279
  %v2281 = vrot.slane %v2241, %v2280
  %2282 = vrot.lane.b32.xlu0 %v2253, 124
  %v2283 = vpop.permute.xlu0 %2282
  %2284 = vrot.lane.b32.xlu0 %v2257, 124
  %v2285 = vpop.permute.xlu0 %2284
  %2286 = vrot.lane.b32.xlu0 %v2261, 124
  %v2287 = vpop.permute.xlu0 %2286
  %2288 = vrot.lane.b32.xlu0 %v2265, 124
  %v2289 = vpop.permute.xlu0 %2288
  %2290 = vrot.lane.b32.xlu0 %v2269, 124
  %v2291 = vpop.permute.xlu0 %2290
  %2292 = vrot.lane.b32.xlu0 %v2273, 124
  %v2293 = vpop.permute.xlu0 %2292
  %2294 = vrot.lane.b32.xlu0 %v2277, 124
  %v2295 = vpop.permute.xlu0 %2294
  %2296 = vrot.lane.b32.xlu0 %v2281, 124
  %v2297 = vpop.permute.xlu0 %2296
  %v2306 = vsel %vm365, %v2216, %v2283
  %v2307 = vsel %vm365, %v2230, %v2285
  %v2308 = vsel %vm365, %v2238, %v2287
  %v2309 = vsel %vm365, %v2240, %v2289
  %v2310 = vsel %vm365, %v2223, %v2291
  %v2311 = vsel %vm365, %v2237, %v2293
  %v2312 = vsel %vm365, %v2239, %v2295
  %v2313 = vsel %vm365, %v2241, %v2297
  %v2322 = vcombine.low %v2306, %v2307
  %v2323 = vcombine.low %v2308, %v2309
  %v2325 = vunpack.c.l.s4 1983009808
  %v2326 = vunpack.c.0.s8 %v2325
  %v2327 = vlaneseq
  %v2328 = vshrl.u32 %v2327, 7
  %v2329 = vsub.s32 %v2326, %v2328
  %v2330 = vrot.slane %v2322, %v2329
  %v2332 = vunpack.c.l.s4 1983009808
  %v2333 = vunpack.c.0.s8 %v2332
  %v2334 = vlaneseq
  %v2335 = vshrl.u32 %v2334, 7
  %v2336 = vsub.s32 %v2333, %v2335
  %v2337 = vrot.slane %v2323, %v2336
  %v2338 = vcombine.low %v2330, %v2337
  %v2339 = vcombine.low %v2310, %v2311
  %v2340 = vcombine.low %v2312, %v2313
  %v2342 = vunpack.c.l.s4 1983009808
  %v2343 = vunpack.c.0.s8 %v2342
  %v2344 = vlaneseq
  %v2345 = vshrl.u32 %v2344, 7
  %v2346 = vsub.s32 %v2343, %v2345
  %v2347 = vrot.slane %v2339, %v2346
  %v2349 = vunpack.c.l.s4 1983009808
  %v2350 = vunpack.c.0.s8 %v2349
  %v2351 = vlaneseq
  %v2352 = vshrl.u32 %v2351, 7
  %v2353 = vsub.s32 %v2350, %v2352
  %v2354 = vrot.slane %v2340, %v2353
  %v2355 = vcombine.low %v2347, %v2354
  %v2358 = vadd.f32 %v11, %v2338
  %v2359 = vadd.f32 %v12, %v2355
  %v2360 = vld [vmem:[%s1 + $0xbc] sm:$0x1]
  %v2361 = vld [vmem:[%s1 + $0xbd] sm:$0x1]
  %v2362 = vsel %vm138, %v2358, 0.0
  %2363 = vadd.xlane.f32.xlu0 %v2362
  %v2364 = vpop.xlane.xlu0 %2363
  %v2365 = vsel %vm138, %v2359, 0.0
  %2366 = vadd.xlane.f32.xlu0 %v2365
  %v2367 = vpop.xlane.xlu0 %2366
  %v2368 = vmul.f32 %v2364, %v640
  %v2369 = vmul.f32 %v2367, %v640
  %v2370 = vsub.f32 %v2358, %v2368
  %v2371 = vsub.f32 %v2359, %v2369
  %v2372 = vmul.f32 %v2370, %v2370
  %v2373 = vmul.f32 %v2371, %v2371
  %v2374 = vsel %vm138, %v2372, 0.0
  %2375 = vadd.xlane.f32.xlu0 %v2374
  %v2376 = vpop.xlane.xlu0 %2375
  %v2377 = vsel %vm138, %v2373, 0.0
  %2378 = vadd.xlane.f32.xlu0 %v2377
  %v2379 = vpop.xlane.xlu0 %2378
  %v2380 = vmul.f32 %v2376, %v640
  %v2381 = vmul.f32 %v2379, %v640
  %v2382 = vadd.f32 %v2380, 1e-05
  %v2383 = vadd.f32 %v2381, 1e-05
  %v2384 = vrsqrt.pop %v2382
  %v2385 = vrsqrt.pop %v2383
  %v2386 = vmul.f32 %v2370, %v2384
  %v2387 = vmul.f32 %v2371, %v2385
  %v2388 = vlaneseq
  %v2389 = vshrl.u32 %v2388, 7
  %v2390 = vsub.s32 0, %v2389
  %v2391 = vrot.slane %v2360, %v2390
  %v2392 = vmul.f32 %v2386, %v2391
  %v2393 = vmul.f32 %v2387, %v2391
  %v2394 = vlaneseq
  %v2395 = vshrl.u32 %v2394, 7
  %v2396 = vsub.s32 0, %v2395
  %v2397 = vrot.slane %v2361, %v2396
  %v2398 = vadd.f32 %v2392, %v2397
  %v2399 = vadd.f32 %v2393, %v2397
  %v2402 = vcombine.high %v2398, %v2398
  %v2404 = vunpack.c.l.s4 1983009808
  %v2405 = vunpack.c.0.s8 %v2404
  %v2406 = vlaneseq
  %v2407 = vshrl.u32 %v2406, 7
  %v2408 = vsub.s32 %v2405, %v2407
  %v2409 = vrot.slane %v2398, %v2408
  %v2411 = vunpack.c.l.s4 1983009808
  %v2412 = vunpack.c.0.s8 %v2411
  %v2413 = vlaneseq
  %v2414 = vshrl.u32 %v2413, 7
  %v2415 = vsub.s32 %v2412, %v2414
  %v2416 = vrot.slane %v2402, %v2415
  %v2417 = vcombine.high %v2409, %v2409
  %v2418 = vcombine.high %v2416, %v2416
  %v2419 = vcombine.high %v2399, %v2399
  %v2421 = vunpack.c.l.s4 1983009808
  %v2422 = vunpack.c.0.s8 %v2421
  %v2423 = vlaneseq
  %v2424 = vshrl.u32 %v2423, 7
  %v2425 = vsub.s32 %v2422, %v2424
  %v2426 = vrot.slane %v2399, %v2425
  %v2428 = vunpack.c.l.s4 1983009808
  %v2429 = vunpack.c.0.s8 %v2428
  %v2430 = vlaneseq
  %v2431 = vshrl.u32 %v2430, 7
  %v2432 = vsub.s32 %v2429, %v2431
  %v2433 = vrot.slane %v2419, %v2432
  %v2434 = vcombine.high %v2426, %v2426
  %v2435 = vcombine.high %v2433, %v2433
  %v2436 = vlaneseq
  %v2437 = vshrl.u32 %v2436, 7
  %v2438 = vsub.s32 0, %v2437
  %v2439 = vrot.slane %v2409, %v2438
  %v2440 = vlaneseq
  %v2441 = vshrl.u32 %v2440, 7
  %v2442 = vsub.s32 0, %v2441
  %v2443 = vrot.slane %v2417, %v2442
  %v2444 = vlaneseq
  %v2445 = vshrl.u32 %v2444, 7
  %v2446 = vsub.s32 0, %v2445
  %v2447 = vrot.slane %v2416, %v2446
  %v2448 = vlaneseq
  %v2449 = vshrl.u32 %v2448, 7
  %v2450 = vsub.s32 0, %v2449
  %v2451 = vrot.slane %v2418, %v2450
  %v2452 = vlaneseq
  %v2453 = vshrl.u32 %v2452, 7
  %v2454 = vsub.s32 0, %v2453
  %v2455 = vrot.slane %v2426, %v2454
  %v2456 = vlaneseq
  %v2457 = vshrl.u32 %v2456, 7
  %v2458 = vsub.s32 0, %v2457
  %v2459 = vrot.slane %v2434, %v2458
  %v2460 = vlaneseq
  %v2461 = vshrl.u32 %v2460, 7
  %v2462 = vsub.s32 0, %v2461
  %v2463 = vrot.slane %v2433, %v2462
  %v2464 = vlaneseq
  %v2465 = vshrl.u32 %v2464, 7
  %v2466 = vsub.s32 0, %v2465
  %v2467 = vrot.slane %v2435, %v2466
  %v2468 = vsel %vm81, %v2443, %v2439
  %v2469 = vsel %vm83, %v2447, %v2468
  %v2470 = vsel %vm85, %v2451, %v2469
  %v2471 = vsel %vm87, %v2455, %v2470
  %v2472 = vsel %vm89, %v2459, %v2471
  %v2473 = vsel %vm91, %v2463, %v2472
  %v2474 = vsel %vm93, %v2467, %v2473
  %v2476 = vlaneseq
  %v2477 = vshrl.u32 %v2476, 7
  %v2478 = vsub.s32 1, %v2477
  %v2479 = vrot.slane %v2409, %v2478
  %v2480 = vlaneseq
  %v2481 = vshrl.u32 %v2480, 7
  %v2482 = vsub.s32 1, %v2481
  %v2483 = vrot.slane %v2417, %v2482
  %v2484 = vlaneseq
  %v2485 = vshrl.u32 %v2484, 7
  %v2486 = vsub.s32 1, %v2485
  %v2487 = vrot.slane %v2416, %v2486
  %v2488 = vlaneseq
  %v2489 = vshrl.u32 %v2488, 7
  %v2490 = vsub.s32 1, %v2489
  %v2491 = vrot.slane %v2418, %v2490
  %v2492 = vlaneseq
  %v2493 = vshrl.u32 %v2492, 7
  %v2494 = vsub.s32 1, %v2493
  %v2495 = vrot.slane %v2426, %v2494
  %v2496 = vlaneseq
  %v2497 = vshrl.u32 %v2496, 7
  %v2498 = vsub.s32 1, %v2497
  %v2499 = vrot.slane %v2434, %v2498
  %v2500 = vlaneseq
  %v2501 = vshrl.u32 %v2500, 7
  %v2502 = vsub.s32 1, %v2501
  %v2503 = vrot.slane %v2433, %v2502
  %v2504 = vlaneseq
  %v2505 = vshrl.u32 %v2504, 7
  %v2506 = vsub.s32 1, %v2505
  %v2507 = vrot.slane %v2435, %v2506
  %v2508 = vsel %vm81, %v2483, %v2479
  %v2509 = vsel %vm83, %v2487, %v2508
  %v2510 = vsel %vm85, %v2491, %v2509
  %v2511 = vsel %vm87, %v2495, %v2510
  %v2512 = vsel %vm89, %v2499, %v2511
  %v2513 = vsel %vm91, %v2503, %v2512
  %v2514 = vsel %vm93, %v2507, %v2513
  %2515 = vrot.lane.b32.xlu0 %v2514, 4
  %v2516 = vpop.permute.xlu0 %2515
  %v2518 = vsel %vm138, %v2474, %v2516
  %v2519 = vld [vmem:[%s1 + $0x20] sm:$0xff]
  %v2520 = vld [vmem:[%s1 + $0xb8] sm:$0x1]
  %v2521 = vld [vmem:[%s1 + $0x50] sm:$0xff]
  %v2522 = vld [vmem:[%s1 + $0xb9] sm:$0x1]
  %2524 = vset.pattern.permute.xlu0 0
  %2525 = vperm.xlu0 %2524, %v2518
  %v2526 = vpop.permute.xlu0 %2525
  %v2528 = vlaneseq
  %v2529 = vshrl.u32 %v2528, 7
  %v2530 = vsub.s32 0, %v2529
  %v2531 = vrot.slane %v2519, %v2530
  %v2532 = vmul.f32 %v2526, %v2531
  %v2533 = vlaneseq
  %v2534 = vshrl.u32 %v2533, 7
  %v2535 = vsub.s32 0, %v2534
  %v2536 = vrot.slane %v2520, %v2535
  %v2537 = vadd.f32 %v2532, %v2536
  %2538 = vset.pattern.permute.xlu0 1
  %2539 = vperm.xlu0 %2538, %v2518
  %v2540 = vpop.permute.xlu0 %2539
  %v2542 = vlaneseq
  %v2543 = vshrl.u32 %v2542, 7
  %v2544 = vsub.s32 1, %v2543
  %v2545 = vrot.slane %v2519, %v2544
  %v2546 = vmul.f32 %v2540, %v2545
  %v2547 = vadd.f32 %v2537, %v2546
  %2548 = vset.pattern.permute.xlu0 2
  %2549 = vperm.xlu0 %2548, %v2518
  %v2550 = vpop.permute.xlu0 %2549
  %v2552 = vlaneseq
  %v2553 = vshrl.u32 %v2552, 7
  %v2554 = vsub.s32 2, %v2553
  %v2555 = vrot.slane %v2519, %v2554
  %v2556 = vmul.f32 %v2550, %v2555
  %v2557 = vadd.f32 %v2547, %v2556
  %2558 = vset.pattern.permute.xlu0 3
  %2559 = vperm.xlu0 %2558, %v2518
  %v2560 = vpop.permute.xlu0 %2559
  %v2562 = vlaneseq
  %v2563 = vshrl.u32 %v2562, 7
  %v2564 = vsub.s32 3, %v2563
  %v2565 = vrot.slane %v2519, %v2564
  %v2566 = vmul.f32 %v2560, %v2565
  %v2567 = vadd.f32 %v2557, %v2566
  %2568 = vset.pattern.permute.xlu0 4
  %2569 = vperm.xlu0 %2568, %v2518
  %v2570 = vpop.permute.xlu0 %2569
  %v2572 = vlaneseq
  %v2573 = vshrl.u32 %v2572, 7
  %v2574 = vsub.s32 4, %v2573
  %v2575 = vrot.slane %v2519, %v2574
  %v2576 = vmul.f32 %v2570, %v2575
  %v2577 = vadd.f32 %v2567, %v2576
  %2578 = vset.pattern.permute.xlu0 5
  %2579 = vperm.xlu0 %2578, %v2518
  %v2580 = vpop.permute.xlu0 %2579
  %v2582 = vlaneseq
  %v2583 = vshrl.u32 %v2582, 7
  %v2584 = vsub.s32 5, %v2583
  %v2585 = vrot.slane %v2519, %v2584
  %v2586 = vmul.f32 %v2580, %v2585
  %v2587 = vadd.f32 %v2577, %v2586
  %2588 = vset.pattern.permute.xlu0 6
  %2589 = vperm.xlu0 %2588, %v2518
  %v2590 = vpop.permute.xlu0 %2589
  %v2592 = vlaneseq
  %v2593 = vshrl.u32 %v2592, 7
  %v2594 = vsub.s32 6, %v2593
  %v2595 = vrot.slane %v2519, %v2594
  %v2596 = vmul.f32 %v2590, %v2595
  %v2597 = vadd.f32 %v2587, %v2596
  %2598 = vset.pattern.permute.xlu0 7
  %2599 = vperm.xlu0 %2598, %v2518
  %v2600 = vpop.permute.xlu0 %2599
  %v2602 = vlaneseq
  %v2603 = vshrl.u32 %v2602, 7
  %v2604 = vsub.s32 7, %v2603
  %v2605 = vrot.slane %v2519, %v2604
  %v2606 = vmul.f32 %v2600, %v2605
  %v2607 = vadd.f32 %v2597, %v2606
  %2609 = vset.pattern.permute.xlu0 0
  %2610 = vperm.xlu0 %2609, %v1915
  %v2611 = vpop.permute.xlu0 %2610
  %v2613 = vmul.f32 %v2611, %v2531
  %v2614 = vadd.f32 %v2613, %v2536
  %2615 = vset.pattern.permute.xlu0 1
  %2616 = vperm.xlu0 %2615, %v1915
  %v2617 = vpop.permute.xlu0 %2616
  %v2619 = vmul.f32 %v2617, %v2545
  %v2620 = vadd.f32 %v2614, %v2619
  %2621 = vset.pattern.permute.xlu0 2
  %2622 = vperm.xlu0 %2621, %v1915
  %v2623 = vpop.permute.xlu0 %2622
  %v2625 = vmul.f32 %v2623, %v2555
  %v2626 = vadd.f32 %v2620, %v2625
  %2627 = vset.pattern.permute.xlu0 3
  %2628 = vperm.xlu0 %2627, %v1915
  %v2629 = vpop.permute.xlu0 %2628
  %v2631 = vmul.f32 %v2629, %v2565
  %v2632 = vadd.f32 %v2626, %v2631
  %2633 = vset.pattern.permute.xlu0 4
  %2634 = vperm.xlu0 %2633, %v1915
  %v2635 = vpop.permute.xlu0 %2634
  %v2637 = vmul.f32 %v2635, %v2575
  %v2638 = vadd.f32 %v2632, %v2637
  %2639 = vset.pattern.permute.xlu0 5
  %2640 = vperm.xlu0 %2639, %v1915
  %v2641 = vpop.permute.xlu0 %2640
  %v2643 = vmul.f32 %v2641, %v2585
  %v2644 = vadd.f32 %v2638, %v2643
  %2645 = vset.pattern.permute.xlu0 6
  %2646 = vperm.xlu0 %2645, %v1915
  %v2647 = vpop.permute.xlu0 %2646
  %v2649 = vmul.f32 %v2647, %v2595
  %v2650 = vadd.f32 %v2644, %v2649
  %2651 = vset.pattern.permute.xlu0 7
  %2652 = vperm.xlu0 %2651, %v1915
  %v2653 = vpop.permute.xlu0 %2652
  %v2655 = vmul.f32 %v2653, %v2605
  %v2656 = vadd.f32 %v2650, %v2655
  %2658 = vrot.lane.b32.xlu0 %v2656, 120
  %v2659 = vpop.permute.xlu0 %2658
  %2661 = vrot.lane.b32.xlu0 %v2656, 8
  %v2662 = vpop.permute.xlu0 %2661
  %2664 = vrot.lane.b32.xlu0 %v2656, 16
  %v2665 = vpop.permute.xlu0 %2664
  %2667 = vrot.lane.b32.xlu0 %v2656, 24
  %v2668 = vpop.permute.xlu0 %2667
  %2670 = vrot.lane.b32.xlu0 %v2656, 32
  %v2671 = vpop.permute.xlu0 %2670
  %2673 = vrot.lane.b32.xlu0 %v2656, 40
  %v2674 = vpop.permute.xlu0 %2673
  %2676 = vrot.lane.b32.xlu0 %v2656, 48
  %v2677 = vpop.permute.xlu0 %2676
  %v2679 = vsel %vm251, %v2659, %v2656
  %v2680 = vsel %vm253, %v2679, %v2662
  %v2681 = vsel %vm255, %v2680, %v2665
  %v2682 = vsel %vm257, %v2681, %v2668
  %v2683 = vsel %vm259, %v2682, %v2671
  %v2684 = vsel %vm261, %v2683, %v2674
  %v2685 = vsel %vm263, %v2684, %v2677
  %2686 = vrot.lane.b32.xlu0 %v2656, 112
  %v2687 = vpop.permute.xlu0 %2686
  %v2689 = vsel %vm251, %v2687, %v2659
  %v2690 = vsel %vm253, %v2689, %v2656
  %v2691 = vsel %vm255, %v2690, %v2662
  %v2692 = vsel %vm257, %v2691, %v2665
  %v2693 = vsel %vm259, %v2692, %v2668
  %v2694 = vsel %vm261, %v2693, %v2671
  %v2695 = vsel %vm263, %v2694, %v2674
  %v2697 = vrot.slane %v2607, 1
  %2698 = vrot.lane.b32.xlu0 %v2697, 8
  %v2699 = vpop.permute.xlu0 %2698
  %v2701 = vrot.slane %v2607, 2
  %2702 = vrot.lane.b32.xlu0 %v2701, 16
  %v2703 = vpop.permute.xlu0 %2702
  %v2705 = vrot.slane %v2607, 3
  %2706 = vrot.lane.b32.xlu0 %v2705, 24
  %v2707 = vpop.permute.xlu0 %2706
  %v2709 = vrot.slane %v2607, 4
  %2710 = vrot.lane.b32.xlu0 %v2709, 32
  %v2711 = vpop.permute.xlu0 %2710
  %v2713 = vrot.slane %v2607, 5
  %2714 = vrot.lane.b32.xlu0 %v2713, 40
  %v2715 = vpop.permute.xlu0 %2714
  %v2717 = vrot.slane %v2607, 6
  %2718 = vrot.lane.b32.xlu0 %v2717, 48
  %v2719 = vpop.permute.xlu0 %2718
  %v2721 = vrot.slane %v2607, 7
  %2722 = vrot.lane.b32.xlu0 %v2721, 56
  %v2723 = vpop.permute.xlu0 %2722
  %v2725 = vsel %vm251, %v2607, %v2699
  %v2726 = vsel %vm253, %v2725, %v2703
  %v2727 = vsel %vm255, %v2726, %v2707
  %v2728 = vsel %vm257, %v2727, %v2711
  %v2729 = vsel %vm259, %v2728, %v2715
  %v2730 = vsel %vm261, %v2729, %v2719
  %v2731 = vsel %vm263, %v2730, %v2723
  %v2732 = vlaneseq
  %v2733 = vshrl.u32 %v2732, 7
  %v2734 = vsub.s32 0, %v2733
  %v2735 = vrot.slane %v2731, %v2734
  %v2736 = vmul.f32 %v2735, %v2685
  %v2737 = vsel %vm315, %v2736, -inf
  %v2738 = vrot.slane %v2737, 4
  %v2739 = vmax.f32 %v2737, %v2738
  %v2740 = vrot.slane %v2739, 2
  %v2741 = vmax.f32 %v2739, %v2740
  %v2742 = vrot.slane %v2741, 1
  %v2743 = vmax.f32 %v2741, %v2742
  %v2744 = vsub.f32 %v2736, %v2743
  %v2745 = vmul.f32 %v2744, 1.442695
  %v2746 = vpow.pop %v2745
  %v2747 = vsel %vm315, %v2746, 0.0
  %v2748 = vrot.slane %v2747, 4
  %v2749 = vadd.f32 %v2747, %v2748
  %v2750 = vrot.slane %v2749, 2
  %v2751 = vadd.f32 %v2749, %v2750
  %v2752 = vrot.slane %v2751, 1
  %v2753 = vadd.f32 %v2751, %v2752
  %v2754 = vrcp.pop %v2753
  %v2755 = vmul.f32 %v2746, %v2754
  %v2756 = vmul.f32 %v2755, %v2695
  %v2757 = vsel %vm315, %v2756, 0.0
  %v2758 = vrot.slane %v2757, 4
  %v2759 = vadd.f32 %v2757, %v2758
  %v2760 = vrot.slane %v2759, 2
  %v2761 = vadd.f32 %v2759, %v2760
  %v2762 = vrot.slane %v2761, 1
  %v2763 = vadd.f32 %v2761, %v2762
  %2765 = vrot.lane.b32.xlu0 %v2763, 120
  %v2766 = vpop.permute.xlu0 %2765
  %2768 = vrot.lane.b32.xlu0 %v2763, 112
  %v2769 = vpop.permute.xlu0 %2768
  %2771 = vrot.lane.b32.xlu0 %v2763, 104
  %v2772 = vpop.permute.xlu0 %2771
  %2774 = vrot.lane.b32.xlu0 %v2763, 96
  %v2775 = vpop.permute.xlu0 %2774
  %2777 = vrot.lane.b32.xlu0 %v2763, 88
  %v2778 = vpop.permute.xlu0 %2777
  %2780 = vrot.lane.b32.xlu0 %v2763, 80
  %v2781 = vpop.permute.xlu0 %2780
  %2783 = vrot.lane.b32.xlu0 %v2763, 72
  %v2784 = vpop.permute.xlu0 %2783
  %v2786 = vsel %vm365, %v2763, %v2766
  %v2787 = vsel %vm367, %v2786, %v2769
  %v2788 = vsel %vm369, %v2787, %v2772
  %v2789 = vsel %vm371, %v2788, %v2775
  %v2790 = vsel %vm373, %v2789, %v2778
  %v2791 = vsel %vm375, %v2790, %v2781
  %v2792 = vsel %vm377, %v2791, %v2784
  %2794 = vset.pattern.permute.xlu0 0
  %2795 = vperm.xlu0 %2794, %v2792
  %v2796 = vpop.permute.xlu0 %2795
  %v2798 = vlaneseq
  %v2799 = vshrl.u32 %v2798, 7
  %v2800 = vsub.s32 0, %v2799
  %v2801 = vrot.slane %v2521, %v2800
  %v2802 = vmul.f32 %v2796, %v2801
  %v2803 = vlaneseq
  %v2804 = vshrl.u32 %v2803, 7
  %v2805 = vsub.s32 0, %v2804
  %v2806 = vrot.slane %v2522, %v2805
  %v2807 = vadd.f32 %v2802, %v2806
  %2808 = vset.pattern.permute.xlu0 1
  %2809 = vperm.xlu0 %2808, %v2792
  %v2810 = vpop.permute.xlu0 %2809
  %v2812 = vlaneseq
  %v2813 = vshrl.u32 %v2812, 7
  %v2814 = vsub.s32 1, %v2813
  %v2815 = vrot.slane %v2521, %v2814
  %v2816 = vmul.f32 %v2810, %v2815
  %v2817 = vadd.f32 %v2807, %v2816
  %2818 = vset.pattern.permute.xlu0 2
  %2819 = vperm.xlu0 %2818, %v2792
  %v2820 = vpop.permute.xlu0 %2819
  %v2822 = vlaneseq
  %v2823 = vshrl.u32 %v2822, 7
  %v2824 = vsub.s32 2, %v2823
  %v2825 = vrot.slane %v2521, %v2824
  %v2826 = vmul.f32 %v2820, %v2825
  %v2827 = vadd.f32 %v2817, %v2826
  %2828 = vset.pattern.permute.xlu0 3
  %2829 = vperm.xlu0 %2828, %v2792
  %v2830 = vpop.permute.xlu0 %2829
  %v2832 = vlaneseq
  %v2833 = vshrl.u32 %v2832, 7
  %v2834 = vsub.s32 3, %v2833
  %v2835 = vrot.slane %v2521, %v2834
  %v2836 = vmul.f32 %v2830, %v2835
  %v2837 = vadd.f32 %v2827, %v2836
  %2838 = vset.pattern.permute.xlu0 4
  %2839 = vperm.xlu0 %2838, %v2792
  %v2840 = vpop.permute.xlu0 %2839
  %v2842 = vlaneseq
  %v2843 = vshrl.u32 %v2842, 7
  %v2844 = vsub.s32 4, %v2843
  %v2845 = vrot.slane %v2521, %v2844
  %v2846 = vmul.f32 %v2840, %v2845
  %v2847 = vadd.f32 %v2837, %v2846
  %2848 = vset.pattern.permute.xlu0 5
  %2849 = vperm.xlu0 %2848, %v2792
  %v2850 = vpop.permute.xlu0 %2849
  %v2852 = vlaneseq
  %v2853 = vshrl.u32 %v2852, 7
  %v2854 = vsub.s32 5, %v2853
  %v2855 = vrot.slane %v2521, %v2854
  %v2856 = vmul.f32 %v2850, %v2855
  %v2857 = vadd.f32 %v2847, %v2856
  %2858 = vset.pattern.permute.xlu0 6
  %2859 = vperm.xlu0 %2858, %v2792
  %v2860 = vpop.permute.xlu0 %2859
  %v2862 = vlaneseq
  %v2863 = vshrl.u32 %v2862, 7
  %v2864 = vsub.s32 6, %v2863
  %v2865 = vrot.slane %v2521, %v2864
  %v2866 = vmul.f32 %v2860, %v2865
  %v2867 = vadd.f32 %v2857, %v2866
  %2868 = vset.pattern.permute.xlu0 7
  %2869 = vperm.xlu0 %2868, %v2792
  %v2870 = vpop.permute.xlu0 %2869
  %v2872 = vlaneseq
  %v2873 = vshrl.u32 %v2872, 7
  %v2874 = vsub.s32 7, %v2873
  %v2875 = vrot.slane %v2521, %v2874
  %v2876 = vmul.f32 %v2870, %v2875
  %v2877 = vadd.f32 %v2867, %v2876
  %v2879 = vcombine.high %v2877, %v2877
  %v2881 = vunpack.c.l.s4 1966171168
  %v2882 = vunpack.c.0.s8 %v2881
  %v2883 = vlaneseq
  %v2884 = vshrl.u32 %v2883, 7
  %v2885 = vsub.s32 %v2882, %v2884
  %v2886 = vrot.slane %v2877, %v2885
  %v2888 = vunpack.c.l.s4 1966171168
  %v2889 = vunpack.c.0.s8 %v2888
  %v2890 = vlaneseq
  %v2891 = vshrl.u32 %v2890, 7
  %v2892 = vsub.s32 %v2889, %v2891
  %v2893 = vrot.slane %v2879, %v2892
  %v2894 = vcombine.high %v2886, %v2886
  %v2895 = vcombine.high %v2893, %v2893
  %v2897 = vunpack.c.l.s4 1966171168
  %v2898 = vunpack.c.0.s8 %v2897
  %v2899 = vlaneseq
  %v2900 = vshrl.u32 %v2899, 7
  %v2901 = vsub.s32 %v2898, %v2900
  %v2902 = vrot.slane %v2886, %v2901
  %v2904 = vunpack.c.l.s4 1966171168
  %v2905 = vunpack.c.0.s8 %v2904
  %v2906 = vlaneseq
  %v2907 = vshrl.u32 %v2906, 7
  %v2908 = vsub.s32 %v2905, %v2907
  %v2909 = vrot.slane %v2893, %v2908
  %v2911 = vunpack.c.l.s4 1966171168
  %v2912 = vunpack.c.0.s8 %v2911
  %v2913 = vlaneseq
  %v2914 = vshrl.u32 %v2913, 7
  %v2915 = vsub.s32 %v2912, %v2914
  %v2916 = vrot.slane %v2894, %v2915
  %v2918 = vunpack.c.l.s4 1966171168
  %v2919 = vunpack.c.0.s8 %v2918
  %v2920 = vlaneseq
  %v2921 = vshrl.u32 %v2920, 7
  %v2922 = vsub.s32 %v2919, %v2921
  %v2923 = vrot.slane %v2895, %v2922
  %v2924 = vcombine.high %v2902, %v2902
  %v2925 = vcombine.high %v2909, %v2909
  %v2926 = vcombine.high %v2916, %v2916
  %v2927 = vcombine.high %v2923, %v2923
  %v2936 = vlaneseq
  %v2937 = vshrl.u32 %v2936, 7
  %v2938 = vsub.s32 0, %v2937
  %v2939 = vrot.slane %v2902, %v2938
  %v2940 = vlaneseq
  %v2941 = vshrl.u32 %v2940, 7
  %v2942 = vsub.s32 0, %v2941
  %v2943 = vrot.slane %v2916, %v2942
  %v2944 = vlaneseq
  %v2945 = vshrl.u32 %v2944, 7
  %v2946 = vsub.s32 0, %v2945
  %v2947 = vrot.slane %v2924, %v2946
  %v2948 = vlaneseq
  %v2949 = vshrl.u32 %v2948, 7
  %v2950 = vsub.s32 0, %v2949
  %v2951 = vrot.slane %v2926, %v2950
  %v2952 = vlaneseq
  %v2953 = vshrl.u32 %v2952, 7
  %v2954 = vsub.s32 0, %v2953
  %v2955 = vrot.slane %v2909, %v2954
  %v2956 = vlaneseq
  %v2957 = vshrl.u32 %v2956, 7
  %v2958 = vsub.s32 0, %v2957
  %v2959 = vrot.slane %v2923, %v2958
  %v2960 = vlaneseq
  %v2961 = vshrl.u32 %v2960, 7
  %v2962 = vsub.s32 0, %v2961
  %v2963 = vrot.slane %v2925, %v2962
  %v2964 = vlaneseq
  %v2965 = vshrl.u32 %v2964, 7
  %v2966 = vsub.s32 0, %v2965
  %v2967 = vrot.slane %v2927, %v2966
  %2968 = vrot.lane.b32.xlu0 %v2939, 124
  %v2969 = vpop.permute.xlu0 %2968
  %2970 = vrot.lane.b32.xlu0 %v2943, 124
  %v2971 = vpop.permute.xlu0 %2970
  %2972 = vrot.lane.b32.xlu0 %v2947, 124
  %v2973 = vpop.permute.xlu0 %2972
  %2974 = vrot.lane.b32.xlu0 %v2951, 124
  %v2975 = vpop.permute.xlu0 %2974
  %2976 = vrot.lane.b32.xlu0 %v2955, 124
  %v2977 = vpop.permute.xlu0 %2976
  %2978 = vrot.lane.b32.xlu0 %v2959, 124
  %v2979 = vpop.permute.xlu0 %2978
  %2980 = vrot.lane.b32.xlu0 %v2963, 124
  %v2981 = vpop.permute.xlu0 %2980
  %2982 = vrot.lane.b32.xlu0 %v2967, 124
  %v2983 = vpop.permute.xlu0 %2982
  %v2992 = vsel %vm365, %v2902, %v2969
  %v2993 = vsel %vm365, %v2916, %v2971
  %v2994 = vsel %vm365, %v2924, %v2973
  %v2995 = vsel %vm365, %v2926, %v2975
  %v2996 = vsel %vm365, %v2909, %v2977
  %v2997 = vsel %vm365, %v2923, %v2979
  %v2998 = vsel %vm365, %v2925, %v2981
  %v2999 = vsel %vm365, %v2927, %v2983
  %v3008 = vcombine.low %v2992, %v2993
  %v3009 = vcombine.low %v2994, %v2995
  %v3011 = vunpack.c.l.s4 1983009808
  %v3012 = vunpack.c.0.s8 %v3011
  %v3013 = vlaneseq
  %v3014 = vshrl.u32 %v3013, 7
  %v3015 = vsub.s32 %v3012, %v3014
  %v3016 = vrot.slane %v3008, %v3015
  %v3018 = vunpack.c.l.s4 1983009808
  %v3019 = vunpack.c.0.s8 %v3018
  %v3020 = vlaneseq
  %v3021 = vshrl.u32 %v3020, 7
  %v3022 = vsub.s32 %v3019, %v3021
  %v3023 = vrot.slane %v3009, %v3022
  %v3024 = vcombine.low %v3016, %v3023
  %v3025 = vcombine.low %v2996, %v2997
  %v3026 = vcombine.low %v2998, %v2999
  %v3028 = vunpack.c.l.s4 1983009808
  %v3029 = vunpack.c.0.s8 %v3028
  %v3030 = vlaneseq
  %v3031 = vshrl.u32 %v3030, 7
  %v3032 = vsub.s32 %v3029, %v3031
  %v3033 = vrot.slane %v3025, %v3032
  %v3035 = vunpack.c.l.s4 1983009808
  %v3036 = vunpack.c.0.s8 %v3035
  %v3037 = vlaneseq
  %v3038 = vshrl.u32 %v3037, 7
  %v3039 = vsub.s32 %v3036, %v3038
  %v3040 = vrot.slane %v3026, %v3039
  %v3041 = vcombine.low %v3033, %v3040
  %v3044 = vadd.f32 %v2398, %v3024
  %v3045 = vadd.f32 %v2399, %v3041
  %v3046 = vld [vmem:[%s1 + $0xbe] sm:$0x1]
  %v3047 = vld [vmem:[%s1 + $0xbf] sm:$0x1]
  %v3048 = vsel %vm138, %v3044, 0.0
  %3049 = vadd.xlane.f32.xlu0 %v3048
  %v3050 = vpop.xlane.xlu0 %3049
  %v3051 = vsel %vm138, %v3045, 0.0
  %3052 = vadd.xlane.f32.xlu0 %v3051
  %v3053 = vpop.xlane.xlu0 %3052
  %v3054 = vmul.f32 %v3050, %v640
  %v3055 = vmul.f32 %v3053, %v640
  %v3056 = vsub.f32 %v3044, %v3054
  %v3057 = vsub.f32 %v3045, %v3055
  %v3058 = vmul.f32 %v3056, %v3056
  %v3059 = vmul.f32 %v3057, %v3057
  %v3060 = vsel %vm138, %v3058, 0.0
  %3061 = vadd.xlane.f32.xlu0 %v3060
  %v3062 = vpop.xlane.xlu0 %3061
  %v3063 = vsel %vm138, %v3059, 0.0
  %3064 = vadd.xlane.f32.xlu0 %v3063
  %v3065 = vpop.xlane.xlu0 %3064
  %v3066 = vmul.f32 %v3062, %v640
  %v3067 = vmul.f32 %v3065, %v640
  %v3068 = vadd.f32 %v3066, 1e-05
  %v3069 = vadd.f32 %v3067, 1e-05
  %v3070 = vrsqrt.pop %v3068
  %v3071 = vrsqrt.pop %v3069
  %v3072 = vmul.f32 %v3056, %v3070
  %v3073 = vmul.f32 %v3057, %v3071
  %v3074 = vlaneseq
  %v3075 = vshrl.u32 %v3074, 7
  %v3076 = vsub.s32 0, %v3075
  %v3077 = vrot.slane %v3046, %v3076
  %v3078 = vmul.f32 %v3072, %v3077
  %v3079 = vmul.f32 %v3073, %v3077
  %v3080 = vlaneseq
  %v3081 = vshrl.u32 %v3080, 7
  %v3082 = vsub.s32 0, %v3081
  %v3083 = vrot.slane %v3047, %v3082
  %v3084 = vadd.f32 %v3078, %v3083
  %v3085 = vadd.f32 %v3079, %v3083
  %v3086 = vld [vmem:[%s1 + $0x78] sm:$0xf]
  %v3087 = vld [vmem:[%s1 + $0xba] sm:$0x1]
  %v3088 = vld [vmem:[%s1 + $0x98] sm:$0xf]
  %v3089 = vld [vmem:[%s1 + $0xbb] sm:$0x1]
  %v3090 = vlaneseq
  %v3091 = vshrl.u32 %v3090, 7
  %v3092 = vsub.s32 0, %v3091
  %v3093 = vrot.slane %v3087, %v3092
  %v3095 = vsel %vm138, %v3084, 0
  %v3098 = vsel %vm138, %v3085, 0
  %v3101 = vsel %vm371, %v3086, 0
  %3103 = vmatprep.subr.mxu0 0.0
  %3104 = vmatpush1.msra.mxu0 0.0
  %3105 = vmatprep.subr.mxu0 0.0
  %3106 = vmatpush1.msra.mxu0 0.0
  %3107 = vmatprep.subr.mxu0 0.0
  %3108 = vmatpush1.msra.mxu0 0.0
  %3109 = vmatprep.subr.mxu0 0.0
  %3110 = vmatpush1.msra.mxu0 0.0
  %3111 = vmatprep.subr.mxu0 0.0
  %3112 = vmatpush1.msra.mxu0 0.0
  %3113 = vmatprep.subr.mxu0 0.0
  %3114 = vmatpush1.msra.mxu0 0.0
  %3115 = vmatprep.subr.mxu0 0.0
  %3116 = vmatpush1.msra.mxu0 0.0
  %3117 = vmatprep.subr.mxu0 0.0
  %3118 = vmatpush1.msra.mxu0 0.0
  %3119 = vmatprep.subr.mxu0 0.0
  %3120 = vmatpush1.msra.mxu0 0.0
  %3121 = vmatprep.subr.mxu0 0.0
  %3122 = vmatpush1.msra.mxu0 0.0
  %3123 = vmatprep.subr.mxu0 0.0
  %3124 = vmatpush1.msra.mxu0 0.0
  %3125 = vmatprep.subr.mxu0 0.0
  %3126 = vmatpush1.msra.mxu0 0.0
  %3127 = vmatprep.subr.mxu0 0.0
  %3128 = vmatpush1.msra.mxu0 0.0
  %3129 = vmatprep.subr.mxu0 0.0
  %3130 = vmatpush1.msra.mxu0 0.0
  %3131 = vmatprep.subr.mxu0 0.0
  %3132 = vmatpush1.msra.mxu0 0.0
  %3133 = vmatprep.subr.mxu0 0.0
  %3134 = vmatpush1.msra.mxu0 %v3101
  %3135 = vmatprep.subr.mxu0 0.0
  %3136 = vmatpush2.msra.mxu0 0.0
  %3137 = vmatprep.subr.mxu0 0.0
  %3138 = vmatpush2.msra.mxu0 0.0
  %3139 = vmatprep.subr.mxu0 0.0
  %3140 = vmatpush2.msra.mxu0 0.0
  %3141 = vmatprep.subr.mxu0 0.0
  %3142 = vmatpush2.msra.mxu0 0.0
  %3143 = vmatprep.subr.mxu0 0.0
  %3144 = vmatpush2.msra.mxu0 0.0
  %3145 = vmatprep.subr.mxu0 0.0
  %3146 = vmatpush2.msra.mxu0 0.0
  %3147 = vmatprep.subr.mxu0 0.0
  %3148 = vmatpush2.msra.mxu0 0.0
  %3149 = vmatprep.subr.mxu0 0.0
  %3150 = vmatpush2.msra.mxu0 0.0
  %3151 = vmatprep.subr.mxu0 0.0
  %3152 = vmatpush2.msra.mxu0 0.0
  %3153 = vmatprep.subr.mxu0 0.0
  %3154 = vmatpush2.msra.mxu0 0.0
  %3155 = vmatprep.subr.mxu0 0.0
  %3156 = vmatpush2.msra.mxu0 0.0
  %3157 = vmatprep.subr.mxu0 0.0
  %3158 = vmatpush2.msra.mxu0 0.0
  %3159 = vmatprep.subr.mxu0 0.0
  %3160 = vmatpush2.msra.mxu0 0.0
  %3161 = vmatprep.subr.mxu0 0.0
  %3162 = vmatpush2.msra.mxu0 0.0
  %3163 = vmatprep.subr.mxu0 0.0
  %3164 = vmatpush2.msra.mxu0 0.0
  %3165 = vmatprep.subr.mxu0 0.0
  %3166 = vmatpush2.msra.mxu0 0.0
  %3167 = vmatprep.mubr.f32.mxu0 0.0
  %3168 = vmatmul.mubr.f32.gmra.mxu0 %v3095
  %v3169 = vpop.f32.mrf.mxu0
  %v3170 = vadd.f32 %v3093, %v3169
  %v3171 = vpop.f32.mrf.mxu0
  %3172 = vmatprep.mubr.f32.mxu0 0.0
  %3173 = vmatmul.mubr.f32.gmra.mxu0 %v3098
  %v3174 = vpop.f32.mrf.mxu0
  %v3175 = vadd.f32 %v3093, %v3174
  %v3176 = vpop.f32.mrf.mxu0
  %3177 = vdwg.mxu0
  %v3178 = vmax.f32 %v3170, 0.0
  %v3179 = vmax.f32 %v3175, 0.0
  %v3180 = vlaneseq
  %v3181 = vshrl.u32 %v3180, 7
  %v3182 = vsub.s32 0, %v3181
  %v3183 = vrot.slane %v3089, %v3182
  %v3185 = vsel %vm315, %v3178, 0
  %v3188 = vsel %vm315, %v3179, 0
  %v3191 = vsel %vm315, %v3088, 0
  %3193 = vmatprep.subr.mxu0 0.0
  %3194 = vmatpush1.xpose.msra.mxu0 0.0
  %3195 = vmatprep.subr.mxu0 0.0
  %3196 = vmatpush1.xpose.msra.mxu0 0.0
  %3197 = vmatprep.subr.mxu0 0.0
  %3198 = vmatpush1.xpose.msra.mxu0 0.0
  %3199 = vmatprep.subr.mxu0 0.0
  %3200 = vmatpush1.xpose.msra.mxu0 0.0
  %3201 = vmatprep.subr.mxu0 0.0
  %3202 = vmatpush1.xpose.msra.mxu0 0.0
  %3203 = vmatprep.subr.mxu0 0.0
  %3204 = vmatpush1.xpose.msra.mxu0 0.0
  %3205 = vmatprep.subr.mxu0 0.0
  %3206 = vmatpush1.xpose.msra.mxu0 0.0
  %3207 = vmatprep.subr.mxu0 0.0
  %3208 = vmatpush1.xpose.msra.mxu0 0.0
  %3209 = vmatprep.subr.mxu0 0.0
  %3210 = vmatpush1.xpose.msra.mxu0 0.0
  %3211 = vmatprep.subr.mxu0 0.0
  %3212 = vmatpush1.xpose.msra.mxu0 0.0
  %3213 = vmatprep.subr.mxu0 0.0
  %3214 = vmatpush1.xpose.msra.mxu0 0.0
  %3215 = vmatprep.subr.mxu0 0.0
  %3216 = vmatpush1.xpose.msra.mxu0 0.0
  %3217 = vmatprep.subr.mxu0 0.0
  %3218 = vmatpush1.xpose.msra.mxu0 0.0
  %3219 = vmatprep.subr.mxu0 0.0
  %3220 = vmatpush1.xpose.msra.mxu0 0.0
  %3221 = vmatprep.subr.mxu0 0.0
  %3222 = vmatpush1.xpose.msra.mxu0 0.0
  %3223 = vmatprep.subr.mxu0 0.0
  %3224 = vmatpush1.xpose.msra.mxu0 %v3191
  %3225 = vmatprep.subr.mxu0 0.0
  %3226 = vmatpush2.xpose.msra.mxu0 0.0
  %3227 = vmatprep.subr.mxu0 0.0
  %3228 = vmatpush2.xpose.msra.mxu0 0.0
  %3229 = vmatprep.subr.mxu0 0.0
  %3230 = vmatpush2.xpose.msra.mxu0 0.0
  %3231 = vmatprep.subr.mxu0 0.0
  %3232 = vmatpush2.xpose.msra.mxu0 0.0
  %3233 = vmatprep.subr.mxu0 0.0
  %3234 = vmatpush2.xpose.msra.mxu0 0.0
  %3235 = vmatprep.subr.mxu0 0.0
  %3236 = vmatpush2.xpose.msra.mxu0 0.0
  %3237 = vmatprep.subr.mxu0 0.0
  %3238 = vmatpush2.xpose.msra.mxu0 0.0
  %3239 = vmatprep.subr.mxu0 0.0
  %3240 = vmatpush2.xpose.msra.mxu0 0.0
  %3241 = vmatprep.subr.mxu0 0.0
  %3242 = vmatpush2.xpose.msra.mxu0 0.0
  %3243 = vmatprep.subr.mxu0 0.0
  %3244 = vmatpush2.xpose.msra.mxu0 0.0
  %3245 = vmatprep.subr.mxu0 0.0
  %3246 = vmatpush2.xpose.msra.mxu0 0.0
  %3247 = vmatprep.subr.mxu0 0.0
  %3248 = vmatpush2.xpose.msra.mxu0 0.0
  %3249 = vmatprep.subr.mxu0 0.0
  %3250 = vmatpush2.xpose.msra.mxu0 0.0
  %3251 = vmatprep.subr.mxu0 0.0
  %3252 = vmatpush2.xpose.msra.mxu0 0.0
  %3253 = vmatprep.subr.mxu0 0.0
  %3254 = vmatpush2.xpose.msra.mxu0 0.0
  %3255 = vmatprep.subr.mxu0 0.0
  %3256 = vmatpush2.xpose.msra.mxu0 0.0
  %3257 = vmatprep.mubr.f32.mxu0 0.0
  %3258 = vmatmul.mubr.f32.gmra.mxu0 %v3185
  %v3259 = vpop.f32.mrf.mxu0
  %v3260 = vadd.f32 %v3183, %v3259
  %v3261 = vpop.f32.mrf.mxu0
  %3262 = vmatprep.mubr.f32.mxu0 0.0
  %3263 = vmatmul.mubr.f32.gmra.mxu0 %v3188
  %v3264 = vpop.f32.mrf.mxu0
  %v3265 = vadd.f32 %v3183, %v3264
  %v3266 = vpop.f32.mrf.mxu0
  %3267 = vdwg.mxu0
  %v3268 = vadd.f32 %v3084, %v3260
  %v3269 = vadd.f32 %v3085, %v3265
  %v3270 = vld [vmem:[%s1 + $0xc0] sm:$0x1]
  %v3271 = vld [vmem:[%s1 + $0xc1] sm:$0x1]
  %v3272 = vsel %vm138, %v3268, 0.0
  %3273 = vadd.xlane.f32.xlu0 %v3272
  %v3274 = vpop.xlane.xlu0 %3273
  %v3275 = vsel %vm138, %v3269, 0.0
  %3276 = vadd.xlane.f32.xlu0 %v3275
  %v3277 = vpop.xlane.xlu0 %3276
  %v3278 = vmul.f32 %v3274, %v640
  %v3279 = vmul.f32 %v3277, %v640
  %v3280 = vsub.f32 %v3268, %v3278
  %v3281 = vsub.f32 %v3269, %v3279
  %v3282 = vmul.f32 %v3280, %v3280
  %v3283 = vmul.f32 %v3281, %v3281
  %v3284 = vsel %vm138, %v3282, 0.0
  %3285 = vadd.xlane.f32.xlu0 %v3284
  %v3286 = vpop.xlane.xlu0 %3285
  %v3287 = vsel %vm138, %v3283, 0.0
  %3288 = vadd.xlane.f32.xlu0 %v3287
  %v3289 = vpop.xlane.xlu0 %3288
  %v3290 = vmul.f32 %v3286, %v640
  %v3291 = vmul.f32 %v3289, %v640
  %v3292 = vadd.f32 %v3290, 1e-05
  %v3293 = vadd.f32 %v3291, 1e-05
  %v3294 = vrsqrt.pop %v3292
  %v3295 = vrsqrt.pop %v3293
  %v3296 = vmul.f32 %v3280, %v3294
  %v3297 = vmul.f32 %v3281, %v3295
  %v3298 = vlaneseq
  %v3299 = vshrl.u32 %v3298, 7
  %v3300 = vsub.s32 0, %v3299
  %v3301 = vrot.slane %v3270, %v3300
  %v3302 = vmul.f32 %v3296, %v3301
  %v3303 = vmul.f32 %v3297, %v3301
  %v3304 = vlaneseq
  %v3305 = vshrl.u32 %v3304, 7
  %v3306 = vsub.s32 0, %v3305
  %v3307 = vrot.slane %v3271, %v3306
  %v3308 = vadd.f32 %v3302, %v3307
  %v3309 = vadd.f32 %v3303, %v3307
  %v3312 = vcombine.high %v3308, %v3308
  %v3314 = vunpack.c.l.s4 1983009808
  %v3315 = vunpack.c.0.s8 %v3314
  %v3316 = vlaneseq
  %v3317 = vshrl.u32 %v3316, 7
  %v3318 = vsub.s32 %v3315, %v3317
  %v3319 = vrot.slane %v3308, %v3318
  %v3321 = vunpack.c.l.s4 1983009808
  %v3322 = vunpack.c.0.s8 %v3321
  %v3323 = vlaneseq
  %v3324 = vshrl.u32 %v3323, 7
  %v3325 = vsub.s32 %v3322, %v3324
  %v3326 = vrot.slane %v3312, %v3325
  %v3327 = vcombine.high %v3319, %v3319
  %v3328 = vcombine.high %v3326, %v3326
  %v3329 = vcombine.high %v3309, %v3309
  %v3331 = vunpack.c.l.s4 1983009808
  %v3332 = vunpack.c.0.s8 %v3331
  %v3333 = vlaneseq
  %v3334 = vshrl.u32 %v3333, 7
  %v3335 = vsub.s32 %v3332, %v3334
  %v3336 = vrot.slane %v3309, %v3335
  %v3338 = vunpack.c.l.s4 1983009808
  %v3339 = vunpack.c.0.s8 %v3338
  %v3340 = vlaneseq
  %v3341 = vshrl.u32 %v3340, 7
  %v3342 = vsub.s32 %v3339, %v3341
  %v3343 = vrot.slane %v3329, %v3342
  %v3344 = vcombine.high %v3336, %v3336
  %v3345 = vcombine.high %v3343, %v3343
  %v3346 = vlaneseq
  %v3347 = vshrl.u32 %v3346, 7
  %v3348 = vsub.s32 0, %v3347
  %v3349 = vrot.slane %v3319, %v3348
  %v3350 = vlaneseq
  %v3351 = vshrl.u32 %v3350, 7
  %v3352 = vsub.s32 0, %v3351
  %v3353 = vrot.slane %v3327, %v3352
  %v3354 = vlaneseq
  %v3355 = vshrl.u32 %v3354, 7
  %v3356 = vsub.s32 0, %v3355
  %v3357 = vrot.slane %v3326, %v3356
  %v3358 = vlaneseq
  %v3359 = vshrl.u32 %v3358, 7
  %v3360 = vsub.s32 0, %v3359
  %v3361 = vrot.slane %v3328, %v3360
  %v3362 = vlaneseq
  %v3363 = vshrl.u32 %v3362, 7
  %v3364 = vsub.s32 0, %v3363
  %v3365 = vrot.slane %v3336, %v3364
  %v3366 = vlaneseq
  %v3367 = vshrl.u32 %v3366, 7
  %v3368 = vsub.s32 0, %v3367
  %v3369 = vrot.slane %v3344, %v3368
  %v3370 = vlaneseq
  %v3371 = vshrl.u32 %v3370, 7
  %v3372 = vsub.s32 0, %v3371
  %v3373 = vrot.slane %v3343, %v3372
  %v3374 = vlaneseq
  %v3375 = vshrl.u32 %v3374, 7
  %v3376 = vsub.s32 0, %v3375
  %v3377 = vrot.slane %v3345, %v3376
  %v3378 = vsel %vm81, %v3353, %v3349
  %v3379 = vsel %vm83, %v3357, %v3378
  %v3380 = vsel %vm85, %v3361, %v3379
  %v3381 = vsel %vm87, %v3365, %v3380
  %v3382 = vsel %vm89, %v3369, %v3381
  %v3383 = vsel %vm91, %v3373, %v3382
  %v3384 = vsel %vm93, %v3377, %v3383
  %v3386 = vlaneseq
  %v3387 = vshrl.u32 %v3386, 7
  %v3388 = vsub.s32 1, %v3387
  %v3389 = vrot.slane %v3319, %v3388
  %v3390 = vlaneseq
  %v3391 = vshrl.u32 %v3390, 7
  %v3392 = vsub.s32 1, %v3391
  %v3393 = vrot.slane %v3327, %v3392
  %v3394 = vlaneseq
  %v3395 = vshrl.u32 %v3394, 7
  %v3396 = vsub.s32 1, %v3395
  %v3397 = vrot.slane %v3326, %v3396
  %v3398 = vlaneseq
  %v3399 = vshrl.u32 %v3398, 7
  %v3400 = vsub.s32 1, %v3399
  %v3401 = vrot.slane %v3328, %v3400
  %v3402 = vlaneseq
  %v3403 = vshrl.u32 %v3402, 7
  %v3404 = vsub.s32 1, %v3403
  %v3405 = vrot.slane %v3336, %v3404
  %v3406 = vlaneseq
  %v3407 = vshrl.u32 %v3406, 7
  %v3408 = vsub.s32 1, %v3407
  %v3409 = vrot.slane %v3344, %v3408
  %v3410 = vlaneseq
  %v3411 = vshrl.u32 %v3410, 7
  %v3412 = vsub.s32 1, %v3411
  %v3413 = vrot.slane %v3343, %v3412
  %v3414 = vlaneseq
  %v3415 = vshrl.u32 %v3414, 7
  %v3416 = vsub.s32 1, %v3415
  %v3417 = vrot.slane %v3345, %v3416
  %v3418 = vsel %vm81, %v3393, %v3389
  %v3419 = vsel %vm83, %v3397, %v3418
  %v3420 = vsel %vm85, %v3401, %v3419
  %v3421 = vsel %vm87, %v3405, %v3420
  %v3422 = vsel %vm89, %v3409, %v3421
  %v3423 = vsel %vm91, %v3413, %v3422
  %v3424 = vsel %vm93, %v3417, %v3423
  %3425 = vrot.lane.b32.xlu0 %v3424, 4
  %v3426 = vpop.permute.xlu0 %3425
  %v3428 = vsel %vm138, %v3384, %v3426
  %v3429 = vld [vmem:[%s1 + $0x18] sm:$0xff]
  %v3430 = vld [vmem:[%s1 + $0xc2] sm:$0x1]
  %v3431 = vld [vmem:[%s1 + $0x48] sm:$0xff]
  %v3432 = vld [vmem:[%s1 + $0xc3] sm:$0x1]
  %3434 = vset.pattern.permute.xlu0 0
  %3435 = vperm.xlu0 %3434, %v3428
  %v3436 = vpop.permute.xlu0 %3435
  %v3438 = vlaneseq
  %v3439 = vshrl.u32 %v3438, 7
  %v3440 = vsub.s32 0, %v3439
  %v3441 = vrot.slane %v3429, %v3440
  %v3442 = vmul.f32 %v3436, %v3441
  %v3443 = vlaneseq
  %v3444 = vshrl.u32 %v3443, 7
  %v3445 = vsub.s32 0, %v3444
  %v3446 = vrot.slane %v3430, %v3445
  %v3447 = vadd.f32 %v3442, %v3446
  %3448 = vset.pattern.permute.xlu0 1
  %3449 = vperm.xlu0 %3448, %v3428
  %v3450 = vpop.permute.xlu0 %3449
  %v3452 = vlaneseq
  %v3453 = vshrl.u32 %v3452, 7
  %v3454 = vsub.s32 1, %v3453
  %v3455 = vrot.slane %v3429, %v3454
  %v3456 = vmul.f32 %v3450, %v3455
  %v3457 = vadd.f32 %v3447, %v3456
  %3458 = vset.pattern.permute.xlu0 2
  %3459 = vperm.xlu0 %3458, %v3428
  %v3460 = vpop.permute.xlu0 %3459
  %v3462 = vlaneseq
  %v3463 = vshrl.u32 %v3462, 7
  %v3464 = vsub.s32 2, %v3463
  %v3465 = vrot.slane %v3429, %v3464
  %v3466 = vmul.f32 %v3460, %v3465
  %v3467 = vadd.f32 %v3457, %v3466
  %3468 = vset.pattern.permute.xlu0 3
  %3469 = vperm.xlu0 %3468, %v3428
  %v3470 = vpop.permute.xlu0 %3469
  %v3472 = vlaneseq
  %v3473 = vshrl.u32 %v3472, 7
  %v3474 = vsub.s32 3, %v3473
  %v3475 = vrot.slane %v3429, %v3474
  %v3476 = vmul.f32 %v3470, %v3475
  %v3477 = vadd.f32 %v3467, %v3476
  %3478 = vset.pattern.permute.xlu0 4
  %3479 = vperm.xlu0 %3478, %v3428
  %v3480 = vpop.permute.xlu0 %3479
  %v3482 = vlaneseq
  %v3483 = vshrl.u32 %v3482, 7
  %v3484 = vsub.s32 4, %v3483
  %v3485 = vrot.slane %v3429, %v3484
  %v3486 = vmul.f32 %v3480, %v3485
  %v3487 = vadd.f32 %v3477, %v3486
  %3488 = vset.pattern.permute.xlu0 5
  %3489 = vperm.xlu0 %3488, %v3428
  %v3490 = vpop.permute.xlu0 %3489
  %v3492 = vlaneseq
  %v3493 = vshrl.u32 %v3492, 7
  %v3494 = vsub.s32 5, %v3493
  %v3495 = vrot.slane %v3429, %v3494
  %v3496 = vmul.f32 %v3490, %v3495
  %v3497 = vadd.f32 %v3487, %v3496
  %3498 = vset.pattern.permute.xlu0 6
  %3499 = vperm.xlu0 %3498, %v3428
  %v3500 = vpop.permute.xlu0 %3499
  %v3502 = vlaneseq
  %v3503 = vshrl.u32 %v3502, 7
  %v3504 = vsub.s32 6, %v3503
  %v3505 = vrot.slane %v3429, %v3504
  %v3506 = vmul.f32 %v3500, %v3505
  %v3507 = vadd.f32 %v3497, %v3506
  %3508 = vset.pattern.permute.xlu0 7
  %3509 = vperm.xlu0 %3508, %v3428
  %v3510 = vpop.permute.xlu0 %3509
  %v3512 = vlaneseq
  %v3513 = vshrl.u32 %v3512, 7
  %v3514 = vsub.s32 7, %v3513
  %v3515 = vrot.slane %v3429, %v3514
  %v3516 = vmul.f32 %v3510, %v3515
  %v3517 = vadd.f32 %v3507, %v3516
  %3519 = vrot.lane.b32.xlu0 %v3517, 120
  %v3520 = vpop.permute.xlu0 %3519
  %3522 = vrot.lane.b32.xlu0 %v3517, 8
  %v3523 = vpop.permute.xlu0 %3522
  %3525 = vrot.lane.b32.xlu0 %v3517, 16
  %v3526 = vpop.permute.xlu0 %3525
  %3528 = vrot.lane.b32.xlu0 %v3517, 24
  %v3529 = vpop.permute.xlu0 %3528
  %3531 = vrot.lane.b32.xlu0 %v3517, 32
  %v3532 = vpop.permute.xlu0 %3531
  %3534 = vrot.lane.b32.xlu0 %v3517, 40
  %v3535 = vpop.permute.xlu0 %3534
  %3537 = vrot.lane.b32.xlu0 %v3517, 48
  %v3538 = vpop.permute.xlu0 %3537
  %v3540 = vsel %vm251, %v3520, %v3517
  %v3541 = vsel %vm253, %v3540, %v3523
  %v3542 = vsel %vm255, %v3541, %v3526
  %v3543 = vsel %vm257, %v3542, %v3529
  %v3544 = vsel %vm259, %v3543, %v3532
  %v3545 = vsel %vm261, %v3544, %v3535
  %v3546 = vsel %vm263, %v3545, %v3538
  %3547 = vrot.lane.b32.xlu0 %v3517, 112
  %v3548 = vpop.permute.xlu0 %3547
  %v3550 = vsel %vm251, %v3548, %v3520
  %v3551 = vsel %vm253, %v3550, %v3517
  %v3552 = vsel %vm255, %v3551, %v3523
  %v3553 = vsel %vm257, %v3552, %v3526
  %v3554 = vsel %vm259, %v3553, %v3529
  %v3555 = vsel %vm261, %v3554, %v3532
  %v3556 = vsel %vm263, %v3555, %v3535
  %v3557 = vrot.slane %v3517, 1
  %3558 = vrot.lane.b32.xlu0 %v3557, 8
  %v3559 = vpop.permute.xlu0 %3558
  %v3561 = vrot.slane %v3517, 2
  %3562 = vrot.lane.b32.xlu0 %v3561, 16
  %v3563 = vpop.permute.xlu0 %3562
  %v3565 = vrot.slane %v3517, 3
  %3566 = vrot.lane.b32.xlu0 %v3565, 24
  %v3567 = vpop.permute.xlu0 %3566
  %v3569 = vrot.slane %v3517, 4
  %3570 = vrot.lane.b32.xlu0 %v3569, 32
  %v3571 = vpop.permute.xlu0 %3570
  %v3573 = vrot.slane %v3517, 5
  %3574 = vrot.lane.b32.xlu0 %v3573, 40
  %v3575 = vpop.permute.xlu0 %3574
  %v3577 = vrot.slane %v3517, 6
  %3578 = vrot.lane.b32.xlu0 %v3577, 48
  %v3579 = vpop.permute.xlu0 %3578
  %v3581 = vrot.slane %v3517, 7
  %3582 = vrot.lane.b32.xlu0 %v3581, 56
  %v3583 = vpop.permute.xlu0 %3582
  %v3585 = vsel %vm251, %v3517, %v3559
  %v3586 = vsel %vm253, %v3585, %v3563
  %v3587 = vsel %vm255, %v3586, %v3567
  %v3588 = vsel %vm257, %v3587, %v3571
  %v3589 = vsel %vm259, %v3588, %v3575
  %v3590 = vsel %vm261, %v3589, %v3579
  %v3591 = vsel %vm263, %v3590, %v3583
  %v3592 = vlaneseq
  %v3593 = vshrl.u32 %v3592, 7
  %v3594 = vsub.s32 0, %v3593
  %v3595 = vrot.slane %v3591, %v3594
  %v3596 = vmul.f32 %v3595, %v3546
  %v3597 = vsel %vm315, %v3596, -inf
  %v3598 = vrot.slane %v3597, 4
  %v3599 = vmax.f32 %v3597, %v3598
  %v3600 = vrot.slane %v3599, 2
  %v3601 = vmax.f32 %v3599, %v3600
  %v3602 = vrot.slane %v3601, 1
  %v3603 = vmax.f32 %v3601, %v3602
  %v3604 = vsub.f32 %v3596, %v3603
  %v3605 = vmul.f32 %v3604, 1.442695
  %v3606 = vpow.pop %v3605
  %v3607 = vsel %vm315, %v3606, 0.0
  %v3608 = vrot.slane %v3607, 4
  %v3609 = vadd.f32 %v3607, %v3608
  %v3610 = vrot.slane %v3609, 2
  %v3611 = vadd.f32 %v3609, %v3610
  %v3612 = vrot.slane %v3611, 1
  %v3613 = vadd.f32 %v3611, %v3612
  %v3614 = vrcp.pop %v3613
  %v3615 = vmul.f32 %v3606, %v3614
  %v3616 = vmul.f32 %v3615, %v3556
  %v3617 = vsel %vm315, %v3616, 0.0
  %v3618 = vrot.slane %v3617, 4
  %v3619 = vadd.f32 %v3617, %v3618
  %v3620 = vrot.slane %v3619, 2
  %v3621 = vadd.f32 %v3619, %v3620
  %v3622 = vrot.slane %v3621, 1
  %v3623 = vadd.f32 %v3621, %v3622
  %3625 = vrot.lane.b32.xlu0 %v3623, 120
  %v3626 = vpop.permute.xlu0 %3625
  %3628 = vrot.lane.b32.xlu0 %v3623, 112
  %v3629 = vpop.permute.xlu0 %3628
  %3631 = vrot.lane.b32.xlu0 %v3623, 104
  %v3632 = vpop.permute.xlu0 %3631
  %3634 = vrot.lane.b32.xlu0 %v3623, 96
  %v3635 = vpop.permute.xlu0 %3634
  %3637 = vrot.lane.b32.xlu0 %v3623, 88
  %v3638 = vpop.permute.xlu0 %3637
  %3640 = vrot.lane.b32.xlu0 %v3623, 80
  %v3641 = vpop.permute.xlu0 %3640
  %3643 = vrot.lane.b32.xlu0 %v3623, 72
  %v3644 = vpop.permute.xlu0 %3643
  %v3646 = vsel %vm365, %v3623, %v3626
  %v3647 = vsel %vm367, %v3646, %v3629
  %v3648 = vsel %vm369, %v3647, %v3632
  %v3649 = vsel %vm371, %v3648, %v3635
  %v3650 = vsel %vm373, %v3649, %v3638
  %v3651 = vsel %vm375, %v3650, %v3641
  %v3652 = vsel %vm377, %v3651, %v3644
  %3654 = vset.pattern.permute.xlu0 0
  %3655 = vperm.xlu0 %3654, %v3652
  %v3656 = vpop.permute.xlu0 %3655
  %v3658 = vlaneseq
  %v3659 = vshrl.u32 %v3658, 7
  %v3660 = vsub.s32 0, %v3659
  %v3661 = vrot.slane %v3431, %v3660
  %v3662 = vmul.f32 %v3656, %v3661
  %v3663 = vlaneseq
  %v3664 = vshrl.u32 %v3663, 7
  %v3665 = vsub.s32 0, %v3664
  %v3666 = vrot.slane %v3432, %v3665
  %v3667 = vadd.f32 %v3662, %v3666
  %3668 = vset.pattern.permute.xlu0 1
  %3669 = vperm.xlu0 %3668, %v3652
  %v3670 = vpop.permute.xlu0 %3669
  %v3672 = vlaneseq
  %v3673 = vshrl.u32 %v3672, 7
  %v3674 = vsub.s32 1, %v3673
  %v3675 = vrot.slane %v3431, %v3674
  %v3676 = vmul.f32 %v3670, %v3675
  %v3677 = vadd.f32 %v3667, %v3676
  %3678 = vset.pattern.permute.xlu0 2
  %3679 = vperm.xlu0 %3678, %v3652
  %v3680 = vpop.permute.xlu0 %3679
  %v3682 = vlaneseq
  %v3683 = vshrl.u32 %v3682, 7
  %v3684 = vsub.s32 2, %v3683
  %v3685 = vrot.slane %v3431, %v3684
  %v3686 = vmul.f32 %v3680, %v3685
  %v3687 = vadd.f32 %v3677, %v3686
  %3688 = vset.pattern.permute.xlu0 3
  %3689 = vperm.xlu0 %3688, %v3652
  %v3690 = vpop.permute.xlu0 %3689
  %v3692 = vlaneseq
  %v3693 = vshrl.u32 %v3692, 7
  %v3694 = vsub.s32 3, %v3693
  %v3695 = vrot.slane %v3431, %v3694
  %v3696 = vmul.f32 %v3690, %v3695
  %v3697 = vadd.f32 %v3687, %v3696
  %3698 = vset.pattern.permute.xlu0 4
  %3699 = vperm.xlu0 %3698, %v3652
  %v3700 = vpop.permute.xlu0 %3699
  %v3702 = vlaneseq
  %v3703 = vshrl.u32 %v3702, 7
  %v3704 = vsub.s32 4, %v3703
  %v3705 = vrot.slane %v3431, %v3704
  %v3706 = vmul.f32 %v3700, %v3705
  %v3707 = vadd.f32 %v3697, %v3706
  %3708 = vset.pattern.permute.xlu0 5
  %3709 = vperm.xlu0 %3708, %v3652
  %v3710 = vpop.permute.xlu0 %3709
  %v3712 = vlaneseq
  %v3713 = vshrl.u32 %v3712, 7
  %v3714 = vsub.s32 5, %v3713
  %v3715 = vrot.slane %v3431, %v3714
  %v3716 = vmul.f32 %v3710, %v3715
  %v3717 = vadd.f32 %v3707, %v3716
  %3718 = vset.pattern.permute.xlu0 6
  %3719 = vperm.xlu0 %3718, %v3652
  %v3720 = vpop.permute.xlu0 %3719
  %v3722 = vlaneseq
  %v3723 = vshrl.u32 %v3722, 7
  %v3724 = vsub.s32 6, %v3723
  %v3725 = vrot.slane %v3431, %v3724
  %v3726 = vmul.f32 %v3720, %v3725
  %v3727 = vadd.f32 %v3717, %v3726
  %3728 = vset.pattern.permute.xlu0 7
  %3729 = vperm.xlu0 %3728, %v3652
  %v3730 = vpop.permute.xlu0 %3729
  %v3732 = vlaneseq
  %v3733 = vshrl.u32 %v3732, 7
  %v3734 = vsub.s32 7, %v3733
  %v3735 = vrot.slane %v3431, %v3734
  %v3736 = vmul.f32 %v3730, %v3735
  %v3737 = vadd.f32 %v3727, %v3736
  %v3739 = vcombine.high %v3737, %v3737
  %v3741 = vunpack.c.l.s4 1966171168
  %v3742 = vunpack.c.0.s8 %v3741
  %v3743 = vlaneseq
  %v3744 = vshrl.u32 %v3743, 7
  %v3745 = vsub.s32 %v3742, %v3744
  %v3746 = vrot.slane %v3737, %v3745
  %v3748 = vunpack.c.l.s4 1966171168
  %v3749 = vunpack.c.0.s8 %v3748
  %v3750 = vlaneseq
  %v3751 = vshrl.u32 %v3750, 7
  %v3752 = vsub.s32 %v3749, %v3751
  %v3753 = vrot.slane %v3739, %v3752
  %v3754 = vcombine.high %v3746, %v3746
  %v3755 = vcombine.high %v3753, %v3753
  %v3757 = vunpack.c.l.s4 1966171168
  %v3758 = vunpack.c.0.s8 %v3757
  %v3759 = vlaneseq
  %v3760 = vshrl.u32 %v3759, 7
  %v3761 = vsub.s32 %v3758, %v3760
  %v3762 = vrot.slane %v3746, %v3761
  %v3764 = vunpack.c.l.s4 1966171168
  %v3765 = vunpack.c.0.s8 %v3764
  %v3766 = vlaneseq
  %v3767 = vshrl.u32 %v3766, 7
  %v3768 = vsub.s32 %v3765, %v3767
  %v3769 = vrot.slane %v3753, %v3768
  %v3771 = vunpack.c.l.s4 1966171168
  %v3772 = vunpack.c.0.s8 %v3771
  %v3773 = vlaneseq
  %v3774 = vshrl.u32 %v3773, 7
  %v3775 = vsub.s32 %v3772, %v3774
  %v3776 = vrot.slane %v3754, %v3775
  %v3778 = vunpack.c.l.s4 1966171168
  %v3779 = vunpack.c.0.s8 %v3778
  %v3780 = vlaneseq
  %v3781 = vshrl.u32 %v3780, 7
  %v3782 = vsub.s32 %v3779, %v3781
  %v3783 = vrot.slane %v3755, %v3782
  %v3784 = vcombine.high %v3762, %v3762
  %v3785 = vcombine.high %v3769, %v3769
  %v3786 = vcombine.high %v3776, %v3776
  %v3787 = vcombine.high %v3783, %v3783
  %v3796 = vlaneseq
  %v3797 = vshrl.u32 %v3796, 7
  %v3798 = vsub.s32 0, %v3797
  %v3799 = vrot.slane %v3762, %v3798
  %v3800 = vlaneseq
  %v3801 = vshrl.u32 %v3800, 7
  %v3802 = vsub.s32 0, %v3801
  %v3803 = vrot.slane %v3776, %v3802
  %v3804 = vlaneseq
  %v3805 = vshrl.u32 %v3804, 7
  %v3806 = vsub.s32 0, %v3805
  %v3807 = vrot.slane %v3784, %v3806
  %v3808 = vlaneseq
  %v3809 = vshrl.u32 %v3808, 7
  %v3810 = vsub.s32 0, %v3809
  %v3811 = vrot.slane %v3786, %v3810
  %v3812 = vlaneseq
  %v3813 = vshrl.u32 %v3812, 7
  %v3814 = vsub.s32 0, %v3813
  %v3815 = vrot.slane %v3769, %v3814
  %v3816 = vlaneseq
  %v3817 = vshrl.u32 %v3816, 7
  %v3818 = vsub.s32 0, %v3817
  %v3819 = vrot.slane %v3783, %v3818
  %v3820 = vlaneseq
  %v3821 = vshrl.u32 %v3820, 7
  %v3822 = vsub.s32 0, %v3821
  %v3823 = vrot.slane %v3785, %v3822
  %v3824 = vlaneseq
  %v3825 = vshrl.u32 %v3824, 7
  %v3826 = vsub.s32 0, %v3825
  %v3827 = vrot.slane %v3787, %v3826
  %3828 = vrot.lane.b32.xlu0 %v3799, 124
  %v3829 = vpop.permute.xlu0 %3828
  %3830 = vrot.lane.b32.xlu0 %v3803, 124
  %v3831 = vpop.permute.xlu0 %3830
  %3832 = vrot.lane.b32.xlu0 %v3807, 124
  %v3833 = vpop.permute.xlu0 %3832
  %3834 = vrot.lane.b32.xlu0 %v3811, 124
  %v3835 = vpop.permute.xlu0 %3834
  %3836 = vrot.lane.b32.xlu0 %v3815, 124
  %v3837 = vpop.permute.xlu0 %3836
  %3838 = vrot.lane.b32.xlu0 %v3819, 124
  %v3839 = vpop.permute.xlu0 %3838
  %3840 = vrot.lane.b32.xlu0 %v3823, 124
  %v3841 = vpop.permute.xlu0 %3840
  %3842 = vrot.lane.b32.xlu0 %v3827, 124
  %v3843 = vpop.permute.xlu0 %3842
  %v3852 = vsel %vm365, %v3762, %v3829
  %v3853 = vsel %vm365, %v3776, %v3831
  %v3854 = vsel %vm365, %v3784, %v3833
  %v3855 = vsel %vm365, %v3786, %v3835
  %v3856 = vsel %vm365, %v3769, %v3837
  %v3857 = vsel %vm365, %v3783, %v3839
  %v3858 = vsel %vm365, %v3785, %v3841
  %v3859 = vsel %vm365, %v3787, %v3843
  %v3868 = vcombine.low %v3852, %v3853
  %v3869 = vcombine.low %v3854, %v3855
  %v3871 = vunpack.c.l.s4 1983009808
  %v3872 = vunpack.c.0.s8 %v3871
  %v3873 = vlaneseq
  %v3874 = vshrl.u32 %v3873, 7
  %v3875 = vsub.s32 %v3872, %v3874
  %v3876 = vrot.slane %v3868, %v3875
  %v3878 = vunpack.c.l.s4 1983009808
  %v3879 = vunpack.c.0.s8 %v3878
  %v3880 = vlaneseq
  %v3881 = vshrl.u32 %v3880, 7
  %v3882 = vsub.s32 %v3879, %v3881
  %v3883 = vrot.slane %v3869, %v3882
  %v3884 = vcombine.low %v3876, %v3883
  %v3885 = vcombine.low %v3856, %v3857
  %v3886 = vcombine.low %v3858, %v3859
  %v3888 = vunpack.c.l.s4 1983009808
  %v3889 = vunpack.c.0.s8 %v3888
  %v3890 = vlaneseq
  %v3891 = vshrl.u32 %v3890, 7
  %v3892 = vsub.s32 %v3889, %v3891
  %v3893 = vrot.slane %v3885, %v3892
  %v3895 = vunpack.c.l.s4 1983009808
  %v3896 = vunpack.c.0.s8 %v3895
  %v3897 = vlaneseq
  %v3898 = vshrl.u32 %v3897, 7
  %v3899 = vsub.s32 %v3896, %v3898
  %v3900 = vrot.slane %v3886, %v3899
  %v3901 = vcombine.low %v3893, %v3900
  %v3904 = vadd.f32 %v3308, %v3884
  %v3905 = vadd.f32 %v3309, %v3901
  %v3906 = vld [vmem:[%s1 + $0xc8] sm:$0x1]
  %v3907 = vld [vmem:[%s1 + $0xc9] sm:$0x1]
  %v3908 = vsel %vm138, %v3904, 0.0
  %3909 = vadd.xlane.f32.xlu0 %v3908
  %v3910 = vpop.xlane.xlu0 %3909
  %v3911 = vsel %vm138, %v3905, 0.0
  %3912 = vadd.xlane.f32.xlu0 %v3911
  %v3913 = vpop.xlane.xlu0 %3912
  %v3914 = vmul.f32 %v3910, %v640
  %v3915 = vmul.f32 %v3913, %v640
  %v3916 = vsub.f32 %v3904, %v3914
  %v3917 = vsub.f32 %v3905, %v3915
  %v3918 = vmul.f32 %v3916, %v3916
  %v3919 = vmul.f32 %v3917, %v3917
  %v3920 = vsel %vm138, %v3918, 0.0
  %3921 = vadd.xlane.f32.xlu0 %v3920
  %v3922 = vpop.xlane.xlu0 %3921
  %v3923 = vsel %vm138, %v3919, 0.0
  %3924 = vadd.xlane.f32.xlu0 %v3923
  %v3925 = vpop.xlane.xlu0 %3924
  %v3926 = vmul.f32 %v3922, %v640
  %v3927 = vmul.f32 %v3925, %v640
  %v3928 = vadd.f32 %v3926, 1e-05
  %v3929 = vadd.f32 %v3927, 1e-05
  %v3930 = vrsqrt.pop %v3928
  %v3931 = vrsqrt.pop %v3929
  %v3932 = vmul.f32 %v3916, %v3930
  %v3933 = vmul.f32 %v3917, %v3931
  %v3934 = vlaneseq
  %v3935 = vshrl.u32 %v3934, 7
  %v3936 = vsub.s32 0, %v3935
  %v3937 = vrot.slane %v3906, %v3936
  %v3938 = vmul.f32 %v3932, %v3937
  %v3939 = vmul.f32 %v3933, %v3937
  %v3940 = vlaneseq
  %v3941 = vshrl.u32 %v3940, 7
  %v3942 = vsub.s32 0, %v3941
  %v3943 = vrot.slane %v3907, %v3942
  %v3944 = vadd.f32 %v3938, %v3943
  %v3945 = vadd.f32 %v3939, %v3943
  %v3948 = vcombine.high %v3944, %v3944
  %v3950 = vunpack.c.l.s4 1983009808
  %v3951 = vunpack.c.0.s8 %v3950
  %v3952 = vlaneseq
  %v3953 = vshrl.u32 %v3952, 7
  %v3954 = vsub.s32 %v3951, %v3953
  %v3955 = vrot.slane %v3944, %v3954
  %v3957 = vunpack.c.l.s4 1983009808
  %v3958 = vunpack.c.0.s8 %v3957
  %v3959 = vlaneseq
  %v3960 = vshrl.u32 %v3959, 7
  %v3961 = vsub.s32 %v3958, %v3960
  %v3962 = vrot.slane %v3948, %v3961
  %v3963 = vcombine.high %v3955, %v3955
  %v3964 = vcombine.high %v3962, %v3962
  %v3965 = vcombine.high %v3945, %v3945
  %v3967 = vunpack.c.l.s4 1983009808
  %v3968 = vunpack.c.0.s8 %v3967
  %v3969 = vlaneseq
  %v3970 = vshrl.u32 %v3969, 7
  %v3971 = vsub.s32 %v3968, %v3970
  %v3972 = vrot.slane %v3945, %v3971
  %v3974 = vunpack.c.l.s4 1983009808
  %v3975 = vunpack.c.0.s8 %v3974
  %v3976 = vlaneseq
  %v3977 = vshrl.u32 %v3976, 7
  %v3978 = vsub.s32 %v3975, %v3977
  %v3979 = vrot.slane %v3965, %v3978
  %v3980 = vcombine.high %v3972, %v3972
  %v3981 = vcombine.high %v3979, %v3979
  %v3982 = vlaneseq
  %v3983 = vshrl.u32 %v3982, 7
  %v3984 = vsub.s32 0, %v3983
  %v3985 = vrot.slane %v3955, %v3984
  %v3986 = vlaneseq
  %v3987 = vshrl.u32 %v3986, 7
  %v3988 = vsub.s32 0, %v3987
  %v3989 = vrot.slane %v3963, %v3988
  %v3990 = vlaneseq
  %v3991 = vshrl.u32 %v3990, 7
  %v3992 = vsub.s32 0, %v3991
  %v3993 = vrot.slane %v3962, %v3992
  %v3994 = vlaneseq
  %v3995 = vshrl.u32 %v3994, 7
  %v3996 = vsub.s32 0, %v3995
  %v3997 = vrot.slane %v3964, %v3996
  %v3998 = vlaneseq
  %v3999 = vshrl.u32 %v3998, 7
  %v4000 = vsub.s32 0, %v3999
  %v4001 = vrot.slane %v3972, %v4000
  %v4002 = vlaneseq
  %v4003 = vshrl.u32 %v4002, 7
  %v4004 = vsub.s32 0, %v4003
  %v4005 = vrot.slane %v3980, %v4004
  %v4006 = vlaneseq
  %v4007 = vshrl.u32 %v4006, 7
  %v4008 = vsub.s32 0, %v4007
  %v4009 = vrot.slane %v3979, %v4008
  %v4010 = vlaneseq
  %v4011 = vshrl.u32 %v4010, 7
  %v4012 = vsub.s32 0, %v4011
  %v4013 = vrot.slane %v3981, %v4012
  %v4014 = vsel %vm81, %v3989, %v3985
  %v4015 = vsel %vm83, %v3993, %v4014
  %v4016 = vsel %vm85, %v3997, %v4015
  %v4017 = vsel %vm87, %v4001, %v4016
  %v4018 = vsel %vm89, %v4005, %v4017
  %v4019 = vsel %vm91, %v4009, %v4018
  %v4020 = vsel %vm93, %v4013, %v4019
  %v4022 = vlaneseq
  %v4023 = vshrl.u32 %v4022, 7
  %v4024 = vsub.s32 1, %v4023
  %v4025 = vrot.slane %v3955, %v4024
  %v4026 = vlaneseq
  %v4027 = vshrl.u32 %v4026, 7
  %v4028 = vsub.s32 1, %v4027
  %v4029 = vrot.slane %v3963, %v4028
  %v4030 = vlaneseq
  %v4031 = vshrl.u32 %v4030, 7
  %v4032 = vsub.s32 1, %v4031
  %v4033 = vrot.slane %v3962, %v4032
  %v4034 = vlaneseq
  %v4035 = vshrl.u32 %v4034, 7
  %v4036 = vsub.s32 1, %v4035
  %v4037 = vrot.slane %v3964, %v4036
  %v4038 = vlaneseq
  %v4039 = vshrl.u32 %v4038, 7
  %v4040 = vsub.s32 1, %v4039
  %v4041 = vrot.slane %v3972, %v4040
  %v4042 = vlaneseq
  %v4043 = vshrl.u32 %v4042, 7
  %v4044 = vsub.s32 1, %v4043
  %v4045 = vrot.slane %v3980, %v4044
  %v4046 = vlaneseq
  %v4047 = vshrl.u32 %v4046, 7
  %v4048 = vsub.s32 1, %v4047
  %v4049 = vrot.slane %v3979, %v4048
  %v4050 = vlaneseq
  %v4051 = vshrl.u32 %v4050, 7
  %v4052 = vsub.s32 1, %v4051
  %v4053 = vrot.slane %v3981, %v4052
  %v4054 = vsel %vm81, %v4029, %v4025
  %v4055 = vsel %vm83, %v4033, %v4054
  %v4056 = vsel %vm85, %v4037, %v4055
  %v4057 = vsel %vm87, %v4041, %v4056
  %v4058 = vsel %vm89, %v4045, %v4057
  %v4059 = vsel %vm91, %v4049, %v4058
  %v4060 = vsel %vm93, %v4053, %v4059
  %4061 = vrot.lane.b32.xlu0 %v4060, 4
  %v4062 = vpop.permute.xlu0 %4061
  %v4064 = vsel %vm138, %v4020, %v4062
  %v4065 = vld [vmem:[%s1 + $0x28] sm:$0xff]
  %v4066 = vld [vmem:[%s1 + $0xc4] sm:$0x1]
  %v4067 = vld [vmem:[%s1 + $0x58] sm:$0xff]
  %v4068 = vld [vmem:[%s1 + $0xc5] sm:$0x1]
  %4070 = vset.pattern.permute.xlu0 0
  %4071 = vperm.xlu0 %4070, %v4064
  %v4072 = vpop.permute.xlu0 %4071
  %v4074 = vlaneseq
  %v4075 = vshrl.u32 %v4074, 7
  %v4076 = vsub.s32 0, %v4075
  %v4077 = vrot.slane %v4065, %v4076
  %v4078 = vmul.f32 %v4072, %v4077
  %v4079 = vlaneseq
  %v4080 = vshrl.u32 %v4079, 7
  %v4081 = vsub.s32 0, %v4080
  %v4082 = vrot.slane %v4066, %v4081
  %v4083 = vadd.f32 %v4078, %v4082
  %4084 = vset.pattern.permute.xlu0 1
  %4085 = vperm.xlu0 %4084, %v4064
  %v4086 = vpop.permute.xlu0 %4085
  %v4088 = vlaneseq
  %v4089 = vshrl.u32 %v4088, 7
  %v4090 = vsub.s32 1, %v4089
  %v4091 = vrot.slane %v4065, %v4090
  %v4092 = vmul.f32 %v4086, %v4091
  %v4093 = vadd.f32 %v4083, %v4092
  %4094 = vset.pattern.permute.xlu0 2
  %4095 = vperm.xlu0 %4094, %v4064
  %v4096 = vpop.permute.xlu0 %4095
  %v4098 = vlaneseq
  %v4099 = vshrl.u32 %v4098, 7
  %v4100 = vsub.s32 2, %v4099
  %v4101 = vrot.slane %v4065, %v4100
  %v4102 = vmul.f32 %v4096, %v4101
  %v4103 = vadd.f32 %v4093, %v4102
  %4104 = vset.pattern.permute.xlu0 3
  %4105 = vperm.xlu0 %4104, %v4064
  %v4106 = vpop.permute.xlu0 %4105
  %v4108 = vlaneseq
  %v4109 = vshrl.u32 %v4108, 7
  %v4110 = vsub.s32 3, %v4109
  %v4111 = vrot.slane %v4065, %v4110
  %v4112 = vmul.f32 %v4106, %v4111
  %v4113 = vadd.f32 %v4103, %v4112
  %4114 = vset.pattern.permute.xlu0 4
  %4115 = vperm.xlu0 %4114, %v4064
  %v4116 = vpop.permute.xlu0 %4115
  %v4118 = vlaneseq
  %v4119 = vshrl.u32 %v4118, 7
  %v4120 = vsub.s32 4, %v4119
  %v4121 = vrot.slane %v4065, %v4120
  %v4122 = vmul.f32 %v4116, %v4121
  %v4123 = vadd.f32 %v4113, %v4122
  %4124 = vset.pattern.permute.xlu0 5
  %4125 = vperm.xlu0 %4124, %v4064
  %v4126 = vpop.permute.xlu0 %4125
  %v4128 = vlaneseq
  %v4129 = vshrl.u32 %v4128, 7
  %v4130 = vsub.s32 5, %v4129
  %v4131 = vrot.slane %v4065, %v4130
  %v4132 = vmul.f32 %v4126, %v4131
  %v4133 = vadd.f32 %v4123, %v4132
  %4134 = vset.pattern.permute.xlu0 6
  %4135 = vperm.xlu0 %4134, %v4064
  %v4136 = vpop.permute.xlu0 %4135
  %v4138 = vlaneseq
  %v4139 = vshrl.u32 %v4138, 7
  %v4140 = vsub.s32 6, %v4139
  %v4141 = vrot.slane %v4065, %v4140
  %v4142 = vmul.f32 %v4136, %v4141
  %v4143 = vadd.f32 %v4133, %v4142
  %4144 = vset.pattern.permute.xlu0 7
  %4145 = vperm.xlu0 %4144, %v4064
  %v4146 = vpop.permute.xlu0 %4145
  %v4148 = vlaneseq
  %v4149 = vshrl.u32 %v4148, 7
  %v4150 = vsub.s32 7, %v4149
  %v4151 = vrot.slane %v4065, %v4150
  %v4152 = vmul.f32 %v4146, %v4151
  %v4153 = vadd.f32 %v4143, %v4152
  %v4154 = vmul.f32 %v2611, %v4077
  %v4155 = vadd.f32 %v4154, %v4082
  %v4156 = vmul.f32 %v2617, %v4091
  %v4157 = vadd.f32 %v4155, %v4156
  %v4158 = vmul.f32 %v2623, %v4101
  %v4159 = vadd.f32 %v4157, %v4158
  %v4160 = vmul.f32 %v2629, %v4111
  %v4161 = vadd.f32 %v4159, %v4160
  %v4162 = vmul.f32 %v2635, %v4121
  %v4163 = vadd.f32 %v4161, %v4162
  %v4164 = vmul.f32 %v2641, %v4131
  %v4165 = vadd.f32 %v4163, %v4164
  %v4166 = vmul.f32 %v2647, %v4141
  %v4167 = vadd.f32 %v4165, %v4166
  %v4168 = vmul.f32 %v2653, %v4151
  %v4169 = vadd.f32 %v4167, %v4168
  %4171 = vrot.lane.b32.xlu0 %v4169, 120
  %v4172 = vpop.permute.xlu0 %4171
  %4174 = vrot.lane.b32.xlu0 %v4169, 8
  %v4175 = vpop.permute.xlu0 %4174
  %4177 = vrot.lane.b32.xlu0 %v4169, 16
  %v4178 = vpop.permute.xlu0 %4177
  %4180 = vrot.lane.b32.xlu0 %v4169, 24
  %v4181 = vpop.permute.xlu0 %4180
  %4183 = vrot.lane.b32.xlu0 %v4169, 32
  %v4184 = vpop.permute.xlu0 %4183
  %4186 = vrot.lane.b32.xlu0 %v4169, 40
  %v4187 = vpop.permute.xlu0 %4186
  %4189 = vrot.lane.b32.xlu0 %v4169, 48
  %v4190 = vpop.permute.xlu0 %4189
  %v4192 = vsel %vm251, %v4172, %v4169
  %v4193 = vsel %vm253, %v4192, %v4175
  %v4194 = vsel %vm255, %v4193, %v4178
  %v4195 = vsel %vm257, %v4194, %v4181
  %v4196 = vsel %vm259, %v4195, %v4184
  %v4197 = vsel %vm261, %v4196, %v4187
  %v4198 = vsel %vm263, %v4197, %v4190
  %4199 = vrot.lane.b32.xlu0 %v4169, 112
  %v4200 = vpop.permute.xlu0 %4199
  %v4202 = vsel %vm251, %v4200, %v4172
  %v4203 = vsel %vm253, %v4202, %v4169
  %v4204 = vsel %vm255, %v4203, %v4175
  %v4205 = vsel %vm257, %v4204, %v4178
  %v4206 = vsel %vm259, %v4205, %v4181
  %v4207 = vsel %vm261, %v4206, %v4184
  %v4208 = vsel %vm263, %v4207, %v4187
  %v4210 = vrot.slane %v4153, 1
  %4211 = vrot.lane.b32.xlu0 %v4210, 8
  %v4212 = vpop.permute.xlu0 %4211
  %v4214 = vrot.slane %v4153, 2
  %4215 = vrot.lane.b32.xlu0 %v4214, 16
  %v4216 = vpop.permute.xlu0 %4215
  %v4218 = vrot.slane %v4153, 3
  %4219 = vrot.lane.b32.xlu0 %v4218, 24
  %v4220 = vpop.permute.xlu0 %4219
  %v4222 = vrot.slane %v4153, 4
  %4223 = vrot.lane.b32.xlu0 %v4222, 32
  %v4224 = vpop.permute.xlu0 %4223
  %v4226 = vrot.slane %v4153, 5
  %4227 = vrot.lane.b32.xlu0 %v4226, 40
  %v4228 = vpop.permute.xlu0 %4227
  %v4230 = vrot.slane %v4153, 6
  %4231 = vrot.lane.b32.xlu0 %v4230, 48
  %v4232 = vpop.permute.xlu0 %4231
  %v4234 = vrot.slane %v4153, 7
  %4235 = vrot.lane.b32.xlu0 %v4234, 56
  %v4236 = vpop.permute.xlu0 %4235
  %v4238 = vsel %vm251, %v4153, %v4212
  %v4239 = vsel %vm253, %v4238, %v4216
  %v4240 = vsel %vm255, %v4239, %v4220
  %v4241 = vsel %vm257, %v4240, %v4224
  %v4242 = vsel %vm259, %v4241, %v4228
  %v4243 = vsel %vm261, %v4242, %v4232
  %v4244 = vsel %vm263, %v4243, %v4236
  %v4245 = vlaneseq
  %v4246 = vshrl.u32 %v4245, 7
  %v4247 = vsub.s32 0, %v4246
  %v4248 = vrot.slane %v4244, %v4247
  %v4249 = vmul.f32 %v4248, %v4198
  %v4250 = vsel %vm315, %v4249, -inf
  %v4251 = vrot.slane %v4250, 4
  %v4252 = vmax.f32 %v4250, %v4251
  %v4253 = vrot.slane %v4252, 2
  %v4254 = vmax.f32 %v4252, %v4253
  %v4255 = vrot.slane %v4254, 1
  %v4256 = vmax.f32 %v4254, %v4255
  %v4257 = vsub.f32 %v4249, %v4256
  %v4258 = vmul.f32 %v4257, 1.442695
  %v4259 = vpow.pop %v4258
  %v4260 = vsel %vm315, %v4259, 0.0
  %v4261 = vrot.slane %v4260, 4
  %v4262 = vadd.f32 %v4260, %v4261
  %v4263 = vrot.slane %v4262, 2
  %v4264 = vadd.f32 %v4262, %v4263
  %v4265 = vrot.slane %v4264, 1
  %v4266 = vadd.f32 %v4264, %v4265
  %v4267 = vrcp.pop %v4266
  %v4268 = vmul.f32 %v4259, %v4267
  %v4269 = vmul.f32 %v4268, %v4208
  %v4270 = vsel %vm315, %v4269, 0.0
  %v4271 = vrot.slane %v4270, 4
  %v4272 = vadd.f32 %v4270, %v4271
  %v4273 = vrot.slane %v4272, 2
  %v4274 = vadd.f32 %v4272, %v4273
  %v4275 = vrot.slane %v4274, 1
  %v4276 = vadd.f32 %v4274, %v4275
  %4278 = vrot.lane.b32.xlu0 %v4276, 120
  %v4279 = vpop.permute.xlu0 %4278
  %4281 = vrot.lane.b32.xlu0 %v4276, 112
  %v4282 = vpop.permute.xlu0 %4281
  %4284 = vrot.lane.b32.xlu0 %v4276, 104
  %v4285 = vpop.permute.xlu0 %4284
  %4287 = vrot.lane.b32.xlu0 %v4276, 96
  %v4288 = vpop.permute.xlu0 %4287
  %4290 = vrot.lane.b32.xlu0 %v4276, 88
  %v4291 = vpop.permute.xlu0 %4290
  %4293 = vrot.lane.b32.xlu0 %v4276, 80
  %v4294 = vpop.permute.xlu0 %4293
  %4296 = vrot.lane.b32.xlu0 %v4276, 72
  %v4297 = vpop.permute.xlu0 %4296
  %v4299 = vsel %vm365, %v4276, %v4279
  %v4300 = vsel %vm367, %v4299, %v4282
  %v4301 = vsel %vm369, %v4300, %v4285
  %v4302 = vsel %vm371, %v4301, %v4288
  %v4303 = vsel %vm373, %v4302, %v4291
  %v4304 = vsel %vm375, %v4303, %v4294
  %v4305 = vsel %vm377, %v4304, %v4297
  %4307 = vset.pattern.permute.xlu0 0
  %4308 = vperm.xlu0 %4307, %v4305
  %v4309 = vpop.permute.xlu0 %4308
  %v4311 = vlaneseq
  %v4312 = vshrl.u32 %v4311, 7
  %v4313 = vsub.s32 0, %v4312
  %v4314 = vrot.slane %v4067, %v4313
  %v4315 = vmul.f32 %v4309, %v4314
  %v4316 = vlaneseq
  %v4317 = vshrl.u32 %v4316, 7
  %v4318 = vsub.s32 0, %v4317
  %v4319 = vrot.slane %v4068, %v4318
  %v4320 = vadd.f32 %v4315, %v4319
  %4321 = vset.pattern.permute.xlu0 1
  %4322 = vperm.xlu0 %4321, %v4305
  %v4323 = vpop.permute.xlu0 %4322
  %v4325 = vlaneseq
  %v4326 = vshrl.u32 %v4325, 7
  %v4327 = vsub.s32 1, %v4326
  %v4328 = vrot.slane %v4067, %v4327
  %v4329 = vmul.f32 %v4323, %v4328
  %v4330 = vadd.f32 %v4320, %v4329
  %4331 = vset.pattern.permute.xlu0 2
  %4332 = vperm.xlu0 %4331, %v4305
  %v4333 = vpop.permute.xlu0 %4332
  %v4335 = vlaneseq
  %v4336 = vshrl.u32 %v4335, 7
  %v4337 = vsub.s32 2, %v4336
  %v4338 = vrot.slane %v4067, %v4337
  %v4339 = vmul.f32 %v4333, %v4338
  %v4340 = vadd.f32 %v4330, %v4339
  %4341 = vset.pattern.permute.xlu0 3
  %4342 = vperm.xlu0 %4341, %v4305
  %v4343 = vpop.permute.xlu0 %4342
  %v4345 = vlaneseq
  %v4346 = vshrl.u32 %v4345, 7
  %v4347 = vsub.s32 3, %v4346
  %v4348 = vrot.slane %v4067, %v4347
  %v4349 = vmul.f32 %v4343, %v4348
  %v4350 = vadd.f32 %v4340, %v4349
  %4351 = vset.pattern.permute.xlu0 4
  %4352 = vperm.xlu0 %4351, %v4305
  %v4353 = vpop.permute.xlu0 %4352
  %v4355 = vlaneseq
  %v4356 = vshrl.u32 %v4355, 7
  %v4357 = vsub.s32 4, %v4356
  %v4358 = vrot.slane %v4067, %v4357
  %v4359 = vmul.f32 %v4353, %v4358
  %v4360 = vadd.f32 %v4350, %v4359
  %4361 = vset.pattern.permute.xlu0 5
  %4362 = vperm.xlu0 %4361, %v4305
  %v4363 = vpop.permute.xlu0 %4362
  %v4365 = vlaneseq
  %v4366 = vshrl.u32 %v4365, 7
  %v4367 = vsub.s32 5, %v4366
  %v4368 = vrot.slane %v4067, %v4367
  %v4369 = vmul.f32 %v4363, %v4368
  %v4370 = vadd.f32 %v4360, %v4369
  %4371 = vset.pattern.permute.xlu0 6
  %4372 = vperm.xlu0 %4371, %v4305
  %v4373 = vpop.permute.xlu0 %4372
  %v4375 = vlaneseq
  %v4376 = vshrl.u32 %v4375, 7
  %v4377 = vsub.s32 6, %v4376
  %v4378 = vrot.slane %v4067, %v4377
  %v4379 = vmul.f32 %v4373, %v4378
  %v4380 = vadd.f32 %v4370, %v4379
  %4381 = vset.pattern.permute.xlu0 7
  %4382 = vperm.xlu0 %4381, %v4305
  %v4383 = vpop.permute.xlu0 %4382
  %v4385 = vlaneseq
  %v4386 = vshrl.u32 %v4385, 7
  %v4387 = vsub.s32 7, %v4386
  %v4388 = vrot.slane %v4067, %v4387
  %v4389 = vmul.f32 %v4383, %v4388
  %v4390 = vadd.f32 %v4380, %v4389
  %v4392 = vcombine.high %v4390, %v4390
  %v4394 = vunpack.c.l.s4 1966171168
  %v4395 = vunpack.c.0.s8 %v4394
  %v4396 = vlaneseq
  %v4397 = vshrl.u32 %v4396, 7
  %v4398 = vsub.s32 %v4395, %v4397
  %v4399 = vrot.slane %v4390, %v4398
  %v4401 = vunpack.c.l.s4 1966171168
  %v4402 = vunpack.c.0.s8 %v4401
  %v4403 = vlaneseq
  %v4404 = vshrl.u32 %v4403, 7
  %v4405 = vsub.s32 %v4402, %v4404
  %v4406 = vrot.slane %v4392, %v4405
  %v4407 = vcombine.high %v4399, %v4399
  %v4408 = vcombine.high %v4406, %v4406
  %v4410 = vunpack.c.l.s4 1966171168
  %v4411 = vunpack.c.0.s8 %v4410
  %v4412 = vlaneseq
  %v4413 = vshrl.u32 %v4412, 7
  %v4414 = vsub.s32 %v4411, %v4413
  %v4415 = vrot.slane %v4399, %v4414
  %v4417 = vunpack.c.l.s4 1966171168
  %v4418 = vunpack.c.0.s8 %v4417
  %v4419 = vlaneseq
  %v4420 = vshrl.u32 %v4419, 7
  %v4421 = vsub.s32 %v4418, %v4420
  %v4422 = vrot.slane %v4406, %v4421
  %v4424 = vunpack.c.l.s4 1966171168
  %v4425 = vunpack.c.0.s8 %v4424
  %v4426 = vlaneseq
  %v4427 = vshrl.u32 %v4426, 7
  %v4428 = vsub.s32 %v4425, %v4427
  %v4429 = vrot.slane %v4407, %v4428
  %v4431 = vunpack.c.l.s4 1966171168
  %v4432 = vunpack.c.0.s8 %v4431
  %v4433 = vlaneseq
  %v4434 = vshrl.u32 %v4433, 7
  %v4435 = vsub.s32 %v4432, %v4434
  %v4436 = vrot.slane %v4408, %v4435
  %v4437 = vcombine.high %v4415, %v4415
  %v4438 = vcombine.high %v4422, %v4422
  %v4439 = vcombine.high %v4429, %v4429
  %v4440 = vcombine.high %v4436, %v4436
  %v4449 = vlaneseq
  %v4450 = vshrl.u32 %v4449, 7
  %v4451 = vsub.s32 0, %v4450
  %v4452 = vrot.slane %v4415, %v4451
  %v4453 = vlaneseq
  %v4454 = vshrl.u32 %v4453, 7
  %v4455 = vsub.s32 0, %v4454
  %v4456 = vrot.slane %v4429, %v4455
  %v4457 = vlaneseq
  %v4458 = vshrl.u32 %v4457, 7
  %v4459 = vsub.s32 0, %v4458
  %v4460 = vrot.slane %v4437, %v4459
  %v4461 = vlaneseq
  %v4462 = vshrl.u32 %v4461, 7
  %v4463 = vsub.s32 0, %v4462
  %v4464 = vrot.slane %v4439, %v4463
  %v4465 = vlaneseq
  %v4466 = vshrl.u32 %v4465, 7
  %v4467 = vsub.s32 0, %v4466
  %v4468 = vrot.slane %v4422, %v4467
  %v4469 = vlaneseq
  %v4470 = vshrl.u32 %v4469, 7
  %v4471 = vsub.s32 0, %v4470
  %v4472 = vrot.slane %v4436, %v4471
  %v4473 = vlaneseq
  %v4474 = vshrl.u32 %v4473, 7
  %v4475 = vsub.s32 0, %v4474
  %v4476 = vrot.slane %v4438, %v4475
  %v4477 = vlaneseq
  %v4478 = vshrl.u32 %v4477, 7
  %v4479 = vsub.s32 0, %v4478
  %v4480 = vrot.slane %v4440, %v4479
  %4481 = vrot.lane.b32.xlu0 %v4452, 124
  %v4482 = vpop.permute.xlu0 %4481
  %4483 = vrot.lane.b32.xlu0 %v4456, 124
  %v4484 = vpop.permute.xlu0 %4483
  %4485 = vrot.lane.b32.xlu0 %v4460, 124
  %v4486 = vpop.permute.xlu0 %4485
  %4487 = vrot.lane.b32.xlu0 %v4464, 124
  %v4488 = vpop.permute.xlu0 %4487
  %4489 = vrot.lane.b32.xlu0 %v4468, 124
  %v4490 = vpop.permute.xlu0 %4489
  %4491 = vrot.lane.b32.xlu0 %v4472, 124
  %v4492 = vpop.permute.xlu0 %4491
  %4493 = vrot.lane.b32.xlu0 %v4476, 124
  %v4494 = vpop.permute.xlu0 %4493
  %4495 = vrot.lane.b32.xlu0 %v4480, 124
  %v4496 = vpop.permute.xlu0 %4495
  %v4505 = vsel %vm365, %v4415, %v4482
  %v4506 = vsel %vm365, %v4429, %v4484
  %v4507 = vsel %vm365, %v4437, %v4486
  %v4508 = vsel %vm365, %v4439, %v4488
  %v4509 = vsel %vm365, %v4422, %v4490
  %v4510 = vsel %vm365, %v4436, %v4492
  %v4511 = vsel %vm365, %v4438, %v4494
  %v4512 = vsel %vm365, %v4440, %v4496
  %v4521 = vcombine.low %v4505, %v4506
  %v4522 = vcombine.low %v4507, %v4508
  %v4524 = vunpack.c.l.s4 1983009808
  %v4525 = vunpack.c.0.s8 %v4524
  %v4526 = vlaneseq
  %v4527 = vshrl.u32 %v4526, 7
  %v4528 = vsub.s32 %v4525, %v4527
  %v4529 = vrot.slane %v4521, %v4528
  %v4531 = vunpack.c.l.s4 1983009808
  %v4532 = vunpack.c.0.s8 %v4531
  %v4533 = vlaneseq
  %v4534 = vshrl.u32 %v4533, 7
  %v4535 = vsub.s32 %v4532, %v4534
  %v4536 = vrot.slane %v4522, %v4535
  %v4537 = vcombine.low %v4529, %v4536
  %v4538 = vcombine.low %v4509, %v4510
  %v4539 = vcombine.low %v4511, %v4512
  %v4541 = vunpack.c.l.s4 1983009808
  %v4542 = vunpack.c.0.s8 %v4541
  %v4543 = vlaneseq
  %v4544 = vshrl.u32 %v4543, 7
  %v4545 = vsub.s32 %v4542, %v4544
  %v4546 = vrot.slane %v4538, %v4545
  %v4548 = vunpack.c.l.s4 1983009808
  %v4549 = vunpack.c.0.s8 %v4548
  %v4550 = vlaneseq
  %v4551 = vshrl.u32 %v4550, 7
  %v4552 = vsub.s32 %v4549, %v4551
  %v4553 = vrot.slane %v4539, %v4552
  %v4554 = vcombine.low %v4546, %v4553
  %v4557 = vadd.f32 %v3944, %v4537
  %v4558 = vadd.f32 %v3945, %v4554
  %v4559 = vld [vmem:[%s1 + $0xca] sm:$0x1]
  %v4560 = vld [vmem:[%s1 + $0xcb] sm:$0x1]
  %v4561 = vsel %vm138, %v4557, 0.0
  %4562 = vadd.xlane.f32.xlu0 %v4561
  %v4563 = vpop.xlane.xlu0 %4562
  %v4564 = vsel %vm138, %v4558, 0.0
  %4565 = vadd.xlane.f32.xlu0 %v4564
  %v4566 = vpop.xlane.xlu0 %4565
  %v4567 = vmul.f32 %v4563, %v640
  %v4568 = vmul.f32 %v4566, %v640
  %v4569 = vsub.f32 %v4557, %v4567
  %v4570 = vsub.f32 %v4558, %v4568
  %v4571 = vmul.f32 %v4569, %v4569
  %v4572 = vmul.f32 %v4570, %v4570
  %v4573 = vsel %vm138, %v4571, 0.0
  %4574 = vadd.xlane.f32.xlu0 %v4573
  %v4575 = vpop.xlane.xlu0 %4574
  %v4576 = vsel %vm138, %v4572, 0.0
  %4577 = vadd.xlane.f32.xlu0 %v4576
  %v4578 = vpop.xlane.xlu0 %4577
  %v4579 = vmul.f32 %v4575, %v640
  %v4580 = vmul.f32 %v4578, %v640
  %v4581 = vadd.f32 %v4579, 1e-05
  %v4582 = vadd.f32 %v4580, 1e-05
  %v4583 = vrsqrt.pop %v4581
  %v4584 = vrsqrt.pop %v4582
  %v4585 = vmul.f32 %v4569, %v4583
  %v4586 = vmul.f32 %v4570, %v4584
  %v4587 = vlaneseq
  %v4588 = vshrl.u32 %v4587, 7
  %v4589 = vsub.s32 0, %v4588
  %v4590 = vrot.slane %v4559, %v4589
  %v4591 = vmul.f32 %v4585, %v4590
  %v4592 = vmul.f32 %v4586, %v4590
  %v4593 = vlaneseq
  %v4594 = vshrl.u32 %v4593, 7
  %v4595 = vsub.s32 0, %v4594
  %v4596 = vrot.slane %v4560, %v4595
  %v4597 = vadd.f32 %v4591, %v4596
  %v4598 = vadd.f32 %v4592, %v4596
  %v4599 = vld [vmem:[%s1 + $0x80] sm:$0xf]
  %v4600 = vld [vmem:[%s1 + $0xc6] sm:$0x1]
  %v4601 = vld [vmem:[%s1 + $0xa0] sm:$0xf]
  %v4602 = vld [vmem:[%s1 + $0xc7] sm:$0x1]
  %v4603 = vlaneseq
  %v4604 = vshrl.u32 %v4603, 7
  %v4605 = vsub.s32 0, %v4604
  %v4606 = vrot.slane %v4600, %v4605
  %v4608 = vsel %vm138, %v4597, 0
  %v4611 = vsel %vm138, %v4598, 0
  %v4614 = vsel %vm371, %v4599, 0
  %4616 = vmatprep.subr.mxu0 0.0
  %4617 = vmatpush1.msra.mxu0 0.0
  %4618 = vmatprep.subr.mxu0 0.0
  %4619 = vmatpush1.msra.mxu0 0.0
  %4620 = vmatprep.subr.mxu0 0.0
  %4621 = vmatpush1.msra.mxu0 0.0
  %4622 = vmatprep.subr.mxu0 0.0
  %4623 = vmatpush1.msra.mxu0 0.0
  %4624 = vmatprep.subr.mxu0 0.0
  %4625 = vmatpush1.msra.mxu0 0.0
  %4626 = vmatprep.subr.mxu0 0.0
  %4627 = vmatpush1.msra.mxu0 0.0
  %4628 = vmatprep.subr.mxu0 0.0
  %4629 = vmatpush1.msra.mxu0 0.0
  %4630 = vmatprep.subr.mxu0 0.0
  %4631 = vmatpush1.msra.mxu0 0.0
  %4632 = vmatprep.subr.mxu0 0.0
  %4633 = vmatpush1.msra.mxu0 0.0
  %4634 = vmatprep.subr.mxu0 0.0
  %4635 = vmatpush1.msra.mxu0 0.0
  %4636 = vmatprep.subr.mxu0 0.0
  %4637 = vmatpush1.msra.mxu0 0.0
  %4638 = vmatprep.subr.mxu0 0.0
  %4639 = vmatpush1.msra.mxu0 0.0
  %4640 = vmatprep.subr.mxu0 0.0
  %4641 = vmatpush1.msra.mxu0 0.0
  %4642 = vmatprep.subr.mxu0 0.0
  %4643 = vmatpush1.msra.mxu0 0.0
  %4644 = vmatprep.subr.mxu0 0.0
  %4645 = vmatpush1.msra.mxu0 0.0
  %4646 = vmatprep.subr.mxu0 0.0
  %4647 = vmatpush1.msra.mxu0 %v4614
  %4648 = vmatprep.subr.mxu0 0.0
  %4649 = vmatpush2.msra.mxu0 0.0
  %4650 = vmatprep.subr.mxu0 0.0
  %4651 = vmatpush2.msra.mxu0 0.0
  %4652 = vmatprep.subr.mxu0 0.0
  %4653 = vmatpush2.msra.mxu0 0.0
  %4654 = vmatprep.subr.mxu0 0.0
  %4655 = vmatpush2.msra.mxu0 0.0
  %4656 = vmatprep.subr.mxu0 0.0
  %4657 = vmatpush2.msra.mxu0 0.0
  %4658 = vmatprep.subr.mxu0 0.0
  %4659 = vmatpush2.msra.mxu0 0.0
  %4660 = vmatprep.subr.mxu0 0.0
  %4661 = vmatpush2.msra.mxu0 0.0
  %4662 = vmatprep.subr.mxu0 0.0
  %4663 = vmatpush2.msra.mxu0 0.0
  %4664 = vmatprep.subr.mxu0 0.0
  %4665 = vmatpush2.msra.mxu0 0.0
  %4666 = vmatprep.subr.mxu0 0.0
  %4667 = vmatpush2.msra.mxu0 0.0
  %4668 = vmatprep.subr.mxu0 0.0
  %4669 = vmatpush2.msra.mxu0 0.0
  %4670 = vmatprep.subr.mxu0 0.0
  %4671 = vmatpush2.msra.mxu0 0.0
  %4672 = vmatprep.subr.mxu0 0.0
  %4673 = vmatpush2.msra.mxu0 0.0
  %4674 = vmatprep.subr.mxu0 0.0
  %4675 = vmatpush2.msra.mxu0 0.0
  %4676 = vmatprep.subr.mxu0 0.0
  %4677 = vmatpush2.msra.mxu0 0.0
  %4678 = vmatprep.subr.mxu0 0.0
  %4679 = vmatpush2.msra.mxu0 0.0
  %4680 = vmatprep.mubr.f32.mxu0 0.0
  %4681 = vmatmul.mubr.f32.gmra.mxu0 %v4608
  %v4682 = vpop.f32.mrf.mxu0
  %v4683 = vadd.f32 %v4606, %v4682
  %v4684 = vpop.f32.mrf.mxu0
  %4685 = vmatprep.mubr.f32.mxu0 0.0
  %4686 = vmatmul.mubr.f32.gmra.mxu0 %v4611
  %v4687 = vpop.f32.mrf.mxu0
  %v4688 = vadd.f32 %v4606, %v4687
  %v4689 = vpop.f32.mrf.mxu0
  %4690 = vdwg.mxu0
  %v4691 = vmax.f32 %v4683, 0.0
  %v4692 = vmax.f32 %v4688, 0.0
  %v4693 = vlaneseq
  %v4694 = vshrl.u32 %v4693, 7
  %v4695 = vsub.s32 0, %v4694
  %v4696 = vrot.slane %v4602, %v4695
  %v4698 = vsel %vm315, %v4691, 0
  %v4701 = vsel %vm315, %v4692, 0
  %v4704 = vsel %vm315, %v4601, 0
  %4706 = vmatprep.subr.mxu0 0.0
  %4707 = vmatpush1.xpose.msra.mxu0 0.0
  %4708 = vmatprep.subr.mxu0 0.0
  %4709 = vmatpush1.xpose.msra.mxu0 0.0
  %4710 = vmatprep.subr.mxu0 0.0
  %4711 = vmatpush1.xpose.msra.mxu0 0.0
  %4712 = vmatprep.subr.mxu0 0.0
  %4713 = vmatpush1.xpose.msra.mxu0 0.0
  %4714 = vmatprep.subr.mxu0 0.0
  %4715 = vmatpush1.xpose.msra.mxu0 0.0
  %4716 = vmatprep.subr.mxu0 0.0
  %4717 = vmatpush1.xpose.msra.mxu0 0.0
  %4718 = vmatprep.subr.mxu0 0.0
  %4719 = vmatpush1.xpose.msra.mxu0 0.0
  %4720 = vmatprep.subr.mxu0 0.0
  %4721 = vmatpush1.xpose.msra.mxu0 0.0
  %4722 = vmatprep.subr.mxu0 0.0
  %4723 = vmatpush1.xpose.msra.mxu0 0.0
  %4724 = vmatprep.subr.mxu0 0.0
  %4725 = vmatpush1.xpose.msra.mxu0 0.0
  %4726 = vmatprep.subr.mxu0 0.0
  %4727 = vmatpush1.xpose.msra.mxu0 0.0
  %4728 = vmatprep.subr.mxu0 0.0
  %4729 = vmatpush1.xpose.msra.mxu0 0.0
  %4730 = vmatprep.subr.mxu0 0.0
  %4731 = vmatpush1.xpose.msra.mxu0 0.0
  %4732 = vmatprep.subr.mxu0 0.0
  %4733 = vmatpush1.xpose.msra.mxu0 0.0
  %4734 = vmatprep.subr.mxu0 0.0
  %4735 = vmatpush1.xpose.msra.mxu0 0.0
  %4736 = vmatprep.subr.mxu0 0.0
  %4737 = vmatpush1.xpose.msra.mxu0 %v4704
  %4738 = vmatprep.subr.mxu0 0.0
  %4739 = vmatpush2.xpose.msra.mxu0 0.0
  %4740 = vmatprep.subr.mxu0 0.0
  %4741 = vmatpush2.xpose.msra.mxu0 0.0
  %4742 = vmatprep.subr.mxu0 0.0
  %4743 = vmatpush2.xpose.msra.mxu0 0.0
  %4744 = vmatprep.subr.mxu0 0.0
  %4745 = vmatpush2.xpose.msra.mxu0 0.0
  %4746 = vmatprep.subr.mxu0 0.0
  %4747 = vmatpush2.xpose.msra.mxu0 0.0
  %4748 = vmatprep.subr.mxu0 0.0
  %4749 = vmatpush2.xpose.msra.mxu0 0.0
  %4750 = vmatprep.subr.mxu0 0.0
  %4751 = vmatpush2.xpose.msra.mxu0 0.0
  %4752 = vmatprep.subr.mxu0 0.0
  %4753 = vmatpush2.xpose.msra.mxu0 0.0
  %4754 = vmatprep.subr.mxu0 0.0
  %4755 = vmatpush2.xpose.msra.mxu0 0.0
  %4756 = vmatprep.subr.mxu0 0.0
  %4757 = vmatpush2.xpose.msra.mxu0 0.0
  %4758 = vmatprep.subr.mxu0 0.0
  %4759 = vmatpush2.xpose.msra.mxu0 0.0
  %4760 = vmatprep.subr.mxu0 0.0
  %4761 = vmatpush2.xpose.msra.mxu0 0.0
  %4762 = vmatprep.subr.mxu0 0.0
  %4763 = vmatpush2.xpose.msra.mxu0 0.0
  %4764 = vmatprep.subr.mxu0 0.0
  %4765 = vmatpush2.xpose.msra.mxu0 0.0
  %4766 = vmatprep.subr.mxu0 0.0
  %4767 = vmatpush2.xpose.msra.mxu0 0.0
  %4768 = vmatprep.subr.mxu0 0.0
  %4769 = vmatpush2.xpose.msra.mxu0 0.0
  %4770 = vmatprep.mubr.f32.mxu0 0.0
  %4771 = vmatmul.mubr.f32.gmra.mxu0 %v4698
  %v4772 = vpop.f32.mrf.mxu0
  %v4773 = vadd.f32 %v4696, %v4772
  %v4774 = vpop.f32.mrf.mxu0
  %4775 = vmatprep.mubr.f32.mxu0 0.0
  %4776 = vmatmul.mubr.f32.gmra.mxu0 %v4701
  %v4777 = vpop.f32.mrf.mxu0
  %v4778 = vadd.f32 %v4696, %v4777
  %v4779 = vpop.f32.mrf.mxu0
  %4780 = vdwg.mxu0
  %v4781 = vadd.f32 %v4597, %v4773
  %v4782 = vadd.f32 %v4598, %v4778
  %v4783 = vld [vmem:[%s1 + $0xcc] sm:$0x1]
  %v4784 = vld [vmem:[%s1 + $0xcd] sm:$0x1]
  %v4785 = vsel %vm138, %v4781, 0.0
  %4786 = vadd.xlane.f32.xlu0 %v4785
  %v4787 = vpop.xlane.xlu0 %4786
  %v4788 = vsel %vm138, %v4782, 0.0
  %4789 = vadd.xlane.f32.xlu0 %v4788
  %v4790 = vpop.xlane.xlu0 %4789
  %v4791 = vmul.f32 %v4787, %v640
  %v4792 = vmul.f32 %v4790, %v640
  %v4793 = vsub.f32 %v4781, %v4791
  %v4794 = vsub.f32 %v4782, %v4792
  %v4795 = vmul.f32 %v4793, %v4793
  %v4796 = vmul.f32 %v4794, %v4794
  %v4797 = vsel %vm138, %v4795, 0.0
  %4798 = vadd.xlane.f32.xlu0 %v4797
  %v4799 = vpop.xlane.xlu0 %4798
  %v4800 = vsel %vm138, %v4796, 0.0
  %4801 = vadd.xlane.f32.xlu0 %v4800
  %v4802 = vpop.xlane.xlu0 %4801
  %v4803 = vmul.f32 %v4799, %v640
  %v4804 = vmul.f32 %v4802, %v640
  %v4805 = vadd.f32 %v4803, 1e-05
  %v4806 = vadd.f32 %v4804, 1e-05
  %v4807 = vrsqrt.pop %v4805
  %v4808 = vrsqrt.pop %v4806
  %v4809 = vmul.f32 %v4793, %v4807
  %v4810 = vmul.f32 %v4794, %v4808
  %v4811 = vlaneseq
  %v4812 = vshrl.u32 %v4811, 7
  %v4813 = vsub.s32 0, %v4812
  %v4814 = vrot.slane %v4783, %v4813
  %v4815 = vmul.f32 %v4809, %v4814
  %v4816 = vmul.f32 %v4810, %v4814
  %v4817 = vlaneseq
  %v4818 = vshrl.u32 %v4817, 7
  %v4819 = vsub.s32 0, %v4818
  %v4820 = vrot.slane %v4784, %v4819
  %v4821 = vadd.f32 %v4815, %v4820
  %v4822 = vadd.f32 %v4816, %v4820
  %v4823 = vld [vmem:[%s1 + $0xce] sm:$0x1]
  %v4824 = vld [vmem:[%s1 + $0xcf] sm:$0x1]
  %v4825 = vsel %vm138, %v4821, 0.0
  %4826 = vadd.xlane.f32.xlu0 %v4825
  %v4827 = vpop.xlane.xlu0 %4826
  %v4828 = vsel %vm138, %v4822, 0.0
  %4829 = vadd.xlane.f32.xlu0 %v4828
  %v4830 = vpop.xlane.xlu0 %4829
  %v4831 = vmul.f32 %v4827, %v640
  %v4832 = vmul.f32 %v4830, %v640
  %v4833 = vsub.f32 %v4821, %v4831
  %v4834 = vsub.f32 %v4822, %v4832
  %v4835 = vmul.f32 %v4833, %v4833
  %v4836 = vmul.f32 %v4834, %v4834
  %v4837 = vsel %vm138, %v4835, 0.0
  %4838 = vadd.xlane.f32.xlu0 %v4837
  %v4839 = vpop.xlane.xlu0 %4838
  %v4840 = vsel %vm138, %v4836, 0.0
  %4841 = vadd.xlane.f32.xlu0 %v4840
  %v4842 = vpop.xlane.xlu0 %4841
  %v4843 = vmul.f32 %v4839, %v640
  %v4844 = vmul.f32 %v4842, %v640
  %v4845 = vadd.f32 %v4843, 1e-05
  %v4846 = vadd.f32 %v4844, 1e-05
  %v4847 = vrsqrt.pop %v4845
  %v4848 = vrsqrt.pop %v4846
  %v4849 = vmul.f32 %v4833, %v4847
  %v4850 = vmul.f32 %v4834, %v4848
  %v4851 = vlaneseq
  %v4852 = vshrl.u32 %v4851, 7
  %v4853 = vsub.s32 0, %v4852
  %v4854 = vrot.slane %v4823, %v4853
  %v4855 = vmul.f32 %v4849, %v4854
  %v4856 = vmul.f32 %v4850, %v4854
  %v4857 = vlaneseq
  %v4858 = vshrl.u32 %v4857, 7
  %v4859 = vsub.s32 0, %v4858
  %v4860 = vrot.slane %v4824, %v4859
  %v4861 = vadd.f32 %v4855, %v4860
  %v4862 = vadd.f32 %v4856, %v4860
  %v4863 = vld [vmem:[%s1 + $0x60] sm:$0xf]
  %v4864 = vld [vmem:[%s1 + $0xd0] sm:$0x1]
  %4865 = vset.pattern.permute.xlu0 0
  %4866 = vperm.xlu0 %4865, %v11
  %v4867 = vpop.permute.xlu0 %4866
  %4869 = vset.pattern.permute.xlu0 0
  %4870 = vperm.xlu0 %4869, %v12
  %v4871 = vpop.permute.xlu0 %4870
  %v4873 = vlaneseq
  %v4874 = vshrl.u32 %v4873, 7
  %v4875 = vsub.s32 0, %v4874
  %v4876 = vrot.slane %v4863, %v4875
  %v4877 = vmul.f32 %v4867, %v4876
  %v4878 = vmul.f32 %v4871, %v4876
  %v4879 = vlaneseq
  %v4880 = vshrl.u32 %v4879, 7
  %v4881 = vsub.s32 0, %v4880
  %v4882 = vrot.slane %v4864, %v4881
  %v4883 = vadd.f32 %v4877, %v4882
  %v4884 = vadd.f32 %v4878, %v4882
  %4885 = vset.pattern.permute.xlu0 1
  %4886 = vperm.xlu0 %4885, %v11
  %v4887 = vpop.permute.xlu0 %4886
  %4889 = vset.pattern.permute.xlu0 1
  %4890 = vperm.xlu0 %4889, %v12
  %v4891 = vpop.permute.xlu0 %4890
  %v4893 = vlaneseq
  %v4894 = vshrl.u32 %v4893, 7
  %v4895 = vsub.s32 1, %v4894
  %v4896 = vrot.slane %v4863, %v4895
  %v4897 = vmul.f32 %v4887, %v4896
  %v4898 = vmul.f32 %v4891, %v4896
  %v4899 = vadd.f32 %v4883, %v4897
  %v4900 = vadd.f32 %v4884, %v4898
  %4901 = vset.pattern.permute.xlu0 2
  %4902 = vperm.xlu0 %4901, %v11
  %v4903 = vpop.permute.xlu0 %4902
  %4905 = vset.pattern.permute.xlu0 2
  %4906 = vperm.xlu0 %4905, %v12
  %v4907 = vpop.permute.xlu0 %4906
  %v4909 = vlaneseq
  %v4910 = vshrl.u32 %v4909, 7
  %v4911 = vsub.s32 2, %v4910
  %v4912 = vrot.slane %v4863, %v4911
  %v4913 = vmul.f32 %v4903, %v4912
  %v4914 = vmul.f32 %v4907, %v4912
  %v4915 = vadd.f32 %v4899, %v4913
  %v4916 = vadd.f32 %v4900, %v4914
  %4917 = vset.pattern.permute.xlu0 3
  %4918 = vperm.xlu0 %4917, %v11
  %v4919 = vpop.permute.xlu0 %4918
  %4921 = vset.pattern.permute.xlu0 3
  %4922 = vperm.xlu0 %4921, %v12
  %v4923 = vpop.permute.xlu0 %4922
  %v4925 = vlaneseq
  %v4926 = vshrl.u32 %v4925, 7
  %v4927 = vsub.s32 3, %v4926
  %v4928 = vrot.slane %v4863, %v4927
  %v4929 = vmul.f32 %v4919, %v4928
  %v4930 = vmul.f32 %v4923, %v4928
  %v4931 = vadd.f32 %v4915, %v4929
  %v4932 = vadd.f32 %v4916, %v4930
  %4935 = vrot.lane.b32.xlu0 %v4931, 4
  %v4936 = vpop.permute.xlu0 %4935
  %4937 = vrot.lane.b32.xlu0 %v4932, 4
  %v4938 = vpop.permute.xlu0 %4937
  %v4941 = vsel %vm138, %v4861, %v4936
  %v4942 = vsel %vm138, %v4862, %v4938
  %4943 = vst.msk [vmem:[%s2] sm:$0xff] %vm251, %v4941
  %4944 = vst.msk [vmem:[%s2 + $0x8] sm:$0xff] %vm251, %v4942
  // Predicated region
  $region10: #{transformer_model_forward.1} parent=0 // pred_check
    _
  $region11: #{transformer_model_forward.1} parent=0 // pred_check_branch
    %4946 = sbr.rel (0) target = $region13
  $region12: #{transformer_model_forward.1} parent=0 // pred_region
    _
  $region13: #{transformer_model_forward.1} parent=0 // pred_fallthru
    _
  // Predicated region
  $region14: #{transformer_model_forward.1} parent=0 // pred_check
    _
  $region15: #{transformer_model_forward.1} parent=0 // pred_check_branch
    %4948 = sbr.rel (0) target = $region17
  $region16: #{transformer_model_forward.1} parent=0 // pred_region
    _
  $region17: #{transformer_model_forward.1} parent=0 // pred_fallthru
    _

</llo_original>
